<compile_context>
chip_gen: v7x
topology: tpu7x:2x2x1
jax: 0.10.0
libtpu: 0.0.40
codegen_flags: <defaults>
</compile_context>

<pallas_src>
import jax
import jax.numpy as jnp
from jax import lax
from jax.experimental import pallas as pl
from jax.experimental.pallas import tpu as pltpu


# -----------------------------------------------------------------------------
# BlockSpec helpers
# -----------------------------------------------------------------------------
def _const_spec(shape, single_buffer):
    """Spec for a grid-invariant operand (weights / scales / biases)."""
    rank = len(shape)
    idx = lambda n: (0,) * rank
    if single_buffer:
        try:
            # Index map is constant across the grid -> double buffering buys
            # nothing; single-buffer to halve the VMEM held by big weights.
            return pl.BlockSpec(shape, idx, pipeline_mode=pl.Buffered(1))
        except (TypeError, AttributeError):
            pass
    return pl.BlockSpec(shape, idx)


# -----------------------------------------------------------------------------
# Dense (stride-1) 3x3 "same" conv on a flattened (H*W, Cin) activation
# -----------------------------------------------------------------------------
def _conv3x3_dense(a_f32, w_ref, H, W, pack9, x_is_first, x_is_last):
    """pack9=True : one MXU dot with K = 9*Cin     (w_ref: (9*Cin, Cout)).
       pack9=False: 9 dots with K = Cin, no lane-axis concatenation
                    (w_ref: (9, Cin, Cout)).
       Returns (H*W, Cout) f32 (stride-1, padding-1 conv, no bias)."""
    HW, Cin = a_f32.shape
    zero = jnp.zeros_like(a_f32)
    # dx taps via XLU roll + x-boundary masks (masks hoisted by the caller).
    a_m1 = jnp.where(x_is_first, zero, pltpu.roll(a_f32, 1, 0))       # x - 1
    a_p1 = jnp.where(x_is_last, zero, pltpu.roll(a_f32, HW - 1, 0))   # x + 1

    if pack9:
        # Narrow channels: pack all 9 taps along K -> one deep MXU contraction.
        a3 = jnp.concatenate([a_m1, a_f32, a_p1], axis=1).astype(jnp.bfloat16)
        zrow = jnp.zeros((W, 3 * Cin), jnp.bfloat16)
        apad = jnp.concatenate([zrow, a3, zrow], axis=0)    # ((H+2)*W, 3*Cin)
        a9 = jnp.concatenate(
            [apad[0:HW], apad[W:W + HW], apad[2 * W:2 * W + HW]], axis=1)
        return jnp.dot(a9, w_ref[...], preferred_element_type=jnp.float32)

    # Wide channels: skip lane concatenation; 9 dots accumulated in f32.
    zrow = jnp.zeros((W, Cin), jnp.bfloat16)
    acc = None
    for dx, a in enumerate((a_m1, a_f32, a_p1)):
        apad = jnp.concatenate([zrow, a.astype(jnp.bfloat16), zrow], axis=0)
        for dy in range(3):
            tap = apad[dy * W: dy * W + HW]                 # sublane-aligned
            d = jnp.dot(tap, w_ref[dy * 3 + dx],
                        preferred_element_type=jnp.float32)
            acc = d if acc is None else acc + d
    return acc


# -----------------------------------------------------------------------------
# Strided (stride > 1) 3x3 conv: taps gathered only at output positions
# -----------------------------------------------------------------------------
def _conv3x3_strided(a_f32, w_ref, tap_scr, H, W, s, x_is_first, x_is_last):
    """w_ref: (3, 3*Cin, Cout) (dy axis, dx packed along K).
       tap_scr: VMEM scratch ((H+1)*W, 3*Cin) bf16; rows [0, W) pre-zeroed.
       Returns (Ho*Wo, Cout) f32."""
    HW, Cin = a_f32.shape
    Ho, Wo = H // s, W // s
    zero = jnp.zeros_like(a_f32)
    a_m1 = jnp.where(x_is_first, zero, pltpu.roll(a_f32, 1, 0))
    a_p1 = jnp.where(x_is_last, zero, pltpu.roll(a_f32, HW - 1, 0))
    a3 = jnp.concatenate([a_m1, a_f32, a_p1], axis=1).astype(jnp.bfloat16)

    # Scratch rows [0, W)       : zeros (image row y = -1, top padding)
    #         rows [W, (H+1)*W) : a3    (image rows 0 .. H-1)
    tap_scr[W:(H + 1) * W, :] = a3

    acc = None
    for dy in range(3):
        # Output (yo, xo) reads padded row (yo*s + dy), column xo*s; gather it
        # with strided sublane reads (one per output image-row).
        rows = [tap_scr[pl.ds((yo * s + dy) * W, Wo, stride=s), :]
                for yo in range(Ho)]
        tap = jnp.concatenate(rows, axis=0)                 # (Ho*Wo, 3*Cin)
        d = jnp.dot(tap, w_ref[dy], preferred_element_type=jnp.float32)
        acc = d if acc is None else acc + d
    return acc


def _gather_strided_rows(src_scr, H, W, s):
    """Gather src_scr (H*W, C) at positions (yo*s, xo*s) -> (Ho*Wo, C)."""
    Ho, Wo = H // s, W // s
    rows = [src_scr[pl.ds((yo * s) * W, Wo, stride=s), :] for yo in range(Ho)]
    return jnp.concatenate(rows, axis=0)


# -----------------------------------------------------------------------------
# Fused wide_basic kernel (conv1 + conv2 + shortcut in one pallas_call)
# -----------------------------------------------------------------------------
def _make_wide_basic_kernel(H, W, stride, has_proj, pack9_1, pack9_2):
    HW = H * W
    Ho = (H - 1) // stride + 1
    Wo = (W - 1) // stride + 1

    def kernel(x_ref, s1_ref, t1_ref, w1_ref, s2_ref, t2_ref, w2_ref,
               bo_ref, *rest):
        rest = list(rest)
        ws_ref = rest.pop(0) if has_proj else None
        o_ref = rest.pop(0)
        if stride > 1:
            tap_scr, x_scr = rest

        Cin = x_ref.shape[3]
        planes = o_ref.shape[3]

        # Input tile -> (H*W, Cin) f32, channels on the lane axis.
        x = x_ref[...].reshape(HW, Cin).astype(jnp.float32)

        # x-boundary masks: computed once, reused by both convs.
        col = lax.broadcasted_iota(jnp.int32, (HW, 1), 0) % W
        x_is_first = col == 0
        x_is_last = col == (W - 1)

        # BN1 (folded) + ReLU
        a1 = jnp.maximum(x * s1_ref[...] + t1_ref[...], 0.0)

        # conv1 (3x3, stride 1, pad 1); its bias is folded into t2.
        h1 = _conv3x3_dense(a1, w1_ref, H, W, pack9_1, x_is_first, x_is_last)
        # dropout: eval-mode identity.
        # TODO(synk): training-mode dropout masking (pltpu.prng_*) not implemented.

        # BN2 (folded, includes conv1 bias) + ReLU
        a2 = jnp.maximum(h1 * s2_ref[...] + t2_ref[...], 0.0)

        if stride == 1:
            h2 = _conv3x3_dense(a2, w2_ref, H, W, pack9_2,
                                x_is_first, x_is_last)
            if has_proj:
                sc = jnp.dot(x.astype(jnp.bfloat16), ws_ref[...],
                             preferred_element_type=jnp.float32)
            else:
                sc = x  # identity shortcut
        else:
            # Top zero-padding row of the tap scratch never changes: fill once.
            @pl.when(pl.program_id(0) == 0)
            def _zero_pad_row():
                tap_scr[0:W, :] = jnp.zeros((W, tap_scr.shape[1]),
                                            tap_scr.dtype)

            h2 = _conv3x3_strided(a2, w2_ref, tap_scr, H, W, stride,
                                  x_is_first, x_is_last)

            # 1x1 projection shortcut, gathered only at strided positions.
            x_scr[...] = x.astype(jnp.bfloat16)
            x_s = _gather_strided_rows(x_scr, H, W, stride)
            sc = jnp.dot(x_s, ws_ref[...], preferred_element_type=jnp.float32)

        # bo = conv2 bias (+ shortcut bias when projecting), added once.
        out = h2 + sc + bo_ref[...]
        o_ref[...] = out.reshape(1, Ho, Wo, planes).astype(o_ref.dtype)

    return kernel


# -----------------------------------------------------------------------------
# Parameter init (deterministic, synthetic)
# -----------------------------------------------------------------------------
def init_wide_basic_params(key, in_planes, planes, stride):
    ks = jax.random.split(key, 12)
    p = {}
    p["bn1_gamma"] = 1.0 + 0.1 * jax.random.normal(ks[0], (in_planes,), jnp.float32)
    p["bn1_beta"] = 0.1 * jax.random.normal(ks[1], (in_planes,), jnp.float32)
    p["bn1_mean"] = 0.1 * jax.random.normal(ks[2], (in_planes,), jnp.float32)
    p["bn1_var"] = jnp.abs(jax.random.normal(ks[3], (in_planes,), jnp.float32)) + 0.5
    std1 = 1.0 / jnp.sqrt(9.0 * in_planes)
    p["conv1_w"] = std1 * jax.random.normal(ks[4], (9, in_planes, planes), jnp.float32)
    p["conv1_b"] = 0.05 * jax.random.normal(ks[5], (planes,), jnp.float32)
    p["bn2_gamma"] = 1.0 + 0.1 * jax.random.normal(ks[6], (planes,), jnp.float32)
    p["bn2_beta"] = 0.1 * jax.random.normal(ks[7], (planes,), jnp.float32)
    p["bn2_mean"] = 0.1 * jax.random.normal(ks[8], (planes,), jnp.float32)
    p["bn2_var"] = jnp.abs(jax.random.normal(ks[9], (planes,), jnp.float32)) + 0.5
    std2 = 1.0 / jnp.sqrt(9.0 * planes)
    p["conv2_w"] = std2 * jax.random.normal(ks[10], (9, planes, planes), jnp.float32)
    p["conv2_b"] = 0.05 * jax.random.normal(ks[11], (planes,), jnp.float32)
    if stride != 1 or in_planes != planes:
        ksc = jax.random.split(ks[0], 2)
        stds = 1.0 / jnp.sqrt(float(in_planes))
        p["sc_w"] = stds * jax.random.normal(ksc[0], (in_planes, planes), jnp.float32)
        p["sc_b"] = 0.05 * jax.random.normal(ksc[1], (planes,), jnp.float32)
    return p


# -----------------------------------------------------------------------------
# VMEM budget estimate (per grid step) -> explicit vmem_limit_bytes
# -----------------------------------------------------------------------------
def _pick_vmem_limit(H, W, cin, cout, stride):
    HW = H * W
    step = 0
    step += 2 * HW * cin * 4                                  # input block x2
    step += 2 * (HW // (stride * stride)) * cout * 4          # output block x2
    step += (9 * cin * cout + 9 * cout * cout + cin * cout) * 2   # bf16 weights
    step += 6 * HW * max(cin, cout) * 4                       # f32 temporaries
    step += 12 * HW * max(cin, cout) * 2                      # bf16 tap temporaries
    if stride > 1:
        step += (H + 1) * W * 3 * cout * 2 + HW * cin * 2     # scratches
    try:
        cap = int(pltpu.get_tpu_info().vmem_capacity_bytes)
    except Exception:
        cap = 64 * 1024 * 1024
    return int(min(max(2 * step, 32 * 1024 * 1024), int(0.85 * cap)))


def _pack_dense_weight(w9, pack9):
    # w9: (9, Cin, Cout), index on axis 0 = kh*3 + kw.
    if pack9:
        return w9.reshape(9 * w9.shape[1], w9.shape[2]).astype(jnp.bfloat16)
    return w9.astype(jnp.bfloat16)


# -----------------------------------------------------------------------------
# Forward wrappers
# -----------------------------------------------------------------------------
def wide_basic_forward_nhwc(x_nhwc, params, in_planes, planes, stride=1,
                            eps=1e-5, out_dtype=None):
    """Canonical NHWC entry point (no layout transposes around the kernel)."""
    N, H, W, Cin = x_nhwc.shape
    assert Cin == in_planes
    assert W % 8 == 0, "W must be a multiple of 8 (sublane-aligned row slices)"
    if stride != 1:
        assert H % stride == 0 and W % stride == 0, \
            "stride must divide H and W for the strided-tap gather"
    Ho = (H - 1) // stride + 1
    Wo = (W - 1) // stride + 1
    has_proj = (stride != 1) or (in_planes != planes)
    out_dtype = x_nhwc.dtype if out_dtype is None else out_dtype

    # Fold BN (inference) into per-channel scale/shift; fold conv1 bias into
    # the BN2 shift and the shortcut bias into the conv2 bias (exact algebra).
    s1 = params["bn1_gamma"] / jnp.sqrt(params["bn1_var"] + eps)
    t1 = params["bn1_beta"] - params["bn1_mean"] * s1
    s2 = params["bn2_gamma"] / jnp.sqrt(params["bn2_var"] + eps)
    t2 = params["bn2_beta"] - params["bn2_mean"] * s2
    t2 = t2 + s2 * params["conv1_b"]
    bo = params["conv2_b"] + (params["sc_b"] if has_proj else 0.0)

    # MXU-depth packing decision (conservative all-chip threshold).
    pack9_1 = 3 * in_planes <= 128
    pack9_2 = (stride == 1) and (3 * planes <= 128)

    w1 = _pack_dense_weight(params["conv1_w"], pack9_1)
    if stride == 1:
        w2 = _pack_dense_weight(params["conv2_w"], pack9_2)
    else:
        w2 = params["conv2_w"].reshape(3, 3 * planes, planes).astype(jnp.bfloat16)

    args = [x_nhwc,
            s1[None].astype(jnp.float32), t1[None].astype(jnp.float32), w1,
            s2[None].astype(jnp.float32), t2[None].astype(jnp.float32), w2,
            bo[None].astype(jnp.float32)]
    if has_proj:
        args.append(params["sc_w"].astype(jnp.bfloat16))

    scratch_shapes = []
    if stride > 1:
        scratch_shapes = [
            pltpu.VMEM(((H + 1) * W, 3 * planes), jnp.bfloat16),  # conv2 taps
            pltpu.VMEM((H * W, in_planes), jnp.bfloat16),         # shortcut x
        ]

    kernel = _make_wide_basic_kernel(H, W, stride, has_proj, pack9_1, pack9_2)

    flops = N * 2 * H * W * 9 * in_planes * planes            # conv1
    flops += N * 2 * Ho * Wo * 9 * planes * planes            # conv2 (strided rows only)
    if has_proj:
        flops += N * 2 * Ho * Wo * in_planes * planes
    bytes_accessed = (int(x_nhwc.size) * x_nhwc.dtype.itemsize
                      + N * Ho * Wo * planes * jnp.dtype(out_dtype).itemsize
                      + sum(int(a.size) * a.dtype.itemsize for a in args[1:]))

    vmem_limit = _pick_vmem_limit(H, W, in_planes, planes, stride)

    def build(single_buffer):
        in_specs = [pl.BlockSpec((1, H, W, in_planes), lambda n: (n, 0, 0, 0))]
        in_specs += [_const_spec(tuple(a.shape), single_buffer) for a in args[1:]]
        return pl.pallas_call(
            kernel,
            out_shape=jax.ShapeDtypeStruct((N, Ho, Wo, planes), out_dtype),
            grid=(N,),
            in_specs=in_specs,
            out_specs=pl.BlockSpec((1, Ho, Wo, planes), lambda n: (n, 0, 0, 0)),
            scratch_shapes=scratch_shapes,
            compiler_params=pltpu.CompilerParams(
                dimension_semantics=("parallel",),
                vmem_limit_bytes=vmem_limit),
            cost_estimate=pl.CostEstimate(flops=int(flops), transcendentals=0,
                                          bytes_accessed=int(bytes_accessed)),
        )

    try:
        return build(single_buffer=True)(*args)
    except Exception:
        # Fallback if this jax build rejects Buffered(1) grid-invariant specs.
        return build(single_buffer=False)(*args)


def wide_basic_forward(x_nchw, params, in_planes, planes, stride=1, eps=1e-5):
    """NCHW adapter (PyTorch layout parity). Prefer the NHWC entry point when
    chaining blocks so activations never pay HBM transpose round-trips."""
    x = jnp.transpose(x_nchw, (0, 2, 3, 1))
    out = wide_basic_forward_nhwc(x, params, in_planes, planes, stride, eps,
                                  out_dtype=jnp.float32)
    return jnp.transpose(out, (0, 3, 1, 2))


# -----------------------------------------------------------------------------
# Pure-JAX reference (lax.conv) for correctness checking
# -----------------------------------------------------------------------------
def _reference_forward(x, p, in_planes, planes, stride, eps=1e-5):
    def bn(z, pre):
        g, b = p[pre + "_gamma"], p[pre + "_beta"]
        m, v = p[pre + "_mean"], p[pre + "_var"]
        inv = 1.0 / jnp.sqrt(v + eps)
        return ((z - m[None, :, None, None]) * inv[None, :, None, None]
                * g[None, :, None, None] + b[None, :, None, None])

    def conv3(z, w9, b, s):
        w = w9.reshape(3, 3, w9.shape[1], w9.shape[2])
        y = jax.lax.conv_general_dilated(
            z, w, (s, s), ((1, 1), (1, 1)),
            dimension_numbers=("NCHW", "HWIO", "NCHW"))
        return y + b[None, :, None, None]

    out = conv3(jax.nn.relu(bn(x, "bn1")), p["conv1_w"], p["conv1_b"], 1)
    out = conv3(jax.nn.relu(bn(out, "bn2")), p["conv2_w"], p["conv2_b"], stride)
    if stride != 1 or in_planes != planes:
        w = p["sc_w"].reshape(1, 1, in_planes, planes)
        sc = jax.lax.conv_general_dilated(
            x, w, (stride, stride), ((0, 0), (0, 0)),
            dimension_numbers=("NCHW", "HWIO", "NCHW"))
        sc = sc + p["sc_b"][None, :, None, None]
    else:
        sc = x
    return out + sc


if __name__ == "__main__":
    key = jax.random.PRNGKey(0)
    N, H, W = 2, 16, 16

    configs = [
        # (in_planes, planes, stride)
        (4, 8, 1),    # projection shortcut (channel change), packed-9 convs
        (8, 8, 1),    # identity shortcut
        (4, 8, 2),    # strided block: strided-tap conv2 + strided 1x1 shortcut
        (48, 48, 1),  # wider channels: no-lane-concat 9-dot conv path
    ]

    for idx, (in_planes, planes, stride) in enumerate(configs):
        kx, kp = jax.random.split(jax.random.fold_in(key, idx))
        x = jax.random.normal(kx, (N, in_planes, H, W), jnp.float32)
        params = init_wide_basic_params(kp, in_planes, planes, stride)

        out = wide_basic_forward(x, params, in_planes, planes, stride=stride)
        out = jax.block_until_ready(out)

        Ho = (H - 1) // stride + 1
        assert out.shape == (N, planes, Ho, Ho), out.shape

        ref = _reference_forward(x, params, in_planes, planes, stride)
        # bf16 MXU operands -> slightly relaxed tolerance vs the f32 reference.
        err = float(jnp.max(jnp.abs(out - ref)))
        assert jnp.allclose(out, ref, atol=5e-2, rtol=5e-2), (
            "mismatch vs reference", idx, err)

    print("KERNEL_OK")
</pallas_src>

<mosaic_0001>
module attributes {stable_mosaic.version = 11 : i64} {
  func.func @kernel(%arg0: i32, %arg1: memref<1x16x16x4xf32, #tpu.memory_space<vmem>>, %arg2: memref<1x4xf32, #tpu.memory_space<vmem>>, %arg3: memref<1x4xf32, #tpu.memory_space<vmem>>, %arg4: memref<36x8xbf16, #tpu.memory_space<vmem>>, %arg5: memref<1x8xf32, #tpu.memory_space<vmem>>, %arg6: memref<1x8xf32, #tpu.memory_space<vmem>>, %arg7: memref<72x8xbf16, #tpu.memory_space<vmem>>, %arg8: memref<1x8xf32, #tpu.memory_space<vmem>>, %arg9: memref<4x8xbf16, #tpu.memory_space<vmem>>, %arg10: memref<1x16x16x8xf32, #tpu.memory_space<vmem>>) attributes {dimension_semantics = [#tpu.dimension_semantics<parallel>], iteration_bounds = array<i64: 2>, scalar_prefetch = 0 : i64, scratch_operands = 0 : i64, tpu.core_type = #tpu.core_type<tc>, window_params = [{transform_indices = @transform_0, window_bounds = array<i64: 1, 16, 16, 4>}, {pipeline_mode = #tpu.pipeline_mode<synchronous>, transform_indices = @transform_1, window_bounds = array<i64: 1, 4>}, {pipeline_mode = #tpu.pipeline_mode<synchronous>, transform_indices = @transform_2, window_bounds = array<i64: 1, 4>}, {pipeline_mode = #tpu.pipeline_mode<synchronous>, transform_indices = @transform_3, window_bounds = array<i64: 36, 8>}, {pipeline_mode = #tpu.pipeline_mode<synchronous>, transform_indices = @transform_4, window_bounds = array<i64: 1, 8>}, {pipeline_mode = #tpu.pipeline_mode<synchronous>, transform_indices = @transform_5, window_bounds = array<i64: 1, 8>}, {pipeline_mode = #tpu.pipeline_mode<synchronous>, transform_indices = @transform_6, window_bounds = array<i64: 72, 8>}, {pipeline_mode = #tpu.pipeline_mode<synchronous>, transform_indices = @transform_7, window_bounds = array<i64: 1, 8>}, {pipeline_mode = #tpu.pipeline_mode<synchronous>, transform_indices = @transform_8, window_bounds = array<i64: 4, 8>}, {transform_indices = @transform_9, window_bounds = array<i64: 1, 16, 16, 8>}]} {
    %c0 = arith.constant 0 : index
    %c0_0 = arith.constant 0 : index
    %c0_1 = arith.constant 0 : index
    %c0_2 = arith.constant 0 : index
    %0 = vector.load %arg1[%c0, %c0_0, %c0_1, %c0_2] : memref<1x16x16x4xf32, #tpu.memory_space<vmem>>, vector<1x16x16x4xf32>
    %1 = vector.shape_cast %0 : vector<1x16x16x4xf32> to vector<256x4xf32>
    %2 = tpu.iota {dimensions = array<i32: 0>} : vector<256x1xi32>
    %c16_i32 = arith.constant 16 : i32
    %c0_i32 = arith.constant 0 : i32
    %3 = arith.cmpi eq, %c16_i32, %c0_i32 : i32
    %c1_i32 = arith.constant 1 : i32
    %4 = arith.select %3, %c1_i32, %c16_i32 : i32
    %5 = vector.broadcast %4 : i32 to vector<256x1xi32>
    %6 = arith.remsi %2, %5 : vector<256x1xi32>
    %c0_i32_3 = arith.constant 0 : i32
    %7 = vector.broadcast %c0_i32_3 : i32 to vector<256x1xi32>
    %8 = arith.cmpi ne, %6, %7 : vector<256x1xi32>
    %c0_i32_4 = arith.constant 0 : i32
    %9 = vector.broadcast %c0_i32_4 : i32 to vector<256x1xi32>
    %10 = arith.cmpi slt, %6, %9 : vector<256x1xi32>
    %c0_i32_5 = arith.constant 0 : i32
    %11 = arith.cmpi slt, %4, %c0_i32_5 : i32
    %12 = vector.broadcast %11 : i1 to vector<256x1xi1>
    %13 = vector.broadcast %12 : vector<256x1xi1> to vector<256x1xi1>
    %14 = arith.xori %10, %13 : vector<256x1xi1>
    %15 = arith.andi %14, %8 : vector<256x1xi1>
    %16 = vector.broadcast %4 : i32 to vector<256x1xi32>
    %17 = arith.addi %6, %16 : vector<256x1xi32>
    %18 = arith.select %15, %17, %6 : vector<256x1xi1>, vector<256x1xi32>
    %c0_i32_6 = arith.constant 0 : i32
    %19 = vector.broadcast %c0_i32_6 : i32 to vector<256x1xi32>
    %20 = arith.cmpi eq, %18, %19 : vector<256x1xi32>
    %c15_i32 = arith.constant 15 : i32
    %21 = vector.broadcast %c15_i32 : i32 to vector<256x1xi32>
    %22 = arith.cmpi eq, %18, %21 : vector<256x1xi32>
    %c0_7 = arith.constant 0 : index
    %c0_8 = arith.constant 0 : index
    %23 = vector.load %arg2[%c0_7, %c0_8] : memref<1x4xf32, #tpu.memory_space<vmem>>, vector<1x4xf32>
    %24 = vector.broadcast %23 : vector<1x4xf32> to vector<256x4xf32>
    %25 = arith.mulf %1, %24 : vector<256x4xf32>
    %c0_9 = arith.constant 0 : index
    %c0_10 = arith.constant 0 : index
    %26 = vector.load %arg3[%c0_9, %c0_10] : memref<1x4xf32, #tpu.memory_space<vmem>>, vector<1x4xf32>
    %27 = vector.broadcast %26 : vector<1x4xf32> to vector<256x4xf32>
    %28 = arith.addf %25, %27 : vector<256x4xf32>
    %cst = arith.constant 0.000000e+00 : f32
    %29 = vector.broadcast %cst : f32 to vector<256x4xf32>
    %30 = arith.maximumf %28, %29 : vector<256x4xf32>
    %cst_11 = arith.constant 0.000000e+00 : f32
    %31 = vector.broadcast %cst_11 : f32 to vector<256x4xf32>
    %c1_i32_12 = arith.constant 1 : i32
    %32 = tpu.dynamic_rotate %30 by %c1_i32_12 dim 0 : vector<256x4xf32>, i32 -> vector<256x4xf32>
    %33 = vector.shape_cast %20 : vector<256x1xi1> to vector<256x1xi1>
    %34 = vector.broadcast %33 : vector<256x1xi1> to vector<256x4xi1>
    %35 = arith.select %34, %31, %32 : vector<256x4xi1>, vector<256x4xf32>
    %c255_i32 = arith.constant 255 : i32
    %36 = tpu.dynamic_rotate %30 by %c255_i32 dim 0 : vector<256x4xf32>, i32 -> vector<256x4xf32>
    %37 = vector.shape_cast %22 : vector<256x1xi1> to vector<256x1xi1>
    %38 = vector.broadcast %37 : vector<256x1xi1> to vector<256x4xi1>
    %39 = arith.select %38, %31, %36 : vector<256x4xi1>, vector<256x4xf32>
    %40 = tpu.concatenate %35, %30, %39 in 1 : vector<256x4xf32>, vector<256x4xf32>, vector<256x4xf32> -> vector<256x12xf32>
    %41 = arith.truncf %40 : vector<256x12xf32> to vector<256x12xbf16>
    %cst_13 = arith.constant 0.000000e+00 : bf16
    %42 = vector.broadcast %cst_13 : bf16 to vector<16x12xbf16>
    %43 = tpu.concatenate %42, %41, %42 in 0 : vector<16x12xbf16>, vector<256x12xbf16>, vector<16x12xbf16> -> vector<288x12xbf16>
    %44 = vector.extract_strided_slice %43 {offsets = [0, 0], sizes = [256, 12], strides = [1, 1]} : vector<288x12xbf16> to vector<256x12xbf16>
    %45 = vector.extract_strided_slice %43 {offsets = [16, 0], sizes = [256, 12], strides = [1, 1]} : vector<288x12xbf16> to vector<256x12xbf16>
    %46 = vector.extract_strided_slice %43 {offsets = [32, 0], sizes = [256, 12], strides = [1, 1]} : vector<288x12xbf16> to vector<256x12xbf16>
    %47 = tpu.concatenate %44, %45, %46 in 1 : vector<256x12xbf16>, vector<256x12xbf16>, vector<256x12xbf16> -> vector<256x36xbf16>
    %c0_14 = arith.constant 0 : index
    %c0_15 = arith.constant 0 : index
    %48 = vector.load %arg4[%c0_14, %c0_15] : memref<36x8xbf16, #tpu.memory_space<vmem>>, vector<36x8xbf16>
    %cst_16 = arith.constant dense<0.000000e+00> : vector<256x8xf32>
    %49 = tpu.matmul %47, %48, %cst_16 {dimension_numbers = #tpu.dot_dimension_numbers<[1], [0], [0], [1], [0, 0, 1, 1], [], []>} : vector<256x36xbf16>, vector<36x8xbf16>, vector<256x8xf32> -> vector<256x8xf32>
    %c0_17 = arith.constant 0 : index
    %c0_18 = arith.constant 0 : index
    %50 = vector.load %arg5[%c0_17, %c0_18] : memref<1x8xf32, #tpu.memory_space<vmem>>, vector<1x8xf32>
    %51 = vector.broadcast %50 : vector<1x8xf32> to vector<256x8xf32>
    %52 = arith.mulf %49, %51 : vector<256x8xf32>
    %c0_19 = arith.constant 0 : index
    %c0_20 = arith.constant 0 : index
    %53 = vector.load %arg6[%c0_19, %c0_20] : memref<1x8xf32, #tpu.memory_space<vmem>>, vector<1x8xf32>
    %54 = vector.broadcast %53 : vector<1x8xf32> to vector<256x8xf32>
    %55 = arith.addf %52, %54 : vector<256x8xf32>
    %cst_21 = arith.constant 0.000000e+00 : f32
    %56 = vector.broadcast %cst_21 : f32 to vector<256x8xf32>
    %57 = arith.maximumf %55, %56 : vector<256x8xf32>
    %cst_22 = arith.constant 0.000000e+00 : f32
    %58 = vector.broadcast %cst_22 : f32 to vector<256x8xf32>
    %c1_i32_23 = arith.constant 1 : i32
    %59 = tpu.dynamic_rotate %57 by %c1_i32_23 dim 0 : vector<256x8xf32>, i32 -> vector<256x8xf32>
    %60 = vector.shape_cast %20 : vector<256x1xi1> to vector<256x1xi1>
    %61 = vector.broadcast %60 : vector<256x1xi1> to vector<256x8xi1>
    %62 = arith.select %61, %58, %59 : vector<256x8xi1>, vector<256x8xf32>
    %c255_i32_24 = arith.constant 255 : i32
    %63 = tpu.dynamic_rotate %57 by %c255_i32_24 dim 0 : vector<256x8xf32>, i32 -> vector<256x8xf32>
    %64 = vector.shape_cast %22 : vector<256x1xi1> to vector<256x1xi1>
    %65 = vector.broadcast %64 : vector<256x1xi1> to vector<256x8xi1>
    %66 = arith.select %65, %58, %63 : vector<256x8xi1>, vector<256x8xf32>
    %67 = tpu.concatenate %62, %57, %66 in 1 : vector<256x8xf32>, vector<256x8xf32>, vector<256x8xf32> -> vector<256x24xf32>
    %68 = arith.truncf %67 : vector<256x24xf32> to vector<256x24xbf16>
    %cst_25 = arith.constant 0.000000e+00 : bf16
    %69 = vector.broadcast %cst_25 : bf16 to vector<16x24xbf16>
    %70 = tpu.concatenate %69, %68, %69 in 0 : vector<16x24xbf16>, vector<256x24xbf16>, vector<16x24xbf16> -> vector<288x24xbf16>
    %71 = vector.extract_strided_slice %70 {offsets = [0, 0], sizes = [256, 24], strides = [1, 1]} : vector<288x24xbf16> to vector<256x24xbf16>
    %72 = vector.extract_strided_slice %70 {offsets = [16, 0], sizes = [256, 24], strides = [1, 1]} : vector<288x24xbf16> to vector<256x24xbf16>
    %73 = vector.extract_strided_slice %70 {offsets = [32, 0], sizes = [256, 24], strides = [1, 1]} : vector<288x24xbf16> to vector<256x24xbf16>
    %74 = tpu.concatenate %71, %72, %73 in 1 : vector<256x24xbf16>, vector<256x24xbf16>, vector<256x24xbf16> -> vector<256x72xbf16>
    %c0_26 = arith.constant 0 : index
    %c0_27 = arith.constant 0 : index
    %75 = vector.load %arg7[%c0_26, %c0_27] : memref<72x8xbf16, #tpu.memory_space<vmem>>, vector<72x8xbf16>
    %cst_28 = arith.constant dense<0.000000e+00> : vector<256x8xf32>
    %76 = tpu.matmul %74, %75, %cst_28 {dimension_numbers = #tpu.dot_dimension_numbers<[1], [0], [0], [1], [0, 0, 1, 1], [], []>} : vector<256x72xbf16>, vector<72x8xbf16>, vector<256x8xf32> -> vector<256x8xf32>
    %77 = arith.truncf %1 : vector<256x4xf32> to vector<256x4xbf16>
    %c0_29 = arith.constant 0 : index
    %c0_30 = arith.constant 0 : index
    %78 = vector.load %arg9[%c0_29, %c0_30] : memref<4x8xbf16, #tpu.memory_space<vmem>>, vector<4x8xbf16>
    %cst_31 = arith.constant dense<0.000000e+00> : vector<256x8xf32>
    %79 = tpu.matmul %77, %78, %cst_31 {dimension_numbers = #tpu.dot_dimension_numbers<[1], [0], [0], [1], [0, 0, 1, 1], [], []>} : vector<256x4xbf16>, vector<4x8xbf16>, vector<256x8xf32> -> vector<256x8xf32>
    %80 = arith.addf %76, %79 : vector<256x8xf32>
    %c0_32 = arith.constant 0 : index
    %c0_33 = arith.constant 0 : index
    %81 = vector.load %arg8[%c0_32, %c0_33] : memref<1x8xf32, #tpu.memory_space<vmem>>, vector<1x8xf32>
    %82 = vector.broadcast %81 : vector<1x8xf32> to vector<256x8xf32>
    %83 = arith.addf %80, %82 : vector<256x8xf32>
    %84 = vector.shape_cast %83 : vector<256x8xf32> to vector<1x16x16x8xf32>
    %c0_34 = arith.constant 0 : index
    %c0_35 = arith.constant 0 : index
    %c0_36 = arith.constant 0 : index
    %c0_37 = arith.constant 0 : index
    %85 = vector.load %arg10[%c0_34, %c0_35, %c0_36, %c0_37] : memref<1x16x16x8xf32, #tpu.memory_space<vmem>>, vector<1x16x16x8xf32>
    tpu.vector_store %arg10[%c0_34, %c0_35, %c0_36, %c0_37], %84 {strides = array<i32>} : memref<1x16x16x8xf32, #tpu.memory_space<vmem>>, vector<1x16x16x8xf32>,
    return
  }
  func.func @transform_0(%arg0: i32) -> (i32, i32, i32, i32) {
    %c0_i32 = arith.constant 0 : i32
    %c0_i32_0 = arith.constant 0 : i32
    %c0_i32_1 = arith.constant 0 : i32
    %c0_i32_2 = arith.constant 0 : i32
    return %arg0, %c0_i32, %c0_i32_0, %c0_i32_1 : i32, i32, i32, i32
  }
  func.func @transform_1(%arg0: i32) -> (i32, i32) {
    %c0_i32 = arith.constant 0 : i32
    %c0_i32_0 = arith.constant 0 : i32
    %c0_i32_1 = arith.constant 0 : i32
    return %c0_i32, %c0_i32_0 : i32, i32
  }
  func.func @transform_2(%arg0: i32) -> (i32, i32) {
    %c0_i32 = arith.constant 0 : i32
    %c0_i32_0 = arith.constant 0 : i32
    %c0_i32_1 = arith.constant 0 : i32
    return %c0_i32, %c0_i32_0 : i32, i32
  }
  func.func @transform_3(%arg0: i32) -> (i32, i32) {
    %c0_i32 = arith.constant 0 : i32
    %c0_i32_0 = arith.constant 0 : i32
    %c0_i32_1 = arith.constant 0 : i32
    return %c0_i32, %c0_i32_0 : i32, i32
  }
  func.func @transform_4(%arg0: i32) -> (i32, i32) {
    %c0_i32 = arith.constant 0 : i32
    %c0_i32_0 = arith.constant 0 : i32
    %c0_i32_1 = arith.constant 0 : i32
    return %c0_i32, %c0_i32_0 : i32, i32
  }
  func.func @transform_5(%arg0: i32) -> (i32, i32) {
    %c0_i32 = arith.constant 0 : i32
    %c0_i32_0 = arith.constant 0 : i32
    %c0_i32_1 = arith.constant 0 : i32
    return %c0_i32, %c0_i32_0 : i32, i32
  }
  func.func @transform_6(%arg0: i32) -> (i32, i32) {
    %c0_i32 = arith.constant 0 : i32
    %c0_i32_0 = arith.constant 0 : i32
    %c0_i32_1 = arith.constant 0 : i32
    return %c0_i32, %c0_i32_0 : i32, i32
  }
  func.func @transform_7(%arg0: i32) -> (i32, i32) {
    %c0_i32 = arith.constant 0 : i32
    %c0_i32_0 = arith.constant 0 : i32
    %c0_i32_1 = arith.constant 0 : i32
    return %c0_i32, %c0_i32_0 : i32, i32
  }
  func.func @transform_8(%arg0: i32) -> (i32, i32) {
    %c0_i32 = arith.constant 0 : i32
    %c0_i32_0 = arith.constant 0 : i32
    %c0_i32_1 = arith.constant 0 : i32
    return %c0_i32, %c0_i32_0 : i32, i32
  }
  func.func @transform_9(%arg0: i32) -> (i32, i32, i32, i32) {
    %c0_i32 = arith.constant 0 : i32
    %c0_i32_0 = arith.constant 0 : i32
    %c0_i32_1 = arith.constant 0 : i32
    %c0_i32_2 = arith.constant 0 : i32
    return %arg0, %c0_i32, %c0_i32_0, %c0_i32_1 : i32, i32, i32, i32
  }
}

module attributes {stable_mosaic.version = 11 : i64} {
  func.func @kernel(%arg0: i32, %arg1: memref<1x16x16x4xf32, #tpu.memory_space<vmem>>, %arg2: memref<1x4xf32, #tpu.memory_space<vmem>>, %arg3: memref<1x4xf32, #tpu.memory_space<vmem>>, %arg4: memref<36x8xbf16, #tpu.memory_space<vmem>>, %arg5: memref<1x8xf32, #tpu.memory_space<vmem>>, %arg6: memref<1x8xf32, #tpu.memory_space<vmem>>, %arg7: memref<72x8xbf16, #tpu.memory_space<vmem>>, %arg8: memref<1x8xf32, #tpu.memory_space<vmem>>, %arg9: memref<4x8xbf16, #tpu.memory_space<vmem>>, %arg10: memref<1x16x16x8xf32, #tpu.memory_space<vmem>>) attributes {dimension_semantics = [#tpu.dimension_semantics<parallel>], iteration_bounds = array<i64: 2>, scalar_prefetch = 0 : i64, scratch_operands = 0 : i64, tpu.core_type = #tpu.core_type<tc>, window_params = [{transform_indices = @transform_0, window_bounds = array<i64: 1, 16, 16, 4>}, {pipeline_mode = #tpu.pipeline_mode<synchronous>, transform_indices = @transform_1, window_bounds = array<i64: 1, 4>}, {pipeline_mode = #tpu.pipeline_mode<synchronous>, transform_indices = @transform_2, window_bounds = array<i64: 1, 4>}, {pipeline_mode = #tpu.pipeline_mode<synchronous>, transform_indices = @transform_3, window_bounds = array<i64: 36, 8>}, {pipeline_mode = #tpu.pipeline_mode<synchronous>, transform_indices = @transform_4, window_bounds = array<i64: 1, 8>}, {pipeline_mode = #tpu.pipeline_mode<synchronous>, transform_indices = @transform_5, window_bounds = array<i64: 1, 8>}, {pipeline_mode = #tpu.pipeline_mode<synchronous>, transform_indices = @transform_6, window_bounds = array<i64: 72, 8>}, {pipeline_mode = #tpu.pipeline_mode<synchronous>, transform_indices = @transform_7, window_bounds = array<i64: 1, 8>}, {pipeline_mode = #tpu.pipeline_mode<synchronous>, transform_indices = @transform_8, window_bounds = array<i64: 4, 8>}, {transform_indices = @transform_9, window_bounds = array<i64: 1, 16, 16, 8>}]} {
    %c0 = arith.constant 0 : index
    %c0_0 = arith.constant 0 : index
    %c0_1 = arith.constant 0 : index
    %c0_2 = arith.constant 0 : index
    %0 = vector.load %arg1[%c0, %c0_0, %c0_1, %c0_2] : memref<1x16x16x4xf32, #tpu.memory_space<vmem>>, vector<1x16x16x4xf32>
    %1 = vector.shape_cast %0 : vector<1x16x16x4xf32> to vector<256x4xf32>
    %2 = tpu.iota {dimensions = array<i32: 0>} : vector<256x1xi32>
    %c16_i32 = arith.constant 16 : i32
    %c0_i32 = arith.constant 0 : i32
    %3 = arith.cmpi eq, %c16_i32, %c0_i32 : i32
    %c1_i32 = arith.constant 1 : i32
    %4 = arith.select %3, %c1_i32, %c16_i32 : i32
    %5 = vector.broadcast %4 : i32 to vector<256x1xi32>
    %6 = arith.remsi %2, %5 : vector<256x1xi32>
    %c0_i32_3 = arith.constant 0 : i32
    %7 = vector.broadcast %c0_i32_3 : i32 to vector<256x1xi32>
    %8 = arith.cmpi ne, %6, %7 : vector<256x1xi32>
    %c0_i32_4 = arith.constant 0 : i32
    %9 = vector.broadcast %c0_i32_4 : i32 to vector<256x1xi32>
    %10 = arith.cmpi slt, %6, %9 : vector<256x1xi32>
    %c0_i32_5 = arith.constant 0 : i32
    %11 = arith.cmpi slt, %4, %c0_i32_5 : i32
    %12 = vector.broadcast %11 : i1 to vector<256x1xi1>
    %13 = vector.broadcast %12 : vector<256x1xi1> to vector<256x1xi1>
    %14 = arith.xori %10, %13 : vector<256x1xi1>
    %15 = arith.andi %14, %8 : vector<256x1xi1>
    %16 = vector.broadcast %4 : i32 to vector<256x1xi32>
    %17 = arith.addi %6, %16 : vector<256x1xi32>
    %18 = arith.select %15, %17, %6 : vector<256x1xi1>, vector<256x1xi32>
    %c0_i32_6 = arith.constant 0 : i32
    %19 = vector.broadcast %c0_i32_6 : i32 to vector<256x1xi32>
    %20 = arith.cmpi eq, %18, %19 : vector<256x1xi32>
    %c15_i32 = arith.constant 15 : i32
    %21 = vector.broadcast %c15_i32 : i32 to vector<256x1xi32>
    %22 = arith.cmpi eq, %18, %21 : vector<256x1xi32>
    %c0_7 = arith.constant 0 : index
    %c0_8 = arith.constant 0 : index
    %23 = vector.load %arg2[%c0_7, %c0_8] : memref<1x4xf32, #tpu.memory_space<vmem>>, vector<1x4xf32>
    %24 = vector.broadcast %23 : vector<1x4xf32> to vector<256x4xf32>
    %25 = arith.mulf %1, %24 : vector<256x4xf32>
    %c0_9 = arith.constant 0 : index
    %c0_10 = arith.constant 0 : index
    %26 = vector.load %arg3[%c0_9, %c0_10] : memref<1x4xf32, #tpu.memory_space<vmem>>, vector<1x4xf32>
    %27 = vector.broadcast %26 : vector<1x4xf32> to vector<256x4xf32>
    %28 = arith.addf %25, %27 : vector<256x4xf32>
    %cst = arith.constant 0.000000e+00 : f32
    %29 = vector.broadcast %cst : f32 to vector<256x4xf32>
    %30 = arith.maximumf %28, %29 : vector<256x4xf32>
    %cst_11 = arith.constant 0.000000e+00 : f32
    %31 = vector.broadcast %cst_11 : f32 to vector<256x4xf32>
    %c1_i32_12 = arith.constant 1 : i32
    %32 = tpu.dynamic_rotate %30 by %c1_i32_12 dim 0 : vector<256x4xf32>, i32 -> vector<256x4xf32>
    %33 = vector.shape_cast %20 : vector<256x1xi1> to vector<256x1xi1>
    %34 = vector.broadcast %33 : vector<256x1xi1> to vector<256x4xi1>
    %35 = arith.select %34, %31, %32 : vector<256x4xi1>, vector<256x4xf32>
    %c255_i32 = arith.constant 255 : i32
    %36 = tpu.dynamic_rotate %30 by %c255_i32 dim 0 : vector<256x4xf32>, i32 -> vector<256x4xf32>
    %37 = vector.shape_cast %22 : vector<256x1xi1> to vector<256x1xi1>
    %38 = vector.broadcast %37 : vector<256x1xi1> to vector<256x4xi1>
    %39 = arith.select %38, %31, %36 : vector<256x4xi1>, vector<256x4xf32>
    %40 = tpu.concatenate %35, %30, %39 in 1 : vector<256x4xf32>, vector<256x4xf32>, vector<256x4xf32> -> vector<256x12xf32>
    %41 = arith.truncf %40 : vector<256x12xf32> to vector<256x12xbf16>
    %cst_13 = arith.constant 0.000000e+00 : bf16
    %42 = vector.broadcast %cst_13 : bf16 to vector<16x12xbf16>
    %43 = tpu.concatenate %42, %41, %42 in 0 : vector<16x12xbf16>, vector<256x12xbf16>, vector<16x12xbf16> -> vector<288x12xbf16>
    %44 = vector.extract_strided_slice %43 {offsets = [0, 0], sizes = [256, 12], strides = [1, 1]} : vector<288x12xbf16> to vector<256x12xbf16>
    %45 = vector.extract_strided_slice %43 {offsets = [16, 0], sizes = [256, 12], strides = [1, 1]} : vector<288x12xbf16> to vector<256x12xbf16>
    %46 = vector.extract_strided_slice %43 {offsets = [32, 0], sizes = [256, 12], strides = [1, 1]} : vector<288x12xbf16> to vector<256x12xbf16>
    %47 = tpu.concatenate %44, %45, %46 in 1 : vector<256x12xbf16>, vector<256x12xbf16>, vector<256x12xbf16> -> vector<256x36xbf16>
    %c0_14 = arith.constant 0 : index
    %c0_15 = arith.constant 0 : index
    %48 = vector.load %arg4[%c0_14, %c0_15] : memref<36x8xbf16, #tpu.memory_space<vmem>>, vector<36x8xbf16>
    %cst_16 = arith.constant dense<0.000000e+00> : vector<256x8xf32>
    %49 = tpu.matmul %47, %48, %cst_16 {dimension_numbers = #tpu.dot_dimension_numbers<[1], [0], [0], [1], [0, 0, 1, 1], [], []>} : vector<256x36xbf16>, vector<36x8xbf16>, vector<256x8xf32> -> vector<256x8xf32>
    %c0_17 = arith.constant 0 : index
    %c0_18 = arith.constant 0 : index
    %50 = vector.load %arg5[%c0_17, %c0_18] : memref<1x8xf32, #tpu.memory_space<vmem>>, vector<1x8xf32>
    %51 = vector.broadcast %50 : vector<1x8xf32> to vector<256x8xf32>
    %52 = arith.mulf %49, %51 : vector<256x8xf32>
    %c0_19 = arith.constant 0 : index
    %c0_20 = arith.constant 0 : index
    %53 = vector.load %arg6[%c0_19, %c0_20] : memref<1x8xf32, #tpu.memory_space<vmem>>, vector<1x8xf32>
    %54 = vector.broadcast %53 : vector<1x8xf32> to vector<256x8xf32>
    %55 = arith.addf %52, %54 : vector<256x8xf32>
    %cst_21 = arith.constant 0.000000e+00 : f32
    %56 = vector.broadcast %cst_21 : f32 to vector<256x8xf32>
    %57 = arith.maximumf %55, %56 : vector<256x8xf32>
    %cst_22 = arith.constant 0.000000e+00 : f32
    %58 = vector.broadcast %cst_22 : f32 to vector<256x8xf32>
    %c1_i32_23 = arith.constant 1 : i32
    %59 = tpu.dynamic_rotate %57 by %c1_i32_23 dim 0 : vector<256x8xf32>, i32 -> vector<256x8xf32>
    %60 = vector.shape_cast %20 : vector<256x1xi1> to vector<256x1xi1>
    %61 = vector.broadcast %60 : vector<256x1xi1> to vector<256x8xi1>
    %62 = arith.select %61, %58, %59 : vector<256x8xi1>, vector<256x8xf32>
    %c255_i32_24 = arith.constant 255 : i32
    %63 = tpu.dynamic_rotate %57 by %c255_i32_24 dim 0 : vector<256x8xf32>, i32 -> vector<256x8xf32>
    %64 = vector.shape_cast %22 : vector<256x1xi1> to vector<256x1xi1>
    %65 = vector.broadcast %64 : vector<256x1xi1> to vector<256x8xi1>
    %66 = arith.select %65, %58, %63 : vector<256x8xi1>, vector<256x8xf32>
    %67 = tpu.concatenate %62, %57, %66 in 1 : vector<256x8xf32>, vector<256x8xf32>, vector<256x8xf32> -> vector<256x24xf32>
    %68 = arith.truncf %67 : vector<256x24xf32> to vector<256x24xbf16>
    %cst_25 = arith.constant 0.000000e+00 : bf16
    %69 = vector.broadcast %cst_25 : bf16 to vector<16x24xbf16>
    %70 = tpu.concatenate %69, %68, %69 in 0 : vector<16x24xbf16>, vector<256x24xbf16>, vector<16x24xbf16> -> vector<288x24xbf16>
    %71 = vector.extract_strided_slice %70 {offsets = [0, 0], sizes = [256, 24], strides = [1, 1]} : vector<288x24xbf16> to vector<256x24xbf16>
    %72 = vector.extract_strided_slice %70 {offsets = [16, 0], sizes = [256, 24], strides = [1, 1]} : vector<288x24xbf16> to vector<256x24xbf16>
    %73 = vector.extract_strided_slice %70 {offsets = [32, 0], sizes = [256, 24], strides = [1, 1]} : vector<288x24xbf16> to vector<256x24xbf16>
    %74 = tpu.concatenate %71, %72, %73 in 1 : vector<256x24xbf16>, vector<256x24xbf16>, vector<256x24xbf16> -> vector<256x72xbf16>
    %c0_26 = arith.constant 0 : index
    %c0_27 = arith.constant 0 : index
    %75 = vector.load %arg7[%c0_26, %c0_27] : memref<72x8xbf16, #tpu.memory_space<vmem>>, vector<72x8xbf16>
    %cst_28 = arith.constant dense<0.000000e+00> : vector<256x8xf32>
    %76 = tpu.matmul %74, %75, %cst_28 {dimension_numbers = #tpu.dot_dimension_numbers<[1], [0], [0], [1], [0, 0, 1, 1], [], []>} : vector<256x72xbf16>, vector<72x8xbf16>, vector<256x8xf32> -> vector<256x8xf32>
    %77 = arith.truncf %1 : vector<256x4xf32> to vector<256x4xbf16>
    %c0_29 = arith.constant 0 : index
    %c0_30 = arith.constant 0 : index
    %78 = vector.load %arg9[%c0_29, %c0_30] : memref<4x8xbf16, #tpu.memory_space<vmem>>, vector<4x8xbf16>
    %cst_31 = arith.constant dense<0.000000e+00> : vector<256x8xf32>
    %79 = tpu.matmul %77, %78, %cst_31 {dimension_numbers = #tpu.dot_dimension_numbers<[1], [0], [0], [1], [0, 0, 1, 1], [], []>} : vector<256x4xbf16>, vector<4x8xbf16>, vector<256x8xf32> -> vector<256x8xf32>
    %80 = arith.addf %76, %79 : vector<256x8xf32>
    %c0_32 = arith.constant 0 : index
    %c0_33 = arith.constant 0 : index
    %81 = vector.load %arg8[%c0_32, %c0_33] : memref<1x8xf32, #tpu.memory_space<vmem>>, vector<1x8xf32>
    %82 = vector.broadcast %81 : vector<1x8xf32> to vector<256x8xf32>
    %83 = arith.addf %80, %82 : vector<256x8xf32>
    %84 = vector.shape_cast %83 : vector<256x8xf32> to vector<1x16x16x8xf32>
    %c0_34 = arith.constant 0 : index
    %c0_35 = arith.constant 0 : index
    %c0_36 = arith.constant 0 : index
    %c0_37 = arith.constant 0 : index
    %85 = vector.load %arg10[%c0_34, %c0_35, %c0_36, %c0_37] : memref<1x16x16x8xf32, #tpu.memory_space<vmem>>, vector<1x16x16x8xf32>
    tpu.vector_store %arg10[%c0_34, %c0_35, %c0_36, %c0_37], %84 {strides = array<i32>} : memref<1x16x16x8xf32, #tpu.memory_space<vmem>>, vector<1x16x16x8xf32>,
    return
  }
  func.func @transform_0(%arg0: i32) -> (i32, i32, i32, i32) {
    %c0_i32 = arith.constant 0 : i32
    %c0_i32_0 = arith.constant 0 : i32
    %c0_i32_1 = arith.constant 0 : i32
    %c0_i32_2 = arith.constant 0 : i32
    return %arg0, %c0_i32, %c0_i32_0, %c0_i32_1 : i32, i32, i32, i32
  }
  func.func @transform_1(%arg0: i32) -> (i32, i32) {
    %c0_i32 = arith.constant 0 : i32
    %c0_i32_0 = arith.constant 0 : i32
    %c0_i32_1 = arith.constant 0 : i32
    return %c0_i32, %c0_i32_0 : i32, i32
  }
  func.func @transform_2(%arg0: i32) -> (i32, i32) {
    %c0_i32 = arith.constant 0 : i32
    %c0_i32_0 = arith.constant 0 : i32
    %c0_i32_1 = arith.constant 0 : i32
    return %c0_i32, %c0_i32_0 : i32, i32
  }
  func.func @transform_3(%arg0: i32) -> (i32, i32) {
    %c0_i32 = arith.constant 0 : i32
    %c0_i32_0 = arith.constant 0 : i32
    %c0_i32_1 = arith.constant 0 : i32
    return %c0_i32, %c0_i32_0 : i32, i32
  }
  func.func @transform_4(%arg0: i32) -> (i32, i32) {
    %c0_i32 = arith.constant 0 : i32
    %c0_i32_0 = arith.constant 0 : i32
    %c0_i32_1 = arith.constant 0 : i32
    return %c0_i32, %c0_i32_0 : i32, i32
  }
  func.func @transform_5(%arg0: i32) -> (i32, i32) {
    %c0_i32 = arith.constant 0 : i32
    %c0_i32_0 = arith.constant 0 : i32
    %c0_i32_1 = arith.constant 0 : i32
    return %c0_i32, %c0_i32_0 : i32, i32
  }
  func.func @transform_6(%arg0: i32) -> (i32, i32) {
    %c0_i32 = arith.constant 0 : i32
    %c0_i32_0 = arith.constant 0 : i32
    %c0_i32_1 = arith.constant 0 : i32
    return %c0_i32, %c0_i32_0 : i32, i32
  }
  func.func @transform_7(%arg0: i32) -> (i32, i32) {
    %c0_i32 = arith.constant 0 : i32
    %c0_i32_0 = arith.constant 0 : i32
    %c0_i32_1 = arith.constant 0 : i32
    return %c0_i32, %c0_i32_0 : i32, i32
  }
  func.func @transform_8(%arg0: i32) -> (i32, i32) {
    %c0_i32 = arith.constant 0 : i32
    %c0_i32_0 = arith.constant 0 : i32
    %c0_i32_1 = arith.constant 0 : i32
    return %c0_i32, %c0_i32_0 : i32, i32
  }
  func.func @transform_9(%arg0: i32) -> (i32, i32, i32, i32) {
    %c0_i32 = arith.constant 0 : i32
    %c0_i32_0 = arith.constant 0 : i32
    %c0_i32_1 = arith.constant 0 : i32
    %c0_i32_2 = arith.constant 0 : i32
    return %arg0, %c0_i32, %c0_i32_0, %c0_i32_1 : i32, i32, i32, i32
  }
}

</mosaic_0001>

<llo_original>
// kernel: tpu_custom_call.1
$region0: #{tpu_custom_call.1}
  #allocation0 [shape = 'u32[]', space=smem, size = 0x4, offset = 0x4, fixed_abs, tag = 'smem constant byte address 0x4 - core index']
  #allocation1 [shape = 'u32[144,128]{1,0:T(1,128)}', space=vmem, size = 0x12000, scoped, tag = 'internal scratch']
  %s0 = inlined_call_operand.vmem [shape: f32[2,16,16,4], index: 0, kind: input, shape index: {}]
  %s1 = inlined_call_operand.vmem [shape: f32[1,4], index: 1, kind: input, shape index: {}]
  %s2 = inlined_call_operand.vmem [shape: f32[1,4], index: 2, kind: input, shape index: {}]
  %s3 = inlined_call_operand.vmem [shape: bf16[36,8], index: 3, kind: input, shape index: {}]
  %s4 = inlined_call_operand.vmem [shape: f32[1,8], index: 4, kind: input, shape index: {}]
  %s5 = inlined_call_operand.vmem [shape: f32[1,8], index: 5, kind: input, shape index: {}]
  %s6 = inlined_call_operand.vmem [shape: bf16[72,8], index: 6, kind: input, shape index: {}]
  %s7 = inlined_call_operand.vmem [shape: f32[1,8], index: 7, kind: input, shape index: {}]
  %s8 = inlined_call_operand.vmem [shape: bf16[4,8], index: 8, kind: input, shape index: {}]
  %s9 = inlined_call_operand.vmem [shape: f32[2,16,16,8], index: 9, kind: output, shape index: {}]
  %s10 = sld [smem:[#allocation0]]
  $region69: #{tpu_custom_call.1} parent=0
    _
  %s12 = ssub.s32 1, %s10
  %s13 = scalar_select 0, %s12, %s10
  loop: start=0, step=1, limit=4
  $region2: #{tpu_custom_call.1} parent=0 // loop_pre_header
    _
  $region3: #{tpu_custom_call.1} parent=0 // loop_header
    %s15 = sphi 0, %s19
    %p16 = scmp.ge.s32.totalorder %s15, 4
    %s25 = sphi 0, %s27
    %s28 = sphi 0, %s25
    %s29 = sphi 0, %s28
    %s45 = sphi 0, %s29
    %s49 = sphi 0, %s49
    %s51 = sphi 0, %s49
    %s52 = sphi 0, %s51
    %s66 = sphi 0, %s52
    %s70 = sphi 0, %s70
    %s72 = sphi 0, %s70
    %s73 = sphi 0, %s72
    %s87 = sphi 0, %s73
    %s91 = sphi 0, %s91
    %s93 = sphi 0, %s91
    %s94 = sphi 0, %s93
    %s108 = sphi 0, %s94
    %s112 = sphi 0, %s112
    %s114 = sphi 0, %s112
    %s115 = sphi 0, %s114
    %s129 = sphi 0, %s115
    %s133 = sphi 0, %s133
    %s135 = sphi 0, %s133
    %s136 = sphi 0, %s135
    %s150 = sphi 0, %s136
    %s154 = sphi 0, %s154
    %s156 = sphi 0, %s154
    %s157 = sphi 0, %s156
    %s171 = sphi 0, %s157
    %s175 = sphi 0, %s175
    %s177 = sphi 0, %s175
    %s178 = sphi 0, %s177
    %s192 = sphi 0, %s178
    %s196 = sphi 0, %s196
    %s198 = sphi 0, %s196
    %s199 = sphi 0, %s198
    %s213 = sphi 0, %s199
    %s219 = sphi 0, %s221
    %s222 = sphi 0, %s219
    %s223 = sphi 0, %s222
    %s239 = sphi 0, %s223
  $region4: #{tpu_custom_call.1} parent=0 // loop_header_branch
    %18 = sbr.rel (%p16) target = $region8
  $region5: #{tpu_custom_call.1} parent=0 // loop_body
    %s20 = ssub.s32 %s15, 1
    %s21 = ssub.s32 %s15, 2
    %s22 = sadd.s32 %s15, 1
    %s23 = ssub.s32 %s15, %s22
    %p24 = scmp.eq.s32.totalorder %s23, 0
    %s26 = sadd.s32 %s25, 1
    %s27 = scalar_select %p24, %s25, %s26
    %p30 = pneg %p24
    %p31 = scmp.eq.s32.totalorder %s15, 1
    %p32 = por %p30, %p31
    %p33 = scmp.ne.s32.totalorder %s25, %s28
    %p34 = scmp.eq.s32.totalorder %s15, 0
    %p35 = por %p33, %p34
    %p36 = scmp.ne.s32.totalorder %s25, %s28
    %p37 = scmp.eq.s32.totalorder %s20, 1
    %p38 = por %p36, %p37
    %p39 = scmp.ne.s32.totalorder %s28, %s29
    %p40 = scmp.eq.s32.totalorder %s20, 0
    %p41 = por %p39, %p40
    %p42 = scmp.ne.s32.totalorder %s28, %s29
    %p43 = scmp.eq.s32.totalorder %s21, 1
    %p44 = por %p42, %p43
    %p46 = scmp.ne.s32.totalorder %s29, %s45
    %p47 = scmp.eq.s32.totalorder %s21, 0
    %p48 = por %p46, %p47
    %s50 = sadd.s32 %s49, 1
    %p53 = scmp.eq.s32.totalorder %s15, 1
    %p54 = scmp.ne.s32.totalorder %s49, %s51
    %p55 = scmp.eq.s32.totalorder %s15, 0
    %p56 = por %p54, %p55
    %p57 = scmp.ne.s32.totalorder %s49, %s51
    %p58 = scmp.eq.s32.totalorder %s20, 1
    %p59 = por %p57, %p58
    %p60 = scmp.ne.s32.totalorder %s51, %s52
    %p61 = scmp.eq.s32.totalorder %s20, 0
    %p62 = por %p60, %p61
    %p63 = scmp.ne.s32.totalorder %s51, %s52
    %p64 = scmp.eq.s32.totalorder %s21, 1
    %p65 = por %p63, %p64
    %p67 = scmp.ne.s32.totalorder %s52, %s66
    %p68 = scmp.eq.s32.totalorder %s21, 0
    %p69 = por %p67, %p68
    %s71 = sadd.s32 %s70, 1
    %p74 = scmp.eq.s32.totalorder %s15, 1
    %p75 = scmp.ne.s32.totalorder %s70, %s72
    %p76 = scmp.eq.s32.totalorder %s15, 0
    %p77 = por %p75, %p76
    %p78 = scmp.ne.s32.totalorder %s70, %s72
    %p79 = scmp.eq.s32.totalorder %s20, 1
    %p80 = por %p78, %p79
    %p81 = scmp.ne.s32.totalorder %s72, %s73
    %p82 = scmp.eq.s32.totalorder %s20, 0
    %p83 = por %p81, %p82
    %p84 = scmp.ne.s32.totalorder %s72, %s73
    %p85 = scmp.eq.s32.totalorder %s21, 1
    %p86 = por %p84, %p85
    %p88 = scmp.ne.s32.totalorder %s73, %s87
    %p89 = scmp.eq.s32.totalorder %s21, 0
    %p90 = por %p88, %p89
    %s92 = sadd.s32 %s91, 1
    %p95 = scmp.eq.s32.totalorder %s15, 1
    %p96 = scmp.ne.s32.totalorder %s91, %s93
    %p97 = scmp.eq.s32.totalorder %s15, 0
    %p98 = por %p96, %p97
    %p99 = scmp.ne.s32.totalorder %s91, %s93
    %p100 = scmp.eq.s32.totalorder %s20, 1
    %p101 = por %p99, %p100
    %p102 = scmp.ne.s32.totalorder %s93, %s94
    %p103 = scmp.eq.s32.totalorder %s20, 0
    %p104 = por %p102, %p103
    %p105 = scmp.ne.s32.totalorder %s93, %s94
    %p106 = scmp.eq.s32.totalorder %s21, 1
    %p107 = por %p105, %p106
    %p109 = scmp.ne.s32.totalorder %s94, %s108
    %p110 = scmp.eq.s32.totalorder %s21, 0
    %p111 = por %p109, %p110
    %s113 = sadd.s32 %s112, 1
    %p116 = scmp.eq.s32.totalorder %s15, 1
    %p117 = scmp.ne.s32.totalorder %s112, %s114
    %p118 = scmp.eq.s32.totalorder %s15, 0
    %p119 = por %p117, %p118
    %p120 = scmp.ne.s32.totalorder %s112, %s114
    %p121 = scmp.eq.s32.totalorder %s20, 1
    %p122 = por %p120, %p121
    %p123 = scmp.ne.s32.totalorder %s114, %s115
    %p124 = scmp.eq.s32.totalorder %s20, 0
    %p125 = por %p123, %p124
    %p126 = scmp.ne.s32.totalorder %s114, %s115
    %p127 = scmp.eq.s32.totalorder %s21, 1
    %p128 = por %p126, %p127
    %p130 = scmp.ne.s32.totalorder %s115, %s129
    %p131 = scmp.eq.s32.totalorder %s21, 0
    %p132 = por %p130, %p131
    %s134 = sadd.s32 %s133, 1
    %p137 = scmp.eq.s32.totalorder %s15, 1
    %p138 = scmp.ne.s32.totalorder %s133, %s135
    %p139 = scmp.eq.s32.totalorder %s15, 0
    %p140 = por %p138, %p139
    %p141 = scmp.ne.s32.totalorder %s133, %s135
    %p142 = scmp.eq.s32.totalorder %s20, 1
    %p143 = por %p141, %p142
    %p144 = scmp.ne.s32.totalorder %s135, %s136
    %p145 = scmp.eq.s32.totalorder %s20, 0
    %p146 = por %p144, %p145
    %p147 = scmp.ne.s32.totalorder %s135, %s136
    %p148 = scmp.eq.s32.totalorder %s21, 1
    %p149 = por %p147, %p148
    %p151 = scmp.ne.s32.totalorder %s136, %s150
    %p152 = scmp.eq.s32.totalorder %s21, 0
    %p153 = por %p151, %p152
    %s155 = sadd.s32 %s154, 1
    %p158 = scmp.eq.s32.totalorder %s15, 1
    %p159 = scmp.ne.s32.totalorder %s154, %s156
    %p160 = scmp.eq.s32.totalorder %s15, 0
    %p161 = por %p159, %p160
    %p162 = scmp.ne.s32.totalorder %s154, %s156
    %p163 = scmp.eq.s32.totalorder %s20, 1
    %p164 = por %p162, %p163
    %p165 = scmp.ne.s32.totalorder %s156, %s157
    %p166 = scmp.eq.s32.totalorder %s20, 0
    %p167 = por %p165, %p166
    %p168 = scmp.ne.s32.totalorder %s156, %s157
    %p169 = scmp.eq.s32.totalorder %s21, 1
    %p170 = por %p168, %p169
    %p172 = scmp.ne.s32.totalorder %s157, %s171
    %p173 = scmp.eq.s32.totalorder %s21, 0
    %p174 = por %p172, %p173
    %s176 = sadd.s32 %s175, 1
    %p179 = scmp.eq.s32.totalorder %s15, 1
    %p180 = scmp.ne.s32.totalorder %s175, %s177
    %p181 = scmp.eq.s32.totalorder %s15, 0
    %p182 = por %p180, %p181
    %p183 = scmp.ne.s32.totalorder %s175, %s177
    %p184 = scmp.eq.s32.totalorder %s20, 1
    %p185 = por %p183, %p184
    %p186 = scmp.ne.s32.totalorder %s177, %s178
    %p187 = scmp.eq.s32.totalorder %s20, 0
    %p188 = por %p186, %p187
    %p189 = scmp.ne.s32.totalorder %s177, %s178
    %p190 = scmp.eq.s32.totalorder %s21, 1
    %p191 = por %p189, %p190
    %p193 = scmp.ne.s32.totalorder %s178, %s192
    %p194 = scmp.eq.s32.totalorder %s21, 0
    %p195 = por %p193, %p194
    %s197 = sadd.s32 %s196, 1
    %p200 = scmp.eq.s32.totalorder %s15, 1
    %p201 = scmp.ne.s32.totalorder %s196, %s198
    %p202 = scmp.eq.s32.totalorder %s15, 0
    %p203 = por %p201, %p202
    %p204 = scmp.ne.s32.totalorder %s196, %s198
    %p205 = scmp.eq.s32.totalorder %s20, 1
    %p206 = por %p204, %p205
    %p207 = scmp.ne.s32.totalorder %s198, %s199
    %p208 = scmp.eq.s32.totalorder %s20, 0
    %p209 = por %p207, %p208
    %p210 = scmp.ne.s32.totalorder %s198, %s199
    %p211 = scmp.eq.s32.totalorder %s21, 1
    %p212 = por %p210, %p211
    %p214 = scmp.ne.s32.totalorder %s199, %s213
    %p215 = scmp.eq.s32.totalorder %s21, 0
    %p216 = por %p214, %p215
    %s217 = ssub.s32 %s15, %s22
    %p218 = scmp.eq.s32.totalorder %s217, 0
    %s220 = sadd.s32 %s219, 1
    %s221 = scalar_select %p218, %s219, %s220
    %p224 = pneg %p218
    %p225 = scmp.eq.s32.totalorder %s15, 1
    %p226 = por %p224, %p225
    %p227 = scmp.ne.s32.totalorder %s219, %s222
    %p228 = scmp.eq.s32.totalorder %s15, 0
    %p229 = por %p227, %p228
    %p230 = scmp.ne.s32.totalorder %s219, %s222
    %p231 = scmp.eq.s32.totalorder %s20, 1
    %p232 = por %p230, %p231
    %p233 = scmp.ne.s32.totalorder %s222, %s223
    %p234 = scmp.eq.s32.totalorder %s20, 0
    %p235 = por %p233, %p234
    %p236 = scmp.ne.s32.totalorder %s222, %s223
    %p237 = scmp.eq.s32.totalorder %s21, 1
    %p238 = por %p236, %p237
    %p240 = scmp.ne.s32.totalorder %s223, %s239
    %p241 = scmp.eq.s32.totalorder %s21, 0
    %p242 = por %p240, %p241
    %p243 = scmp.le.s32.totalorder 1, %s15
    %p244 = scmp.lt.s32.totalorder %s15, 3
    %p245 = pnand %p243, %p244
    %p246 = pneg %p245
    // Predicated region
    $region9: #{tpu_custom_call.1} parent=5 // pred_check
      _
    $region10: #{tpu_custom_call.1} parent=5 // pred_check_branch
      %248 = sbr.rel (%p245) target = $region12
    $region11: #{tpu_custom_call.1} parent=5 // pred_region
      %s249 = ssub.s32 %s15, 1
      // Predicated region
      $region13: #{tpu_custom_call.1} parent=11 // pred_check
        %p250 = pneg %p62
      $region14: #{tpu_custom_call.1} parent=11 // pred_check_branch
        %252 = sbr.rel (%p250) target = $region16
      $region15: #{tpu_custom_call.1} parent=11 // pred_region
        _
      $region16: #{tpu_custom_call.1} parent=11 // pred_fallthru
        _
      // Predicated region
      $region17: #{tpu_custom_call.1} parent=11 // pred_check
        %p253 = pneg %p83
      $region18: #{tpu_custom_call.1} parent=11 // pred_check_branch
        %255 = sbr.rel (%p253) target = $region20
      $region19: #{tpu_custom_call.1} parent=11 // pred_region
        _
      $region20: #{tpu_custom_call.1} parent=11 // pred_fallthru
        _
      // Predicated region
      $region21: #{tpu_custom_call.1} parent=11 // pred_check
        %p256 = pneg %p104
      $region22: #{tpu_custom_call.1} parent=11 // pred_check_branch
        %258 = sbr.rel (%p256) target = $region24
      $region23: #{tpu_custom_call.1} parent=11 // pred_region
        _
      $region24: #{tpu_custom_call.1} parent=11 // pred_fallthru
        _
      // Predicated region
      $region25: #{tpu_custom_call.1} parent=11 // pred_check
        %p259 = pneg %p125
      $region26: #{tpu_custom_call.1} parent=11 // pred_check_branch
        %261 = sbr.rel (%p259) target = $region28
      $region27: #{tpu_custom_call.1} parent=11 // pred_region
        _
      $region28: #{tpu_custom_call.1} parent=11 // pred_fallthru
        _
      // Predicated region
      $region29: #{tpu_custom_call.1} parent=11 // pred_check
        %p262 = pneg %p146
      $region30: #{tpu_custom_call.1} parent=11 // pred_check_branch
        %264 = sbr.rel (%p262) target = $region32
      $region31: #{tpu_custom_call.1} parent=11 // pred_region
        _
      $region32: #{tpu_custom_call.1} parent=11 // pred_fallthru
        _
      // Predicated region
      $region33: #{tpu_custom_call.1} parent=11 // pred_check
        %p265 = pneg %p167
      $region34: #{tpu_custom_call.1} parent=11 // pred_check_branch
        %267 = sbr.rel (%p265) target = $region36
      $region35: #{tpu_custom_call.1} parent=11 // pred_region
        _
      $region36: #{tpu_custom_call.1} parent=11 // pred_fallthru
        _
      // Predicated region
      $region37: #{tpu_custom_call.1} parent=11 // pred_check
        %p268 = pneg %p188
      $region38: #{tpu_custom_call.1} parent=11 // pred_check_branch
        %270 = sbr.rel (%p268) target = $region40
      $region39: #{tpu_custom_call.1} parent=11 // pred_region
        _
      $region40: #{tpu_custom_call.1} parent=11 // pred_fallthru
        _
      // Predicated region
      $region41: #{tpu_custom_call.1} parent=11 // pred_check
        %p271 = pneg %p209
      $region42: #{tpu_custom_call.1} parent=11 // pred_check_branch
        %273 = sbr.rel (%p271) target = $region44
      $region43: #{tpu_custom_call.1} parent=11 // pred_region
        _
      $region44: #{tpu_custom_call.1} parent=11 // pred_fallthru
        _
    $region12: #{tpu_custom_call.1} parent=5 // pred_fallthru
      _
    %p274 = scmp.lt.s32.totalorder %s15, 2
    // Predicated region
    $region45: #{tpu_custom_call.1} parent=5 // pred_check
      %p275 = pneg %p274
    $region46: #{tpu_custom_call.1} parent=5 // pred_check_branch
      %277 = sbr.rel (%p275) target = $region48
    $region47: #{tpu_custom_call.1} parent=5 // pred_region
      // Predicated region
      $region49: #{tpu_custom_call.1} parent=47 // pred_check
        %p278 = pneg %p35
      $region50: #{tpu_custom_call.1} parent=47 // pred_check_branch
        %280 = sbr.rel (%p278) target = $region52
      $region51: #{tpu_custom_call.1} parent=47 // pred_region
        %p281 = scmp.lt.s32.totalorder %s15, 1
        %s282 = scalar_select %p281, %s15, 1
        %s283 = smul.addr %s282, 32
        %s284 = smul.addr %s283, 8
        %s285 = scalar_lea.vmem %s0, %s284
      $region52: #{tpu_custom_call.1} parent=47 // pred_fallthru
        _
    $region48: #{tpu_custom_call.1} parent=5 // pred_fallthru
      _
    %p286 = scmp.le.s32.totalorder 1, %s15
    %p287 = scmp.lt.s32.totalorder %s15, 3
    %p288 = pnand %p286, %p287
    %p289 = pneg %p288
    // Predicated region
    $region53: #{tpu_custom_call.1} parent=5 // pred_check
      _
    $region54: #{tpu_custom_call.1} parent=5 // pred_check_branch
      %291 = sbr.rel (%p288) target = $region56
    $region55: #{tpu_custom_call.1} parent=5 // pred_region
      %s292 = ssub.s32 %s15, 1
      %p293 = scmp.lt.s32.totalorder %s20, 1
      %s294 = scalar_select %p293, %s20, 1
      %s295 = smul.addr %s294, 32
      %s296 = smul.addr %s295, 8
      %s297 = scalar_lea.vmem %s0, %s296
      %p298 = pneg %p41
      %p299 = pneg %p38
      %p300 = pneg %p62
      %p301 = pneg %p59
      %p302 = pneg %p83
      %p303 = pneg %p80
      %p304 = pneg %p104
      %p305 = pneg %p101
      %p306 = pneg %p125
      %p307 = pneg %p122
      %p308 = pneg %p146
      %p309 = pneg %p143
      %p310 = pneg %p167
      %p311 = pneg %p164
      %p312 = pneg %p188
      %p313 = pneg %p185
      %p314 = pneg %p209
      %p315 = pneg %p206
      %p316 = pneg %p235
      %p317 = pneg %p232
      %p318 = scmp.lt.s32.totalorder %s20, 1
      %s319 = scalar_select %p318, %s20, 1
      %s320 = smul.addr %s319, 32
      %s321 = smul.addr %s320, 8
      %s322 = scalar_lea.vmem %s9, %s321
      %p323 = scmp.lt.s32.totalorder %s20, 1
      %s324 = scalar_select %p323, %s20, 1
      %s325 = smul.addr %s324, 32
      %s326 = smul.addr %s325, 8
      %s327 = scalar_lea.vmem %s0, %s326
      %p328 = scmp.lt.s32.totalorder %s20, 1
      %s329 = scalar_select %p328, %s20, 1
      %s330 = smul.addr %s329, 32
      %s331 = smul.addr %s330, 8
      %s332 = scalar_lea.vmem %s9, %s331
      %v334 = vld [vmem:[%s327] sm:$0xff]
      %v335 = vld [vmem:[%s327 + $0x8] sm:$0xff]
      %v336 = vld [vmem:[%s327 + $0x10] sm:$0xff]
      %v337 = vld [vmem:[%s327 + $0x18] sm:$0xff]
      %v338 = vld [vmem:[%s327 + $0x20] sm:$0xff]
      %v339 = vld [vmem:[%s327 + $0x28] sm:$0xff]
      %v340 = vld [vmem:[%s327 + $0x30] sm:$0xff]
      %v341 = vld [vmem:[%s327 + $0x38] sm:$0xff]
      %v342 = vld [vmem:[%s327 + $0x40] sm:$0xff]
      %v343 = vld [vmem:[%s327 + $0x48] sm:$0xff]
      %v344 = vld [vmem:[%s327 + $0x50] sm:$0xff]
      %v345 = vld [vmem:[%s327 + $0x58] sm:$0xff]
      %v346 = vld [vmem:[%s327 + $0x60] sm:$0xff]
      %v347 = vld [vmem:[%s327 + $0x68] sm:$0xff]
      %v348 = vld [vmem:[%s327 + $0x70] sm:$0xff]
      %v349 = vld [vmem:[%s327 + $0x78] sm:$0xff]
      %v350 = vld [vmem:[%s327 + $0x80] sm:$0xff]
      %v351 = vld [vmem:[%s327 + $0x88] sm:$0xff]
      %v352 = vld [vmem:[%s327 + $0x90] sm:$0xff]
      %v353 = vld [vmem:[%s327 + $0x98] sm:$0xff]
      %v354 = vld [vmem:[%s327 + $0xa0] sm:$0xff]
      %v355 = vld [vmem:[%s327 + $0xa8] sm:$0xff]
      %v356 = vld [vmem:[%s327 + $0xb0] sm:$0xff]
      %v357 = vld [vmem:[%s327 + $0xb8] sm:$0xff]
      %v358 = vld [vmem:[%s327 + $0xc0] sm:$0xff]
      %v359 = vld [vmem:[%s327 + $0xc8] sm:$0xff]
      %v360 = vld [vmem:[%s327 + $0xd0] sm:$0xff]
      %v361 = vld [vmem:[%s327 + $0xd8] sm:$0xff]
      %v362 = vld [vmem:[%s327 + $0xe0] sm:$0xff]
      %v363 = vld [vmem:[%s327 + $0xe8] sm:$0xff]
      %v364 = vld [vmem:[%s327 + $0xf0] sm:$0xff]
      %v365 = vld [vmem:[%s327 + $0xf8] sm:$0xff]
      %v366 = vlaneseq
      %v367 = vshrl.u32 %v366, 7
      %v368 = vadd.s32 %v367, 8
      %v369 = vadd.s32 %v367, 16
      %v370 = vadd.s32 %v367, 24
      %v371 = vadd.s32 %v367, 32
      %v372 = vadd.s32 %v367, 40
      %v373 = vadd.s32 %v367, 48
      %v374 = vadd.s32 %v367, 56
      %v375 = vadd.s32 %v367, 64
      %v376 = vadd.s32 %v367, 72
      %v377 = vadd.s32 %v367, 80
      %v378 = vadd.s32 %v367, 88
      %v379 = vadd.s32 %v367, 96
      %v380 = vadd.s32 %v367, 104
      %v381 = vadd.s32 %v367, 112
      %v382 = vadd.s32 %v367, 120
      %v383 = vadd.s32 %v367, 128
      %v384 = vadd.s32 %v367, 136
      %v385 = vadd.s32 %v367, 144
      %v386 = vadd.s32 %v367, 152
      %v387 = vadd.s32 %v367, 160
      %v388 = vadd.s32 %v367, 168
      %v389 = vadd.s32 %v367, 176
      %v390 = vadd.s32 %v367, 184
      %v391 = vadd.s32 %v367, 192
      %v392 = vadd.s32 %v367, 200
      %v393 = vadd.s32 %v367, 208
      %v394 = vadd.s32 %v367, 216
      %v395 = vadd.s32 %v367, 224
      %v396 = vadd.s32 %v367, 232
      %v397 = vadd.s32 %v367, 240
      %v398 = vadd.s32 %v367, 248
      %vm399 = vcmp.lt.s32.totalorder %v367, 0
      %v400 = vsub.s32 0, %v367
      %v401 = vsel %vm399, %v400, %v367
      %v402 = vshrl.u32 %v401, 4
      %v403 = vand.u32 %v401, 15
      %v404 = vsub.s32 0, %v403
      %v405 = vsel %vm399, %v404, %v403
      %vm406 = vcmp.lt.s32.totalorder %v368, 0
      %v407 = vsub.s32 0, %v368
      %v408 = vsel %vm406, %v407, %v368
      %v409 = vshrl.u32 %v408, 4
      %v410 = vand.u32 %v408, 15
      %v411 = vsub.s32 0, %v410
      %v412 = vsel %vm406, %v411, %v410
      %vm413 = vcmp.lt.s32.totalorder %v369, 0
      %v414 = vsub.s32 0, %v369
      %v415 = vsel %vm413, %v414, %v369
      %v416 = vshrl.u32 %v415, 4
      %v417 = vand.u32 %v415, 15
      %v418 = vsub.s32 0, %v417
      %v419 = vsel %vm413, %v418, %v417
      %vm420 = vcmp.lt.s32.totalorder %v370, 0
      %v421 = vsub.s32 0, %v370
      %v422 = vsel %vm420, %v421, %v370
      %v423 = vshrl.u32 %v422, 4
      %v424 = vand.u32 %v422, 15
      %v425 = vsub.s32 0, %v424
      %v426 = vsel %vm420, %v425, %v424
      %vm427 = vcmp.lt.s32.totalorder %v371, 0
      %v428 = vsub.s32 0, %v371
      %v429 = vsel %vm427, %v428, %v371
      %v430 = vshrl.u32 %v429, 4
      %v431 = vand.u32 %v429, 15
      %v432 = vsub.s32 0, %v431
      %v433 = vsel %vm427, %v432, %v431
      %vm434 = vcmp.lt.s32.totalorder %v372, 0
      %v435 = vsub.s32 0, %v372
      %v436 = vsel %vm434, %v435, %v372
      %v437 = vshrl.u32 %v436, 4
      %v438 = vand.u32 %v436, 15
      %v439 = vsub.s32 0, %v438
      %v440 = vsel %vm434, %v439, %v438
      %vm441 = vcmp.lt.s32.totalorder %v373, 0
      %v442 = vsub.s32 0, %v373
      %v443 = vsel %vm441, %v442, %v373
      %v444 = vshrl.u32 %v443, 4
      %v445 = vand.u32 %v443, 15
      %v446 = vsub.s32 0, %v445
      %v447 = vsel %vm441, %v446, %v445
      %vm448 = vcmp.lt.s32.totalorder %v374, 0
      %v449 = vsub.s32 0, %v374
      %v450 = vsel %vm448, %v449, %v374
      %v451 = vshrl.u32 %v450, 4
      %v452 = vand.u32 %v450, 15
      %v453 = vsub.s32 0, %v452
      %v454 = vsel %vm448, %v453, %v452
      %vm455 = vcmp.lt.s32.totalorder %v375, 0
      %v456 = vsub.s32 0, %v375
      %v457 = vsel %vm455, %v456, %v375
      %v458 = vshrl.u32 %v457, 4
      %v459 = vand.u32 %v457, 15
      %v460 = vsub.s32 0, %v459
      %v461 = vsel %vm455, %v460, %v459
      %vm462 = vcmp.lt.s32.totalorder %v376, 0
      %v463 = vsub.s32 0, %v376
      %v464 = vsel %vm462, %v463, %v376
      %v465 = vshrl.u32 %v464, 4
      %v466 = vand.u32 %v464, 15
      %v467 = vsub.s32 0, %v466
      %v468 = vsel %vm462, %v467, %v466
      %vm469 = vcmp.lt.s32.totalorder %v377, 0
      %v470 = vsub.s32 0, %v377
      %v471 = vsel %vm469, %v470, %v377
      %v472 = vshrl.u32 %v471, 4
      %v473 = vand.u32 %v471, 15
      %v474 = vsub.s32 0, %v473
      %v475 = vsel %vm469, %v474, %v473
      %vm476 = vcmp.lt.s32.totalorder %v378, 0
      %v477 = vsub.s32 0, %v378
      %v478 = vsel %vm476, %v477, %v378
      %v479 = vshrl.u32 %v478, 4
      %v480 = vand.u32 %v478, 15
      %v481 = vsub.s32 0, %v480
      %v482 = vsel %vm476, %v481, %v480
      %vm483 = vcmp.lt.s32.totalorder %v379, 0
      %v484 = vsub.s32 0, %v379
      %v485 = vsel %vm483, %v484, %v379
      %v486 = vshrl.u32 %v485, 4
      %v487 = vand.u32 %v485, 15
      %v488 = vsub.s32 0, %v487
      %v489 = vsel %vm483, %v488, %v487
      %vm490 = vcmp.lt.s32.totalorder %v380, 0
      %v491 = vsub.s32 0, %v380
      %v492 = vsel %vm490, %v491, %v380
      %v493 = vshrl.u32 %v492, 4
      %v494 = vand.u32 %v492, 15
      %v495 = vsub.s32 0, %v494
      %v496 = vsel %vm490, %v495, %v494
      %vm497 = vcmp.lt.s32.totalorder %v381, 0
      %v498 = vsub.s32 0, %v381
      %v499 = vsel %vm497, %v498, %v381
      %v500 = vshrl.u32 %v499, 4
      %v501 = vand.u32 %v499, 15
      %v502 = vsub.s32 0, %v501
      %v503 = vsel %vm497, %v502, %v501
      %vm504 = vcmp.lt.s32.totalorder %v382, 0
      %v505 = vsub.s32 0, %v382
      %v506 = vsel %vm504, %v505, %v382
      %v507 = vshrl.u32 %v506, 4
      %v508 = vand.u32 %v506, 15
      %v509 = vsub.s32 0, %v508
      %v510 = vsel %vm504, %v509, %v508
      %vm511 = vcmp.lt.s32.totalorder %v383, 0
      %v512 = vsub.s32 0, %v383
      %v513 = vsel %vm511, %v512, %v383
      %v514 = vshrl.u32 %v513, 4
      %v515 = vand.u32 %v513, 15
      %v516 = vsub.s32 0, %v515
      %v517 = vsel %vm511, %v516, %v515
      %vm518 = vcmp.lt.s32.totalorder %v384, 0
      %v519 = vsub.s32 0, %v384
      %v520 = vsel %vm518, %v519, %v384
      %v521 = vshrl.u32 %v520, 4
      %v522 = vand.u32 %v520, 15
      %v523 = vsub.s32 0, %v522
      %v524 = vsel %vm518, %v523, %v522
      %vm525 = vcmp.lt.s32.totalorder %v385, 0
      %v526 = vsub.s32 0, %v385
      %v527 = vsel %vm525, %v526, %v385
      %v528 = vshrl.u32 %v527, 4
      %v529 = vand.u32 %v527, 15
      %v530 = vsub.s32 0, %v529
      %v531 = vsel %vm525, %v530, %v529
      %vm532 = vcmp.lt.s32.totalorder %v386, 0
      %v533 = vsub.s32 0, %v386
      %v534 = vsel %vm532, %v533, %v386
      %v535 = vshrl.u32 %v534, 4
      %v536 = vand.u32 %v534, 15
      %v537 = vsub.s32 0, %v536
      %v538 = vsel %vm532, %v537, %v536
      %vm539 = vcmp.lt.s32.totalorder %v387, 0
      %v540 = vsub.s32 0, %v387
      %v541 = vsel %vm539, %v540, %v387
      %v542 = vshrl.u32 %v541, 4
      %v543 = vand.u32 %v541, 15
      %v544 = vsub.s32 0, %v543
      %v545 = vsel %vm539, %v544, %v543
      %vm546 = vcmp.lt.s32.totalorder %v388, 0
      %v547 = vsub.s32 0, %v388
      %v548 = vsel %vm546, %v547, %v388
      %v549 = vshrl.u32 %v548, 4
      %v550 = vand.u32 %v548, 15
      %v551 = vsub.s32 0, %v550
      %v552 = vsel %vm546, %v551, %v550
      %vm553 = vcmp.lt.s32.totalorder %v389, 0
      %v554 = vsub.s32 0, %v389
      %v555 = vsel %vm553, %v554, %v389
      %v556 = vshrl.u32 %v555, 4
      %v557 = vand.u32 %v555, 15
      %v558 = vsub.s32 0, %v557
      %v559 = vsel %vm553, %v558, %v557
      %vm560 = vcmp.lt.s32.totalorder %v390, 0
      %v561 = vsub.s32 0, %v390
      %v562 = vsel %vm560, %v561, %v390
      %v563 = vshrl.u32 %v562, 4
      %v564 = vand.u32 %v562, 15
      %v565 = vsub.s32 0, %v564
      %v566 = vsel %vm560, %v565, %v564
      %vm567 = vcmp.lt.s32.totalorder %v391, 0
      %v568 = vsub.s32 0, %v391
      %v569 = vsel %vm567, %v568, %v391
      %v570 = vshrl.u32 %v569, 4
      %v571 = vand.u32 %v569, 15
      %v572 = vsub.s32 0, %v571
      %v573 = vsel %vm567, %v572, %v571
      %vm574 = vcmp.lt.s32.totalorder %v392, 0
      %v575 = vsub.s32 0, %v392
      %v576 = vsel %vm574, %v575, %v392
      %v577 = vshrl.u32 %v576, 4
      %v578 = vand.u32 %v576, 15
      %v579 = vsub.s32 0, %v578
      %v580 = vsel %vm574, %v579, %v578
      %vm581 = vcmp.lt.s32.totalorder %v393, 0
      %v582 = vsub.s32 0, %v393
      %v583 = vsel %vm581, %v582, %v393
      %v584 = vshrl.u32 %v583, 4
      %v585 = vand.u32 %v583, 15
      %v586 = vsub.s32 0, %v585
      %v587 = vsel %vm581, %v586, %v585
      %vm588 = vcmp.lt.s32.totalorder %v394, 0
      %v589 = vsub.s32 0, %v394
      %v590 = vsel %vm588, %v589, %v394
      %v591 = vshrl.u32 %v590, 4
      %v592 = vand.u32 %v590, 15
      %v593 = vsub.s32 0, %v592
      %v594 = vsel %vm588, %v593, %v592
      %vm595 = vcmp.lt.s32.totalorder %v395, 0
      %v596 = vsub.s32 0, %v395
      %v597 = vsel %vm595, %v596, %v395
      %v598 = vshrl.u32 %v597, 4
      %v599 = vand.u32 %v597, 15
      %v600 = vsub.s32 0, %v599
      %v601 = vsel %vm595, %v600, %v599
      %vm602 = vcmp.lt.s32.totalorder %v396, 0
      %v603 = vsub.s32 0, %v396
      %v604 = vsel %vm602, %v603, %v396
      %v605 = vshrl.u32 %v604, 4
      %v606 = vand.u32 %v604, 15
      %v607 = vsub.s32 0, %v606
      %v608 = vsel %vm602, %v607, %v606
      %vm609 = vcmp.lt.s32.totalorder %v397, 0
      %v610 = vsub.s32 0, %v397
      %v611 = vsel %vm609, %v610, %v397
      %v612 = vshrl.u32 %v611, 4
      %v613 = vand.u32 %v611, 15
      %v614 = vsub.s32 0, %v613
      %v615 = vsel %vm609, %v614, %v613
      %vm616 = vcmp.lt.s32.totalorder %v398, 0
      %v617 = vsub.s32 0, %v398
      %v618 = vsel %vm616, %v617, %v398
      %v619 = vshrl.u32 %v618, 4
      %v620 = vand.u32 %v618, 15
      %v621 = vsub.s32 0, %v620
      %v622 = vsel %vm616, %v621, %v620
      %vm623 = vcmp.ne.s32.totalorder %v405, 0
      %vm624 = vcmp.ne.s32.totalorder %v412, 0
      %vm625 = vcmp.ne.s32.totalorder %v419, 0
      %vm626 = vcmp.ne.s32.totalorder %v426, 0
      %vm627 = vcmp.ne.s32.totalorder %v433, 0
      %vm628 = vcmp.ne.s32.totalorder %v440, 0
      %vm629 = vcmp.ne.s32.totalorder %v447, 0
      %vm630 = vcmp.ne.s32.totalorder %v454, 0
      %vm631 = vcmp.ne.s32.totalorder %v461, 0
      %vm632 = vcmp.ne.s32.totalorder %v468, 0
      %vm633 = vcmp.ne.s32.totalorder %v475, 0
      %vm634 = vcmp.ne.s32.totalorder %v482, 0
      %vm635 = vcmp.ne.s32.totalorder %v489, 0
      %vm636 = vcmp.ne.s32.totalorder %v496, 0
      %vm637 = vcmp.ne.s32.totalorder %v503, 0
      %vm638 = vcmp.ne.s32.totalorder %v510, 0
      %vm639 = vcmp.ne.s32.totalorder %v517, 0
      %vm640 = vcmp.ne.s32.totalorder %v524, 0
      %vm641 = vcmp.ne.s32.totalorder %v531, 0
      %vm642 = vcmp.ne.s32.totalorder %v538, 0
      %vm643 = vcmp.ne.s32.totalorder %v545, 0
      %vm644 = vcmp.ne.s32.totalorder %v552, 0
      %vm645 = vcmp.ne.s32.totalorder %v559, 0
      %vm646 = vcmp.ne.s32.totalorder %v566, 0
      %vm647 = vcmp.ne.s32.totalorder %v573, 0
      %vm648 = vcmp.ne.s32.totalorder %v580, 0
      %vm649 = vcmp.ne.s32.totalorder %v587, 0
      %vm650 = vcmp.ne.s32.totalorder %v594, 0
      %vm651 = vcmp.ne.s32.totalorder %v601, 0
      %vm652 = vcmp.ne.s32.totalorder %v608, 0
      %vm653 = vcmp.ne.s32.totalorder %v615, 0
      %vm654 = vcmp.ne.s32.totalorder %v622, 0
      %vm655 = vcmp.lt.s32.totalorder %v405, 0
      %vm656 = vcmp.lt.s32.totalorder %v412, 0
      %vm657 = vcmp.lt.s32.totalorder %v419, 0
      %vm658 = vcmp.lt.s32.totalorder %v426, 0
      %vm659 = vcmp.lt.s32.totalorder %v433, 0
      %vm660 = vcmp.lt.s32.totalorder %v440, 0
      %vm661 = vcmp.lt.s32.totalorder %v447, 0
      %vm662 = vcmp.lt.s32.totalorder %v454, 0
      %vm663 = vcmp.lt.s32.totalorder %v461, 0
      %vm664 = vcmp.lt.s32.totalorder %v468, 0
      %vm665 = vcmp.lt.s32.totalorder %v475, 0
      %vm666 = vcmp.lt.s32.totalorder %v482, 0
      %vm667 = vcmp.lt.s32.totalorder %v489, 0
      %vm668 = vcmp.lt.s32.totalorder %v496, 0
      %vm669 = vcmp.lt.s32.totalorder %v503, 0
      %vm670 = vcmp.lt.s32.totalorder %v510, 0
      %vm671 = vcmp.lt.s32.totalorder %v517, 0
      %vm672 = vcmp.lt.s32.totalorder %v524, 0
      %vm673 = vcmp.lt.s32.totalorder %v531, 0
      %vm674 = vcmp.lt.s32.totalorder %v538, 0
      %vm675 = vcmp.lt.s32.totalorder %v545, 0
      %vm676 = vcmp.lt.s32.totalorder %v552, 0
      %vm677 = vcmp.lt.s32.totalorder %v559, 0
      %vm678 = vcmp.lt.s32.totalorder %v566, 0
      %vm679 = vcmp.lt.s32.totalorder %v573, 0
      %vm680 = vcmp.lt.s32.totalorder %v580, 0
      %vm681 = vcmp.lt.s32.totalorder %v587, 0
      %vm682 = vcmp.lt.s32.totalorder %v594, 0
      %vm683 = vcmp.lt.s32.totalorder %v601, 0
      %vm684 = vcmp.lt.s32.totalorder %v608, 0
      %vm685 = vcmp.lt.s32.totalorder %v615, 0
      %vm686 = vcmp.lt.s32.totalorder %v622, 0
      %vm687 = vmand %vm655, %vm623
      %vm688 = vmand %vm656, %vm624
      %vm689 = vmand %vm657, %vm625
      %vm690 = vmand %vm658, %vm626
      %vm691 = vmand %vm659, %vm627
      %vm692 = vmand %vm660, %vm628
      %vm693 = vmand %vm661, %vm629
      %vm694 = vmand %vm662, %vm630
      %vm695 = vmand %vm663, %vm631
      %vm696 = vmand %vm664, %vm632
      %vm697 = vmand %vm665, %vm633
      %vm698 = vmand %vm666, %vm634
      %vm699 = vmand %vm667, %vm635
      %vm700 = vmand %vm668, %vm636
      %vm701 = vmand %vm669, %vm637
      %vm702 = vmand %vm670, %vm638
      %vm703 = vmand %vm671, %vm639
      %vm704 = vmand %vm672, %vm640
      %vm705 = vmand %vm673, %vm641
      %vm706 = vmand %vm674, %vm642
      %vm707 = vmand %vm675, %vm643
      %vm708 = vmand %vm676, %vm644
      %vm709 = vmand %vm677, %vm645
      %vm710 = vmand %vm678, %vm646
      %vm711 = vmand %vm679, %vm647
      %vm712 = vmand %vm680, %vm648
      %vm713 = vmand %vm681, %vm649
      %vm714 = vmand %vm682, %vm650
      %vm715 = vmand %vm683, %vm651
      %vm716 = vmand %vm684, %vm652
      %vm717 = vmand %vm685, %vm653
      %vm718 = vmand %vm686, %vm654
      %v719 = vadd.s32 %v405, 16
      %v720 = vadd.s32 %v412, 16
      %v721 = vadd.s32 %v419, 16
      %v722 = vadd.s32 %v426, 16
      %v723 = vadd.s32 %v433, 16
      %v724 = vadd.s32 %v440, 16
      %v725 = vadd.s32 %v447, 16
      %v726 = vadd.s32 %v454, 16
      %v727 = vadd.s32 %v461, 16
      %v728 = vadd.s32 %v468, 16
      %v729 = vadd.s32 %v475, 16
      %v730 = vadd.s32 %v482, 16
      %v731 = vadd.s32 %v489, 16
      %v732 = vadd.s32 %v496, 16
      %v733 = vadd.s32 %v503, 16
      %v734 = vadd.s32 %v510, 16
      %v735 = vadd.s32 %v517, 16
      %v736 = vadd.s32 %v524, 16
      %v737 = vadd.s32 %v531, 16
      %v738 = vadd.s32 %v538, 16
      %v739 = vadd.s32 %v545, 16
      %v740 = vadd.s32 %v552, 16
      %v741 = vadd.s32 %v559, 16
      %v742 = vadd.s32 %v566, 16
      %v743 = vadd.s32 %v573, 16
      %v744 = vadd.s32 %v580, 16
      %v745 = vadd.s32 %v587, 16
      %v746 = vadd.s32 %v594, 16
      %v747 = vadd.s32 %v601, 16
      %v748 = vadd.s32 %v608, 16
      %v749 = vadd.s32 %v615, 16
      %v750 = vadd.s32 %v622, 16
      %v751 = vsel %vm687, %v719, %v405
      %v752 = vsel %vm688, %v720, %v412
      %v753 = vsel %vm689, %v721, %v419
      %v754 = vsel %vm690, %v722, %v426
      %v755 = vsel %vm691, %v723, %v433
      %v756 = vsel %vm692, %v724, %v440
      %v757 = vsel %vm693, %v725, %v447
      %v758 = vsel %vm694, %v726, %v454
      %v759 = vsel %vm695, %v727, %v461
      %v760 = vsel %vm696, %v728, %v468
      %v761 = vsel %vm697, %v729, %v475
      %v762 = vsel %vm698, %v730, %v482
      %v763 = vsel %vm699, %v731, %v489
      %v764 = vsel %vm700, %v732, %v496
      %v765 = vsel %vm701, %v733, %v503
      %v766 = vsel %vm702, %v734, %v510
      %v767 = vsel %vm703, %v735, %v517
      %v768 = vsel %vm704, %v736, %v524
      %v769 = vsel %vm705, %v737, %v531
      %v770 = vsel %vm706, %v738, %v538
      %v771 = vsel %vm707, %v739, %v545
      %v772 = vsel %vm708, %v740, %v552
      %v773 = vsel %vm709, %v741, %v559
      %v774 = vsel %vm710, %v742, %v566
      %v775 = vsel %vm711, %v743, %v573
      %v776 = vsel %vm712, %v744, %v580
      %v777 = vsel %vm713, %v745, %v587
      %v778 = vsel %vm714, %v746, %v594
      %v779 = vsel %vm715, %v747, %v601
      %v780 = vsel %vm716, %v748, %v608
      %v781 = vsel %vm717, %v749, %v615
      %v782 = vsel %vm718, %v750, %v622
      %vm783 = vcmp.eq.s32.totalorder %v751, 0
      %vm784 = vcmp.eq.s32.totalorder %v752, 0
      %vm785 = vcmp.eq.s32.totalorder %v753, 0
      %vm786 = vcmp.eq.s32.totalorder %v754, 0
      %vm787 = vcmp.eq.s32.totalorder %v755, 0
      %vm788 = vcmp.eq.s32.totalorder %v756, 0
      %vm789 = vcmp.eq.s32.totalorder %v757, 0
      %vm790 = vcmp.eq.s32.totalorder %v758, 0
      %vm791 = vcmp.eq.s32.totalorder %v759, 0
      %vm792 = vcmp.eq.s32.totalorder %v760, 0
      %vm793 = vcmp.eq.s32.totalorder %v761, 0
      %vm794 = vcmp.eq.s32.totalorder %v762, 0
      %vm795 = vcmp.eq.s32.totalorder %v763, 0
      %vm796 = vcmp.eq.s32.totalorder %v764, 0
      %vm797 = vcmp.eq.s32.totalorder %v765, 0
      %vm798 = vcmp.eq.s32.totalorder %v766, 0
      %vm799 = vcmp.eq.s32.totalorder %v767, 0
      %vm800 = vcmp.eq.s32.totalorder %v768, 0
      %vm801 = vcmp.eq.s32.totalorder %v769, 0
      %vm802 = vcmp.eq.s32.totalorder %v770, 0
      %vm803 = vcmp.eq.s32.totalorder %v771, 0
      %vm804 = vcmp.eq.s32.totalorder %v772, 0
      %vm805 = vcmp.eq.s32.totalorder %v773, 0
      %vm806 = vcmp.eq.s32.totalorder %v774, 0
      %vm807 = vcmp.eq.s32.totalorder %v775, 0
      %vm808 = vcmp.eq.s32.totalorder %v776, 0
      %vm809 = vcmp.eq.s32.totalorder %v777, 0
      %vm810 = vcmp.eq.s32.totalorder %v778, 0
      %vm811 = vcmp.eq.s32.totalorder %v779, 0
      %vm812 = vcmp.eq.s32.totalorder %v780, 0
      %vm813 = vcmp.eq.s32.totalorder %v781, 0
      %vm814 = vcmp.eq.s32.totalorder %v782, 0
      %vm815 = vcmp.eq.s32.totalorder %v751, 15
      %vm816 = vcmp.eq.s32.totalorder %v752, 15
      %vm817 = vcmp.eq.s32.totalorder %v753, 15
      %vm818 = vcmp.eq.s32.totalorder %v754, 15
      %vm819 = vcmp.eq.s32.totalorder %v755, 15
      %vm820 = vcmp.eq.s32.totalorder %v756, 15
      %vm821 = vcmp.eq.s32.totalorder %v757, 15
      %vm822 = vcmp.eq.s32.totalorder %v758, 15
      %vm823 = vcmp.eq.s32.totalorder %v759, 15
      %vm824 = vcmp.eq.s32.totalorder %v760, 15
      %vm825 = vcmp.eq.s32.totalorder %v761, 15
      %vm826 = vcmp.eq.s32.totalorder %v762, 15
      %vm827 = vcmp.eq.s32.totalorder %v763, 15
      %vm828 = vcmp.eq.s32.totalorder %v764, 15
      %vm829 = vcmp.eq.s32.totalorder %v765, 15
      %vm830 = vcmp.eq.s32.totalorder %v766, 15
      %vm831 = vcmp.eq.s32.totalorder %v767, 15
      %vm832 = vcmp.eq.s32.totalorder %v768, 15
      %vm833 = vcmp.eq.s32.totalorder %v769, 15
      %vm834 = vcmp.eq.s32.totalorder %v770, 15
      %vm835 = vcmp.eq.s32.totalorder %v771, 15
      %vm836 = vcmp.eq.s32.totalorder %v772, 15
      %vm837 = vcmp.eq.s32.totalorder %v773, 15
      %vm838 = vcmp.eq.s32.totalorder %v774, 15
      %vm839 = vcmp.eq.s32.totalorder %v775, 15
      %vm840 = vcmp.eq.s32.totalorder %v776, 15
      %vm841 = vcmp.eq.s32.totalorder %v777, 15
      %vm842 = vcmp.eq.s32.totalorder %v778, 15
      %vm843 = vcmp.eq.s32.totalorder %v779, 15
      %vm844 = vcmp.eq.s32.totalorder %v780, 15
      %vm845 = vcmp.eq.s32.totalorder %v781, 15
      %vm846 = vcmp.eq.s32.totalorder %v782, 15
      %v847 = vld [vmem:[%s1] sm:$0x1]
      %v849 = vlaneseq
      %v850 = vshrl.u32 %v849, 7
      %v851 = vsub.s32 0, %v850
      %v852 = vrot.slane %v847, %v851
      %v854 = vmul.f32 %v334, %v852
      %v855 = vmul.f32 %v335, %v852
      %v856 = vmul.f32 %v336, %v852
      %v857 = vmul.f32 %v337, %v852
      %v858 = vmul.f32 %v338, %v852
      %v859 = vmul.f32 %v339, %v852
      %v860 = vmul.f32 %v340, %v852
      %v861 = vmul.f32 %v341, %v852
      %v862 = vmul.f32 %v342, %v852
      %v863 = vmul.f32 %v343, %v852
      %v864 = vmul.f32 %v344, %v852
      %v865 = vmul.f32 %v345, %v852
      %v866 = vmul.f32 %v346, %v852
      %v867 = vmul.f32 %v347, %v852
      %v868 = vmul.f32 %v348, %v852
      %v869 = vmul.f32 %v349, %v852
      %v870 = vmul.f32 %v350, %v852
      %v871 = vmul.f32 %v351, %v852
      %v872 = vmul.f32 %v352, %v852
      %v873 = vmul.f32 %v353, %v852
      %v874 = vmul.f32 %v354, %v852
      %v875 = vmul.f32 %v355, %v852
      %v876 = vmul.f32 %v356, %v852
      %v877 = vmul.f32 %v357, %v852
      %v878 = vmul.f32 %v358, %v852
      %v879 = vmul.f32 %v359, %v852
      %v880 = vmul.f32 %v360, %v852
      %v881 = vmul.f32 %v361, %v852
      %v882 = vmul.f32 %v362, %v852
      %v883 = vmul.f32 %v363, %v852
      %v884 = vmul.f32 %v364, %v852
      %v885 = vmul.f32 %v365, %v852
      %v886 = vld [vmem:[%s2] sm:$0x1]
      %v888 = vlaneseq
      %v889 = vshrl.u32 %v888, 7
      %v890 = vsub.s32 0, %v889
      %v891 = vrot.slane %v886, %v890
      %v893 = vadd.f32 %v854, %v891
      %v894 = vadd.f32 %v855, %v891
      %v895 = vadd.f32 %v856, %v891
      %v896 = vadd.f32 %v857, %v891
      %v897 = vadd.f32 %v858, %v891
      %v898 = vadd.f32 %v859, %v891
      %v899 = vadd.f32 %v860, %v891
      %v900 = vadd.f32 %v861, %v891
      %v901 = vadd.f32 %v862, %v891
      %v902 = vadd.f32 %v863, %v891
      %v903 = vadd.f32 %v864, %v891
      %v904 = vadd.f32 %v865, %v891
      %v905 = vadd.f32 %v866, %v891
      %v906 = vadd.f32 %v867, %v891
      %v907 = vadd.f32 %v868, %v891
      %v908 = vadd.f32 %v869, %v891
      %v909 = vadd.f32 %v870, %v891
      %v910 = vadd.f32 %v871, %v891
      %v911 = vadd.f32 %v872, %v891
      %v912 = vadd.f32 %v873, %v891
      %v913 = vadd.f32 %v874, %v891
      %v914 = vadd.f32 %v875, %v891
      %v915 = vadd.f32 %v876, %v891
      %v916 = vadd.f32 %v877, %v891
      %v917 = vadd.f32 %v878, %v891
      %v918 = vadd.f32 %v879, %v891
      %v919 = vadd.f32 %v880, %v891
      %v920 = vadd.f32 %v881, %v891
      %v921 = vadd.f32 %v882, %v891
      %v922 = vadd.f32 %v883, %v891
      %v923 = vadd.f32 %v884, %v891
      %v924 = vadd.f32 %v885, %v891
      %v925 = vmax.f32 %v893, 0.0
      %v926 = vmax.f32 %v894, 0.0
      %v927 = vmax.f32 %v895, 0.0
      %v928 = vmax.f32 %v896, 0.0
      %v929 = vmax.f32 %v897, 0.0
      %v930 = vmax.f32 %v898, 0.0
      %v931 = vmax.f32 %v899, 0.0
      %v932 = vmax.f32 %v900, 0.0
      %v933 = vmax.f32 %v901, 0.0
      %v934 = vmax.f32 %v902, 0.0
      %v935 = vmax.f32 %v903, 0.0
      %v936 = vmax.f32 %v904, 0.0
      %v937 = vmax.f32 %v905, 0.0
      %v938 = vmax.f32 %v906, 0.0
      %v939 = vmax.f32 %v907, 0.0
      %v940 = vmax.f32 %v908, 0.0
      %v941 = vmax.f32 %v909, 0.0
      %v942 = vmax.f32 %v910, 0.0
      %v943 = vmax.f32 %v911, 0.0
      %v944 = vmax.f32 %v912, 0.0
      %v945 = vmax.f32 %v913, 0.0
      %v946 = vmax.f32 %v914, 0.0
      %v947 = vmax.f32 %v915, 0.0
      %v948 = vmax.f32 %v916, 0.0
      %v949 = vmax.f32 %v917, 0.0
      %v950 = vmax.f32 %v918, 0.0
      %v951 = vmax.f32 %v919, 0.0
      %v952 = vmax.f32 %v920, 0.0
      %v953 = vmax.f32 %v921, 0.0
      %v954 = vmax.f32 %v922, 0.0
      %v955 = vmax.f32 %v923, 0.0
      %v956 = vmax.f32 %v924, 0.0
      %v957 = vrot.slane %v925, 7
      %v958 = vrot.slane %v926, 7
      %v959 = vrot.slane %v927, 7
      %v960 = vrot.slane %v928, 7
      %v961 = vrot.slane %v929, 7
      %v962 = vrot.slane %v930, 7
      %v963 = vrot.slane %v931, 7
      %v964 = vrot.slane %v932, 7
      %v965 = vrot.slane %v933, 7
      %v966 = vrot.slane %v934, 7
      %v967 = vrot.slane %v935, 7
      %v968 = vrot.slane %v936, 7
      %v969 = vrot.slane %v937, 7
      %v970 = vrot.slane %v938, 7
      %v971 = vrot.slane %v939, 7
      %v972 = vrot.slane %v940, 7
      %v973 = vrot.slane %v941, 7
      %v974 = vrot.slane %v942, 7
      %v975 = vrot.slane %v943, 7
      %v976 = vrot.slane %v944, 7
      %v977 = vrot.slane %v945, 7
      %v978 = vrot.slane %v946, 7
      %v979 = vrot.slane %v947, 7
      %v980 = vrot.slane %v948, 7
      %v981 = vrot.slane %v949, 7
      %v982 = vrot.slane %v950, 7
      %v983 = vrot.slane %v951, 7
      %v984 = vrot.slane %v952, 7
      %v985 = vrot.slane %v953, 7
      %v986 = vrot.slane %v954, 7
      %v987 = vrot.slane %v955, 7
      %v988 = vrot.slane %v956, 7
      %vm989 = vcmp.lt.s32.totalorder %v367, 1
      %v990 = vsel %vm989, %v987, %v988
      %v991 = vsel %vm989, %v986, %v987
      %v992 = vsel %vm989, %v985, %v986
      %v993 = vsel %vm989, %v984, %v985
      %v994 = vsel %vm989, %v983, %v984
      %v995 = vsel %vm989, %v982, %v983
      %v996 = vsel %vm989, %v981, %v982
      %v997 = vsel %vm989, %v980, %v981
      %v998 = vsel %vm989, %v979, %v980
      %v999 = vsel %vm989, %v978, %v979
      %v1000 = vsel %vm989, %v977, %v978
      %v1001 = vsel %vm989, %v976, %v977
      %v1002 = vsel %vm989, %v975, %v976
      %v1003 = vsel %vm989, %v974, %v975
      %v1004 = vsel %vm989, %v973, %v974
      %v1005 = vsel %vm989, %v972, %v973
      %v1006 = vsel %vm989, %v971, %v972
      %v1007 = vsel %vm989, %v970, %v971
      %v1008 = vsel %vm989, %v969, %v970
      %v1009 = vsel %vm989, %v968, %v969
      %v1010 = vsel %vm989, %v967, %v968
      %v1011 = vsel %vm989, %v966, %v967
      %v1012 = vsel %vm989, %v965, %v966
      %v1013 = vsel %vm989, %v964, %v965
      %v1014 = vsel %vm989, %v963, %v964
      %v1015 = vsel %vm989, %v962, %v963
      %v1016 = vsel %vm989, %v961, %v962
      %v1017 = vsel %vm989, %v960, %v961
      %v1018 = vsel %vm989, %v959, %v960
      %v1019 = vsel %vm989, %v958, %v959
      %v1020 = vsel %vm989, %v957, %v958
      %v1021 = vsel %vm989, %v988, %v957
      %v1022 = vsel %vm783, 1, 0
      %v1023 = vsel %vm784, 1, 0
      %v1024 = vsel %vm785, 1, 0
      %v1025 = vsel %vm786, 1, 0
      %v1026 = vsel %vm787, 1, 0
      %v1027 = vsel %vm788, 1, 0
      %v1028 = vsel %vm789, 1, 0
      %v1029 = vsel %vm790, 1, 0
      %v1030 = vsel %vm791, 1, 0
      %v1031 = vsel %vm792, 1, 0
      %v1032 = vsel %vm793, 1, 0
      %v1033 = vsel %vm794, 1, 0
      %v1034 = vsel %vm795, 1, 0
      %v1035 = vsel %vm796, 1, 0
      %v1036 = vsel %vm797, 1, 0
      %v1037 = vsel %vm798, 1, 0
      %v1038 = vsel %vm799, 1, 0
      %v1039 = vsel %vm800, 1, 0
      %v1040 = vsel %vm801, 1, 0
      %v1041 = vsel %vm802, 1, 0
      %v1042 = vsel %vm803, 1, 0
      %v1043 = vsel %vm804, 1, 0
      %v1044 = vsel %vm805, 1, 0
      %v1045 = vsel %vm806, 1, 0
      %v1046 = vsel %vm807, 1, 0
      %v1047 = vsel %vm808, 1, 0
      %v1048 = vsel %vm809, 1, 0
      %v1049 = vsel %vm810, 1, 0
      %v1050 = vsel %vm811, 1, 0
      %v1051 = vsel %vm812, 1, 0
      %v1052 = vsel %vm813, 1, 0
      %v1053 = vsel %vm814, 1, 0
      %vm1054 = vcmp.eq.s32.totalorder %v1022, 1
      %vm1055 = vcmp.eq.s32.totalorder %v1023, 1
      %vm1056 = vcmp.eq.s32.totalorder %v1024, 1
      %vm1057 = vcmp.eq.s32.totalorder %v1025, 1
      %vm1058 = vcmp.eq.s32.totalorder %v1026, 1
      %vm1059 = vcmp.eq.s32.totalorder %v1027, 1
      %vm1060 = vcmp.eq.s32.totalorder %v1028, 1
      %vm1061 = vcmp.eq.s32.totalorder %v1029, 1
      %vm1062 = vcmp.eq.s32.totalorder %v1030, 1
      %vm1063 = vcmp.eq.s32.totalorder %v1031, 1
      %vm1064 = vcmp.eq.s32.totalorder %v1032, 1
      %vm1065 = vcmp.eq.s32.totalorder %v1033, 1
      %vm1066 = vcmp.eq.s32.totalorder %v1034, 1
      %vm1067 = vcmp.eq.s32.totalorder %v1035, 1
      %vm1068 = vcmp.eq.s32.totalorder %v1036, 1
      %vm1069 = vcmp.eq.s32.totalorder %v1037, 1
      %vm1070 = vcmp.eq.s32.totalorder %v1038, 1
      %vm1071 = vcmp.eq.s32.totalorder %v1039, 1
      %vm1072 = vcmp.eq.s32.totalorder %v1040, 1
      %vm1073 = vcmp.eq.s32.totalorder %v1041, 1
      %vm1074 = vcmp.eq.s32.totalorder %v1042, 1
      %vm1075 = vcmp.eq.s32.totalorder %v1043, 1
      %vm1076 = vcmp.eq.s32.totalorder %v1044, 1
      %vm1077 = vcmp.eq.s32.totalorder %v1045, 1
      %vm1078 = vcmp.eq.s32.totalorder %v1046, 1
      %vm1079 = vcmp.eq.s32.totalorder %v1047, 1
      %vm1080 = vcmp.eq.s32.totalorder %v1048, 1
      %vm1081 = vcmp.eq.s32.totalorder %v1049, 1
      %vm1082 = vcmp.eq.s32.totalorder %v1050, 1
      %vm1083 = vcmp.eq.s32.totalorder %v1051, 1
      %vm1084 = vcmp.eq.s32.totalorder %v1052, 1
      %vm1085 = vcmp.eq.s32.totalorder %v1053, 1
      %v1086 = vsel %vm1054, 0.0, %v1021
      %v1087 = vsel %vm1055, 0.0, %v1020
      %v1088 = vsel %vm1056, 0.0, %v1019
      %v1089 = vsel %vm1057, 0.0, %v1018
      %v1090 = vsel %vm1058, 0.0, %v1017
      %v1091 = vsel %vm1059, 0.0, %v1016
      %v1092 = vsel %vm1060, 0.0, %v1015
      %v1093 = vsel %vm1061, 0.0, %v1014
      %v1094 = vsel %vm1062, 0.0, %v1013
      %v1095 = vsel %vm1063, 0.0, %v1012
      %v1096 = vsel %vm1064, 0.0, %v1011
      %v1097 = vsel %vm1065, 0.0, %v1010
      %v1098 = vsel %vm1066, 0.0, %v1009
      %v1099 = vsel %vm1067, 0.0, %v1008
      %v1100 = vsel %vm1068, 0.0, %v1007
      %v1101 = vsel %vm1069, 0.0, %v1006
      %v1102 = vsel %vm1070, 0.0, %v1005
      %v1103 = vsel %vm1071, 0.0, %v1004
      %v1104 = vsel %vm1072, 0.0, %v1003
      %v1105 = vsel %vm1073, 0.0, %v1002
      %v1106 = vsel %vm1074, 0.0, %v1001
      %v1107 = vsel %vm1075, 0.0, %v1000
      %v1108 = vsel %vm1076, 0.0, %v999
      %v1109 = vsel %vm1077, 0.0, %v998
      %v1110 = vsel %vm1078, 0.0, %v997
      %v1111 = vsel %vm1079, 0.0, %v996
      %v1112 = vsel %vm1080, 0.0, %v995
      %v1113 = vsel %vm1081, 0.0, %v994
      %v1114 = vsel %vm1082, 0.0, %v993
      %v1115 = vsel %vm1083, 0.0, %v992
      %v1116 = vsel %vm1084, 0.0, %v991
      %v1117 = vsel %vm1085, 0.0, %v990
      %v1118 = vrot.slane %v925, 1
      %v1119 = vrot.slane %v926, 1
      %v1120 = vrot.slane %v927, 1
      %v1121 = vrot.slane %v928, 1
      %v1122 = vrot.slane %v929, 1
      %v1123 = vrot.slane %v930, 1
      %v1124 = vrot.slane %v931, 1
      %v1125 = vrot.slane %v932, 1
      %v1126 = vrot.slane %v933, 1
      %v1127 = vrot.slane %v934, 1
      %v1128 = vrot.slane %v935, 1
      %v1129 = vrot.slane %v936, 1
      %v1130 = vrot.slane %v937, 1
      %v1131 = vrot.slane %v938, 1
      %v1132 = vrot.slane %v939, 1
      %v1133 = vrot.slane %v940, 1
      %v1134 = vrot.slane %v941, 1
      %v1135 = vrot.slane %v942, 1
      %v1136 = vrot.slane %v943, 1
      %v1137 = vrot.slane %v944, 1
      %v1138 = vrot.slane %v945, 1
      %v1139 = vrot.slane %v946, 1
      %v1140 = vrot.slane %v947, 1
      %v1141 = vrot.slane %v948, 1
      %v1142 = vrot.slane %v949, 1
      %v1143 = vrot.slane %v950, 1
      %v1144 = vrot.slane %v951, 1
      %v1145 = vrot.slane %v952, 1
      %v1146 = vrot.slane %v953, 1
      %v1147 = vrot.slane %v954, 1
      %v1148 = vrot.slane %v955, 1
      %v1149 = vrot.slane %v956, 1
      %vm1150 = vcmp.lt.s32.totalorder %v367, 7
      %v1151 = vsel %vm1150, %v1148, %v1149
      %v1152 = vsel %vm1150, %v1147, %v1148
      %v1153 = vsel %vm1150, %v1146, %v1147
      %v1154 = vsel %vm1150, %v1145, %v1146
      %v1155 = vsel %vm1150, %v1144, %v1145
      %v1156 = vsel %vm1150, %v1143, %v1144
      %v1157 = vsel %vm1150, %v1142, %v1143
      %v1158 = vsel %vm1150, %v1141, %v1142
      %v1159 = vsel %vm1150, %v1140, %v1141
      %v1160 = vsel %vm1150, %v1139, %v1140
      %v1161 = vsel %vm1150, %v1138, %v1139
      %v1162 = vsel %vm1150, %v1137, %v1138
      %v1163 = vsel %vm1150, %v1136, %v1137
      %v1164 = vsel %vm1150, %v1135, %v1136
      %v1165 = vsel %vm1150, %v1134, %v1135
      %v1166 = vsel %vm1150, %v1133, %v1134
      %v1167 = vsel %vm1150, %v1132, %v1133
      %v1168 = vsel %vm1150, %v1131, %v1132
      %v1169 = vsel %vm1150, %v1130, %v1131
      %v1170 = vsel %vm1150, %v1129, %v1130
      %v1171 = vsel %vm1150, %v1128, %v1129
      %v1172 = vsel %vm1150, %v1127, %v1128
      %v1173 = vsel %vm1150, %v1126, %v1127
      %v1174 = vsel %vm1150, %v1125, %v1126
      %v1175 = vsel %vm1150, %v1124, %v1125
      %v1176 = vsel %vm1150, %v1123, %v1124
      %v1177 = vsel %vm1150, %v1122, %v1123
      %v1178 = vsel %vm1150, %v1121, %v1122
      %v1179 = vsel %vm1150, %v1120, %v1121
      %v1180 = vsel %vm1150, %v1119, %v1120
      %v1181 = vsel %vm1150, %v1118, %v1119
      %v1182 = vsel %vm1150, %v1149, %v1118
      %v1183 = vsel %vm815, 1, 0
      %v1184 = vsel %vm816, 1, 0
      %v1185 = vsel %vm817, 1, 0
      %v1186 = vsel %vm818, 1, 0
      %v1187 = vsel %vm819, 1, 0
      %v1188 = vsel %vm820, 1, 0
      %v1189 = vsel %vm821, 1, 0
      %v1190 = vsel %vm822, 1, 0
      %v1191 = vsel %vm823, 1, 0
      %v1192 = vsel %vm824, 1, 0
      %v1193 = vsel %vm825, 1, 0
      %v1194 = vsel %vm826, 1, 0
      %v1195 = vsel %vm827, 1, 0
      %v1196 = vsel %vm828, 1, 0
      %v1197 = vsel %vm829, 1, 0
      %v1198 = vsel %vm830, 1, 0
      %v1199 = vsel %vm831, 1, 0
      %v1200 = vsel %vm832, 1, 0
      %v1201 = vsel %vm833, 1, 0
      %v1202 = vsel %vm834, 1, 0
      %v1203 = vsel %vm835, 1, 0
      %v1204 = vsel %vm836, 1, 0
      %v1205 = vsel %vm837, 1, 0
      %v1206 = vsel %vm838, 1, 0
      %v1207 = vsel %vm839, 1, 0
      %v1208 = vsel %vm840, 1, 0
      %v1209 = vsel %vm841, 1, 0
      %v1210 = vsel %vm842, 1, 0
      %v1211 = vsel %vm843, 1, 0
      %v1212 = vsel %vm844, 1, 0
      %v1213 = vsel %vm845, 1, 0
      %v1214 = vsel %vm846, 1, 0
      %vm1215 = vcmp.eq.s32.totalorder %v1183, 1
      %vm1216 = vcmp.eq.s32.totalorder %v1184, 1
      %vm1217 = vcmp.eq.s32.totalorder %v1185, 1
      %vm1218 = vcmp.eq.s32.totalorder %v1186, 1
      %vm1219 = vcmp.eq.s32.totalorder %v1187, 1
      %vm1220 = vcmp.eq.s32.totalorder %v1188, 1
      %vm1221 = vcmp.eq.s32.totalorder %v1189, 1
      %vm1222 = vcmp.eq.s32.totalorder %v1190, 1
      %vm1223 = vcmp.eq.s32.totalorder %v1191, 1
      %vm1224 = vcmp.eq.s32.totalorder %v1192, 1
      %vm1225 = vcmp.eq.s32.totalorder %v1193, 1
      %vm1226 = vcmp.eq.s32.totalorder %v1194, 1
      %vm1227 = vcmp.eq.s32.totalorder %v1195, 1
      %vm1228 = vcmp.eq.s32.totalorder %v1196, 1
      %vm1229 = vcmp.eq.s32.totalorder %v1197, 1
      %vm1230 = vcmp.eq.s32.totalorder %v1198, 1
      %vm1231 = vcmp.eq.s32.totalorder %v1199, 1
      %vm1232 = vcmp.eq.s32.totalorder %v1200, 1
      %vm1233 = vcmp.eq.s32.totalorder %v1201, 1
      %vm1234 = vcmp.eq.s32.totalorder %v1202, 1
      %vm1235 = vcmp.eq.s32.totalorder %v1203, 1
      %vm1236 = vcmp.eq.s32.totalorder %v1204, 1
      %vm1237 = vcmp.eq.s32.totalorder %v1205, 1
      %vm1238 = vcmp.eq.s32.totalorder %v1206, 1
      %vm1239 = vcmp.eq.s32.totalorder %v1207, 1
      %vm1240 = vcmp.eq.s32.totalorder %v1208, 1
      %vm1241 = vcmp.eq.s32.totalorder %v1209, 1
      %vm1242 = vcmp.eq.s32.totalorder %v1210, 1
      %vm1243 = vcmp.eq.s32.totalorder %v1211, 1
      %vm1244 = vcmp.eq.s32.totalorder %v1212, 1
      %vm1245 = vcmp.eq.s32.totalorder %v1213, 1
      %vm1246 = vcmp.eq.s32.totalorder %v1214, 1
      %v1247 = vsel %vm1215, 0.0, %v1181
      %v1248 = vsel %vm1216, 0.0, %v1180
      %v1249 = vsel %vm1217, 0.0, %v1179
      %v1250 = vsel %vm1218, 0.0, %v1178
      %v1251 = vsel %vm1219, 0.0, %v1177
      %v1252 = vsel %vm1220, 0.0, %v1176
      %v1253 = vsel %vm1221, 0.0, %v1175
      %v1254 = vsel %vm1222, 0.0, %v1174
      %v1255 = vsel %vm1223, 0.0, %v1173
      %v1256 = vsel %vm1224, 0.0, %v1172
      %v1257 = vsel %vm1225, 0.0, %v1171
      %v1258 = vsel %vm1226, 0.0, %v1170
      %v1259 = vsel %vm1227, 0.0, %v1169
      %v1260 = vsel %vm1228, 0.0, %v1168
      %v1261 = vsel %vm1229, 0.0, %v1167
      %v1262 = vsel %vm1230, 0.0, %v1166
      %v1263 = vsel %vm1231, 0.0, %v1165
      %v1264 = vsel %vm1232, 0.0, %v1164
      %v1265 = vsel %vm1233, 0.0, %v1163
      %v1266 = vsel %vm1234, 0.0, %v1162
      %v1267 = vsel %vm1235, 0.0, %v1161
      %v1268 = vsel %vm1236, 0.0, %v1160
      %v1269 = vsel %vm1237, 0.0, %v1159
      %v1270 = vsel %vm1238, 0.0, %v1158
      %v1271 = vsel %vm1239, 0.0, %v1157
      %v1272 = vsel %vm1240, 0.0, %v1156
      %v1273 = vsel %vm1241, 0.0, %v1155
      %v1274 = vsel %vm1242, 0.0, %v1154
      %v1275 = vsel %vm1243, 0.0, %v1153
      %v1276 = vsel %vm1244, 0.0, %v1152
      %v1277 = vsel %vm1245, 0.0, %v1151
      %v1278 = vsel %vm1246, 0.0, %v1182
      %1311 = vrot.lane.b32.xlu0 %v925, 4
      %v1312 = vpop.permute.xlu0 %1311
      %1313 = vrot.lane.b32.xlu0 %v926, 4
      %v1314 = vpop.permute.xlu0 %1313
      %1315 = vrot.lane.b32.xlu0 %v927, 4
      %v1316 = vpop.permute.xlu0 %1315
      %1317 = vrot.lane.b32.xlu0 %v928, 4
      %v1318 = vpop.permute.xlu0 %1317
      %1319 = vrot.lane.b32.xlu0 %v929, 4
      %v1320 = vpop.permute.xlu0 %1319
      %1321 = vrot.lane.b32.xlu0 %v930, 4
      %v1322 = vpop.permute.xlu0 %1321
      %1323 = vrot.lane.b32.xlu0 %v931, 4
      %v1324 = vpop.permute.xlu0 %1323
      %1325 = vrot.lane.b32.xlu0 %v932, 4
      %v1326 = vpop.permute.xlu0 %1325
      %1327 = vrot.lane.b32.xlu0 %v933, 4
      %v1328 = vpop.permute.xlu0 %1327
      %1329 = vrot.lane.b32.xlu0 %v934, 4
      %v1330 = vpop.permute.xlu0 %1329
      %1331 = vrot.lane.b32.xlu0 %v935, 4
      %v1332 = vpop.permute.xlu0 %1331
      %1333 = vrot.lane.b32.xlu0 %v936, 4
      %v1334 = vpop.permute.xlu0 %1333
      %1335 = vrot.lane.b32.xlu0 %v937, 4
      %v1336 = vpop.permute.xlu0 %1335
      %1337 = vrot.lane.b32.xlu0 %v938, 4
      %v1338 = vpop.permute.xlu0 %1337
      %1339 = vrot.lane.b32.xlu0 %v939, 4
      %v1340 = vpop.permute.xlu0 %1339
      %1341 = vrot.lane.b32.xlu0 %v940, 4
      %v1342 = vpop.permute.xlu0 %1341
      %1343 = vrot.lane.b32.xlu0 %v941, 4
      %v1344 = vpop.permute.xlu0 %1343
      %1345 = vrot.lane.b32.xlu0 %v942, 4
      %v1346 = vpop.permute.xlu0 %1345
      %1347 = vrot.lane.b32.xlu0 %v943, 4
      %v1348 = vpop.permute.xlu0 %1347
      %1349 = vrot.lane.b32.xlu0 %v944, 4
      %v1350 = vpop.permute.xlu0 %1349
      %1351 = vrot.lane.b32.xlu0 %v945, 4
      %v1352 = vpop.permute.xlu0 %1351
      %1353 = vrot.lane.b32.xlu0 %v946, 4
      %v1354 = vpop.permute.xlu0 %1353
      %1355 = vrot.lane.b32.xlu0 %v947, 4
      %v1356 = vpop.permute.xlu0 %1355
      %1357 = vrot.lane.b32.xlu0 %v948, 4
      %v1358 = vpop.permute.xlu0 %1357
      %1359 = vrot.lane.b32.xlu0 %v949, 4
      %v1360 = vpop.permute.xlu0 %1359
      %1361 = vrot.lane.b32.xlu0 %v950, 4
      %v1362 = vpop.permute.xlu0 %1361
      %1363 = vrot.lane.b32.xlu0 %v951, 4
      %v1364 = vpop.permute.xlu0 %1363
      %1365 = vrot.lane.b32.xlu0 %v952, 4
      %v1366 = vpop.permute.xlu0 %1365
      %1367 = vrot.lane.b32.xlu0 %v953, 4
      %v1368 = vpop.permute.xlu0 %1367
      %1369 = vrot.lane.b32.xlu0 %v954, 4
      %v1370 = vpop.permute.xlu0 %1369
      %1371 = vrot.lane.b32.xlu0 %v955, 4
      %v1372 = vpop.permute.xlu0 %1371
      %1373 = vrot.lane.b32.xlu0 %v956, 4
      %v1374 = vpop.permute.xlu0 %1373
      %1439 = vrot.lane.b32.xlu0 %v1247, 8
      %v1440 = vpop.permute.xlu0 %1439
      %1441 = vrot.lane.b32.xlu0 %v1248, 8
      %v1442 = vpop.permute.xlu0 %1441
      %1443 = vrot.lane.b32.xlu0 %v1249, 8
      %v1444 = vpop.permute.xlu0 %1443
      %1445 = vrot.lane.b32.xlu0 %v1250, 8
      %v1446 = vpop.permute.xlu0 %1445
      %1447 = vrot.lane.b32.xlu0 %v1251, 8
      %v1448 = vpop.permute.xlu0 %1447
      %1449 = vrot.lane.b32.xlu0 %v1252, 8
      %v1450 = vpop.permute.xlu0 %1449
      %1451 = vrot.lane.b32.xlu0 %v1253, 8
      %v1452 = vpop.permute.xlu0 %1451
      %1453 = vrot.lane.b32.xlu0 %v1254, 8
      %v1454 = vpop.permute.xlu0 %1453
      %1455 = vrot.lane.b32.xlu0 %v1255, 8
      %v1456 = vpop.permute.xlu0 %1455
      %1457 = vrot.lane.b32.xlu0 %v1256, 8
      %v1458 = vpop.permute.xlu0 %1457
      %1459 = vrot.lane.b32.xlu0 %v1257, 8
      %v1460 = vpop.permute.xlu0 %1459
      %1461 = vrot.lane.b32.xlu0 %v1258, 8
      %v1462 = vpop.permute.xlu0 %1461
      %1463 = vrot.lane.b32.xlu0 %v1259, 8
      %v1464 = vpop.permute.xlu0 %1463
      %1465 = vrot.lane.b32.xlu0 %v1260, 8
      %v1466 = vpop.permute.xlu0 %1465
      %1467 = vrot.lane.b32.xlu0 %v1261, 8
      %v1468 = vpop.permute.xlu0 %1467
      %1469 = vrot.lane.b32.xlu0 %v1262, 8
      %v1470 = vpop.permute.xlu0 %1469
      %1471 = vrot.lane.b32.xlu0 %v1263, 8
      %v1472 = vpop.permute.xlu0 %1471
      %1473 = vrot.lane.b32.xlu0 %v1264, 8
      %v1474 = vpop.permute.xlu0 %1473
      %1475 = vrot.lane.b32.xlu0 %v1265, 8
      %v1476 = vpop.permute.xlu0 %1475
      %1477 = vrot.lane.b32.xlu0 %v1266, 8
      %v1478 = vpop.permute.xlu0 %1477
      %1479 = vrot.lane.b32.xlu0 %v1267, 8
      %v1480 = vpop.permute.xlu0 %1479
      %1481 = vrot.lane.b32.xlu0 %v1268, 8
      %v1482 = vpop.permute.xlu0 %1481
      %1483 = vrot.lane.b32.xlu0 %v1269, 8
      %v1484 = vpop.permute.xlu0 %1483
      %1485 = vrot.lane.b32.xlu0 %v1270, 8
      %v1486 = vpop.permute.xlu0 %1485
      %1487 = vrot.lane.b32.xlu0 %v1271, 8
      %v1488 = vpop.permute.xlu0 %1487
      %1489 = vrot.lane.b32.xlu0 %v1272, 8
      %v1490 = vpop.permute.xlu0 %1489
      %1491 = vrot.lane.b32.xlu0 %v1273, 8
      %v1492 = vpop.permute.xlu0 %1491
      %1493 = vrot.lane.b32.xlu0 %v1274, 8
      %v1494 = vpop.permute.xlu0 %1493
      %1495 = vrot.lane.b32.xlu0 %v1275, 8
      %v1496 = vpop.permute.xlu0 %1495
      %1497 = vrot.lane.b32.xlu0 %v1276, 8
      %v1498 = vpop.permute.xlu0 %1497
      %1499 = vrot.lane.b32.xlu0 %v1277, 8
      %v1500 = vpop.permute.xlu0 %1499
      %1501 = vrot.lane.b32.xlu0 %v1278, 8
      %v1502 = vpop.permute.xlu0 %1501
      %vm1535 = vcmask 31744
      %v1536 = vsel %vm1535, %v1086, %v1312
      %v1537 = vsel %vm1535, %v1087, %v1314
      %v1538 = vsel %vm1535, %v1088, %v1316
      %v1539 = vsel %vm1535, %v1089, %v1318
      %v1540 = vsel %vm1535, %v1090, %v1320
      %v1541 = vsel %vm1535, %v1091, %v1322
      %v1542 = vsel %vm1535, %v1092, %v1324
      %v1543 = vsel %vm1535, %v1093, %v1326
      %v1544 = vsel %vm1535, %v1094, %v1328
      %v1545 = vsel %vm1535, %v1095, %v1330
      %v1546 = vsel %vm1535, %v1096, %v1332
      %v1547 = vsel %vm1535, %v1097, %v1334
      %v1548 = vsel %vm1535, %v1098, %v1336
      %v1549 = vsel %vm1535, %v1099, %v1338
      %v1550 = vsel %vm1535, %v1100, %v1340
      %v1551 = vsel %vm1535, %v1101, %v1342
      %v1552 = vsel %vm1535, %v1102, %v1344
      %v1553 = vsel %vm1535, %v1103, %v1346
      %v1554 = vsel %vm1535, %v1104, %v1348
      %v1555 = vsel %vm1535, %v1105, %v1350
      %v1556 = vsel %vm1535, %v1106, %v1352
      %v1557 = vsel %vm1535, %v1107, %v1354
      %v1558 = vsel %vm1535, %v1108, %v1356
      %v1559 = vsel %vm1535, %v1109, %v1358
      %v1560 = vsel %vm1535, %v1110, %v1360
      %v1561 = vsel %vm1535, %v1111, %v1362
      %v1562 = vsel %vm1535, %v1112, %v1364
      %v1563 = vsel %vm1535, %v1113, %v1366
      %v1564 = vsel %vm1535, %v1114, %v1368
      %v1565 = vsel %vm1535, %v1115, %v1370
      %v1566 = vsel %vm1535, %v1116, %v1372
      %v1567 = vsel %vm1535, %v1117, %v1374
      %vm1568 = vcmask 64512
      %v1569 = vsel %vm1568, %v1536, %v1440
      %v1570 = vsel %vm1568, %v1537, %v1442
      %v1571 = vsel %vm1568, %v1538, %v1444
      %v1572 = vsel %vm1568, %v1539, %v1446
      %v1573 = vsel %vm1568, %v1540, %v1448
      %v1574 = vsel %vm1568, %v1541, %v1450
      %v1575 = vsel %vm1568, %v1542, %v1452
      %v1576 = vsel %vm1568, %v1543, %v1454
      %v1577 = vsel %vm1568, %v1544, %v1456
      %v1578 = vsel %vm1568, %v1545, %v1458
      %v1579 = vsel %vm1568, %v1546, %v1460
      %v1580 = vsel %vm1568, %v1547, %v1462
      %v1581 = vsel %vm1568, %v1548, %v1464
      %v1582 = vsel %vm1568, %v1549, %v1466
      %v1583 = vsel %vm1568, %v1550, %v1468
      %v1584 = vsel %vm1568, %v1551, %v1470
      %v1585 = vsel %vm1568, %v1552, %v1472
      %v1586 = vsel %vm1568, %v1553, %v1474
      %v1587 = vsel %vm1568, %v1554, %v1476
      %v1588 = vsel %vm1568, %v1555, %v1478
      %v1589 = vsel %vm1568, %v1556, %v1480
      %v1590 = vsel %vm1568, %v1557, %v1482
      %v1591 = vsel %vm1568, %v1558, %v1484
      %v1592 = vsel %vm1568, %v1559, %v1486
      %v1593 = vsel %vm1568, %v1560, %v1488
      %v1594 = vsel %vm1568, %v1561, %v1490
      %v1595 = vsel %vm1568, %v1562, %v1492
      %v1596 = vsel %vm1568, %v1563, %v1494
      %v1597 = vsel %vm1568, %v1564, %v1496
      %v1598 = vsel %vm1568, %v1565, %v1498
      %v1599 = vsel %vm1568, %v1566, %v1500
      %v1600 = vsel %vm1568, %v1567, %v1502
      %v1601 = vpack.c.bf16 %v1570, %v1569
      %v1602 = vpack.c.bf16 %v1572, %v1571
      %v1603 = vpack.c.bf16 %v1574, %v1573
      %v1604 = vpack.c.bf16 %v1576, %v1575
      %v1605 = vpack.c.bf16 %v1578, %v1577
      %v1606 = vpack.c.bf16 %v1580, %v1579
      %v1607 = vpack.c.bf16 %v1582, %v1581
      %v1608 = vpack.c.bf16 %v1584, %v1583
      %v1609 = vpack.c.bf16 %v1586, %v1585
      %v1610 = vpack.c.bf16 %v1588, %v1587
      %v1611 = vpack.c.bf16 %v1590, %v1589
      %v1612 = vpack.c.bf16 %v1592, %v1591
      %v1613 = vpack.c.bf16 %v1594, %v1593
      %v1614 = vpack.c.bf16 %v1596, %v1595
      %v1615 = vpack.c.bf16 %v1598, %v1597
      %v1616 = vpack.c.bf16 %v1600, %v1599
      %1633 = vrot.lane.b32.xlu0 %v1601, 12
      %v1634 = vpop.permute.xlu0 %1633
      %1635 = vrot.lane.b32.xlu0 %v1602, 12
      %v1636 = vpop.permute.xlu0 %1635
      %1637 = vrot.lane.b32.xlu0 %v1603, 12
      %v1638 = vpop.permute.xlu0 %1637
      %1639 = vrot.lane.b32.xlu0 %v1604, 12
      %v1640 = vpop.permute.xlu0 %1639
      %1641 = vrot.lane.b32.xlu0 %v1605, 12
      %v1642 = vpop.permute.xlu0 %1641
      %1643 = vrot.lane.b32.xlu0 %v1606, 12
      %v1644 = vpop.permute.xlu0 %1643
      %1645 = vrot.lane.b32.xlu0 %v1607, 12
      %v1646 = vpop.permute.xlu0 %1645
      %1647 = vrot.lane.b32.xlu0 %v1608, 12
      %v1648 = vpop.permute.xlu0 %1647
      %1649 = vrot.lane.b32.xlu0 %v1609, 12
      %v1650 = vpop.permute.xlu0 %1649
      %1651 = vrot.lane.b32.xlu0 %v1610, 12
      %v1652 = vpop.permute.xlu0 %1651
      %1653 = vrot.lane.b32.xlu0 %v1611, 12
      %v1654 = vpop.permute.xlu0 %1653
      %1655 = vrot.lane.b32.xlu0 %v1612, 12
      %v1656 = vpop.permute.xlu0 %1655
      %1657 = vrot.lane.b32.xlu0 %v1613, 12
      %v1658 = vpop.permute.xlu0 %1657
      %1659 = vrot.lane.b32.xlu0 %v1614, 12
      %v1660 = vpop.permute.xlu0 %1659
      %1661 = vrot.lane.b32.xlu0 %v1615, 12
      %v1662 = vpop.permute.xlu0 %1661
      %1663 = vrot.lane.b32.xlu0 %v1616, 12
      %v1664 = vpop.permute.xlu0 %1663
      %1666 = vrot.lane.b32.xlu0 %v1602, 24
      %v1667 = vpop.permute.xlu0 %1666
      %1668 = vrot.lane.b32.xlu0 %v1603, 24
      %v1669 = vpop.permute.xlu0 %1668
      %1670 = vrot.lane.b32.xlu0 %v1604, 24
      %v1671 = vpop.permute.xlu0 %1670
      %1672 = vrot.lane.b32.xlu0 %v1605, 24
      %v1673 = vpop.permute.xlu0 %1672
      %1674 = vrot.lane.b32.xlu0 %v1606, 24
      %v1675 = vpop.permute.xlu0 %1674
      %1676 = vrot.lane.b32.xlu0 %v1607, 24
      %v1677 = vpop.permute.xlu0 %1676
      %1678 = vrot.lane.b32.xlu0 %v1608, 24
      %v1679 = vpop.permute.xlu0 %1678
      %1680 = vrot.lane.b32.xlu0 %v1609, 24
      %v1681 = vpop.permute.xlu0 %1680
      %1682 = vrot.lane.b32.xlu0 %v1610, 24
      %v1683 = vpop.permute.xlu0 %1682
      %1684 = vrot.lane.b32.xlu0 %v1611, 24
      %v1685 = vpop.permute.xlu0 %1684
      %1686 = vrot.lane.b32.xlu0 %v1612, 24
      %v1687 = vpop.permute.xlu0 %1686
      %1688 = vrot.lane.b32.xlu0 %v1613, 24
      %v1689 = vpop.permute.xlu0 %1688
      %1690 = vrot.lane.b32.xlu0 %v1614, 24
      %v1691 = vpop.permute.xlu0 %1690
      %1692 = vrot.lane.b32.xlu0 %v1615, 24
      %v1693 = vpop.permute.xlu0 %1692
      %1694 = vrot.lane.b32.xlu0 %v1616, 24
      %v1695 = vpop.permute.xlu0 %1694
      %1696 = vrot.lane.b32.xlu0 0, 24
      %v1697 = vpop.permute.xlu0 %1696
      %vm1698 = vcmask 97280
      %v1701 = vsel %vm1698, 0, %v1634
      %v1704 = vsel %vm1698, %v1601, %v1636
      %v1707 = vsel %vm1698, %v1602, %v1638
      %v1710 = vsel %vm1698, %v1603, %v1640
      %v1713 = vsel %vm1698, %v1604, %v1642
      %v1716 = vsel %vm1698, %v1605, %v1644
      %v1719 = vsel %vm1698, %v1606, %v1646
      %v1722 = vsel %vm1698, %v1607, %v1648
      %v1725 = vsel %vm1698, %v1608, %v1650
      %v1728 = vsel %vm1698, %v1609, %v1652
      %v1731 = vsel %vm1698, %v1610, %v1654
      %v1734 = vsel %vm1698, %v1611, %v1656
      %v1737 = vsel %vm1698, %v1612, %v1658
      %v1740 = vsel %vm1698, %v1613, %v1660
      %v1743 = vsel %vm1698, %v1614, %v1662
      %v1746 = vsel %vm1698, %v1615, %v1664
      %vm1747 = vcmask 195584
      %v1749 = vsel %vm1747, %v1701, %v1667
      %v1751 = vsel %vm1747, %v1704, %v1669
      %v1753 = vsel %vm1747, %v1707, %v1671
      %v1755 = vsel %vm1747, %v1710, %v1673
      %v1757 = vsel %vm1747, %v1713, %v1675
      %v1759 = vsel %vm1747, %v1716, %v1677
      %v1761 = vsel %vm1747, %v1719, %v1679
      %v1763 = vsel %vm1747, %v1722, %v1681
      %v1765 = vsel %vm1747, %v1725, %v1683
      %v1767 = vsel %vm1747, %v1728, %v1685
      %v1769 = vsel %vm1747, %v1731, %v1687
      %v1771 = vsel %vm1747, %v1734, %v1689
      %v1773 = vsel %vm1747, %v1737, %v1691
      %v1775 = vsel %vm1747, %v1740, %v1693
      %v1777 = vsel %vm1747, %v1743, %v1695
      %v1779 = vsel %vm1747, %v1746, %v1697
      %v1780 = vld [vmem:[%s3] sm:$0xf]
      %v1781 = vld [vmem:[%s3 + $0x4] sm:$0xf]
      %v1782 = vld [vmem:[%s3 + $0x8] sm:$0xf]
      %v1783 = vld [vmem:[%s3 + $0xc] sm:$0xf]
      %v1784 = vld [vmem:[%s3 + $0x10] sm:$0x3]
      %v1790 = vunpack.c.l.b16 %v1780
      %v1791 = vunpack.c.l.b16 %v1781
      %v1792 = vunpack.c.l.b16 %v1782
      %v1793 = vunpack.c.l.b16 %v1783
      %v1794 = vunpack.c.l.b16 %v1784
      %v1795 = vpack.c.b16 %v1791, %v1790
      %v1796 = vpack.c.b16 %v1793, %v1792
      %v1797 = vpack.c.b16 %v1794, %v1794
      %vm1800 = vcmask 293888
      %v1801 = vsel %vm1800, %v1749, 0
      %v1803 = vsel %vm1800, %v1751, 0
      %v1805 = vsel %vm1800, %v1753, 0
      %v1807 = vsel %vm1800, %v1755, 0
      %v1809 = vsel %vm1800, %v1757, 0
      %v1811 = vsel %vm1800, %v1759, 0
      %v1813 = vsel %vm1800, %v1761, 0
      %v1815 = vsel %vm1800, %v1763, 0
      %v1817 = vsel %vm1800, %v1765, 0
      %v1819 = vsel %vm1800, %v1767, 0
      %v1821 = vsel %vm1800, %v1769, 0
      %v1823 = vsel %vm1800, %v1771, 0
      %v1825 = vsel %vm1800, %v1773, 0
      %v1827 = vsel %vm1800, %v1775, 0
      %v1829 = vsel %vm1800, %v1777, 0
      %v1831 = vsel %vm1800, %v1779, 0
      %vm1833 = vcmask 1041408
      %v1835 = vsel %vm1833, %v1797, 0
      %1837 = vmatprep.subr.bf16.mxu0 0
      %1838 = vmatpush1.bf16.msra.mxu0 %v1795
      %1839 = vmatprep.subr.bf16.mxu0 0
      %1840 = vmatpush1.bf16.msra.mxu0 %v1796
      %1841 = vmatprep.subr.bf16.mxu0 0
      %1842 = vmatpush1.bf16.msra.mxu0 %v1835
      %1843 = vmatprep.subr.bf16.mxu0 0
      %1844 = vmatpush1.bf16.msra.mxu0 0
      %1845 = vmatprep.subr.bf16.mxu0 0
      %1846 = vmatpush1.bf16.msra.mxu0 0
      %1847 = vmatprep.subr.bf16.mxu0 0
      %1848 = vmatpush1.bf16.msra.mxu0 0
      %1849 = vmatprep.subr.bf16.mxu0 0
      %1850 = vmatpush1.bf16.msra.mxu0 0
      %1851 = vmatprep.subr.bf16.mxu0 0
      %1852 = vmatpush1.bf16.msra.mxu0 0
      %1853 = vmatprep.subr.bf16.mxu0 0
      %1854 = vmatpush1.bf16.msra.mxu0 0
      %1855 = vmatprep.subr.bf16.mxu0 0
      %1856 = vmatpush1.bf16.msra.mxu0 0
      %1857 = vmatprep.subr.bf16.mxu0 0
      %1858 = vmatpush1.bf16.msra.mxu0 0
      %1859 = vmatprep.subr.bf16.mxu0 0
      %1860 = vmatpush1.bf16.msra.mxu0 0
      %1861 = vmatprep.subr.bf16.mxu0 0
      %1862 = vmatpush1.bf16.msra.mxu0 0
      %1863 = vmatprep.subr.bf16.mxu0 0
      %1864 = vmatpush1.bf16.msra.mxu0 0
      %1865 = vmatprep.subr.bf16.mxu0 0
      %1866 = vmatpush1.bf16.msra.mxu0 0
      %1867 = vmatprep.subr.bf16.mxu0 0
      %1868 = vmatpush1.bf16.msra.mxu0 0
      %1869 = vmatprep.mubr.bf16.mxu0 0
      %1870 = vmatmul.mubr.bf16.gmra.mrb[0].mxu0 %v1801
      %v1871 = vpop.f32.mrb[0].mxu0
      %v1872 = vadd.f32 0.0, %v1871
      %v1873 = vpop.f32.mrb[0].mxu0
      %v1874 = vpop.f32.mrb[0].mxu0
      %v1875 = vadd.f32 0.0, %v1874
      %v1876 = vpop.f32.mrb[0].mxu0
      %1877 = vmatprep.mubr.bf16.mxu0 0
      %1878 = vmatmul.mubr.bf16.gmra.mrb[0].mxu0 %v1803
      %v1879 = vpop.f32.mrb[0].mxu0
      %v1880 = vadd.f32 0.0, %v1879
      %v1881 = vpop.f32.mrb[0].mxu0
      %v1882 = vpop.f32.mrb[0].mxu0
      %v1883 = vadd.f32 0.0, %v1882
      %v1884 = vpop.f32.mrb[0].mxu0
      %1885 = vmatprep.mubr.bf16.mxu0 0
      %1886 = vmatmul.mubr.bf16.gmra.mrb[0].mxu0 %v1805
      %v1887 = vpop.f32.mrb[0].mxu0
      %v1888 = vadd.f32 0.0, %v1887
      %v1889 = vpop.f32.mrb[0].mxu0
      %v1890 = vpop.f32.mrb[0].mxu0
      %v1891 = vadd.f32 0.0, %v1890
      %v1892 = vpop.f32.mrb[0].mxu0
      %1893 = vmatprep.mubr.bf16.mxu0 0
      %1894 = vmatmul.mubr.bf16.gmra.mrb[0].mxu0 %v1807
      %v1895 = vpop.f32.mrb[0].mxu0
      %v1896 = vadd.f32 0.0, %v1895
      %v1897 = vpop.f32.mrb[0].mxu0
      %v1898 = vpop.f32.mrb[0].mxu0
      %v1899 = vadd.f32 0.0, %v1898
      %v1900 = vpop.f32.mrb[0].mxu0
      %1901 = vmatprep.mubr.bf16.mxu0 0
      %1902 = vmatmul.mubr.bf16.gmra.mrb[0].mxu0 %v1809
      %v1903 = vpop.f32.mrb[0].mxu0
      %v1904 = vadd.f32 0.0, %v1903
      %v1905 = vpop.f32.mrb[0].mxu0
      %v1906 = vpop.f32.mrb[0].mxu0
      %v1907 = vadd.f32 0.0, %v1906
      %v1908 = vpop.f32.mrb[0].mxu0
      %1909 = vmatprep.mubr.bf16.mxu0 0
      %1910 = vmatmul.mubr.bf16.gmra.mrb[0].mxu0 %v1811
      %v1911 = vpop.f32.mrb[0].mxu0
      %v1912 = vadd.f32 0.0, %v1911
      %v1913 = vpop.f32.mrb[0].mxu0
      %v1914 = vpop.f32.mrb[0].mxu0
      %v1915 = vadd.f32 0.0, %v1914
      %v1916 = vpop.f32.mrb[0].mxu0
      %1917 = vmatprep.mubr.bf16.mxu0 0
      %1918 = vmatmul.mubr.bf16.gmra.mrb[0].mxu0 %v1813
      %v1919 = vpop.f32.mrb[0].mxu0
      %v1920 = vadd.f32 0.0, %v1919
      %v1921 = vpop.f32.mrb[0].mxu0
      %v1922 = vpop.f32.mrb[0].mxu0
      %v1923 = vadd.f32 0.0, %v1922
      %v1924 = vpop.f32.mrb[0].mxu0
      %1925 = vmatprep.mubr.bf16.mxu0 0
      %1926 = vmatmul.mubr.bf16.gmra.mrb[0].mxu0 %v1815
      %v1927 = vpop.f32.mrb[0].mxu0
      %v1928 = vadd.f32 0.0, %v1927
      %v1929 = vpop.f32.mrb[0].mxu0
      %v1930 = vpop.f32.mrb[0].mxu0
      %v1931 = vadd.f32 0.0, %v1930
      %v1932 = vpop.f32.mrb[0].mxu0
      %1933 = vmatprep.mubr.bf16.mxu0 0
      %1934 = vmatmul.mubr.bf16.gmra.mrb[0].mxu0 %v1817
      %v1935 = vpop.f32.mrb[0].mxu0
      %v1936 = vadd.f32 0.0, %v1935
      %v1937 = vpop.f32.mrb[0].mxu0
      %v1938 = vpop.f32.mrb[0].mxu0
      %v1939 = vadd.f32 0.0, %v1938
      %v1940 = vpop.f32.mrb[0].mxu0
      %1941 = vmatprep.mubr.bf16.mxu0 0
      %1942 = vmatmul.mubr.bf16.gmra.mrb[0].mxu0 %v1819
      %v1943 = vpop.f32.mrb[0].mxu0
      %v1944 = vadd.f32 0.0, %v1943
      %v1945 = vpop.f32.mrb[0].mxu0
      %v1946 = vpop.f32.mrb[0].mxu0
      %v1947 = vadd.f32 0.0, %v1946
      %v1948 = vpop.f32.mrb[0].mxu0
      %1949 = vmatprep.mubr.bf16.mxu0 0
      %1950 = vmatmul.mubr.bf16.gmra.mrb[0].mxu0 %v1821
      %v1951 = vpop.f32.mrb[0].mxu0
      %v1952 = vadd.f32 0.0, %v1951
      %v1953 = vpop.f32.mrb[0].mxu0
      %v1954 = vpop.f32.mrb[0].mxu0
      %v1955 = vadd.f32 0.0, %v1954
      %v1956 = vpop.f32.mrb[0].mxu0
      %1957 = vmatprep.mubr.bf16.mxu0 0
      %1958 = vmatmul.mubr.bf16.gmra.mrb[0].mxu0 %v1823
      %v1959 = vpop.f32.mrb[0].mxu0
      %v1960 = vadd.f32 0.0, %v1959
      %v1961 = vpop.f32.mrb[0].mxu0
      %v1962 = vpop.f32.mrb[0].mxu0
      %v1963 = vadd.f32 0.0, %v1962
      %v1964 = vpop.f32.mrb[0].mxu0
      %1965 = vmatprep.mubr.bf16.mxu0 0
      %1966 = vmatmul.mubr.bf16.gmra.mrb[0].mxu0 %v1825
      %v1967 = vpop.f32.mrb[0].mxu0
      %v1968 = vadd.f32 0.0, %v1967
      %v1969 = vpop.f32.mrb[0].mxu0
      %v1970 = vpop.f32.mrb[0].mxu0
      %v1971 = vadd.f32 0.0, %v1970
      %v1972 = vpop.f32.mrb[0].mxu0
      %1973 = vmatprep.mubr.bf16.mxu0 0
      %1974 = vmatmul.mubr.bf16.gmra.mrb[0].mxu0 %v1827
      %v1975 = vpop.f32.mrb[0].mxu0
      %v1976 = vadd.f32 0.0, %v1975
      %v1977 = vpop.f32.mrb[0].mxu0
      %v1978 = vpop.f32.mrb[0].mxu0
      %v1979 = vadd.f32 0.0, %v1978
      %v1980 = vpop.f32.mrb[0].mxu0
      %1981 = vmatprep.mubr.bf16.mxu0 0
      %1982 = vmatmul.mubr.bf16.gmra.mrb[0].mxu0 %v1829
      %v1983 = vpop.f32.mrb[0].mxu0
      %v1984 = vadd.f32 0.0, %v1983
      %v1985 = vpop.f32.mrb[0].mxu0
      %v1986 = vpop.f32.mrb[0].mxu0
      %v1987 = vadd.f32 0.0, %v1986
      %v1988 = vpop.f32.mrb[0].mxu0
      %1989 = vmatprep.mubr.bf16.mxu0 0
      %1990 = vmatmul.mubr.bf16.gmra.mrb[0].mxu0 %v1831
      %v1991 = vpop.f32.mrb[0].mxu0
      %v1992 = vadd.f32 0.0, %v1991
      %v1993 = vpop.f32.mrb[0].mxu0
      %v1994 = vpop.f32.mrb[0].mxu0
      %v1995 = vadd.f32 0.0, %v1994
      %v1996 = vpop.f32.mrb[0].mxu0
      %1997 = vdwg.mxu0
      %v1998 = vld [vmem:[%s4] sm:$0x1]
      %v2000 = vlaneseq
      %v2001 = vshrl.u32 %v2000, 7
      %v2002 = vsub.s32 0, %v2001
      %v2003 = vrot.slane %v1998, %v2002
      %v2005 = vmul.f32 %v1872, %v2003
      %v2006 = vmul.f32 %v1875, %v2003
      %v2007 = vmul.f32 %v1880, %v2003
      %v2008 = vmul.f32 %v1883, %v2003
      %v2009 = vmul.f32 %v1888, %v2003
      %v2010 = vmul.f32 %v1891, %v2003
      %v2011 = vmul.f32 %v1896, %v2003
      %v2012 = vmul.f32 %v1899, %v2003
      %v2013 = vmul.f32 %v1904, %v2003
      %v2014 = vmul.f32 %v1907, %v2003
      %v2015 = vmul.f32 %v1912, %v2003
      %v2016 = vmul.f32 %v1915, %v2003
      %v2017 = vmul.f32 %v1920, %v2003
      %v2018 = vmul.f32 %v1923, %v2003
      %v2019 = vmul.f32 %v1928, %v2003
      %v2020 = vmul.f32 %v1931, %v2003
      %v2021 = vmul.f32 %v1936, %v2003
      %v2022 = vmul.f32 %v1939, %v2003
      %v2023 = vmul.f32 %v1944, %v2003
      %v2024 = vmul.f32 %v1947, %v2003
      %v2025 = vmul.f32 %v1952, %v2003
      %v2026 = vmul.f32 %v1955, %v2003
      %v2027 = vmul.f32 %v1960, %v2003
      %v2028 = vmul.f32 %v1963, %v2003
      %v2029 = vmul.f32 %v1968, %v2003
      %v2030 = vmul.f32 %v1971, %v2003
      %v2031 = vmul.f32 %v1976, %v2003
      %v2032 = vmul.f32 %v1979, %v2003
      %v2033 = vmul.f32 %v1984, %v2003
      %v2034 = vmul.f32 %v1987, %v2003
      %v2035 = vmul.f32 %v1992, %v2003
      %v2036 = vmul.f32 %v1995, %v2003
      %v2037 = vld [vmem:[%s5] sm:$0x1]
      %v2039 = vlaneseq
      %v2040 = vshrl.u32 %v2039, 7
      %v2041 = vsub.s32 0, %v2040
      %v2042 = vrot.slane %v2037, %v2041
      %v2044 = vadd.f32 %v2005, %v2042
      %v2045 = vadd.f32 %v2006, %v2042
      %v2046 = vadd.f32 %v2007, %v2042
      %v2047 = vadd.f32 %v2008, %v2042
      %v2048 = vadd.f32 %v2009, %v2042
      %v2049 = vadd.f32 %v2010, %v2042
      %v2050 = vadd.f32 %v2011, %v2042
      %v2051 = vadd.f32 %v2012, %v2042
      %v2052 = vadd.f32 %v2013, %v2042
      %v2053 = vadd.f32 %v2014, %v2042
      %v2054 = vadd.f32 %v2015, %v2042
      %v2055 = vadd.f32 %v2016, %v2042
      %v2056 = vadd.f32 %v2017, %v2042
      %v2057 = vadd.f32 %v2018, %v2042
      %v2058 = vadd.f32 %v2019, %v2042
      %v2059 = vadd.f32 %v2020, %v2042
      %v2060 = vadd.f32 %v2021, %v2042
      %v2061 = vadd.f32 %v2022, %v2042
      %v2062 = vadd.f32 %v2023, %v2042
      %v2063 = vadd.f32 %v2024, %v2042
      %v2064 = vadd.f32 %v2025, %v2042
      %v2065 = vadd.f32 %v2026, %v2042
      %v2066 = vadd.f32 %v2027, %v2042
      %v2067 = vadd.f32 %v2028, %v2042
      %v2068 = vadd.f32 %v2029, %v2042
      %v2069 = vadd.f32 %v2030, %v2042
      %v2070 = vadd.f32 %v2031, %v2042
      %v2071 = vadd.f32 %v2032, %v2042
      %v2072 = vadd.f32 %v2033, %v2042
      %v2073 = vadd.f32 %v2034, %v2042
      %v2074 = vadd.f32 %v2035, %v2042
      %v2075 = vadd.f32 %v2036, %v2042
      %v2076 = vmax.f32 %v2044, 0.0
      %v2077 = vmax.f32 %v2045, 0.0
      %v2078 = vmax.f32 %v2046, 0.0
      %v2079 = vmax.f32 %v2047, 0.0
      %v2080 = vmax.f32 %v2048, 0.0
      %v2081 = vmax.f32 %v2049, 0.0
      %v2082 = vmax.f32 %v2050, 0.0
      %v2083 = vmax.f32 %v2051, 0.0
      %v2084 = vmax.f32 %v2052, 0.0
      %v2085 = vmax.f32 %v2053, 0.0
      %v2086 = vmax.f32 %v2054, 0.0
      %v2087 = vmax.f32 %v2055, 0.0
      %v2088 = vmax.f32 %v2056, 0.0
      %v2089 = vmax.f32 %v2057, 0.0
      %v2090 = vmax.f32 %v2058, 0.0
      %v2091 = vmax.f32 %v2059, 0.0
      %v2092 = vmax.f32 %v2060, 0.0
      %v2093 = vmax.f32 %v2061, 0.0
      %v2094 = vmax.f32 %v2062, 0.0
      %v2095 = vmax.f32 %v2063, 0.0
      %v2096 = vmax.f32 %v2064, 0.0
      %v2097 = vmax.f32 %v2065, 0.0
      %v2098 = vmax.f32 %v2066, 0.0
      %v2099 = vmax.f32 %v2067, 0.0
      %v2100 = vmax.f32 %v2068, 0.0
      %v2101 = vmax.f32 %v2069, 0.0
      %v2102 = vmax.f32 %v2070, 0.0
      %v2103 = vmax.f32 %v2071, 0.0
      %v2104 = vmax.f32 %v2072, 0.0
      %v2105 = vmax.f32 %v2073, 0.0
      %v2106 = vmax.f32 %v2074, 0.0
      %v2107 = vmax.f32 %v2075, 0.0
      %v2108 = vrot.slane %v2076, 7
      %v2109 = vrot.slane %v2077, 7
      %v2110 = vrot.slane %v2078, 7
      %v2111 = vrot.slane %v2079, 7
      %v2112 = vrot.slane %v2080, 7
      %v2113 = vrot.slane %v2081, 7
      %v2114 = vrot.slane %v2082, 7
      %v2115 = vrot.slane %v2083, 7
      %v2116 = vrot.slane %v2084, 7
      %v2117 = vrot.slane %v2085, 7
      %v2118 = vrot.slane %v2086, 7
      %v2119 = vrot.slane %v2087, 7
      %v2120 = vrot.slane %v2088, 7
      %v2121 = vrot.slane %v2089, 7
      %v2122 = vrot.slane %v2090, 7
      %v2123 = vrot.slane %v2091, 7
      %v2124 = vrot.slane %v2092, 7
      %v2125 = vrot.slane %v2093, 7
      %v2126 = vrot.slane %v2094, 7
      %v2127 = vrot.slane %v2095, 7
      %v2128 = vrot.slane %v2096, 7
      %v2129 = vrot.slane %v2097, 7
      %v2130 = vrot.slane %v2098, 7
      %v2131 = vrot.slane %v2099, 7
      %v2132 = vrot.slane %v2100, 7
      %v2133 = vrot.slane %v2101, 7
      %v2134 = vrot.slane %v2102, 7
      %v2135 = vrot.slane %v2103, 7
      %v2136 = vrot.slane %v2104, 7
      %v2137 = vrot.slane %v2105, 7
      %v2138 = vrot.slane %v2106, 7
      %v2139 = vrot.slane %v2107, 7
      %v2140 = vsel %vm989, %v2138, %v2139
      %v2141 = vsel %vm989, %v2137, %v2138
      %v2142 = vsel %vm989, %v2136, %v2137
      %v2143 = vsel %vm989, %v2135, %v2136
      %v2144 = vsel %vm989, %v2134, %v2135
      %v2145 = vsel %vm989, %v2133, %v2134
      %v2146 = vsel %vm989, %v2132, %v2133
      %v2147 = vsel %vm989, %v2131, %v2132
      %v2148 = vsel %vm989, %v2130, %v2131
      %v2149 = vsel %vm989, %v2129, %v2130
      %v2150 = vsel %vm989, %v2128, %v2129
      %v2151 = vsel %vm989, %v2127, %v2128
      %v2152 = vsel %vm989, %v2126, %v2127
      %v2153 = vsel %vm989, %v2125, %v2126
      %v2154 = vsel %vm989, %v2124, %v2125
      %v2155 = vsel %vm989, %v2123, %v2124
      %v2156 = vsel %vm989, %v2122, %v2123
      %v2157 = vsel %vm989, %v2121, %v2122
      %v2158 = vsel %vm989, %v2120, %v2121
      %v2159 = vsel %vm989, %v2119, %v2120
      %v2160 = vsel %vm989, %v2118, %v2119
      %v2161 = vsel %vm989, %v2117, %v2118
      %v2162 = vsel %vm989, %v2116, %v2117
      %v2163 = vsel %vm989, %v2115, %v2116
      %v2164 = vsel %vm989, %v2114, %v2115
      %v2165 = vsel %vm989, %v2113, %v2114
      %v2166 = vsel %vm989, %v2112, %v2113
      %v2167 = vsel %vm989, %v2111, %v2112
      %v2168 = vsel %vm989, %v2110, %v2111
      %v2169 = vsel %vm989, %v2109, %v2110
      %v2170 = vsel %vm989, %v2108, %v2109
      %v2171 = vsel %vm989, %v2139, %v2108
      %v2172 = vsel %vm1054, 0.0, %v2171
      %v2173 = vsel %vm1055, 0.0, %v2170
      %v2174 = vsel %vm1056, 0.0, %v2169
      %v2175 = vsel %vm1057, 0.0, %v2168
      %v2176 = vsel %vm1058, 0.0, %v2167
      %v2177 = vsel %vm1059, 0.0, %v2166
      %v2178 = vsel %vm1060, 0.0, %v2165
      %v2179 = vsel %vm1061, 0.0, %v2164
      %v2180 = vsel %vm1062, 0.0, %v2163
      %v2181 = vsel %vm1063, 0.0, %v2162
      %v2182 = vsel %vm1064, 0.0, %v2161
      %v2183 = vsel %vm1065, 0.0, %v2160
      %v2184 = vsel %vm1066, 0.0, %v2159
      %v2185 = vsel %vm1067, 0.0, %v2158
      %v2186 = vsel %vm1068, 0.0, %v2157
      %v2187 = vsel %vm1069, 0.0, %v2156
      %v2188 = vsel %vm1070, 0.0, %v2155
      %v2189 = vsel %vm1071, 0.0, %v2154
      %v2190 = vsel %vm1072, 0.0, %v2153
      %v2191 = vsel %vm1073, 0.0, %v2152
      %v2192 = vsel %vm1074, 0.0, %v2151
      %v2193 = vsel %vm1075, 0.0, %v2150
      %v2194 = vsel %vm1076, 0.0, %v2149
      %v2195 = vsel %vm1077, 0.0, %v2148
      %v2196 = vsel %vm1078, 0.0, %v2147
      %v2197 = vsel %vm1079, 0.0, %v2146
      %v2198 = vsel %vm1080, 0.0, %v2145
      %v2199 = vsel %vm1081, 0.0, %v2144
      %v2200 = vsel %vm1082, 0.0, %v2143
      %v2201 = vsel %vm1083, 0.0, %v2142
      %v2202 = vsel %vm1084, 0.0, %v2141
      %v2203 = vsel %vm1085, 0.0, %v2140
      %v2204 = vrot.slane %v2076, 1
      %v2205 = vrot.slane %v2077, 1
      %v2206 = vrot.slane %v2078, 1
      %v2207 = vrot.slane %v2079, 1
      %v2208 = vrot.slane %v2080, 1
      %v2209 = vrot.slane %v2081, 1
      %v2210 = vrot.slane %v2082, 1
      %v2211 = vrot.slane %v2083, 1
      %v2212 = vrot.slane %v2084, 1
      %v2213 = vrot.slane %v2085, 1
      %v2214 = vrot.slane %v2086, 1
      %v2215 = vrot.slane %v2087, 1
      %v2216 = vrot.slane %v2088, 1
      %v2217 = vrot.slane %v2089, 1
      %v2218 = vrot.slane %v2090, 1
      %v2219 = vrot.slane %v2091, 1
      %v2220 = vrot.slane %v2092, 1
      %v2221 = vrot.slane %v2093, 1
      %v2222 = vrot.slane %v2094, 1
      %v2223 = vrot.slane %v2095, 1
      %v2224 = vrot.slane %v2096, 1
      %v2225 = vrot.slane %v2097, 1
      %v2226 = vrot.slane %v2098, 1
      %v2227 = vrot.slane %v2099, 1
      %v2228 = vrot.slane %v2100, 1
      %v2229 = vrot.slane %v2101, 1
      %v2230 = vrot.slane %v2102, 1
      %v2231 = vrot.slane %v2103, 1
      %v2232 = vrot.slane %v2104, 1
      %v2233 = vrot.slane %v2105, 1
      %v2234 = vrot.slane %v2106, 1
      %v2235 = vrot.slane %v2107, 1
      %v2236 = vsel %vm1150, %v2234, %v2235
      %v2237 = vsel %vm1150, %v2233, %v2234
      %v2238 = vsel %vm1150, %v2232, %v2233
      %v2239 = vsel %vm1150, %v2231, %v2232
      %v2240 = vsel %vm1150, %v2230, %v2231
      %v2241 = vsel %vm1150, %v2229, %v2230
      %v2242 = vsel %vm1150, %v2228, %v2229
      %v2243 = vsel %vm1150, %v2227, %v2228
      %v2244 = vsel %vm1150, %v2226, %v2227
      %v2245 = vsel %vm1150, %v2225, %v2226
      %v2246 = vsel %vm1150, %v2224, %v2225
      %v2247 = vsel %vm1150, %v2223, %v2224
      %v2248 = vsel %vm1150, %v2222, %v2223
      %v2249 = vsel %vm1150, %v2221, %v2222
      %v2250 = vsel %vm1150, %v2220, %v2221
      %v2251 = vsel %vm1150, %v2219, %v2220
      %v2252 = vsel %vm1150, %v2218, %v2219
      %v2253 = vsel %vm1150, %v2217, %v2218
      %v2254 = vsel %vm1150, %v2216, %v2217
      %v2255 = vsel %vm1150, %v2215, %v2216
      %v2256 = vsel %vm1150, %v2214, %v2215
      %v2257 = vsel %vm1150, %v2213, %v2214
      %v2258 = vsel %vm1150, %v2212, %v2213
      %v2259 = vsel %vm1150, %v2211, %v2212
      %v2260 = vsel %vm1150, %v2210, %v2211
      %v2261 = vsel %vm1150, %v2209, %v2210
      %v2262 = vsel %vm1150, %v2208, %v2209
      %v2263 = vsel %vm1150, %v2207, %v2208
      %v2264 = vsel %vm1150, %v2206, %v2207
      %v2265 = vsel %vm1150, %v2205, %v2206
      %v2266 = vsel %vm1150, %v2204, %v2205
      %v2267 = vsel %vm1150, %v2235, %v2204
      %v2268 = vsel %vm1215, 0.0, %v2266
      %v2269 = vsel %vm1216, 0.0, %v2265
      %v2270 = vsel %vm1217, 0.0, %v2264
      %v2271 = vsel %vm1218, 0.0, %v2263
      %v2272 = vsel %vm1219, 0.0, %v2262
      %v2273 = vsel %vm1220, 0.0, %v2261
      %v2274 = vsel %vm1221, 0.0, %v2260
      %v2275 = vsel %vm1222, 0.0, %v2259
      %v2276 = vsel %vm1223, 0.0, %v2258
      %v2277 = vsel %vm1224, 0.0, %v2257
      %v2278 = vsel %vm1225, 0.0, %v2256
      %v2279 = vsel %vm1226, 0.0, %v2255
      %v2280 = vsel %vm1227, 0.0, %v2254
      %v2281 = vsel %vm1228, 0.0, %v2253
      %v2282 = vsel %vm1229, 0.0, %v2252
      %v2283 = vsel %vm1230, 0.0, %v2251
      %v2284 = vsel %vm1231, 0.0, %v2250
      %v2285 = vsel %vm1232, 0.0, %v2249
      %v2286 = vsel %vm1233, 0.0, %v2248
      %v2287 = vsel %vm1234, 0.0, %v2247
      %v2288 = vsel %vm1235, 0.0, %v2246
      %v2289 = vsel %vm1236, 0.0, %v2245
      %v2290 = vsel %vm1237, 0.0, %v2244
      %v2291 = vsel %vm1238, 0.0, %v2243
      %v2292 = vsel %vm1239, 0.0, %v2242
      %v2293 = vsel %vm1240, 0.0, %v2241
      %v2294 = vsel %vm1241, 0.0, %v2240
      %v2295 = vsel %vm1242, 0.0, %v2239
      %v2296 = vsel %vm1243, 0.0, %v2238
      %v2297 = vsel %vm1244, 0.0, %v2237
      %v2298 = vsel %vm1245, 0.0, %v2236
      %v2299 = vsel %vm1246, 0.0, %v2267
      %2332 = vrot.lane.b32.xlu0 %v2076, 8
      %v2333 = vpop.permute.xlu0 %2332
      %2334 = vrot.lane.b32.xlu0 %v2077, 8
      %v2335 = vpop.permute.xlu0 %2334
      %2336 = vrot.lane.b32.xlu0 %v2078, 8
      %v2337 = vpop.permute.xlu0 %2336
      %2338 = vrot.lane.b32.xlu0 %v2079, 8
      %v2339 = vpop.permute.xlu0 %2338
      %2340 = vrot.lane.b32.xlu0 %v2080, 8
      %v2341 = vpop.permute.xlu0 %2340
      %2342 = vrot.lane.b32.xlu0 %v2081, 8
      %v2343 = vpop.permute.xlu0 %2342
      %2344 = vrot.lane.b32.xlu0 %v2082, 8
      %v2345 = vpop.permute.xlu0 %2344
      %2346 = vrot.lane.b32.xlu0 %v2083, 8
      %v2347 = vpop.permute.xlu0 %2346
      %2348 = vrot.lane.b32.xlu0 %v2084, 8
      %v2349 = vpop.permute.xlu0 %2348
      %2350 = vrot.lane.b32.xlu0 %v2085, 8
      %v2351 = vpop.permute.xlu0 %2350
      %2352 = vrot.lane.b32.xlu0 %v2086, 8
      %v2353 = vpop.permute.xlu0 %2352
      %2354 = vrot.lane.b32.xlu0 %v2087, 8
      %v2355 = vpop.permute.xlu0 %2354
      %2356 = vrot.lane.b32.xlu0 %v2088, 8
      %v2357 = vpop.permute.xlu0 %2356
      %2358 = vrot.lane.b32.xlu0 %v2089, 8
      %v2359 = vpop.permute.xlu0 %2358
      %2360 = vrot.lane.b32.xlu0 %v2090, 8
      %v2361 = vpop.permute.xlu0 %2360
      %2362 = vrot.lane.b32.xlu0 %v2091, 8
      %v2363 = vpop.permute.xlu0 %2362
      %2364 = vrot.lane.b32.xlu0 %v2092, 8
      %v2365 = vpop.permute.xlu0 %2364
      %2366 = vrot.lane.b32.xlu0 %v2093, 8
      %v2367 = vpop.permute.xlu0 %2366
      %2368 = vrot.lane.b32.xlu0 %v2094, 8
      %v2369 = vpop.permute.xlu0 %2368
      %2370 = vrot.lane.b32.xlu0 %v2095, 8
      %v2371 = vpop.permute.xlu0 %2370
      %2372 = vrot.lane.b32.xlu0 %v2096, 8
      %v2373 = vpop.permute.xlu0 %2372
      %2374 = vrot.lane.b32.xlu0 %v2097, 8
      %v2375 = vpop.permute.xlu0 %2374
      %2376 = vrot.lane.b32.xlu0 %v2098, 8
      %v2377 = vpop.permute.xlu0 %2376
      %2378 = vrot.lane.b32.xlu0 %v2099, 8
      %v2379 = vpop.permute.xlu0 %2378
      %2380 = vrot.lane.b32.xlu0 %v2100, 8
      %v2381 = vpop.permute.xlu0 %2380
      %2382 = vrot.lane.b32.xlu0 %v2101, 8
      %v2383 = vpop.permute.xlu0 %2382
      %2384 = vrot.lane.b32.xlu0 %v2102, 8
      %v2385 = vpop.permute.xlu0 %2384
      %2386 = vrot.lane.b32.xlu0 %v2103, 8
      %v2387 = vpop.permute.xlu0 %2386
      %2388 = vrot.lane.b32.xlu0 %v2104, 8
      %v2389 = vpop.permute.xlu0 %2388
      %2390 = vrot.lane.b32.xlu0 %v2105, 8
      %v2391 = vpop.permute.xlu0 %2390
      %2392 = vrot.lane.b32.xlu0 %v2106, 8
      %v2393 = vpop.permute.xlu0 %2392
      %2394 = vrot.lane.b32.xlu0 %v2107, 8
      %v2395 = vpop.permute.xlu0 %2394
      %2460 = vrot.lane.b32.xlu0 %v2268, 16
      %v2461 = vpop.permute.xlu0 %2460
      %2462 = vrot.lane.b32.xlu0 %v2269, 16
      %v2463 = vpop.permute.xlu0 %2462
      %2464 = vrot.lane.b32.xlu0 %v2270, 16
      %v2465 = vpop.permute.xlu0 %2464
      %2466 = vrot.lane.b32.xlu0 %v2271, 16
      %v2467 = vpop.permute.xlu0 %2466
      %2468 = vrot.lane.b32.xlu0 %v2272, 16
      %v2469 = vpop.permute.xlu0 %2468
      %2470 = vrot.lane.b32.xlu0 %v2273, 16
      %v2471 = vpop.permute.xlu0 %2470
      %2472 = vrot.lane.b32.xlu0 %v2274, 16
      %v2473 = vpop.permute.xlu0 %2472
      %2474 = vrot.lane.b32.xlu0 %v2275, 16
      %v2475 = vpop.permute.xlu0 %2474
      %2476 = vrot.lane.b32.xlu0 %v2276, 16
      %v2477 = vpop.permute.xlu0 %2476
      %2478 = vrot.lane.b32.xlu0 %v2277, 16
      %v2479 = vpop.permute.xlu0 %2478
      %2480 = vrot.lane.b32.xlu0 %v2278, 16
      %v2481 = vpop.permute.xlu0 %2480
      %2482 = vrot.lane.b32.xlu0 %v2279, 16
      %v2483 = vpop.permute.xlu0 %2482
      %2484 = vrot.lane.b32.xlu0 %v2280, 16
      %v2485 = vpop.permute.xlu0 %2484
      %2486 = vrot.lane.b32.xlu0 %v2281, 16
      %v2487 = vpop.permute.xlu0 %2486
      %2488 = vrot.lane.b32.xlu0 %v2282, 16
      %v2489 = vpop.permute.xlu0 %2488
      %2490 = vrot.lane.b32.xlu0 %v2283, 16
      %v2491 = vpop.permute.xlu0 %2490
      %2492 = vrot.lane.b32.xlu0 %v2284, 16
      %v2493 = vpop.permute.xlu0 %2492
      %2494 = vrot.lane.b32.xlu0 %v2285, 16
      %v2495 = vpop.permute.xlu0 %2494
      %2496 = vrot.lane.b32.xlu0 %v2286, 16
      %v2497 = vpop.permute.xlu0 %2496
      %2498 = vrot.lane.b32.xlu0 %v2287, 16
      %v2499 = vpop.permute.xlu0 %2498
      %2500 = vrot.lane.b32.xlu0 %v2288, 16
      %v2501 = vpop.permute.xlu0 %2500
      %2502 = vrot.lane.b32.xlu0 %v2289, 16
      %v2503 = vpop.permute.xlu0 %2502
      %2504 = vrot.lane.b32.xlu0 %v2290, 16
      %v2505 = vpop.permute.xlu0 %2504
      %2506 = vrot.lane.b32.xlu0 %v2291, 16
      %v2507 = vpop.permute.xlu0 %2506
      %2508 = vrot.lane.b32.xlu0 %v2292, 16
      %v2509 = vpop.permute.xlu0 %2508
      %2510 = vrot.lane.b32.xlu0 %v2293, 16
      %v2511 = vpop.permute.xlu0 %2510
      %2512 = vrot.lane.b32.xlu0 %v2294, 16
      %v2513 = vpop.permute.xlu0 %2512
      %2514 = vrot.lane.b32.xlu0 %v2295, 16
      %v2515 = vpop.permute.xlu0 %2514
      %2516 = vrot.lane.b32.xlu0 %v2296, 16
      %v2517 = vpop.permute.xlu0 %2516
      %2518 = vrot.lane.b32.xlu0 %v2297, 16
      %v2519 = vpop.permute.xlu0 %2518
      %2520 = vrot.lane.b32.xlu0 %v2298, 16
      %v2521 = vpop.permute.xlu0 %2520
      %2522 = vrot.lane.b32.xlu0 %v2299, 16
      %v2523 = vpop.permute.xlu0 %2522
      %v2556 = vsel %vm1568, %v2172, %v2333
      %v2557 = vsel %vm1568, %v2173, %v2335
      %v2558 = vsel %vm1568, %v2174, %v2337
      %v2559 = vsel %vm1568, %v2175, %v2339
      %v2560 = vsel %vm1568, %v2176, %v2341
      %v2561 = vsel %vm1568, %v2177, %v2343
      %v2562 = vsel %vm1568, %v2178, %v2345
      %v2563 = vsel %vm1568, %v2179, %v2347
      %v2564 = vsel %vm1568, %v2180, %v2349
      %v2565 = vsel %vm1568, %v2181, %v2351
      %v2566 = vsel %vm1568, %v2182, %v2353
      %v2567 = vsel %vm1568, %v2183, %v2355
      %v2568 = vsel %vm1568, %v2184, %v2357
      %v2569 = vsel %vm1568, %v2185, %v2359
      %v2570 = vsel %vm1568, %v2186, %v2361
      %v2571 = vsel %vm1568, %v2187, %v2363
      %v2572 = vsel %vm1568, %v2188, %v2365
      %v2573 = vsel %vm1568, %v2189, %v2367
      %v2574 = vsel %vm1568, %v2190, %v2369
      %v2575 = vsel %vm1568, %v2191, %v2371
      %v2576 = vsel %vm1568, %v2192, %v2373
      %v2577 = vsel %vm1568, %v2193, %v2375
      %v2578 = vsel %vm1568, %v2194, %v2377
      %v2579 = vsel %vm1568, %v2195, %v2379
      %v2580 = vsel %vm1568, %v2196, %v2381
      %v2581 = vsel %vm1568, %v2197, %v2383
      %v2582 = vsel %vm1568, %v2198, %v2385
      %v2583 = vsel %vm1568, %v2199, %v2387
      %v2584 = vsel %vm1568, %v2200, %v2389
      %v2585 = vsel %vm1568, %v2201, %v2391
      %v2586 = vsel %vm1568, %v2202, %v2393
      %v2587 = vsel %vm1568, %v2203, %v2395
      %vm2588 = vcmask 130048
      %v2589 = vsel %vm2588, %v2556, %v2461
      %v2590 = vsel %vm2588, %v2557, %v2463
      %v2591 = vsel %vm2588, %v2558, %v2465
      %v2592 = vsel %vm2588, %v2559, %v2467
      %v2593 = vsel %vm2588, %v2560, %v2469
      %v2594 = vsel %vm2588, %v2561, %v2471
      %v2595 = vsel %vm2588, %v2562, %v2473
      %v2596 = vsel %vm2588, %v2563, %v2475
      %v2597 = vsel %vm2588, %v2564, %v2477
      %v2598 = vsel %vm2588, %v2565, %v2479
      %v2599 = vsel %vm2588, %v2566, %v2481
      %v2600 = vsel %vm2588, %v2567, %v2483
      %v2601 = vsel %vm2588, %v2568, %v2485
      %v2602 = vsel %vm2588, %v2569, %v2487
      %v2603 = vsel %vm2588, %v2570, %v2489
      %v2604 = vsel %vm2588, %v2571, %v2491
      %v2605 = vsel %vm2588, %v2572, %v2493
      %v2606 = vsel %vm2588, %v2573, %v2495
      %v2607 = vsel %vm2588, %v2574, %v2497
      %v2608 = vsel %vm2588, %v2575, %v2499
      %v2609 = vsel %vm2588, %v2576, %v2501
      %v2610 = vsel %vm2588, %v2577, %v2503
      %v2611 = vsel %vm2588, %v2578, %v2505
      %v2612 = vsel %vm2588, %v2579, %v2507
      %v2613 = vsel %vm2588, %v2580, %v2509
      %v2614 = vsel %vm2588, %v2581, %v2511
      %v2615 = vsel %vm2588, %v2582, %v2513
      %v2616 = vsel %vm2588, %v2583, %v2515
      %v2617 = vsel %vm2588, %v2584, %v2517
      %v2618 = vsel %vm2588, %v2585, %v2519
      %v2619 = vsel %vm2588, %v2586, %v2521
      %v2620 = vsel %vm2588, %v2587, %v2523
      %v2621 = vpack.c.bf16 %v2590, %v2589
      %v2622 = vpack.c.bf16 %v2592, %v2591
      %v2623 = vpack.c.bf16 %v2594, %v2593
      %v2624 = vpack.c.bf16 %v2596, %v2595
      %v2625 = vpack.c.bf16 %v2598, %v2597
      %v2626 = vpack.c.bf16 %v2600, %v2599
      %v2627 = vpack.c.bf16 %v2602, %v2601
      %v2628 = vpack.c.bf16 %v2604, %v2603
      %v2629 = vpack.c.bf16 %v2606, %v2605
      %v2630 = vpack.c.bf16 %v2608, %v2607
      %v2631 = vpack.c.bf16 %v2610, %v2609
      %v2632 = vpack.c.bf16 %v2612, %v2611
      %v2633 = vpack.c.bf16 %v2614, %v2613
      %v2634 = vpack.c.bf16 %v2616, %v2615
      %v2635 = vpack.c.bf16 %v2618, %v2617
      %v2636 = vpack.c.bf16 %v2620, %v2619
      %2653 = vrot.lane.b32.xlu0 %v2621, 24
      %v2654 = vpop.permute.xlu0 %2653
      %2655 = vrot.lane.b32.xlu0 %v2622, 24
      %v2656 = vpop.permute.xlu0 %2655
      %2657 = vrot.lane.b32.xlu0 %v2623, 24
      %v2658 = vpop.permute.xlu0 %2657
      %2659 = vrot.lane.b32.xlu0 %v2624, 24
      %v2660 = vpop.permute.xlu0 %2659
      %2661 = vrot.lane.b32.xlu0 %v2625, 24
      %v2662 = vpop.permute.xlu0 %2661
      %2663 = vrot.lane.b32.xlu0 %v2626, 24
      %v2664 = vpop.permute.xlu0 %2663
      %2665 = vrot.lane.b32.xlu0 %v2627, 24
      %v2666 = vpop.permute.xlu0 %2665
      %2667 = vrot.lane.b32.xlu0 %v2628, 24
      %v2668 = vpop.permute.xlu0 %2667
      %2669 = vrot.lane.b32.xlu0 %v2629, 24
      %v2670 = vpop.permute.xlu0 %2669
      %2671 = vrot.lane.b32.xlu0 %v2630, 24
      %v2672 = vpop.permute.xlu0 %2671
      %2673 = vrot.lane.b32.xlu0 %v2631, 24
      %v2674 = vpop.permute.xlu0 %2673
      %2675 = vrot.lane.b32.xlu0 %v2632, 24
      %v2676 = vpop.permute.xlu0 %2675
      %2677 = vrot.lane.b32.xlu0 %v2633, 24
      %v2678 = vpop.permute.xlu0 %2677
      %2679 = vrot.lane.b32.xlu0 %v2634, 24
      %v2680 = vpop.permute.xlu0 %2679
      %2681 = vrot.lane.b32.xlu0 %v2635, 24
      %v2682 = vpop.permute.xlu0 %2681
      %2683 = vrot.lane.b32.xlu0 %v2636, 24
      %v2684 = vpop.permute.xlu0 %2683
      %2685 = vrot.lane.b32.xlu0 %v2622, 48
      %v2686 = vpop.permute.xlu0 %2685
      %2687 = vrot.lane.b32.xlu0 %v2623, 48
      %v2688 = vpop.permute.xlu0 %2687
      %2689 = vrot.lane.b32.xlu0 %v2624, 48
      %v2690 = vpop.permute.xlu0 %2689
      %2691 = vrot.lane.b32.xlu0 %v2625, 48
      %v2692 = vpop.permute.xlu0 %2691
      %2693 = vrot.lane.b32.xlu0 %v2626, 48
      %v2694 = vpop.permute.xlu0 %2693
      %2695 = vrot.lane.b32.xlu0 %v2627, 48
      %v2696 = vpop.permute.xlu0 %2695
      %2697 = vrot.lane.b32.xlu0 %v2628, 48
      %v2698 = vpop.permute.xlu0 %2697
      %2699 = vrot.lane.b32.xlu0 %v2629, 48
      %v2700 = vpop.permute.xlu0 %2699
      %2701 = vrot.lane.b32.xlu0 %v2630, 48
      %v2702 = vpop.permute.xlu0 %2701
      %2703 = vrot.lane.b32.xlu0 %v2631, 48
      %v2704 = vpop.permute.xlu0 %2703
      %2705 = vrot.lane.b32.xlu0 %v2632, 48
      %v2706 = vpop.permute.xlu0 %2705
      %2707 = vrot.lane.b32.xlu0 %v2633, 48
      %v2708 = vpop.permute.xlu0 %2707
      %2709 = vrot.lane.b32.xlu0 %v2634, 48
      %v2710 = vpop.permute.xlu0 %2709
      %2711 = vrot.lane.b32.xlu0 %v2635, 48
      %v2712 = vpop.permute.xlu0 %2711
      %2713 = vrot.lane.b32.xlu0 %v2636, 48
      %v2714 = vpop.permute.xlu0 %2713
      %2715 = vrot.lane.b32.xlu0 0, 48
      %v2716 = vpop.permute.xlu0 %2715
      %v2718 = vsel %vm1747, 0, %v2654
      %v2721 = vsel %vm1747, %v2621, %v2656
      %v2724 = vsel %vm1747, %v2622, %v2658
      %v2727 = vsel %vm1747, %v2623, %v2660
      %v2730 = vsel %vm1747, %v2624, %v2662
      %v2733 = vsel %vm1747, %v2625, %v2664
      %v2736 = vsel %vm1747, %v2626, %v2666
      %v2739 = vsel %vm1747, %v2627, %v2668
      %v2742 = vsel %vm1747, %v2628, %v2670
      %v2745 = vsel %vm1747, %v2629, %v2672
      %v2748 = vsel %vm1747, %v2630, %v2674
      %v2751 = vsel %vm1747, %v2631, %v2676
      %v2754 = vsel %vm1747, %v2632, %v2678
      %v2757 = vsel %vm1747, %v2633, %v2680
      %v2760 = vsel %vm1747, %v2634, %v2682
      %v2763 = vsel %vm1747, %v2635, %v2684
      %vm2764 = vcmask 392192
      %v2766 = vsel %vm2764, %v2718, %v2686
      %v2768 = vsel %vm2764, %v2721, %v2688
      %v2770 = vsel %vm2764, %v2724, %v2690
      %v2772 = vsel %vm2764, %v2727, %v2692
      %v2774 = vsel %vm2764, %v2730, %v2694
      %v2776 = vsel %vm2764, %v2733, %v2696
      %v2778 = vsel %vm2764, %v2736, %v2698
      %v2780 = vsel %vm2764, %v2739, %v2700
      %v2782 = vsel %vm2764, %v2742, %v2702
      %v2784 = vsel %vm2764, %v2745, %v2704
      %v2786 = vsel %vm2764, %v2748, %v2706
      %v2788 = vsel %vm2764, %v2751, %v2708
      %v2790 = vsel %vm2764, %v2754, %v2710
      %v2792 = vsel %vm2764, %v2757, %v2712
      %v2794 = vsel %vm2764, %v2760, %v2714
      %v2796 = vsel %vm2764, %v2763, %v2716
      %v2797 = vld [vmem:[%s6] sm:$0xf]
      %v2798 = vld [vmem:[%s6 + $0x4] sm:$0xf]
      %v2799 = vld [vmem:[%s6 + $0x8] sm:$0xf]
      %v2800 = vld [vmem:[%s6 + $0xc] sm:$0xf]
      %v2801 = vld [vmem:[%s6 + $0x10] sm:$0xf]
      %v2802 = vld [vmem:[%s6 + $0x14] sm:$0xf]
      %v2803 = vld [vmem:[%s6 + $0x18] sm:$0xf]
      %v2804 = vld [vmem:[%s6 + $0x1c] sm:$0xf]
      %v2805 = vld [vmem:[%s6 + $0x20] sm:$0xf]
      %v2806 = vpack.c.bf16 %v335, %v334
      %v2807 = vpack.c.bf16 %v337, %v336
      %v2808 = vpack.c.bf16 %v339, %v338
      %v2809 = vpack.c.bf16 %v341, %v340
      %v2810 = vpack.c.bf16 %v343, %v342
      %v2811 = vpack.c.bf16 %v345, %v344
      %v2812 = vpack.c.bf16 %v347, %v346
      %v2813 = vpack.c.bf16 %v349, %v348
      %v2814 = vpack.c.bf16 %v351, %v350
      %v2815 = vpack.c.bf16 %v353, %v352
      %v2816 = vpack.c.bf16 %v355, %v354
      %v2817 = vpack.c.bf16 %v357, %v356
      %v2818 = vpack.c.bf16 %v359, %v358
      %v2819 = vpack.c.bf16 %v361, %v360
      %v2820 = vpack.c.bf16 %v363, %v362
      %v2821 = vpack.c.bf16 %v365, %v364
      %v2822 = vld [vmem:[%s8] sm:$0x3]
      %v2824 = vsel %vm1535, %v2806, 0
      %v2827 = vsel %vm1535, %v2807, 0
      %v2830 = vsel %vm1535, %v2808, 0
      %v2833 = vsel %vm1535, %v2809, 0
      %v2836 = vsel %vm1535, %v2810, 0
      %v2839 = vsel %vm1535, %v2811, 0
      %v2842 = vsel %vm1535, %v2812, 0
      %v2845 = vsel %vm1535, %v2813, 0
      %v2848 = vsel %vm1535, %v2814, 0
      %v2851 = vsel %vm1535, %v2815, 0
      %v2854 = vsel %vm1535, %v2816, 0
      %v2857 = vsel %vm1535, %v2817, 0
      %v2860 = vsel %vm1535, %v2818, 0
      %v2863 = vsel %vm1535, %v2819, 0
      %v2866 = vsel %vm1535, %v2820, 0
      %v2869 = vsel %vm1535, %v2821, 0
      %v2872 = vsel %vm1833, %v2822, 0
      %2874 = vmatprep.subr.bf16.mxu0 0
      %2875 = vmatpush1.bf16.msra.mxu0 %v2872
      %2876 = vmatprep.subr.bf16.mxu0 0
      %2877 = vmatpush1.bf16.msra.mxu0 0
      %2878 = vmatprep.subr.bf16.mxu0 0
      %2879 = vmatpush1.bf16.msra.mxu0 0
      %2880 = vmatprep.subr.bf16.mxu0 0
      %2881 = vmatpush1.bf16.msra.mxu0 0
      %2882 = vmatprep.subr.bf16.mxu0 0
      %2883 = vmatpush1.bf16.msra.mxu0 0
      %2884 = vmatprep.subr.bf16.mxu0 0
      %2885 = vmatpush1.bf16.msra.mxu0 0
      %2886 = vmatprep.subr.bf16.mxu0 0
      %2887 = vmatpush1.bf16.msra.mxu0 0
      %2888 = vmatprep.subr.bf16.mxu0 0
      %2889 = vmatpush1.bf16.msra.mxu0 0
      %2890 = vmatprep.subr.bf16.mxu0 0
      %2891 = vmatpush1.bf16.msra.mxu0 0
      %2892 = vmatprep.subr.bf16.mxu0 0
      %2893 = vmatpush1.bf16.msra.mxu0 0
      %2894 = vmatprep.subr.bf16.mxu0 0
      %2895 = vmatpush1.bf16.msra.mxu0 0
      %2896 = vmatprep.subr.bf16.mxu0 0
      %2897 = vmatpush1.bf16.msra.mxu0 0
      %2898 = vmatprep.subr.bf16.mxu0 0
      %2899 = vmatpush1.bf16.msra.mxu0 0
      %2900 = vmatprep.subr.bf16.mxu0 0
      %2901 = vmatpush1.bf16.msra.mxu0 0
      %2902 = vmatprep.subr.bf16.mxu0 0
      %2903 = vmatpush1.bf16.msra.mxu0 0
      %2904 = vmatprep.subr.bf16.mxu0 0
      %2905 = vmatpush1.bf16.msra.mxu0 0
      %2906 = vmatprep.mubr.bf16.mxu0 0
      %2907 = vmatmul.mubr.bf16.gmra.mrb[0].mxu0 %v2824
      %v2908 = vpop.f32.mrb[0].mxu0
      %v2909 = vadd.f32 0.0, %v2908
      %v2910 = vpop.f32.mrb[0].mxu0
      %v2911 = vpop.f32.mrb[0].mxu0
      %v2912 = vadd.f32 0.0, %v2911
      %v2913 = vpop.f32.mrb[0].mxu0
      %2914 = vmatprep.mubr.bf16.mxu0 0
      %2915 = vmatmul.mubr.bf16.gmra.mrb[0].mxu0 %v2827
      %v2916 = vpop.f32.mrb[0].mxu0
      %v2917 = vadd.f32 0.0, %v2916
      %v2918 = vpop.f32.mrb[0].mxu0
      %v2919 = vpop.f32.mrb[0].mxu0
      %v2920 = vadd.f32 0.0, %v2919
      %v2921 = vpop.f32.mrb[0].mxu0
      %2922 = vmatprep.mubr.bf16.mxu0 0
      %2923 = vmatmul.mubr.bf16.gmra.mrb[0].mxu0 %v2830
      %v2924 = vpop.f32.mrb[0].mxu0
      %v2925 = vadd.f32 0.0, %v2924
      %v2926 = vpop.f32.mrb[0].mxu0
      %v2927 = vpop.f32.mrb[0].mxu0
      %v2928 = vadd.f32 0.0, %v2927
      %v2929 = vpop.f32.mrb[0].mxu0
      %2930 = vmatprep.mubr.bf16.mxu0 0
      %2931 = vmatmul.mubr.bf16.gmra.mrb[0].mxu0 %v2833
      %v2932 = vpop.f32.mrb[0].mxu0
      %v2933 = vadd.f32 0.0, %v2932
      %v2934 = vpop.f32.mrb[0].mxu0
      %v2935 = vpop.f32.mrb[0].mxu0
      %v2936 = vadd.f32 0.0, %v2935
      %v2937 = vpop.f32.mrb[0].mxu0
      %2938 = vmatprep.mubr.bf16.mxu0 0
      %2939 = vmatmul.mubr.bf16.gmra.mrb[0].mxu0 %v2836
      %v2940 = vpop.f32.mrb[0].mxu0
      %v2941 = vadd.f32 0.0, %v2940
      %v2942 = vpop.f32.mrb[0].mxu0
      %v2943 = vpop.f32.mrb[0].mxu0
      %v2944 = vadd.f32 0.0, %v2943
      %v2945 = vpop.f32.mrb[0].mxu0
      %2946 = vmatprep.mubr.bf16.mxu0 0
      %2947 = vmatmul.mubr.bf16.gmra.mrb[0].mxu0 %v2839
      %v2948 = vpop.f32.mrb[0].mxu0
      %v2949 = vadd.f32 0.0, %v2948
      %v2950 = vpop.f32.mrb[0].mxu0
      %v2951 = vpop.f32.mrb[0].mxu0
      %v2952 = vadd.f32 0.0, %v2951
      %v2953 = vpop.f32.mrb[0].mxu0
      %2954 = vmatprep.mubr.bf16.mxu0 0
      %2955 = vmatmul.mubr.bf16.gmra.mrb[0].mxu0 %v2842
      %v2956 = vpop.f32.mrb[0].mxu0
      %v2957 = vadd.f32 0.0, %v2956
      %v2958 = vpop.f32.mrb[0].mxu0
      %v2959 = vpop.f32.mrb[0].mxu0
      %v2960 = vadd.f32 0.0, %v2959
      %v2961 = vpop.f32.mrb[0].mxu0
      %2962 = vmatprep.mubr.bf16.mxu0 0
      %2963 = vmatmul.mubr.bf16.gmra.mrb[0].mxu0 %v2845
      %v2964 = vpop.f32.mrb[0].mxu0
      %v2965 = vadd.f32 0.0, %v2964
      %v2966 = vpop.f32.mrb[0].mxu0
      %v2967 = vpop.f32.mrb[0].mxu0
      %v2968 = vadd.f32 0.0, %v2967
      %v2969 = vpop.f32.mrb[0].mxu0
      %2970 = vmatprep.mubr.bf16.mxu0 0
      %2971 = vmatmul.mubr.bf16.gmra.mrb[0].mxu0 %v2848
      %v2972 = vpop.f32.mrb[0].mxu0
      %v2973 = vadd.f32 0.0, %v2972
      %v2974 = vpop.f32.mrb[0].mxu0
      %v2975 = vpop.f32.mrb[0].mxu0
      %v2976 = vadd.f32 0.0, %v2975
      %v2977 = vpop.f32.mrb[0].mxu0
      %2978 = vmatprep.mubr.bf16.mxu0 0
      %2979 = vmatmul.mubr.bf16.gmra.mrb[0].mxu0 %v2851
      %v2980 = vpop.f32.mrb[0].mxu0
      %v2981 = vadd.f32 0.0, %v2980
      %v2982 = vpop.f32.mrb[0].mxu0
      %v2983 = vpop.f32.mrb[0].mxu0
      %v2984 = vadd.f32 0.0, %v2983
      %v2985 = vpop.f32.mrb[0].mxu0
      %2986 = vmatprep.mubr.bf16.mxu0 0
      %2987 = vmatmul.mubr.bf16.gmra.mrb[0].mxu0 %v2854
      %v2988 = vpop.f32.mrb[0].mxu0
      %v2989 = vadd.f32 0.0, %v2988
      %v2990 = vpop.f32.mrb[0].mxu0
      %v2991 = vpop.f32.mrb[0].mxu0
      %v2992 = vadd.f32 0.0, %v2991
      %v2993 = vpop.f32.mrb[0].mxu0
      %2994 = vmatprep.mubr.bf16.mxu0 0
      %2995 = vmatmul.mubr.bf16.gmra.mrb[0].mxu0 %v2857
      %v2996 = vpop.f32.mrb[0].mxu0
      %v2997 = vadd.f32 0.0, %v2996
      %v2998 = vpop.f32.mrb[0].mxu0
      %v2999 = vpop.f32.mrb[0].mxu0
      %v3000 = vadd.f32 0.0, %v2999
      %v3001 = vpop.f32.mrb[0].mxu0
      %3002 = vmatprep.mubr.bf16.mxu0 0
      %3003 = vmatmul.mubr.bf16.gmra.mrb[0].mxu0 %v2860
      %v3004 = vpop.f32.mrb[0].mxu0
      %v3005 = vadd.f32 0.0, %v3004
      %v3006 = vpop.f32.mrb[0].mxu0
      %v3007 = vpop.f32.mrb[0].mxu0
      %v3008 = vadd.f32 0.0, %v3007
      %v3009 = vpop.f32.mrb[0].mxu0
      %3010 = vmatprep.mubr.bf16.mxu0 0
      %3011 = vmatmul.mubr.bf16.gmra.mrb[0].mxu0 %v2863
      %v3012 = vpop.f32.mrb[0].mxu0
      %v3013 = vadd.f32 0.0, %v3012
      %v3014 = vpop.f32.mrb[0].mxu0
      %v3015 = vpop.f32.mrb[0].mxu0
      %v3016 = vadd.f32 0.0, %v3015
      %v3017 = vpop.f32.mrb[0].mxu0
      %3018 = vmatprep.mubr.bf16.mxu0 0
      %3019 = vmatmul.mubr.bf16.gmra.mrb[0].mxu0 %v2866
      %v3020 = vpop.f32.mrb[0].mxu0
      %v3021 = vadd.f32 0.0, %v3020
      %v3022 = vpop.f32.mrb[0].mxu0
      %v3023 = vpop.f32.mrb[0].mxu0
      %v3024 = vadd.f32 0.0, %v3023
      %v3025 = vpop.f32.mrb[0].mxu0
      %3026 = vmatprep.mubr.bf16.mxu0 0
      %3027 = vmatmul.mubr.bf16.gmra.mrb[0].mxu0 %v2869
      %v3028 = vpop.f32.mrb[0].mxu0
      %v3029 = vadd.f32 0.0, %v3028
      %v3030 = vpop.f32.mrb[0].mxu0
      %v3031 = vpop.f32.mrb[0].mxu0
      %v3032 = vadd.f32 0.0, %v3031
      %v3033 = vpop.f32.mrb[0].mxu0
      %3034 = vdwg.mxu0
      %v3044 = vunpack.c.l.b16 %v2797
      %v3045 = vunpack.c.l.b16 %v2798
      %v3046 = vunpack.c.l.b16 %v2799
      %v3047 = vunpack.c.l.b16 %v2800
      %v3048 = vunpack.c.l.b16 %v2801
      %v3049 = vunpack.c.l.b16 %v2802
      %v3050 = vunpack.c.l.b16 %v2803
      %v3051 = vunpack.c.l.b16 %v2804
      %v3052 = vunpack.c.l.b16 %v2805
      %v3053 = vpack.c.b16 %v3045, %v3044
      %v3054 = vpack.c.b16 %v3047, %v3046
      %v3055 = vpack.c.b16 %v3049, %v3048
      %v3056 = vpack.c.b16 %v3051, %v3050
      %v3057 = vpack.c.b16 %v3052, %v3052
      %vm3062 = vcmask 588800
      %v3063 = vsel %vm3062, %v2766, 0
      %v3065 = vsel %vm3062, %v2768, 0
      %v3067 = vsel %vm3062, %v2770, 0
      %v3069 = vsel %vm3062, %v2772, 0
      %v3071 = vsel %vm3062, %v2774, 0
      %v3073 = vsel %vm3062, %v2776, 0
      %v3075 = vsel %vm3062, %v2778, 0
      %v3077 = vsel %vm3062, %v2780, 0
      %v3079 = vsel %vm3062, %v2782, 0
      %v3081 = vsel %vm3062, %v2784, 0
      %v3083 = vsel %vm3062, %v2786, 0
      %v3085 = vsel %vm3062, %v2788, 0
      %v3087 = vsel %vm3062, %v2790, 0
      %v3089 = vsel %vm3062, %v2792, 0
      %v3091 = vsel %vm3062, %v2794, 0
      %v3093 = vsel %vm3062, %v2796, 0
      %vm3095 = vcmask 1043456
      %v3097 = vsel %vm3095, %v3057, 0
      %3099 = vmatprep.subr.bf16.mxu0 0
      %3100 = vmatpush1.bf16.msra.mxu0 %v3053
      %3101 = vmatprep.subr.bf16.mxu0 0
      %3102 = vmatpush1.bf16.msra.mxu0 %v3054
      %3103 = vmatprep.subr.bf16.mxu0 0
      %3104 = vmatpush1.bf16.msra.mxu0 %v3055
      %3105 = vmatprep.subr.bf16.mxu0 0
      %3106 = vmatpush1.bf16.msra.mxu0 %v3056
      %3107 = vmatprep.subr.bf16.mxu0 0
      %3108 = vmatpush1.bf16.msra.mxu0 %v3097
      %3109 = vmatprep.subr.bf16.mxu0 0
      %3110 = vmatpush1.bf16.msra.mxu0 0
      %3111 = vmatprep.subr.bf16.mxu0 0
      %3112 = vmatpush1.bf16.msra.mxu0 0
      %3113 = vmatprep.subr.bf16.mxu0 0
      %3114 = vmatpush1.bf16.msra.mxu0 0
      %3115 = vmatprep.subr.bf16.mxu0 0
      %3116 = vmatpush1.bf16.msra.mxu0 0
      %3117 = vmatprep.subr.bf16.mxu0 0
      %3118 = vmatpush1.bf16.msra.mxu0 0
      %3119 = vmatprep.subr.bf16.mxu0 0
      %3120 = vmatpush1.bf16.msra.mxu0 0
      %3121 = vmatprep.subr.bf16.mxu0 0
      %3122 = vmatpush1.bf16.msra.mxu0 0
      %3123 = vmatprep.subr.bf16.mxu0 0
      %3124 = vmatpush1.bf16.msra.mxu0 0
      %3125 = vmatprep.subr.bf16.mxu0 0
      %3126 = vmatpush1.bf16.msra.mxu0 0
      %3127 = vmatprep.subr.bf16.mxu0 0
      %3128 = vmatpush1.bf16.msra.mxu0 0
      %3129 = vmatprep.subr.bf16.mxu0 0
      %3130 = vmatpush1.bf16.msra.mxu0 0
      %3131 = vmatprep.mubr.bf16.mxu0 0
      %3132 = vmatmul.mubr.bf16.gmra.mrb[0].mxu0 %v3063
      %v3133 = vpop.f32.mrb[0].mxu0
      %v3134 = vadd.f32 %v2909, %v3133
      %v3135 = vpop.f32.mrb[0].mxu0
      %v3136 = vpop.f32.mrb[0].mxu0
      %v3137 = vadd.f32 %v2912, %v3136
      %v3138 = vpop.f32.mrb[0].mxu0
      %3139 = vmatprep.mubr.bf16.mxu0 0
      %3140 = vmatmul.mubr.bf16.gmra.mrb[0].mxu0 %v3065
      %v3141 = vpop.f32.mrb[0].mxu0
      %v3142 = vadd.f32 %v2917, %v3141
      %v3143 = vpop.f32.mrb[0].mxu0
      %v3144 = vpop.f32.mrb[0].mxu0
      %v3145 = vadd.f32 %v2920, %v3144
      %v3146 = vpop.f32.mrb[0].mxu0
      %3147 = vmatprep.mubr.bf16.mxu0 0
      %3148 = vmatmul.mubr.bf16.gmra.mrb[0].mxu0 %v3067
      %v3149 = vpop.f32.mrb[0].mxu0
      %v3150 = vadd.f32 %v2925, %v3149
      %v3151 = vpop.f32.mrb[0].mxu0
      %v3152 = vpop.f32.mrb[0].mxu0
      %v3153 = vadd.f32 %v2928, %v3152
      %v3154 = vpop.f32.mrb[0].mxu0
      %3155 = vmatprep.mubr.bf16.mxu0 0
      %3156 = vmatmul.mubr.bf16.gmra.mrb[0].mxu0 %v3069
      %v3157 = vpop.f32.mrb[0].mxu0
      %v3158 = vadd.f32 %v2933, %v3157
      %v3159 = vpop.f32.mrb[0].mxu0
      %v3160 = vpop.f32.mrb[0].mxu0
      %v3161 = vadd.f32 %v2936, %v3160
      %v3162 = vpop.f32.mrb[0].mxu0
      %3163 = vmatprep.mubr.bf16.mxu0 0
      %3164 = vmatmul.mubr.bf16.gmra.mrb[0].mxu0 %v3071
      %v3165 = vpop.f32.mrb[0].mxu0
      %v3166 = vadd.f32 %v2941, %v3165
      %v3167 = vpop.f32.mrb[0].mxu0
      %v3168 = vpop.f32.mrb[0].mxu0
      %v3169 = vadd.f32 %v2944, %v3168
      %v3170 = vpop.f32.mrb[0].mxu0
      %3171 = vmatprep.mubr.bf16.mxu0 0
      %3172 = vmatmul.mubr.bf16.gmra.mrb[0].mxu0 %v3073
      %v3173 = vpop.f32.mrb[0].mxu0
      %v3174 = vadd.f32 %v2949, %v3173
      %v3175 = vpop.f32.mrb[0].mxu0
      %v3176 = vpop.f32.mrb[0].mxu0
      %v3177 = vadd.f32 %v2952, %v3176
      %v3178 = vpop.f32.mrb[0].mxu0
      %3179 = vmatprep.mubr.bf16.mxu0 0
      %3180 = vmatmul.mubr.bf16.gmra.mrb[0].mxu0 %v3075
      %v3181 = vpop.f32.mrb[0].mxu0
      %v3182 = vadd.f32 %v2957, %v3181
      %v3183 = vpop.f32.mrb[0].mxu0
      %v3184 = vpop.f32.mrb[0].mxu0
      %v3185 = vadd.f32 %v2960, %v3184
      %v3186 = vpop.f32.mrb[0].mxu0
      %3187 = vmatprep.mubr.bf16.mxu0 0
      %3188 = vmatmul.mubr.bf16.gmra.mrb[0].mxu0 %v3077
      %v3189 = vpop.f32.mrb[0].mxu0
      %v3190 = vadd.f32 %v2965, %v3189
      %v3191 = vpop.f32.mrb[0].mxu0
      %v3192 = vpop.f32.mrb[0].mxu0
      %v3193 = vadd.f32 %v2968, %v3192
      %v3194 = vpop.f32.mrb[0].mxu0
      %3195 = vmatprep.mubr.bf16.mxu0 0
      %3196 = vmatmul.mubr.bf16.gmra.mrb[0].mxu0 %v3079
      %v3197 = vpop.f32.mrb[0].mxu0
      %v3198 = vadd.f32 %v2973, %v3197
      %v3199 = vpop.f32.mrb[0].mxu0
      %v3200 = vpop.f32.mrb[0].mxu0
      %v3201 = vadd.f32 %v2976, %v3200
      %v3202 = vpop.f32.mrb[0].mxu0
      %3203 = vmatprep.mubr.bf16.mxu0 0
      %3204 = vmatmul.mubr.bf16.gmra.mrb[0].mxu0 %v3081
      %v3205 = vpop.f32.mrb[0].mxu0
      %v3206 = vadd.f32 %v2981, %v3205
      %v3207 = vpop.f32.mrb[0].mxu0
      %v3208 = vpop.f32.mrb[0].mxu0
      %v3209 = vadd.f32 %v2984, %v3208
      %v3210 = vpop.f32.mrb[0].mxu0
      %3211 = vmatprep.mubr.bf16.mxu0 0
      %3212 = vmatmul.mubr.bf16.gmra.mrb[0].mxu0 %v3083
      %v3213 = vpop.f32.mrb[0].mxu0
      %v3214 = vadd.f32 %v2989, %v3213
      %v3215 = vpop.f32.mrb[0].mxu0
      %v3216 = vpop.f32.mrb[0].mxu0
      %v3217 = vadd.f32 %v2992, %v3216
      %v3218 = vpop.f32.mrb[0].mxu0
      %3219 = vmatprep.mubr.bf16.mxu0 0
      %3220 = vmatmul.mubr.bf16.gmra.mrb[0].mxu0 %v3085
      %v3221 = vpop.f32.mrb[0].mxu0
      %v3222 = vadd.f32 %v2997, %v3221
      %v3223 = vpop.f32.mrb[0].mxu0
      %v3224 = vpop.f32.mrb[0].mxu0
      %v3225 = vadd.f32 %v3000, %v3224
      %v3226 = vpop.f32.mrb[0].mxu0
      %3227 = vmatprep.mubr.bf16.mxu0 0
      %3228 = vmatmul.mubr.bf16.gmra.mrb[0].mxu0 %v3087
      %v3229 = vpop.f32.mrb[0].mxu0
      %v3230 = vadd.f32 %v3005, %v3229
      %v3231 = vpop.f32.mrb[0].mxu0
      %v3232 = vpop.f32.mrb[0].mxu0
      %v3233 = vadd.f32 %v3008, %v3232
      %v3234 = vpop.f32.mrb[0].mxu0
      %3235 = vmatprep.mubr.bf16.mxu0 0
      %3236 = vmatmul.mubr.bf16.gmra.mrb[0].mxu0 %v3089
      %v3237 = vpop.f32.mrb[0].mxu0
      %v3238 = vadd.f32 %v3013, %v3237
      %v3239 = vpop.f32.mrb[0].mxu0
      %v3240 = vpop.f32.mrb[0].mxu0
      %v3241 = vadd.f32 %v3016, %v3240
      %v3242 = vpop.f32.mrb[0].mxu0
      %3243 = vmatprep.mubr.bf16.mxu0 0
      %3244 = vmatmul.mubr.bf16.gmra.mrb[0].mxu0 %v3091
      %v3245 = vpop.f32.mrb[0].mxu0
      %v3246 = vadd.f32 %v3021, %v3245
      %v3247 = vpop.f32.mrb[0].mxu0
      %v3248 = vpop.f32.mrb[0].mxu0
      %v3249 = vadd.f32 %v3024, %v3248
      %v3250 = vpop.f32.mrb[0].mxu0
      %3251 = vmatprep.mubr.bf16.mxu0 0
      %3252 = vmatmul.mubr.bf16.gmra.mrb[0].mxu0 %v3093
      %v3253 = vpop.f32.mrb[0].mxu0
      %v3254 = vadd.f32 %v3029, %v3253
      %v3255 = vpop.f32.mrb[0].mxu0
      %v3256 = vpop.f32.mrb[0].mxu0
      %v3257 = vadd.f32 %v3032, %v3256
      %v3258 = vpop.f32.mrb[0].mxu0
      %3259 = vdwg.mxu0
      %v3260 = vld [vmem:[%s7] sm:$0x1]
      %v3262 = vlaneseq
      %v3263 = vshrl.u32 %v3262, 7
      %v3264 = vsub.s32 0, %v3263
      %v3265 = vrot.slane %v3260, %v3264
      %v3267 = vadd.f32 %v3134, %v3265
      %v3268 = vadd.f32 %v3137, %v3265
      %v3269 = vadd.f32 %v3142, %v3265
      %v3270 = vadd.f32 %v3145, %v3265
      %v3271 = vadd.f32 %v3150, %v3265
      %v3272 = vadd.f32 %v3153, %v3265
      %v3273 = vadd.f32 %v3158, %v3265
      %v3274 = vadd.f32 %v3161, %v3265
      %v3275 = vadd.f32 %v3166, %v3265
      %v3276 = vadd.f32 %v3169, %v3265
      %v3277 = vadd.f32 %v3174, %v3265
      %v3278 = vadd.f32 %v3177, %v3265
      %v3279 = vadd.f32 %v3182, %v3265
      %v3280 = vadd.f32 %v3185, %v3265
      %v3281 = vadd.f32 %v3190, %v3265
      %v3282 = vadd.f32 %v3193, %v3265
      %v3283 = vadd.f32 %v3198, %v3265
      %v3284 = vadd.f32 %v3201, %v3265
      %v3285 = vadd.f32 %v3206, %v3265
      %v3286 = vadd.f32 %v3209, %v3265
      %v3287 = vadd.f32 %v3214, %v3265
      %v3288 = vadd.f32 %v3217, %v3265
      %v3289 = vadd.f32 %v3222, %v3265
      %v3290 = vadd.f32 %v3225, %v3265
      %v3291 = vadd.f32 %v3230, %v3265
      %v3292 = vadd.f32 %v3233, %v3265
      %v3293 = vadd.f32 %v3238, %v3265
      %v3294 = vadd.f32 %v3241, %v3265
      %v3295 = vadd.f32 %v3246, %v3265
      %v3296 = vadd.f32 %v3249, %v3265
      %v3297 = vadd.f32 %v3254, %v3265
      %v3298 = vadd.f32 %v3257, %v3265
      %3299 = vst.msk [vmem:[%s332] sm:$0xff] %vm1568, %v3267
      %3300 = vst.msk [vmem:[%s332 + $0x8] sm:$0xff] %vm1568, %v3268
      %3301 = vst.msk [vmem:[%s332 + $0x10] sm:$0xff] %vm1568, %v3269
      %3302 = vst.msk [vmem:[%s332 + $0x18] sm:$0xff] %vm1568, %v3270
      %3303 = vst.msk [vmem:[%s332 + $0x20] sm:$0xff] %vm1568, %v3271
      %3304 = vst.msk [vmem:[%s332 + $0x28] sm:$0xff] %vm1568, %v3272
      %3305 = vst.msk [vmem:[%s332 + $0x30] sm:$0xff] %vm1568, %v3273
      %3306 = vst.msk [vmem:[%s332 + $0x38] sm:$0xff] %vm1568, %v3274
      %3307 = vst.msk [vmem:[%s332 + $0x40] sm:$0xff] %vm1568, %v3275
      %3308 = vst.msk [vmem:[%s332 + $0x48] sm:$0xff] %vm1568, %v3276
      %3309 = vst.msk [vmem:[%s332 + $0x50] sm:$0xff] %vm1568, %v3277
      %3310 = vst.msk [vmem:[%s332 + $0x58] sm:$0xff] %vm1568, %v3278
      %3311 = vst.msk [vmem:[%s332 + $0x60] sm:$0xff] %vm1568, %v3279
      %3312 = vst.msk [vmem:[%s332 + $0x68] sm:$0xff] %vm1568, %v3280
      %3313 = vst.msk [vmem:[%s332 + $0x70] sm:$0xff] %vm1568, %v3281
      %3314 = vst.msk [vmem:[%s332 + $0x78] sm:$0xff] %vm1568, %v3282
      %3315 = vst.msk [vmem:[%s332 + $0x80] sm:$0xff] %vm1568, %v3283
      %3316 = vst.msk [vmem:[%s332 + $0x88] sm:$0xff] %vm1568, %v3284
      %3317 = vst.msk [vmem:[%s332 + $0x90] sm:$0xff] %vm1568, %v3285
      %3318 = vst.msk [vmem:[%s332 + $0x98] sm:$0xff] %vm1568, %v3286
      %3319 = vst.msk [vmem:[%s332 + $0xa0] sm:$0xff] %vm1568, %v3287
      %3320 = vst.msk [vmem:[%s332 + $0xa8] sm:$0xff] %vm1568, %v3288
      %3321 = vst.msk [vmem:[%s332 + $0xb0] sm:$0xff] %vm1568, %v3289
      %3322 = vst.msk [vmem:[%s332 + $0xb8] sm:$0xff] %vm1568, %v3290
      %3323 = vst.msk [vmem:[%s332 + $0xc0] sm:$0xff] %vm1568, %v3291
      %3324 = vst.msk [vmem:[%s332 + $0xc8] sm:$0xff] %vm1568, %v3292
      %3325 = vst.msk [vmem:[%s332 + $0xd0] sm:$0xff] %vm1568, %v3293
      %3326 = vst.msk [vmem:[%s332 + $0xd8] sm:$0xff] %vm1568, %v3294
      %3327 = vst.msk [vmem:[%s332 + $0xe0] sm:$0xff] %vm1568, %v3295
      %3328 = vst.msk [vmem:[%s332 + $0xe8] sm:$0xff] %vm1568, %v3296
      %3329 = vst.msk [vmem:[%s332 + $0xf0] sm:$0xff] %vm1568, %v3297
      %3330 = vst.msk [vmem:[%s332 + $0xf8] sm:$0xff] %vm1568, %v3298
      %p3331 = scmp.lt.s32.totalorder %s20, 1
      %s3332 = scalar_select %p3331, %s20, 1
      %s3333 = smul.addr %s3332, 32
      %s3334 = smul.addr %s3333, 8
      %s3335 = scalar_lea.vmem %s9, %s3334
      // Predicated region
      $region57: #{tpu_custom_call.1} parent=55 // pred_check
        %p3336 = pneg %p232
      $region58: #{tpu_custom_call.1} parent=55 // pred_check_branch
        %3338 = sbr.rel (%p3336) target = $region60
      $region59: #{tpu_custom_call.1} parent=55 // pred_region
        _
      $region60: #{tpu_custom_call.1} parent=55 // pred_fallthru
        _
    $region56: #{tpu_custom_call.1} parent=5 // pred_fallthru
      _
    %p3339 = scmp.le.s32.totalorder 2, %s15
    // Predicated region
    $region61: #{tpu_custom_call.1} parent=5 // pred_check
      %p3340 = pneg %p3339
    $region62: #{tpu_custom_call.1} parent=5 // pred_check_branch
      %3342 = sbr.rel (%p3340) target = $region64
    $region63: #{tpu_custom_call.1} parent=5 // pred_region
      %s3343 = ssub.s32 %s15, 2
      // Predicated region
      $region65: #{tpu_custom_call.1} parent=63 // pred_check
        %p3344 = pneg %p238
      $region66: #{tpu_custom_call.1} parent=63 // pred_check_branch
        %3346 = sbr.rel (%p3344) target = $region68
      $region67: #{tpu_custom_call.1} parent=63 // pred_region
        %p3347 = scmp.lt.s32.totalorder %s21, 1
        %s3348 = scalar_select %p3347, %s21, 1
        %s3349 = smul.addr %s3348, 32
        %s3350 = smul.addr %s3349, 8
        %s3351 = scalar_lea.vmem %s9, %s3350
      $region68: #{tpu_custom_call.1} parent=63 // pred_fallthru
        _
    $region64: #{tpu_custom_call.1} parent=5 // pred_fallthru
      _
  $region6: #{tpu_custom_call.1} parent=0 // loop_footer
    %s19 = sadd.s32 1, %s15
  $region7: #{tpu_custom_call.1} parent=0 // loop_footer_branch
    %14 = sbr.rel target = $region3
  $region8: #{tpu_custom_call.1} parent=0 // loop_exit
    _

// kernel: tpu_custom_call.1
$region0: #{tpu_custom_call.1}
  #allocation0 [shape = 'u32[]', space=smem, size = 0x4, offset = 0x4, fixed_abs, tag = 'smem constant byte address 0x4 - core index']
  #allocation1 [shape = 'u32[144,128]{1,0:T(1,128)}', space=vmem, size = 0x12000, scoped, tag = 'internal scratch']
  %s0 = inlined_call_operand.vmem [shape: f32[2,16,16,4], index: 0, kind: input, shape index: {}]
  %s1 = inlined_call_operand.vmem [shape: f32[1,4], index: 1, kind: input, shape index: {}]
  %s2 = inlined_call_operand.vmem [shape: f32[1,4], index: 2, kind: input, shape index: {}]
  %s3 = inlined_call_operand.vmem [shape: bf16[36,8], index: 3, kind: input, shape index: {}]
  %s4 = inlined_call_operand.vmem [shape: f32[1,8], index: 4, kind: input, shape index: {}]
  %s5 = inlined_call_operand.vmem [shape: f32[1,8], index: 5, kind: input, shape index: {}]
  %s6 = inlined_call_operand.vmem [shape: bf16[72,8], index: 6, kind: input, shape index: {}]
  %s7 = inlined_call_operand.vmem [shape: f32[1,8], index: 7, kind: input, shape index: {}]
  %s8 = inlined_call_operand.vmem [shape: bf16[4,8], index: 8, kind: input, shape index: {}]
  %s9 = inlined_call_operand.vmem [shape: f32[2,16,16,8], index: 9, kind: output, shape index: {}]
  %s10 = sld [smem:[#allocation0]]
  $region69: #{tpu_custom_call.1} parent=0
    _
  %s12 = ssub.s32 1, %s10
  %s13 = scalar_select 0, %s12, %s10
  loop: start=0, step=1, limit=4
  $region2: #{tpu_custom_call.1} parent=0 // loop_pre_header
    _
  $region3: #{tpu_custom_call.1} parent=0 // loop_header
    %s15 = sphi 0, %s19
    %p16 = scmp.ge.s32.totalorder %s15, 4
    %s25 = sphi 0, %s27
    %s28 = sphi 0, %s25
    %s29 = sphi 0, %s28
    %s45 = sphi 0, %s29
    %s49 = sphi 0, %s49
    %s51 = sphi 0, %s49
    %s52 = sphi 0, %s51
    %s66 = sphi 0, %s52
    %s70 = sphi 0, %s70
    %s72 = sphi 0, %s70
    %s73 = sphi 0, %s72
    %s87 = sphi 0, %s73
    %s91 = sphi 0, %s91
    %s93 = sphi 0, %s91
    %s94 = sphi 0, %s93
    %s108 = sphi 0, %s94
    %s112 = sphi 0, %s112
    %s114 = sphi 0, %s112
    %s115 = sphi 0, %s114
    %s129 = sphi 0, %s115
    %s133 = sphi 0, %s133
    %s135 = sphi 0, %s133
    %s136 = sphi 0, %s135
    %s150 = sphi 0, %s136
    %s154 = sphi 0, %s154
    %s156 = sphi 0, %s154
    %s157 = sphi 0, %s156
    %s171 = sphi 0, %s157
    %s175 = sphi 0, %s175
    %s177 = sphi 0, %s175
    %s178 = sphi 0, %s177
    %s192 = sphi 0, %s178
    %s196 = sphi 0, %s196
    %s198 = sphi 0, %s196
    %s199 = sphi 0, %s198
    %s213 = sphi 0, %s199
    %s219 = sphi 0, %s221
    %s222 = sphi 0, %s219
    %s223 = sphi 0, %s222
    %s239 = sphi 0, %s223
  $region4: #{tpu_custom_call.1} parent=0 // loop_header_branch
    %18 = sbr.rel (%p16) target = $region8
  $region5: #{tpu_custom_call.1} parent=0 // loop_body
    %s20 = ssub.s32 %s15, 1
    %s21 = ssub.s32 %s15, 2
    %s22 = sadd.s32 %s15, 1
    %s23 = ssub.s32 %s15, %s22
    %p24 = scmp.eq.s32.totalorder %s23, 0
    %s26 = sadd.s32 %s25, 1
    %s27 = scalar_select %p24, %s25, %s26
    %p30 = pneg %p24
    %p31 = scmp.eq.s32.totalorder %s15, 1
    %p32 = por %p30, %p31
    %p33 = scmp.ne.s32.totalorder %s25, %s28
    %p34 = scmp.eq.s32.totalorder %s15, 0
    %p35 = por %p33, %p34
    %p36 = scmp.ne.s32.totalorder %s25, %s28
    %p37 = scmp.eq.s32.totalorder %s20, 1
    %p38 = por %p36, %p37
    %p39 = scmp.ne.s32.totalorder %s28, %s29
    %p40 = scmp.eq.s32.totalorder %s20, 0
    %p41 = por %p39, %p40
    %p42 = scmp.ne.s32.totalorder %s28, %s29
    %p43 = scmp.eq.s32.totalorder %s21, 1
    %p44 = por %p42, %p43
    %p46 = scmp.ne.s32.totalorder %s29, %s45
    %p47 = scmp.eq.s32.totalorder %s21, 0
    %p48 = por %p46, %p47
    %s50 = sadd.s32 %s49, 1
    %p53 = scmp.eq.s32.totalorder %s15, 1
    %p54 = scmp.ne.s32.totalorder %s49, %s51
    %p55 = scmp.eq.s32.totalorder %s15, 0
    %p56 = por %p54, %p55
    %p57 = scmp.ne.s32.totalorder %s49, %s51
    %p58 = scmp.eq.s32.totalorder %s20, 1
    %p59 = por %p57, %p58
    %p60 = scmp.ne.s32.totalorder %s51, %s52
    %p61 = scmp.eq.s32.totalorder %s20, 0
    %p62 = por %p60, %p61
    %p63 = scmp.ne.s32.totalorder %s51, %s52
    %p64 = scmp.eq.s32.totalorder %s21, 1
    %p65 = por %p63, %p64
    %p67 = scmp.ne.s32.totalorder %s52, %s66
    %p68 = scmp.eq.s32.totalorder %s21, 0
    %p69 = por %p67, %p68
    %s71 = sadd.s32 %s70, 1
    %p74 = scmp.eq.s32.totalorder %s15, 1
    %p75 = scmp.ne.s32.totalorder %s70, %s72
    %p76 = scmp.eq.s32.totalorder %s15, 0
    %p77 = por %p75, %p76
    %p78 = scmp.ne.s32.totalorder %s70, %s72
    %p79 = scmp.eq.s32.totalorder %s20, 1
    %p80 = por %p78, %p79
    %p81 = scmp.ne.s32.totalorder %s72, %s73
    %p82 = scmp.eq.s32.totalorder %s20, 0
    %p83 = por %p81, %p82
    %p84 = scmp.ne.s32.totalorder %s72, %s73
    %p85 = scmp.eq.s32.totalorder %s21, 1
    %p86 = por %p84, %p85
    %p88 = scmp.ne.s32.totalorder %s73, %s87
    %p89 = scmp.eq.s32.totalorder %s21, 0
    %p90 = por %p88, %p89
    %s92 = sadd.s32 %s91, 1
    %p95 = scmp.eq.s32.totalorder %s15, 1
    %p96 = scmp.ne.s32.totalorder %s91, %s93
    %p97 = scmp.eq.s32.totalorder %s15, 0
    %p98 = por %p96, %p97
    %p99 = scmp.ne.s32.totalorder %s91, %s93
    %p100 = scmp.eq.s32.totalorder %s20, 1
    %p101 = por %p99, %p100
    %p102 = scmp.ne.s32.totalorder %s93, %s94
    %p103 = scmp.eq.s32.totalorder %s20, 0
    %p104 = por %p102, %p103
    %p105 = scmp.ne.s32.totalorder %s93, %s94
    %p106 = scmp.eq.s32.totalorder %s21, 1
    %p107 = por %p105, %p106
    %p109 = scmp.ne.s32.totalorder %s94, %s108
    %p110 = scmp.eq.s32.totalorder %s21, 0
    %p111 = por %p109, %p110
    %s113 = sadd.s32 %s112, 1
    %p116 = scmp.eq.s32.totalorder %s15, 1
    %p117 = scmp.ne.s32.totalorder %s112, %s114
    %p118 = scmp.eq.s32.totalorder %s15, 0
    %p119 = por %p117, %p118
    %p120 = scmp.ne.s32.totalorder %s112, %s114
    %p121 = scmp.eq.s32.totalorder %s20, 1
    %p122 = por %p120, %p121
    %p123 = scmp.ne.s32.totalorder %s114, %s115
    %p124 = scmp.eq.s32.totalorder %s20, 0
    %p125 = por %p123, %p124
    %p126 = scmp.ne.s32.totalorder %s114, %s115
    %p127 = scmp.eq.s32.totalorder %s21, 1
    %p128 = por %p126, %p127
    %p130 = scmp.ne.s32.totalorder %s115, %s129
    %p131 = scmp.eq.s32.totalorder %s21, 0
    %p132 = por %p130, %p131
    %s134 = sadd.s32 %s133, 1
    %p137 = scmp.eq.s32.totalorder %s15, 1
    %p138 = scmp.ne.s32.totalorder %s133, %s135
    %p139 = scmp.eq.s32.totalorder %s15, 0
    %p140 = por %p138, %p139
    %p141 = scmp.ne.s32.totalorder %s133, %s135
    %p142 = scmp.eq.s32.totalorder %s20, 1
    %p143 = por %p141, %p142
    %p144 = scmp.ne.s32.totalorder %s135, %s136
    %p145 = scmp.eq.s32.totalorder %s20, 0
    %p146 = por %p144, %p145
    %p147 = scmp.ne.s32.totalorder %s135, %s136
    %p148 = scmp.eq.s32.totalorder %s21, 1
    %p149 = por %p147, %p148
    %p151 = scmp.ne.s32.totalorder %s136, %s150
    %p152 = scmp.eq.s32.totalorder %s21, 0
    %p153 = por %p151, %p152
    %s155 = sadd.s32 %s154, 1
    %p158 = scmp.eq.s32.totalorder %s15, 1
    %p159 = scmp.ne.s32.totalorder %s154, %s156
    %p160 = scmp.eq.s32.totalorder %s15, 0
    %p161 = por %p159, %p160
    %p162 = scmp.ne.s32.totalorder %s154, %s156
    %p163 = scmp.eq.s32.totalorder %s20, 1
    %p164 = por %p162, %p163
    %p165 = scmp.ne.s32.totalorder %s156, %s157
    %p166 = scmp.eq.s32.totalorder %s20, 0
    %p167 = por %p165, %p166
    %p168 = scmp.ne.s32.totalorder %s156, %s157
    %p169 = scmp.eq.s32.totalorder %s21, 1
    %p170 = por %p168, %p169
    %p172 = scmp.ne.s32.totalorder %s157, %s171
    %p173 = scmp.eq.s32.totalorder %s21, 0
    %p174 = por %p172, %p173
    %s176 = sadd.s32 %s175, 1
    %p179 = scmp.eq.s32.totalorder %s15, 1
    %p180 = scmp.ne.s32.totalorder %s175, %s177
    %p181 = scmp.eq.s32.totalorder %s15, 0
    %p182 = por %p180, %p181
    %p183 = scmp.ne.s32.totalorder %s175, %s177
    %p184 = scmp.eq.s32.totalorder %s20, 1
    %p185 = por %p183, %p184
    %p186 = scmp.ne.s32.totalorder %s177, %s178
    %p187 = scmp.eq.s32.totalorder %s20, 0
    %p188 = por %p186, %p187
    %p189 = scmp.ne.s32.totalorder %s177, %s178
    %p190 = scmp.eq.s32.totalorder %s21, 1
    %p191 = por %p189, %p190
    %p193 = scmp.ne.s32.totalorder %s178, %s192
    %p194 = scmp.eq.s32.totalorder %s21, 0
    %p195 = por %p193, %p194
    %s197 = sadd.s32 %s196, 1
    %p200 = scmp.eq.s32.totalorder %s15, 1
    %p201 = scmp.ne.s32.totalorder %s196, %s198
    %p202 = scmp.eq.s32.totalorder %s15, 0
    %p203 = por %p201, %p202
    %p204 = scmp.ne.s32.totalorder %s196, %s198
    %p205 = scmp.eq.s32.totalorder %s20, 1
    %p206 = por %p204, %p205
    %p207 = scmp.ne.s32.totalorder %s198, %s199
    %p208 = scmp.eq.s32.totalorder %s20, 0
    %p209 = por %p207, %p208
    %p210 = scmp.ne.s32.totalorder %s198, %s199
    %p211 = scmp.eq.s32.totalorder %s21, 1
    %p212 = por %p210, %p211
    %p214 = scmp.ne.s32.totalorder %s199, %s213
    %p215 = scmp.eq.s32.totalorder %s21, 0
    %p216 = por %p214, %p215
    %s217 = ssub.s32 %s15, %s22
    %p218 = scmp.eq.s32.totalorder %s217, 0
    %s220 = sadd.s32 %s219, 1
    %s221 = scalar_select %p218, %s219, %s220
    %p224 = pneg %p218
    %p225 = scmp.eq.s32.totalorder %s15, 1
    %p226 = por %p224, %p225
    %p227 = scmp.ne.s32.totalorder %s219, %s222
    %p228 = scmp.eq.s32.totalorder %s15, 0
    %p229 = por %p227, %p228
    %p230 = scmp.ne.s32.totalorder %s219, %s222
    %p231 = scmp.eq.s32.totalorder %s20, 1
    %p232 = por %p230, %p231
    %p233 = scmp.ne.s32.totalorder %s222, %s223
    %p234 = scmp.eq.s32.totalorder %s20, 0
    %p235 = por %p233, %p234
    %p236 = scmp.ne.s32.totalorder %s222, %s223
    %p237 = scmp.eq.s32.totalorder %s21, 1
    %p238 = por %p236, %p237
    %p240 = scmp.ne.s32.totalorder %s223, %s239
    %p241 = scmp.eq.s32.totalorder %s21, 0
    %p242 = por %p240, %p241
    %p243 = scmp.le.s32.totalorder 1, %s15
    %p244 = scmp.lt.s32.totalorder %s15, 3
    %p245 = pnand %p243, %p244
    %p246 = pneg %p245
    // Predicated region
    $region9: #{tpu_custom_call.1} parent=5 // pred_check
      _
    $region10: #{tpu_custom_call.1} parent=5 // pred_check_branch
      %248 = sbr.rel (%p245) target = $region12
    $region11: #{tpu_custom_call.1} parent=5 // pred_region
      %s249 = ssub.s32 %s15, 1
      // Predicated region
      $region13: #{tpu_custom_call.1} parent=11 // pred_check
        %p250 = pneg %p62
      $region14: #{tpu_custom_call.1} parent=11 // pred_check_branch
        %252 = sbr.rel (%p250) target = $region16
      $region15: #{tpu_custom_call.1} parent=11 // pred_region
        _
      $region16: #{tpu_custom_call.1} parent=11 // pred_fallthru
        _
      // Predicated region
      $region17: #{tpu_custom_call.1} parent=11 // pred_check
        %p253 = pneg %p83
      $region18: #{tpu_custom_call.1} parent=11 // pred_check_branch
        %255 = sbr.rel (%p253) target = $region20
      $region19: #{tpu_custom_call.1} parent=11 // pred_region
        _
      $region20: #{tpu_custom_call.1} parent=11 // pred_fallthru
        _
      // Predicated region
      $region21: #{tpu_custom_call.1} parent=11 // pred_check
        %p256 = pneg %p104
      $region22: #{tpu_custom_call.1} parent=11 // pred_check_branch
        %258 = sbr.rel (%p256) target = $region24
      $region23: #{tpu_custom_call.1} parent=11 // pred_region
        _
      $region24: #{tpu_custom_call.1} parent=11 // pred_fallthru
        _
      // Predicated region
      $region25: #{tpu_custom_call.1} parent=11 // pred_check
        %p259 = pneg %p125
      $region26: #{tpu_custom_call.1} parent=11 // pred_check_branch
        %261 = sbr.rel (%p259) target = $region28
      $region27: #{tpu_custom_call.1} parent=11 // pred_region
        _
      $region28: #{tpu_custom_call.1} parent=11 // pred_fallthru
        _
      // Predicated region
      $region29: #{tpu_custom_call.1} parent=11 // pred_check
        %p262 = pneg %p146
      $region30: #{tpu_custom_call.1} parent=11 // pred_check_branch
        %264 = sbr.rel (%p262) target = $region32
      $region31: #{tpu_custom_call.1} parent=11 // pred_region
        _
      $region32: #{tpu_custom_call.1} parent=11 // pred_fallthru
        _
      // Predicated region
      $region33: #{tpu_custom_call.1} parent=11 // pred_check
        %p265 = pneg %p167
      $region34: #{tpu_custom_call.1} parent=11 // pred_check_branch
        %267 = sbr.rel (%p265) target = $region36
      $region35: #{tpu_custom_call.1} parent=11 // pred_region
        _
      $region36: #{tpu_custom_call.1} parent=11 // pred_fallthru
        _
      // Predicated region
      $region37: #{tpu_custom_call.1} parent=11 // pred_check
        %p268 = pneg %p188
      $region38: #{tpu_custom_call.1} parent=11 // pred_check_branch
        %270 = sbr.rel (%p268) target = $region40
      $region39: #{tpu_custom_call.1} parent=11 // pred_region
        _
      $region40: #{tpu_custom_call.1} parent=11 // pred_fallthru
        _
      // Predicated region
      $region41: #{tpu_custom_call.1} parent=11 // pred_check
        %p271 = pneg %p209
      $region42: #{tpu_custom_call.1} parent=11 // pred_check_branch
        %273 = sbr.rel (%p271) target = $region44
      $region43: #{tpu_custom_call.1} parent=11 // pred_region
        _
      $region44: #{tpu_custom_call.1} parent=11 // pred_fallthru
        _
    $region12: #{tpu_custom_call.1} parent=5 // pred_fallthru
      _
    %p274 = scmp.lt.s32.totalorder %s15, 2
    // Predicated region
    $region45: #{tpu_custom_call.1} parent=5 // pred_check
      %p275 = pneg %p274
    $region46: #{tpu_custom_call.1} parent=5 // pred_check_branch
      %277 = sbr.rel (%p275) target = $region48
    $region47: #{tpu_custom_call.1} parent=5 // pred_region
      // Predicated region
      $region49: #{tpu_custom_call.1} parent=47 // pred_check
        %p278 = pneg %p35
      $region50: #{tpu_custom_call.1} parent=47 // pred_check_branch
        %280 = sbr.rel (%p278) target = $region52
      $region51: #{tpu_custom_call.1} parent=47 // pred_region
        %p281 = scmp.lt.s32.totalorder %s15, 1
        %s282 = scalar_select %p281, %s15, 1
        %s283 = smul.addr %s282, 32
        %s284 = smul.addr %s283, 8
        %s285 = scalar_lea.vmem %s0, %s284
      $region52: #{tpu_custom_call.1} parent=47 // pred_fallthru
        _
    $region48: #{tpu_custom_call.1} parent=5 // pred_fallthru
      _
    %p286 = scmp.le.s32.totalorder 1, %s15
    %p287 = scmp.lt.s32.totalorder %s15, 3
    %p288 = pnand %p286, %p287
    %p289 = pneg %p288
    // Predicated region
    $region53: #{tpu_custom_call.1} parent=5 // pred_check
      _
    $region54: #{tpu_custom_call.1} parent=5 // pred_check_branch
      %291 = sbr.rel (%p288) target = $region56
    $region55: #{tpu_custom_call.1} parent=5 // pred_region
      %s292 = ssub.s32 %s15, 1
      %p293 = scmp.lt.s32.totalorder %s20, 1
      %s294 = scalar_select %p293, %s20, 1
      %s295 = smul.addr %s294, 32
      %s296 = smul.addr %s295, 8
      %s297 = scalar_lea.vmem %s0, %s296
      %p298 = pneg %p41
      %p299 = pneg %p38
      %p300 = pneg %p62
      %p301 = pneg %p59
      %p302 = pneg %p83
      %p303 = pneg %p80
      %p304 = pneg %p104
      %p305 = pneg %p101
      %p306 = pneg %p125
      %p307 = pneg %p122
      %p308 = pneg %p146
      %p309 = pneg %p143
      %p310 = pneg %p167
      %p311 = pneg %p164
      %p312 = pneg %p188
      %p313 = pneg %p185
      %p314 = pneg %p209
      %p315 = pneg %p206
      %p316 = pneg %p235
      %p317 = pneg %p232
      %p318 = scmp.lt.s32.totalorder %s20, 1
      %s319 = scalar_select %p318, %s20, 1
      %s320 = smul.addr %s319, 32
      %s321 = smul.addr %s320, 8
      %s322 = scalar_lea.vmem %s9, %s321
      %p323 = scmp.lt.s32.totalorder %s20, 1
      %s324 = scalar_select %p323, %s20, 1
      %s325 = smul.addr %s324, 32
      %s326 = smul.addr %s325, 8
      %s327 = scalar_lea.vmem %s0, %s326
      %p328 = scmp.lt.s32.totalorder %s20, 1
      %s329 = scalar_select %p328, %s20, 1
      %s330 = smul.addr %s329, 32
      %s331 = smul.addr %s330, 8
      %s332 = scalar_lea.vmem %s9, %s331
      %v334 = vld [vmem:[%s327] sm:$0xff]
      %v335 = vld [vmem:[%s327 + $0x8] sm:$0xff]
      %v336 = vld [vmem:[%s327 + $0x10] sm:$0xff]
      %v337 = vld [vmem:[%s327 + $0x18] sm:$0xff]
      %v338 = vld [vmem:[%s327 + $0x20] sm:$0xff]
      %v339 = vld [vmem:[%s327 + $0x28] sm:$0xff]
      %v340 = vld [vmem:[%s327 + $0x30] sm:$0xff]
      %v341 = vld [vmem:[%s327 + $0x38] sm:$0xff]
      %v342 = vld [vmem:[%s327 + $0x40] sm:$0xff]
      %v343 = vld [vmem:[%s327 + $0x48] sm:$0xff]
      %v344 = vld [vmem:[%s327 + $0x50] sm:$0xff]
      %v345 = vld [vmem:[%s327 + $0x58] sm:$0xff]
      %v346 = vld [vmem:[%s327 + $0x60] sm:$0xff]
      %v347 = vld [vmem:[%s327 + $0x68] sm:$0xff]
      %v348 = vld [vmem:[%s327 + $0x70] sm:$0xff]
      %v349 = vld [vmem:[%s327 + $0x78] sm:$0xff]
      %v350 = vld [vmem:[%s327 + $0x80] sm:$0xff]
      %v351 = vld [vmem:[%s327 + $0x88] sm:$0xff]
      %v352 = vld [vmem:[%s327 + $0x90] sm:$0xff]
      %v353 = vld [vmem:[%s327 + $0x98] sm:$0xff]
      %v354 = vld [vmem:[%s327 + $0xa0] sm:$0xff]
      %v355 = vld [vmem:[%s327 + $0xa8] sm:$0xff]
      %v356 = vld [vmem:[%s327 + $0xb0] sm:$0xff]
      %v357 = vld [vmem:[%s327 + $0xb8] sm:$0xff]
      %v358 = vld [vmem:[%s327 + $0xc0] sm:$0xff]
      %v359 = vld [vmem:[%s327 + $0xc8] sm:$0xff]
      %v360 = vld [vmem:[%s327 + $0xd0] sm:$0xff]
      %v361 = vld [vmem:[%s327 + $0xd8] sm:$0xff]
      %v362 = vld [vmem:[%s327 + $0xe0] sm:$0xff]
      %v363 = vld [vmem:[%s327 + $0xe8] sm:$0xff]
      %v364 = vld [vmem:[%s327 + $0xf0] sm:$0xff]
      %v365 = vld [vmem:[%s327 + $0xf8] sm:$0xff]
      %v366 = vlaneseq
      %v367 = vshrl.u32 %v366, 7
      %v368 = vadd.s32 %v367, 8
      %v369 = vadd.s32 %v367, 16
      %v370 = vadd.s32 %v367, 24
      %v371 = vadd.s32 %v367, 32
      %v372 = vadd.s32 %v367, 40
      %v373 = vadd.s32 %v367, 48
      %v374 = vadd.s32 %v367, 56
      %v375 = vadd.s32 %v367, 64
      %v376 = vadd.s32 %v367, 72
      %v377 = vadd.s32 %v367, 80
      %v378 = vadd.s32 %v367, 88
      %v379 = vadd.s32 %v367, 96
      %v380 = vadd.s32 %v367, 104
      %v381 = vadd.s32 %v367, 112
      %v382 = vadd.s32 %v367, 120
      %v383 = vadd.s32 %v367, 128
      %v384 = vadd.s32 %v367, 136
      %v385 = vadd.s32 %v367, 144
      %v386 = vadd.s32 %v367, 152
      %v387 = vadd.s32 %v367, 160
      %v388 = vadd.s32 %v367, 168
      %v389 = vadd.s32 %v367, 176
      %v390 = vadd.s32 %v367, 184
      %v391 = vadd.s32 %v367, 192
      %v392 = vadd.s32 %v367, 200
      %v393 = vadd.s32 %v367, 208
      %v394 = vadd.s32 %v367, 216
      %v395 = vadd.s32 %v367, 224
      %v396 = vadd.s32 %v367, 232
      %v397 = vadd.s32 %v367, 240
      %v398 = vadd.s32 %v367, 248
      %vm399 = vcmp.lt.s32.totalorder %v367, 0
      %v400 = vsub.s32 0, %v367
      %v401 = vsel %vm399, %v400, %v367
      %v402 = vshrl.u32 %v401, 4
      %v403 = vand.u32 %v401, 15
      %v404 = vsub.s32 0, %v403
      %v405 = vsel %vm399, %v404, %v403
      %vm406 = vcmp.lt.s32.totalorder %v368, 0
      %v407 = vsub.s32 0, %v368
      %v408 = vsel %vm406, %v407, %v368
      %v409 = vshrl.u32 %v408, 4
      %v410 = vand.u32 %v408, 15
      %v411 = vsub.s32 0, %v410
      %v412 = vsel %vm406, %v411, %v410
      %vm413 = vcmp.lt.s32.totalorder %v369, 0
      %v414 = vsub.s32 0, %v369
      %v415 = vsel %vm413, %v414, %v369
      %v416 = vshrl.u32 %v415, 4
      %v417 = vand.u32 %v415, 15
      %v418 = vsub.s32 0, %v417
      %v419 = vsel %vm413, %v418, %v417
      %vm420 = vcmp.lt.s32.totalorder %v370, 0
      %v421 = vsub.s32 0, %v370
      %v422 = vsel %vm420, %v421, %v370
      %v423 = vshrl.u32 %v422, 4
      %v424 = vand.u32 %v422, 15
      %v425 = vsub.s32 0, %v424
      %v426 = vsel %vm420, %v425, %v424
      %vm427 = vcmp.lt.s32.totalorder %v371, 0
      %v428 = vsub.s32 0, %v371
      %v429 = vsel %vm427, %v428, %v371
      %v430 = vshrl.u32 %v429, 4
      %v431 = vand.u32 %v429, 15
      %v432 = vsub.s32 0, %v431
      %v433 = vsel %vm427, %v432, %v431
      %vm434 = vcmp.lt.s32.totalorder %v372, 0
      %v435 = vsub.s32 0, %v372
      %v436 = vsel %vm434, %v435, %v372
      %v437 = vshrl.u32 %v436, 4
      %v438 = vand.u32 %v436, 15
      %v439 = vsub.s32 0, %v438
      %v440 = vsel %vm434, %v439, %v438
      %vm441 = vcmp.lt.s32.totalorder %v373, 0
      %v442 = vsub.s32 0, %v373
      %v443 = vsel %vm441, %v442, %v373
      %v444 = vshrl.u32 %v443, 4
      %v445 = vand.u32 %v443, 15
      %v446 = vsub.s32 0, %v445
      %v447 = vsel %vm441, %v446, %v445
      %vm448 = vcmp.lt.s32.totalorder %v374, 0
      %v449 = vsub.s32 0, %v374
      %v450 = vsel %vm448, %v449, %v374
      %v451 = vshrl.u32 %v450, 4
      %v452 = vand.u32 %v450, 15
      %v453 = vsub.s32 0, %v452
      %v454 = vsel %vm448, %v453, %v452
      %vm455 = vcmp.lt.s32.totalorder %v375, 0
      %v456 = vsub.s32 0, %v375
      %v457 = vsel %vm455, %v456, %v375
      %v458 = vshrl.u32 %v457, 4
      %v459 = vand.u32 %v457, 15
      %v460 = vsub.s32 0, %v459
      %v461 = vsel %vm455, %v460, %v459
      %vm462 = vcmp.lt.s32.totalorder %v376, 0
      %v463 = vsub.s32 0, %v376
      %v464 = vsel %vm462, %v463, %v376
      %v465 = vshrl.u32 %v464, 4
      %v466 = vand.u32 %v464, 15
      %v467 = vsub.s32 0, %v466
      %v468 = vsel %vm462, %v467, %v466
      %vm469 = vcmp.lt.s32.totalorder %v377, 0
      %v470 = vsub.s32 0, %v377
      %v471 = vsel %vm469, %v470, %v377
      %v472 = vshrl.u32 %v471, 4
      %v473 = vand.u32 %v471, 15
      %v474 = vsub.s32 0, %v473
      %v475 = vsel %vm469, %v474, %v473
      %vm476 = vcmp.lt.s32.totalorder %v378, 0
      %v477 = vsub.s32 0, %v378
      %v478 = vsel %vm476, %v477, %v378
      %v479 = vshrl.u32 %v478, 4
      %v480 = vand.u32 %v478, 15
      %v481 = vsub.s32 0, %v480
      %v482 = vsel %vm476, %v481, %v480
      %vm483 = vcmp.lt.s32.totalorder %v379, 0
      %v484 = vsub.s32 0, %v379
      %v485 = vsel %vm483, %v484, %v379
      %v486 = vshrl.u32 %v485, 4
      %v487 = vand.u32 %v485, 15
      %v488 = vsub.s32 0, %v487
      %v489 = vsel %vm483, %v488, %v487
      %vm490 = vcmp.lt.s32.totalorder %v380, 0
      %v491 = vsub.s32 0, %v380
      %v492 = vsel %vm490, %v491, %v380
      %v493 = vshrl.u32 %v492, 4
      %v494 = vand.u32 %v492, 15
      %v495 = vsub.s32 0, %v494
      %v496 = vsel %vm490, %v495, %v494
      %vm497 = vcmp.lt.s32.totalorder %v381, 0
      %v498 = vsub.s32 0, %v381
      %v499 = vsel %vm497, %v498, %v381
      %v500 = vshrl.u32 %v499, 4
      %v501 = vand.u32 %v499, 15
      %v502 = vsub.s32 0, %v501
      %v503 = vsel %vm497, %v502, %v501
      %vm504 = vcmp.lt.s32.totalorder %v382, 0
      %v505 = vsub.s32 0, %v382
      %v506 = vsel %vm504, %v505, %v382
      %v507 = vshrl.u32 %v506, 4
      %v508 = vand.u32 %v506, 15
      %v509 = vsub.s32 0, %v508
      %v510 = vsel %vm504, %v509, %v508
      %vm511 = vcmp.lt.s32.totalorder %v383, 0
      %v512 = vsub.s32 0, %v383
      %v513 = vsel %vm511, %v512, %v383
      %v514 = vshrl.u32 %v513, 4
      %v515 = vand.u32 %v513, 15
      %v516 = vsub.s32 0, %v515
      %v517 = vsel %vm511, %v516, %v515
      %vm518 = vcmp.lt.s32.totalorder %v384, 0
      %v519 = vsub.s32 0, %v384
      %v520 = vsel %vm518, %v519, %v384
      %v521 = vshrl.u32 %v520, 4
      %v522 = vand.u32 %v520, 15
      %v523 = vsub.s32 0, %v522
      %v524 = vsel %vm518, %v523, %v522
      %vm525 = vcmp.lt.s32.totalorder %v385, 0
      %v526 = vsub.s32 0, %v385
      %v527 = vsel %vm525, %v526, %v385
      %v528 = vshrl.u32 %v527, 4
      %v529 = vand.u32 %v527, 15
      %v530 = vsub.s32 0, %v529
      %v531 = vsel %vm525, %v530, %v529
      %vm532 = vcmp.lt.s32.totalorder %v386, 0
      %v533 = vsub.s32 0, %v386
      %v534 = vsel %vm532, %v533, %v386
      %v535 = vshrl.u32 %v534, 4
      %v536 = vand.u32 %v534, 15
      %v537 = vsub.s32 0, %v536
      %v538 = vsel %vm532, %v537, %v536
      %vm539 = vcmp.lt.s32.totalorder %v387, 0
      %v540 = vsub.s32 0, %v387
      %v541 = vsel %vm539, %v540, %v387
      %v542 = vshrl.u32 %v541, 4
      %v543 = vand.u32 %v541, 15
      %v544 = vsub.s32 0, %v543
      %v545 = vsel %vm539, %v544, %v543
      %vm546 = vcmp.lt.s32.totalorder %v388, 0
      %v547 = vsub.s32 0, %v388
      %v548 = vsel %vm546, %v547, %v388
      %v549 = vshrl.u32 %v548, 4
      %v550 = vand.u32 %v548, 15
      %v551 = vsub.s32 0, %v550
      %v552 = vsel %vm546, %v551, %v550
      %vm553 = vcmp.lt.s32.totalorder %v389, 0
      %v554 = vsub.s32 0, %v389
      %v555 = vsel %vm553, %v554, %v389
      %v556 = vshrl.u32 %v555, 4
      %v557 = vand.u32 %v555, 15
      %v558 = vsub.s32 0, %v557
      %v559 = vsel %vm553, %v558, %v557
      %vm560 = vcmp.lt.s32.totalorder %v390, 0
      %v561 = vsub.s32 0, %v390
      %v562 = vsel %vm560, %v561, %v390
      %v563 = vshrl.u32 %v562, 4
      %v564 = vand.u32 %v562, 15
      %v565 = vsub.s32 0, %v564
      %v566 = vsel %vm560, %v565, %v564
      %vm567 = vcmp.lt.s32.totalorder %v391, 0
      %v568 = vsub.s32 0, %v391
      %v569 = vsel %vm567, %v568, %v391
      %v570 = vshrl.u32 %v569, 4
      %v571 = vand.u32 %v569, 15
      %v572 = vsub.s32 0, %v571
      %v573 = vsel %vm567, %v572, %v571
      %vm574 = vcmp.lt.s32.totalorder %v392, 0
      %v575 = vsub.s32 0, %v392
      %v576 = vsel %vm574, %v575, %v392
      %v577 = vshrl.u32 %v576, 4
      %v578 = vand.u32 %v576, 15
      %v579 = vsub.s32 0, %v578
      %v580 = vsel %vm574, %v579, %v578
      %vm581 = vcmp.lt.s32.totalorder %v393, 0
      %v582 = vsub.s32 0, %v393
      %v583 = vsel %vm581, %v582, %v393
      %v584 = vshrl.u32 %v583, 4
      %v585 = vand.u32 %v583, 15
      %v586 = vsub.s32 0, %v585
      %v587 = vsel %vm581, %v586, %v585
      %vm588 = vcmp.lt.s32.totalorder %v394, 0
      %v589 = vsub.s32 0, %v394
      %v590 = vsel %vm588, %v589, %v394
      %v591 = vshrl.u32 %v590, 4
      %v592 = vand.u32 %v590, 15
      %v593 = vsub.s32 0, %v592
      %v594 = vsel %vm588, %v593, %v592
      %vm595 = vcmp.lt.s32.totalorder %v395, 0
      %v596 = vsub.s32 0, %v395
      %v597 = vsel %vm595, %v596, %v395
      %v598 = vshrl.u32 %v597, 4
      %v599 = vand.u32 %v597, 15
      %v600 = vsub.s32 0, %v599
      %v601 = vsel %vm595, %v600, %v599
      %vm602 = vcmp.lt.s32.totalorder %v396, 0
      %v603 = vsub.s32 0, %v396
      %v604 = vsel %vm602, %v603, %v396
      %v605 = vshrl.u32 %v604, 4
      %v606 = vand.u32 %v604, 15
      %v607 = vsub.s32 0, %v606
      %v608 = vsel %vm602, %v607, %v606
      %vm609 = vcmp.lt.s32.totalorder %v397, 0
      %v610 = vsub.s32 0, %v397
      %v611 = vsel %vm609, %v610, %v397
      %v612 = vshrl.u32 %v611, 4
      %v613 = vand.u32 %v611, 15
      %v614 = vsub.s32 0, %v613
      %v615 = vsel %vm609, %v614, %v613
      %vm616 = vcmp.lt.s32.totalorder %v398, 0
      %v617 = vsub.s32 0, %v398
      %v618 = vsel %vm616, %v617, %v398
      %v619 = vshrl.u32 %v618, 4
      %v620 = vand.u32 %v618, 15
      %v621 = vsub.s32 0, %v620
      %v622 = vsel %vm616, %v621, %v620
      %vm623 = vcmp.ne.s32.totalorder %v405, 0
      %vm624 = vcmp.ne.s32.totalorder %v412, 0
      %vm625 = vcmp.ne.s32.totalorder %v419, 0
      %vm626 = vcmp.ne.s32.totalorder %v426, 0
      %vm627 = vcmp.ne.s32.totalorder %v433, 0
      %vm628 = vcmp.ne.s32.totalorder %v440, 0
      %vm629 = vcmp.ne.s32.totalorder %v447, 0
      %vm630 = vcmp.ne.s32.totalorder %v454, 0
      %vm631 = vcmp.ne.s32.totalorder %v461, 0
      %vm632 = vcmp.ne.s32.totalorder %v468, 0
      %vm633 = vcmp.ne.s32.totalorder %v475, 0
      %vm634 = vcmp.ne.s32.totalorder %v482, 0
      %vm635 = vcmp.ne.s32.totalorder %v489, 0
      %vm636 = vcmp.ne.s32.totalorder %v496, 0
      %vm637 = vcmp.ne.s32.totalorder %v503, 0
      %vm638 = vcmp.ne.s32.totalorder %v510, 0
      %vm639 = vcmp.ne.s32.totalorder %v517, 0
      %vm640 = vcmp.ne.s32.totalorder %v524, 0
      %vm641 = vcmp.ne.s32.totalorder %v531, 0
      %vm642 = vcmp.ne.s32.totalorder %v538, 0
      %vm643 = vcmp.ne.s32.totalorder %v545, 0
      %vm644 = vcmp.ne.s32.totalorder %v552, 0
      %vm645 = vcmp.ne.s32.totalorder %v559, 0
      %vm646 = vcmp.ne.s32.totalorder %v566, 0
      %vm647 = vcmp.ne.s32.totalorder %v573, 0
      %vm648 = vcmp.ne.s32.totalorder %v580, 0
      %vm649 = vcmp.ne.s32.totalorder %v587, 0
      %vm650 = vcmp.ne.s32.totalorder %v594, 0
      %vm651 = vcmp.ne.s32.totalorder %v601, 0
      %vm652 = vcmp.ne.s32.totalorder %v608, 0
      %vm653 = vcmp.ne.s32.totalorder %v615, 0
      %vm654 = vcmp.ne.s32.totalorder %v622, 0
      %vm655 = vcmp.lt.s32.totalorder %v405, 0
      %vm656 = vcmp.lt.s32.totalorder %v412, 0
      %vm657 = vcmp.lt.s32.totalorder %v419, 0
      %vm658 = vcmp.lt.s32.totalorder %v426, 0
      %vm659 = vcmp.lt.s32.totalorder %v433, 0
      %vm660 = vcmp.lt.s32.totalorder %v440, 0
      %vm661 = vcmp.lt.s32.totalorder %v447, 0
      %vm662 = vcmp.lt.s32.totalorder %v454, 0
      %vm663 = vcmp.lt.s32.totalorder %v461, 0
      %vm664 = vcmp.lt.s32.totalorder %v468, 0
      %vm665 = vcmp.lt.s32.totalorder %v475, 0
      %vm666 = vcmp.lt.s32.totalorder %v482, 0
      %vm667 = vcmp.lt.s32.totalorder %v489, 0
      %vm668 = vcmp.lt.s32.totalorder %v496, 0
      %vm669 = vcmp.lt.s32.totalorder %v503, 0
      %vm670 = vcmp.lt.s32.totalorder %v510, 0
      %vm671 = vcmp.lt.s32.totalorder %v517, 0
      %vm672 = vcmp.lt.s32.totalorder %v524, 0
      %vm673 = vcmp.lt.s32.totalorder %v531, 0
      %vm674 = vcmp.lt.s32.totalorder %v538, 0
      %vm675 = vcmp.lt.s32.totalorder %v545, 0
      %vm676 = vcmp.lt.s32.totalorder %v552, 0
      %vm677 = vcmp.lt.s32.totalorder %v559, 0
      %vm678 = vcmp.lt.s32.totalorder %v566, 0
      %vm679 = vcmp.lt.s32.totalorder %v573, 0
      %vm680 = vcmp.lt.s32.totalorder %v580, 0
      %vm681 = vcmp.lt.s32.totalorder %v587, 0
      %vm682 = vcmp.lt.s32.totalorder %v594, 0
      %vm683 = vcmp.lt.s32.totalorder %v601, 0
      %vm684 = vcmp.lt.s32.totalorder %v608, 0
      %vm685 = vcmp.lt.s32.totalorder %v615, 0
      %vm686 = vcmp.lt.s32.totalorder %v622, 0
      %vm687 = vmand %vm655, %vm623
      %vm688 = vmand %vm656, %vm624
      %vm689 = vmand %vm657, %vm625
      %vm690 = vmand %vm658, %vm626
      %vm691 = vmand %vm659, %vm627
      %vm692 = vmand %vm660, %vm628
      %vm693 = vmand %vm661, %vm629
      %vm694 = vmand %vm662, %vm630
      %vm695 = vmand %vm663, %vm631
      %vm696 = vmand %vm664, %vm632
      %vm697 = vmand %vm665, %vm633
      %vm698 = vmand %vm666, %vm634
      %vm699 = vmand %vm667, %vm635
      %vm700 = vmand %vm668, %vm636
      %vm701 = vmand %vm669, %vm637
      %vm702 = vmand %vm670, %vm638
      %vm703 = vmand %vm671, %vm639
      %vm704 = vmand %vm672, %vm640
      %vm705 = vmand %vm673, %vm641
      %vm706 = vmand %vm674, %vm642
      %vm707 = vmand %vm675, %vm643
      %vm708 = vmand %vm676, %vm644
      %vm709 = vmand %vm677, %vm645
      %vm710 = vmand %vm678, %vm646
      %vm711 = vmand %vm679, %vm647
      %vm712 = vmand %vm680, %vm648
      %vm713 = vmand %vm681, %vm649
      %vm714 = vmand %vm682, %vm650
      %vm715 = vmand %vm683, %vm651
      %vm716 = vmand %vm684, %vm652
      %vm717 = vmand %vm685, %vm653
      %vm718 = vmand %vm686, %vm654
      %v719 = vadd.s32 %v405, 16
      %v720 = vadd.s32 %v412, 16
      %v721 = vadd.s32 %v419, 16
      %v722 = vadd.s32 %v426, 16
      %v723 = vadd.s32 %v433, 16
      %v724 = vadd.s32 %v440, 16
      %v725 = vadd.s32 %v447, 16
      %v726 = vadd.s32 %v454, 16
      %v727 = vadd.s32 %v461, 16
      %v728 = vadd.s32 %v468, 16
      %v729 = vadd.s32 %v475, 16
      %v730 = vadd.s32 %v482, 16
      %v731 = vadd.s32 %v489, 16
      %v732 = vadd.s32 %v496, 16
      %v733 = vadd.s32 %v503, 16
      %v734 = vadd.s32 %v510, 16
      %v735 = vadd.s32 %v517, 16
      %v736 = vadd.s32 %v524, 16
      %v737 = vadd.s32 %v531, 16
      %v738 = vadd.s32 %v538, 16
      %v739 = vadd.s32 %v545, 16
      %v740 = vadd.s32 %v552, 16
      %v741 = vadd.s32 %v559, 16
      %v742 = vadd.s32 %v566, 16
      %v743 = vadd.s32 %v573, 16
      %v744 = vadd.s32 %v580, 16
      %v745 = vadd.s32 %v587, 16
      %v746 = vadd.s32 %v594, 16
      %v747 = vadd.s32 %v601, 16
      %v748 = vadd.s32 %v608, 16
      %v749 = vadd.s32 %v615, 16
      %v750 = vadd.s32 %v622, 16
      %v751 = vsel %vm687, %v719, %v405
      %v752 = vsel %vm688, %v720, %v412
      %v753 = vsel %vm689, %v721, %v419
      %v754 = vsel %vm690, %v722, %v426
      %v755 = vsel %vm691, %v723, %v433
      %v756 = vsel %vm692, %v724, %v440
      %v757 = vsel %vm693, %v725, %v447
      %v758 = vsel %vm694, %v726, %v454
      %v759 = vsel %vm695, %v727, %v461
      %v760 = vsel %vm696, %v728, %v468
      %v761 = vsel %vm697, %v729, %v475
      %v762 = vsel %vm698, %v730, %v482
      %v763 = vsel %vm699, %v731, %v489
      %v764 = vsel %vm700, %v732, %v496
      %v765 = vsel %vm701, %v733, %v503
      %v766 = vsel %vm702, %v734, %v510
      %v767 = vsel %vm703, %v735, %v517
      %v768 = vsel %vm704, %v736, %v524
      %v769 = vsel %vm705, %v737, %v531
      %v770 = vsel %vm706, %v738, %v538
      %v771 = vsel %vm707, %v739, %v545
      %v772 = vsel %vm708, %v740, %v552
      %v773 = vsel %vm709, %v741, %v559
      %v774 = vsel %vm710, %v742, %v566
      %v775 = vsel %vm711, %v743, %v573
      %v776 = vsel %vm712, %v744, %v580
      %v777 = vsel %vm713, %v745, %v587
      %v778 = vsel %vm714, %v746, %v594
      %v779 = vsel %vm715, %v747, %v601
      %v780 = vsel %vm716, %v748, %v608
      %v781 = vsel %vm717, %v749, %v615
      %v782 = vsel %vm718, %v750, %v622
      %vm783 = vcmp.eq.s32.totalorder %v751, 0
      %vm784 = vcmp.eq.s32.totalorder %v752, 0
      %vm785 = vcmp.eq.s32.totalorder %v753, 0
      %vm786 = vcmp.eq.s32.totalorder %v754, 0
      %vm787 = vcmp.eq.s32.totalorder %v755, 0
      %vm788 = vcmp.eq.s32.totalorder %v756, 0
      %vm789 = vcmp.eq.s32.totalorder %v757, 0
      %vm790 = vcmp.eq.s32.totalorder %v758, 0
      %vm791 = vcmp.eq.s32.totalorder %v759, 0
      %vm792 = vcmp.eq.s32.totalorder %v760, 0
      %vm793 = vcmp.eq.s32.totalorder %v761, 0
      %vm794 = vcmp.eq.s32.totalorder %v762, 0
      %vm795 = vcmp.eq.s32.totalorder %v763, 0
      %vm796 = vcmp.eq.s32.totalorder %v764, 0
      %vm797 = vcmp.eq.s32.totalorder %v765, 0
      %vm798 = vcmp.eq.s32.totalorder %v766, 0
      %vm799 = vcmp.eq.s32.totalorder %v767, 0
      %vm800 = vcmp.eq.s32.totalorder %v768, 0
      %vm801 = vcmp.eq.s32.totalorder %v769, 0
      %vm802 = vcmp.eq.s32.totalorder %v770, 0
      %vm803 = vcmp.eq.s32.totalorder %v771, 0
      %vm804 = vcmp.eq.s32.totalorder %v772, 0
      %vm805 = vcmp.eq.s32.totalorder %v773, 0
      %vm806 = vcmp.eq.s32.totalorder %v774, 0
      %vm807 = vcmp.eq.s32.totalorder %v775, 0
      %vm808 = vcmp.eq.s32.totalorder %v776, 0
      %vm809 = vcmp.eq.s32.totalorder %v777, 0
      %vm810 = vcmp.eq.s32.totalorder %v778, 0
      %vm811 = vcmp.eq.s32.totalorder %v779, 0
      %vm812 = vcmp.eq.s32.totalorder %v780, 0
      %vm813 = vcmp.eq.s32.totalorder %v781, 0
      %vm814 = vcmp.eq.s32.totalorder %v782, 0
      %vm815 = vcmp.eq.s32.totalorder %v751, 15
      %vm816 = vcmp.eq.s32.totalorder %v752, 15
      %vm817 = vcmp.eq.s32.totalorder %v753, 15
      %vm818 = vcmp.eq.s32.totalorder %v754, 15
      %vm819 = vcmp.eq.s32.totalorder %v755, 15
      %vm820 = vcmp.eq.s32.totalorder %v756, 15
      %vm821 = vcmp.eq.s32.totalorder %v757, 15
      %vm822 = vcmp.eq.s32.totalorder %v758, 15
      %vm823 = vcmp.eq.s32.totalorder %v759, 15
      %vm824 = vcmp.eq.s32.totalorder %v760, 15
      %vm825 = vcmp.eq.s32.totalorder %v761, 15
      %vm826 = vcmp.eq.s32.totalorder %v762, 15
      %vm827 = vcmp.eq.s32.totalorder %v763, 15
      %vm828 = vcmp.eq.s32.totalorder %v764, 15
      %vm829 = vcmp.eq.s32.totalorder %v765, 15
      %vm830 = vcmp.eq.s32.totalorder %v766, 15
      %vm831 = vcmp.eq.s32.totalorder %v767, 15
      %vm832 = vcmp.eq.s32.totalorder %v768, 15
      %vm833 = vcmp.eq.s32.totalorder %v769, 15
      %vm834 = vcmp.eq.s32.totalorder %v770, 15
      %vm835 = vcmp.eq.s32.totalorder %v771, 15
      %vm836 = vcmp.eq.s32.totalorder %v772, 15
      %vm837 = vcmp.eq.s32.totalorder %v773, 15
      %vm838 = vcmp.eq.s32.totalorder %v774, 15
      %vm839 = vcmp.eq.s32.totalorder %v775, 15
      %vm840 = vcmp.eq.s32.totalorder %v776, 15
      %vm841 = vcmp.eq.s32.totalorder %v777, 15
      %vm842 = vcmp.eq.s32.totalorder %v778, 15
      %vm843 = vcmp.eq.s32.totalorder %v779, 15
      %vm844 = vcmp.eq.s32.totalorder %v780, 15
      %vm845 = vcmp.eq.s32.totalorder %v781, 15
      %vm846 = vcmp.eq.s32.totalorder %v782, 15
      %v847 = vld [vmem:[%s1] sm:$0x1]
      %v849 = vlaneseq
      %v850 = vshrl.u32 %v849, 7
      %v851 = vsub.s32 0, %v850
      %v852 = vrot.slane %v847, %v851
      %v854 = vmul.f32 %v334, %v852
      %v855 = vmul.f32 %v335, %v852
      %v856 = vmul.f32 %v336, %v852
      %v857 = vmul.f32 %v337, %v852
      %v858 = vmul.f32 %v338, %v852
      %v859 = vmul.f32 %v339, %v852
      %v860 = vmul.f32 %v340, %v852
      %v861 = vmul.f32 %v341, %v852
      %v862 = vmul.f32 %v342, %v852
      %v863 = vmul.f32 %v343, %v852
      %v864 = vmul.f32 %v344, %v852
      %v865 = vmul.f32 %v345, %v852
      %v866 = vmul.f32 %v346, %v852
      %v867 = vmul.f32 %v347, %v852
      %v868 = vmul.f32 %v348, %v852
      %v869 = vmul.f32 %v349, %v852
      %v870 = vmul.f32 %v350, %v852
      %v871 = vmul.f32 %v351, %v852
      %v872 = vmul.f32 %v352, %v852
      %v873 = vmul.f32 %v353, %v852
      %v874 = vmul.f32 %v354, %v852
      %v875 = vmul.f32 %v355, %v852
      %v876 = vmul.f32 %v356, %v852
      %v877 = vmul.f32 %v357, %v852
      %v878 = vmul.f32 %v358, %v852
      %v879 = vmul.f32 %v359, %v852
      %v880 = vmul.f32 %v360, %v852
      %v881 = vmul.f32 %v361, %v852
      %v882 = vmul.f32 %v362, %v852
      %v883 = vmul.f32 %v363, %v852
      %v884 = vmul.f32 %v364, %v852
      %v885 = vmul.f32 %v365, %v852
      %v886 = vld [vmem:[%s2] sm:$0x1]
      %v888 = vlaneseq
      %v889 = vshrl.u32 %v888, 7
      %v890 = vsub.s32 0, %v889
      %v891 = vrot.slane %v886, %v890
      %v893 = vadd.f32 %v854, %v891
      %v894 = vadd.f32 %v855, %v891
      %v895 = vadd.f32 %v856, %v891
      %v896 = vadd.f32 %v857, %v891
      %v897 = vadd.f32 %v858, %v891
      %v898 = vadd.f32 %v859, %v891
      %v899 = vadd.f32 %v860, %v891
      %v900 = vadd.f32 %v861, %v891
      %v901 = vadd.f32 %v862, %v891
      %v902 = vadd.f32 %v863, %v891
      %v903 = vadd.f32 %v864, %v891
      %v904 = vadd.f32 %v865, %v891
      %v905 = vadd.f32 %v866, %v891
      %v906 = vadd.f32 %v867, %v891
      %v907 = vadd.f32 %v868, %v891
      %v908 = vadd.f32 %v869, %v891
      %v909 = vadd.f32 %v870, %v891
      %v910 = vadd.f32 %v871, %v891
      %v911 = vadd.f32 %v872, %v891
      %v912 = vadd.f32 %v873, %v891
      %v913 = vadd.f32 %v874, %v891
      %v914 = vadd.f32 %v875, %v891
      %v915 = vadd.f32 %v876, %v891
      %v916 = vadd.f32 %v877, %v891
      %v917 = vadd.f32 %v878, %v891
      %v918 = vadd.f32 %v879, %v891
      %v919 = vadd.f32 %v880, %v891
      %v920 = vadd.f32 %v881, %v891
      %v921 = vadd.f32 %v882, %v891
      %v922 = vadd.f32 %v883, %v891
      %v923 = vadd.f32 %v884, %v891
      %v924 = vadd.f32 %v885, %v891
      %v925 = vmax.f32 %v893, 0.0
      %v926 = vmax.f32 %v894, 0.0
      %v927 = vmax.f32 %v895, 0.0
      %v928 = vmax.f32 %v896, 0.0
      %v929 = vmax.f32 %v897, 0.0
      %v930 = vmax.f32 %v898, 0.0
      %v931 = vmax.f32 %v899, 0.0
      %v932 = vmax.f32 %v900, 0.0
      %v933 = vmax.f32 %v901, 0.0
      %v934 = vmax.f32 %v902, 0.0
      %v935 = vmax.f32 %v903, 0.0
      %v936 = vmax.f32 %v904, 0.0
      %v937 = vmax.f32 %v905, 0.0
      %v938 = vmax.f32 %v906, 0.0
      %v939 = vmax.f32 %v907, 0.0
      %v940 = vmax.f32 %v908, 0.0
      %v941 = vmax.f32 %v909, 0.0
      %v942 = vmax.f32 %v910, 0.0
      %v943 = vmax.f32 %v911, 0.0
      %v944 = vmax.f32 %v912, 0.0
      %v945 = vmax.f32 %v913, 0.0
      %v946 = vmax.f32 %v914, 0.0
      %v947 = vmax.f32 %v915, 0.0
      %v948 = vmax.f32 %v916, 0.0
      %v949 = vmax.f32 %v917, 0.0
      %v950 = vmax.f32 %v918, 0.0
      %v951 = vmax.f32 %v919, 0.0
      %v952 = vmax.f32 %v920, 0.0
      %v953 = vmax.f32 %v921, 0.0
      %v954 = vmax.f32 %v922, 0.0
      %v955 = vmax.f32 %v923, 0.0
      %v956 = vmax.f32 %v924, 0.0
      %v957 = vrot.slane %v925, 7
      %v958 = vrot.slane %v926, 7
      %v959 = vrot.slane %v927, 7
      %v960 = vrot.slane %v928, 7
      %v961 = vrot.slane %v929, 7
      %v962 = vrot.slane %v930, 7
      %v963 = vrot.slane %v931, 7
      %v964 = vrot.slane %v932, 7
      %v965 = vrot.slane %v933, 7
      %v966 = vrot.slane %v934, 7
      %v967 = vrot.slane %v935, 7
      %v968 = vrot.slane %v936, 7
      %v969 = vrot.slane %v937, 7
      %v970 = vrot.slane %v938, 7
      %v971 = vrot.slane %v939, 7
      %v972 = vrot.slane %v940, 7
      %v973 = vrot.slane %v941, 7
      %v974 = vrot.slane %v942, 7
      %v975 = vrot.slane %v943, 7
      %v976 = vrot.slane %v944, 7
      %v977 = vrot.slane %v945, 7
      %v978 = vrot.slane %v946, 7
      %v979 = vrot.slane %v947, 7
      %v980 = vrot.slane %v948, 7
      %v981 = vrot.slane %v949, 7
      %v982 = vrot.slane %v950, 7
      %v983 = vrot.slane %v951, 7
      %v984 = vrot.slane %v952, 7
      %v985 = vrot.slane %v953, 7
      %v986 = vrot.slane %v954, 7
      %v987 = vrot.slane %v955, 7
      %v988 = vrot.slane %v956, 7
      %vm989 = vcmp.lt.s32.totalorder %v367, 1
      %v990 = vsel %vm989, %v987, %v988
      %v991 = vsel %vm989, %v986, %v987
      %v992 = vsel %vm989, %v985, %v986
      %v993 = vsel %vm989, %v984, %v985
      %v994 = vsel %vm989, %v983, %v984
      %v995 = vsel %vm989, %v982, %v983
      %v996 = vsel %vm989, %v981, %v982
      %v997 = vsel %vm989, %v980, %v981
      %v998 = vsel %vm989, %v979, %v980
      %v999 = vsel %vm989, %v978, %v979
      %v1000 = vsel %vm989, %v977, %v978
      %v1001 = vsel %vm989, %v976, %v977
      %v1002 = vsel %vm989, %v975, %v976
      %v1003 = vsel %vm989, %v974, %v975
      %v1004 = vsel %vm989, %v973, %v974
      %v1005 = vsel %vm989, %v972, %v973
      %v1006 = vsel %vm989, %v971, %v972
      %v1007 = vsel %vm989, %v970, %v971
      %v1008 = vsel %vm989, %v969, %v970
      %v1009 = vsel %vm989, %v968, %v969
      %v1010 = vsel %vm989, %v967, %v968
      %v1011 = vsel %vm989, %v966, %v967
      %v1012 = vsel %vm989, %v965, %v966
      %v1013 = vsel %vm989, %v964, %v965
      %v1014 = vsel %vm989, %v963, %v964
      %v1015 = vsel %vm989, %v962, %v963
      %v1016 = vsel %vm989, %v961, %v962
      %v1017 = vsel %vm989, %v960, %v961
      %v1018 = vsel %vm989, %v959, %v960
      %v1019 = vsel %vm989, %v958, %v959
      %v1020 = vsel %vm989, %v957, %v958
      %v1021 = vsel %vm989, %v988, %v957
      %v1022 = vsel %vm783, 1, 0
      %v1023 = vsel %vm784, 1, 0
      %v1024 = vsel %vm785, 1, 0
      %v1025 = vsel %vm786, 1, 0
      %v1026 = vsel %vm787, 1, 0
      %v1027 = vsel %vm788, 1, 0
      %v1028 = vsel %vm789, 1, 0
      %v1029 = vsel %vm790, 1, 0
      %v1030 = vsel %vm791, 1, 0
      %v1031 = vsel %vm792, 1, 0
      %v1032 = vsel %vm793, 1, 0
      %v1033 = vsel %vm794, 1, 0
      %v1034 = vsel %vm795, 1, 0
      %v1035 = vsel %vm796, 1, 0
      %v1036 = vsel %vm797, 1, 0
      %v1037 = vsel %vm798, 1, 0
      %v1038 = vsel %vm799, 1, 0
      %v1039 = vsel %vm800, 1, 0
      %v1040 = vsel %vm801, 1, 0
      %v1041 = vsel %vm802, 1, 0
      %v1042 = vsel %vm803, 1, 0
      %v1043 = vsel %vm804, 1, 0
      %v1044 = vsel %vm805, 1, 0
      %v1045 = vsel %vm806, 1, 0
      %v1046 = vsel %vm807, 1, 0
      %v1047 = vsel %vm808, 1, 0
      %v1048 = vsel %vm809, 1, 0
      %v1049 = vsel %vm810, 1, 0
      %v1050 = vsel %vm811, 1, 0
      %v1051 = vsel %vm812, 1, 0
      %v1052 = vsel %vm813, 1, 0
      %v1053 = vsel %vm814, 1, 0
      %vm1054 = vcmp.eq.s32.totalorder %v1022, 1
      %vm1055 = vcmp.eq.s32.totalorder %v1023, 1
      %vm1056 = vcmp.eq.s32.totalorder %v1024, 1
      %vm1057 = vcmp.eq.s32.totalorder %v1025, 1
      %vm1058 = vcmp.eq.s32.totalorder %v1026, 1
      %vm1059 = vcmp.eq.s32.totalorder %v1027, 1
      %vm1060 = vcmp.eq.s32.totalorder %v1028, 1
      %vm1061 = vcmp.eq.s32.totalorder %v1029, 1
      %vm1062 = vcmp.eq.s32.totalorder %v1030, 1
      %vm1063 = vcmp.eq.s32.totalorder %v1031, 1
      %vm1064 = vcmp.eq.s32.totalorder %v1032, 1
      %vm1065 = vcmp.eq.s32.totalorder %v1033, 1
      %vm1066 = vcmp.eq.s32.totalorder %v1034, 1
      %vm1067 = vcmp.eq.s32.totalorder %v1035, 1
      %vm1068 = vcmp.eq.s32.totalorder %v1036, 1
      %vm1069 = vcmp.eq.s32.totalorder %v1037, 1
      %vm1070 = vcmp.eq.s32.totalorder %v1038, 1
      %vm1071 = vcmp.eq.s32.totalorder %v1039, 1
      %vm1072 = vcmp.eq.s32.totalorder %v1040, 1
      %vm1073 = vcmp.eq.s32.totalorder %v1041, 1
      %vm1074 = vcmp.eq.s32.totalorder %v1042, 1
      %vm1075 = vcmp.eq.s32.totalorder %v1043, 1
      %vm1076 = vcmp.eq.s32.totalorder %v1044, 1
      %vm1077 = vcmp.eq.s32.totalorder %v1045, 1
      %vm1078 = vcmp.eq.s32.totalorder %v1046, 1
      %vm1079 = vcmp.eq.s32.totalorder %v1047, 1
      %vm1080 = vcmp.eq.s32.totalorder %v1048, 1
      %vm1081 = vcmp.eq.s32.totalorder %v1049, 1
      %vm1082 = vcmp.eq.s32.totalorder %v1050, 1
      %vm1083 = vcmp.eq.s32.totalorder %v1051, 1
      %vm1084 = vcmp.eq.s32.totalorder %v1052, 1
      %vm1085 = vcmp.eq.s32.totalorder %v1053, 1
      %v1086 = vsel %vm1054, 0.0, %v1021
      %v1087 = vsel %vm1055, 0.0, %v1020
      %v1088 = vsel %vm1056, 0.0, %v1019
      %v1089 = vsel %vm1057, 0.0, %v1018
      %v1090 = vsel %vm1058, 0.0, %v1017
      %v1091 = vsel %vm1059, 0.0, %v1016
      %v1092 = vsel %vm1060, 0.0, %v1015
      %v1093 = vsel %vm1061, 0.0, %v1014
      %v1094 = vsel %vm1062, 0.0, %v1013
      %v1095 = vsel %vm1063, 0.0, %v1012
      %v1096 = vsel %vm1064, 0.0, %v1011
      %v1097 = vsel %vm1065, 0.0, %v1010
      %v1098 = vsel %vm1066, 0.0, %v1009
      %v1099 = vsel %vm1067, 0.0, %v1008
      %v1100 = vsel %vm1068, 0.0, %v1007
      %v1101 = vsel %vm1069, 0.0, %v1006
      %v1102 = vsel %vm1070, 0.0, %v1005
      %v1103 = vsel %vm1071, 0.0, %v1004
      %v1104 = vsel %vm1072, 0.0, %v1003
      %v1105 = vsel %vm1073, 0.0, %v1002
      %v1106 = vsel %vm1074, 0.0, %v1001
      %v1107 = vsel %vm1075, 0.0, %v1000
      %v1108 = vsel %vm1076, 0.0, %v999
      %v1109 = vsel %vm1077, 0.0, %v998
      %v1110 = vsel %vm1078, 0.0, %v997
      %v1111 = vsel %vm1079, 0.0, %v996
      %v1112 = vsel %vm1080, 0.0, %v995
      %v1113 = vsel %vm1081, 0.0, %v994
      %v1114 = vsel %vm1082, 0.0, %v993
      %v1115 = vsel %vm1083, 0.0, %v992
      %v1116 = vsel %vm1084, 0.0, %v991
      %v1117 = vsel %vm1085, 0.0, %v990
      %v1118 = vrot.slane %v925, 1
      %v1119 = vrot.slane %v926, 1
      %v1120 = vrot.slane %v927, 1
      %v1121 = vrot.slane %v928, 1
      %v1122 = vrot.slane %v929, 1
      %v1123 = vrot.slane %v930, 1
      %v1124 = vrot.slane %v931, 1
      %v1125 = vrot.slane %v932, 1
      %v1126 = vrot.slane %v933, 1
      %v1127 = vrot.slane %v934, 1
      %v1128 = vrot.slane %v935, 1
      %v1129 = vrot.slane %v936, 1
      %v1130 = vrot.slane %v937, 1
      %v1131 = vrot.slane %v938, 1
      %v1132 = vrot.slane %v939, 1
      %v1133 = vrot.slane %v940, 1
      %v1134 = vrot.slane %v941, 1
      %v1135 = vrot.slane %v942, 1
      %v1136 = vrot.slane %v943, 1
      %v1137 = vrot.slane %v944, 1
      %v1138 = vrot.slane %v945, 1
      %v1139 = vrot.slane %v946, 1
      %v1140 = vrot.slane %v947, 1
      %v1141 = vrot.slane %v948, 1
      %v1142 = vrot.slane %v949, 1
      %v1143 = vrot.slane %v950, 1
      %v1144 = vrot.slane %v951, 1
      %v1145 = vrot.slane %v952, 1
      %v1146 = vrot.slane %v953, 1
      %v1147 = vrot.slane %v954, 1
      %v1148 = vrot.slane %v955, 1
      %v1149 = vrot.slane %v956, 1
      %vm1150 = vcmp.lt.s32.totalorder %v367, 7
      %v1151 = vsel %vm1150, %v1148, %v1149
      %v1152 = vsel %vm1150, %v1147, %v1148
      %v1153 = vsel %vm1150, %v1146, %v1147
      %v1154 = vsel %vm1150, %v1145, %v1146
      %v1155 = vsel %vm1150, %v1144, %v1145
      %v1156 = vsel %vm1150, %v1143, %v1144
      %v1157 = vsel %vm1150, %v1142, %v1143
      %v1158 = vsel %vm1150, %v1141, %v1142
      %v1159 = vsel %vm1150, %v1140, %v1141
      %v1160 = vsel %vm1150, %v1139, %v1140
      %v1161 = vsel %vm1150, %v1138, %v1139
      %v1162 = vsel %vm1150, %v1137, %v1138
      %v1163 = vsel %vm1150, %v1136, %v1137
      %v1164 = vsel %vm1150, %v1135, %v1136
      %v1165 = vsel %vm1150, %v1134, %v1135
      %v1166 = vsel %vm1150, %v1133, %v1134
      %v1167 = vsel %vm1150, %v1132, %v1133
      %v1168 = vsel %vm1150, %v1131, %v1132
      %v1169 = vsel %vm1150, %v1130, %v1131
      %v1170 = vsel %vm1150, %v1129, %v1130
      %v1171 = vsel %vm1150, %v1128, %v1129
      %v1172 = vsel %vm1150, %v1127, %v1128
      %v1173 = vsel %vm1150, %v1126, %v1127
      %v1174 = vsel %vm1150, %v1125, %v1126
      %v1175 = vsel %vm1150, %v1124, %v1125
      %v1176 = vsel %vm1150, %v1123, %v1124
      %v1177 = vsel %vm1150, %v1122, %v1123
      %v1178 = vsel %vm1150, %v1121, %v1122
      %v1179 = vsel %vm1150, %v1120, %v1121
      %v1180 = vsel %vm1150, %v1119, %v1120
      %v1181 = vsel %vm1150, %v1118, %v1119
      %v1182 = vsel %vm1150, %v1149, %v1118
      %v1183 = vsel %vm815, 1, 0
      %v1184 = vsel %vm816, 1, 0
      %v1185 = vsel %vm817, 1, 0
      %v1186 = vsel %vm818, 1, 0
      %v1187 = vsel %vm819, 1, 0
      %v1188 = vsel %vm820, 1, 0
      %v1189 = vsel %vm821, 1, 0
      %v1190 = vsel %vm822, 1, 0
      %v1191 = vsel %vm823, 1, 0
      %v1192 = vsel %vm824, 1, 0
      %v1193 = vsel %vm825, 1, 0
      %v1194 = vsel %vm826, 1, 0
      %v1195 = vsel %vm827, 1, 0
      %v1196 = vsel %vm828, 1, 0
      %v1197 = vsel %vm829, 1, 0
      %v1198 = vsel %vm830, 1, 0
      %v1199 = vsel %vm831, 1, 0
      %v1200 = vsel %vm832, 1, 0
      %v1201 = vsel %vm833, 1, 0
      %v1202 = vsel %vm834, 1, 0
      %v1203 = vsel %vm835, 1, 0
      %v1204 = vsel %vm836, 1, 0
      %v1205 = vsel %vm837, 1, 0
      %v1206 = vsel %vm838, 1, 0
      %v1207 = vsel %vm839, 1, 0
      %v1208 = vsel %vm840, 1, 0
      %v1209 = vsel %vm841, 1, 0
      %v1210 = vsel %vm842, 1, 0
      %v1211 = vsel %vm843, 1, 0
      %v1212 = vsel %vm844, 1, 0
      %v1213 = vsel %vm845, 1, 0
      %v1214 = vsel %vm846, 1, 0
      %vm1215 = vcmp.eq.s32.totalorder %v1183, 1
      %vm1216 = vcmp.eq.s32.totalorder %v1184, 1
      %vm1217 = vcmp.eq.s32.totalorder %v1185, 1
      %vm1218 = vcmp.eq.s32.totalorder %v1186, 1
      %vm1219 = vcmp.eq.s32.totalorder %v1187, 1
      %vm1220 = vcmp.eq.s32.totalorder %v1188, 1
      %vm1221 = vcmp.eq.s32.totalorder %v1189, 1
      %vm1222 = vcmp.eq.s32.totalorder %v1190, 1
      %vm1223 = vcmp.eq.s32.totalorder %v1191, 1
      %vm1224 = vcmp.eq.s32.totalorder %v1192, 1
      %vm1225 = vcmp.eq.s32.totalorder %v1193, 1
      %vm1226 = vcmp.eq.s32.totalorder %v1194, 1
      %vm1227 = vcmp.eq.s32.totalorder %v1195, 1
      %vm1228 = vcmp.eq.s32.totalorder %v1196, 1
      %vm1229 = vcmp.eq.s32.totalorder %v1197, 1
      %vm1230 = vcmp.eq.s32.totalorder %v1198, 1
      %vm1231 = vcmp.eq.s32.totalorder %v1199, 1
      %vm1232 = vcmp.eq.s32.totalorder %v1200, 1
      %vm1233 = vcmp.eq.s32.totalorder %v1201, 1
      %vm1234 = vcmp.eq.s32.totalorder %v1202, 1
      %vm1235 = vcmp.eq.s32.totalorder %v1203, 1
      %vm1236 = vcmp.eq.s32.totalorder %v1204, 1
      %vm1237 = vcmp.eq.s32.totalorder %v1205, 1
      %vm1238 = vcmp.eq.s32.totalorder %v1206, 1
      %vm1239 = vcmp.eq.s32.totalorder %v1207, 1
      %vm1240 = vcmp.eq.s32.totalorder %v1208, 1
      %vm1241 = vcmp.eq.s32.totalorder %v1209, 1
      %vm1242 = vcmp.eq.s32.totalorder %v1210, 1
      %vm1243 = vcmp.eq.s32.totalorder %v1211, 1
      %vm1244 = vcmp.eq.s32.totalorder %v1212, 1
      %vm1245 = vcmp.eq.s32.totalorder %v1213, 1
      %vm1246 = vcmp.eq.s32.totalorder %v1214, 1
      %v1247 = vsel %vm1215, 0.0, %v1181
      %v1248 = vsel %vm1216, 0.0, %v1180
      %v1249 = vsel %vm1217, 0.0, %v1179
      %v1250 = vsel %vm1218, 0.0, %v1178
      %v1251 = vsel %vm1219, 0.0, %v1177
      %v1252 = vsel %vm1220, 0.0, %v1176
      %v1253 = vsel %vm1221, 0.0, %v1175
      %v1254 = vsel %vm1222, 0.0, %v1174
      %v1255 = vsel %vm1223, 0.0, %v1173
      %v1256 = vsel %vm1224, 0.0, %v1172
      %v1257 = vsel %vm1225, 0.0, %v1171
      %v1258 = vsel %vm1226, 0.0, %v1170
      %v1259 = vsel %vm1227, 0.0, %v1169
      %v1260 = vsel %vm1228, 0.0, %v1168
      %v1261 = vsel %vm1229, 0.0, %v1167
      %v1262 = vsel %vm1230, 0.0, %v1166
      %v1263 = vsel %vm1231, 0.0, %v1165
      %v1264 = vsel %vm1232, 0.0, %v1164
      %v1265 = vsel %vm1233, 0.0, %v1163
      %v1266 = vsel %vm1234, 0.0, %v1162
      %v1267 = vsel %vm1235, 0.0, %v1161
      %v1268 = vsel %vm1236, 0.0, %v1160
      %v1269 = vsel %vm1237, 0.0, %v1159
      %v1270 = vsel %vm1238, 0.0, %v1158
      %v1271 = vsel %vm1239, 0.0, %v1157
      %v1272 = vsel %vm1240, 0.0, %v1156
      %v1273 = vsel %vm1241, 0.0, %v1155
      %v1274 = vsel %vm1242, 0.0, %v1154
      %v1275 = vsel %vm1243, 0.0, %v1153
      %v1276 = vsel %vm1244, 0.0, %v1152
      %v1277 = vsel %vm1245, 0.0, %v1151
      %v1278 = vsel %vm1246, 0.0, %v1182
      %1311 = vrot.lane.b32.xlu0 %v925, 4
      %v1312 = vpop.permute.xlu0 %1311
      %1313 = vrot.lane.b32.xlu0 %v926, 4
      %v1314 = vpop.permute.xlu0 %1313
      %1315 = vrot.lane.b32.xlu0 %v927, 4
      %v1316 = vpop.permute.xlu0 %1315
      %1317 = vrot.lane.b32.xlu0 %v928, 4
      %v1318 = vpop.permute.xlu0 %1317
      %1319 = vrot.lane.b32.xlu0 %v929, 4
      %v1320 = vpop.permute.xlu0 %1319
      %1321 = vrot.lane.b32.xlu0 %v930, 4
      %v1322 = vpop.permute.xlu0 %1321
      %1323 = vrot.lane.b32.xlu0 %v931, 4
      %v1324 = vpop.permute.xlu0 %1323
      %1325 = vrot.lane.b32.xlu0 %v932, 4
      %v1326 = vpop.permute.xlu0 %1325
      %1327 = vrot.lane.b32.xlu0 %v933, 4
      %v1328 = vpop.permute.xlu0 %1327
      %1329 = vrot.lane.b32.xlu0 %v934, 4
      %v1330 = vpop.permute.xlu0 %1329
      %1331 = vrot.lane.b32.xlu0 %v935, 4
      %v1332 = vpop.permute.xlu0 %1331
      %1333 = vrot.lane.b32.xlu0 %v936, 4
      %v1334 = vpop.permute.xlu0 %1333
      %1335 = vrot.lane.b32.xlu0 %v937, 4
      %v1336 = vpop.permute.xlu0 %1335
      %1337 = vrot.lane.b32.xlu0 %v938, 4
      %v1338 = vpop.permute.xlu0 %1337
      %1339 = vrot.lane.b32.xlu0 %v939, 4
      %v1340 = vpop.permute.xlu0 %1339
      %1341 = vrot.lane.b32.xlu0 %v940, 4
      %v1342 = vpop.permute.xlu0 %1341
      %1343 = vrot.lane.b32.xlu0 %v941, 4
      %v1344 = vpop.permute.xlu0 %1343
      %1345 = vrot.lane.b32.xlu0 %v942, 4
      %v1346 = vpop.permute.xlu0 %1345
      %1347 = vrot.lane.b32.xlu0 %v943, 4
      %v1348 = vpop.permute.xlu0 %1347
      %1349 = vrot.lane.b32.xlu0 %v944, 4
      %v1350 = vpop.permute.xlu0 %1349
      %1351 = vrot.lane.b32.xlu0 %v945, 4
      %v1352 = vpop.permute.xlu0 %1351
      %1353 = vrot.lane.b32.xlu0 %v946, 4
      %v1354 = vpop.permute.xlu0 %1353
      %1355 = vrot.lane.b32.xlu0 %v947, 4
      %v1356 = vpop.permute.xlu0 %1355
      %1357 = vrot.lane.b32.xlu0 %v948, 4
      %v1358 = vpop.permute.xlu0 %1357
      %1359 = vrot.lane.b32.xlu0 %v949, 4
      %v1360 = vpop.permute.xlu0 %1359
      %1361 = vrot.lane.b32.xlu0 %v950, 4
      %v1362 = vpop.permute.xlu0 %1361
      %1363 = vrot.lane.b32.xlu0 %v951, 4
      %v1364 = vpop.permute.xlu0 %1363
      %1365 = vrot.lane.b32.xlu0 %v952, 4
      %v1366 = vpop.permute.xlu0 %1365
      %1367 = vrot.lane.b32.xlu0 %v953, 4
      %v1368 = vpop.permute.xlu0 %1367
      %1369 = vrot.lane.b32.xlu0 %v954, 4
      %v1370 = vpop.permute.xlu0 %1369
      %1371 = vrot.lane.b32.xlu0 %v955, 4
      %v1372 = vpop.permute.xlu0 %1371
      %1373 = vrot.lane.b32.xlu0 %v956, 4
      %v1374 = vpop.permute.xlu0 %1373
      %1439 = vrot.lane.b32.xlu0 %v1247, 8
      %v1440 = vpop.permute.xlu0 %1439
      %1441 = vrot.lane.b32.xlu0 %v1248, 8
      %v1442 = vpop.permute.xlu0 %1441
      %1443 = vrot.lane.b32.xlu0 %v1249, 8
      %v1444 = vpop.permute.xlu0 %1443
      %1445 = vrot.lane.b32.xlu0 %v1250, 8
      %v1446 = vpop.permute.xlu0 %1445
      %1447 = vrot.lane.b32.xlu0 %v1251, 8
      %v1448 = vpop.permute.xlu0 %1447
      %1449 = vrot.lane.b32.xlu0 %v1252, 8
      %v1450 = vpop.permute.xlu0 %1449
      %1451 = vrot.lane.b32.xlu0 %v1253, 8
      %v1452 = vpop.permute.xlu0 %1451
      %1453 = vrot.lane.b32.xlu0 %v1254, 8
      %v1454 = vpop.permute.xlu0 %1453
      %1455 = vrot.lane.b32.xlu0 %v1255, 8
      %v1456 = vpop.permute.xlu0 %1455
      %1457 = vrot.lane.b32.xlu0 %v1256, 8
      %v1458 = vpop.permute.xlu0 %1457
      %1459 = vrot.lane.b32.xlu0 %v1257, 8
      %v1460 = vpop.permute.xlu0 %1459
      %1461 = vrot.lane.b32.xlu0 %v1258, 8
      %v1462 = vpop.permute.xlu0 %1461
      %1463 = vrot.lane.b32.xlu0 %v1259, 8
      %v1464 = vpop.permute.xlu0 %1463
      %1465 = vrot.lane.b32.xlu0 %v1260, 8
      %v1466 = vpop.permute.xlu0 %1465
      %1467 = vrot.lane.b32.xlu0 %v1261, 8
      %v1468 = vpop.permute.xlu0 %1467
      %1469 = vrot.lane.b32.xlu0 %v1262, 8
      %v1470 = vpop.permute.xlu0 %1469
      %1471 = vrot.lane.b32.xlu0 %v1263, 8
      %v1472 = vpop.permute.xlu0 %1471
      %1473 = vrot.lane.b32.xlu0 %v1264, 8
      %v1474 = vpop.permute.xlu0 %1473
      %1475 = vrot.lane.b32.xlu0 %v1265, 8
      %v1476 = vpop.permute.xlu0 %1475
      %1477 = vrot.lane.b32.xlu0 %v1266, 8
      %v1478 = vpop.permute.xlu0 %1477
      %1479 = vrot.lane.b32.xlu0 %v1267, 8
      %v1480 = vpop.permute.xlu0 %1479
      %1481 = vrot.lane.b32.xlu0 %v1268, 8
      %v1482 = vpop.permute.xlu0 %1481
      %1483 = vrot.lane.b32.xlu0 %v1269, 8
      %v1484 = vpop.permute.xlu0 %1483
      %1485 = vrot.lane.b32.xlu0 %v1270, 8
      %v1486 = vpop.permute.xlu0 %1485
      %1487 = vrot.lane.b32.xlu0 %v1271, 8
      %v1488 = vpop.permute.xlu0 %1487
      %1489 = vrot.lane.b32.xlu0 %v1272, 8
      %v1490 = vpop.permute.xlu0 %1489
      %1491 = vrot.lane.b32.xlu0 %v1273, 8
      %v1492 = vpop.permute.xlu0 %1491
      %1493 = vrot.lane.b32.xlu0 %v1274, 8
      %v1494 = vpop.permute.xlu0 %1493
      %1495 = vrot.lane.b32.xlu0 %v1275, 8
      %v1496 = vpop.permute.xlu0 %1495
      %1497 = vrot.lane.b32.xlu0 %v1276, 8
      %v1498 = vpop.permute.xlu0 %1497
      %1499 = vrot.lane.b32.xlu0 %v1277, 8
      %v1500 = vpop.permute.xlu0 %1499
      %1501 = vrot.lane.b32.xlu0 %v1278, 8
      %v1502 = vpop.permute.xlu0 %1501
      %vm1535 = vcmask 31744
      %v1536 = vsel %vm1535, %v1086, %v1312
      %v1537 = vsel %vm1535, %v1087, %v1314
      %v1538 = vsel %vm1535, %v1088, %v1316
      %v1539 = vsel %vm1535, %v1089, %v1318
      %v1540 = vsel %vm1535, %v1090, %v1320
      %v1541 = vsel %vm1535, %v1091, %v1322
      %v1542 = vsel %vm1535, %v1092, %v1324
      %v1543 = vsel %vm1535, %v1093, %v1326
      %v1544 = vsel %vm1535, %v1094, %v1328
      %v1545 = vsel %vm1535, %v1095, %v1330
      %v1546 = vsel %vm1535, %v1096, %v1332
      %v1547 = vsel %vm1535, %v1097, %v1334
      %v1548 = vsel %vm1535, %v1098, %v1336
      %v1549 = vsel %vm1535, %v1099, %v1338
      %v1550 = vsel %vm1535, %v1100, %v1340
      %v1551 = vsel %vm1535, %v1101, %v1342
      %v1552 = vsel %vm1535, %v1102, %v1344
      %v1553 = vsel %vm1535, %v1103, %v1346
      %v1554 = vsel %vm1535, %v1104, %v1348
      %v1555 = vsel %vm1535, %v1105, %v1350
      %v1556 = vsel %vm1535, %v1106, %v1352
      %v1557 = vsel %vm1535, %v1107, %v1354
      %v1558 = vsel %vm1535, %v1108, %v1356
      %v1559 = vsel %vm1535, %v1109, %v1358
      %v1560 = vsel %vm1535, %v1110, %v1360
      %v1561 = vsel %vm1535, %v1111, %v1362
      %v1562 = vsel %vm1535, %v1112, %v1364
      %v1563 = vsel %vm1535, %v1113, %v1366
      %v1564 = vsel %vm1535, %v1114, %v1368
      %v1565 = vsel %vm1535, %v1115, %v1370
      %v1566 = vsel %vm1535, %v1116, %v1372
      %v1567 = vsel %vm1535, %v1117, %v1374
      %vm1568 = vcmask 64512
      %v1569 = vsel %vm1568, %v1536, %v1440
      %v1570 = vsel %vm1568, %v1537, %v1442
      %v1571 = vsel %vm1568, %v1538, %v1444
      %v1572 = vsel %vm1568, %v1539, %v1446
      %v1573 = vsel %vm1568, %v1540, %v1448
      %v1574 = vsel %vm1568, %v1541, %v1450
      %v1575 = vsel %vm1568, %v1542, %v1452
      %v1576 = vsel %vm1568, %v1543, %v1454
      %v1577 = vsel %vm1568, %v1544, %v1456
      %v1578 = vsel %vm1568, %v1545, %v1458
      %v1579 = vsel %vm1568, %v1546, %v1460
      %v1580 = vsel %vm1568, %v1547, %v1462
      %v1581 = vsel %vm1568, %v1548, %v1464
      %v1582 = vsel %vm1568, %v1549, %v1466
      %v1583 = vsel %vm1568, %v1550, %v1468
      %v1584 = vsel %vm1568, %v1551, %v1470
      %v1585 = vsel %vm1568, %v1552, %v1472
      %v1586 = vsel %vm1568, %v1553, %v1474
      %v1587 = vsel %vm1568, %v1554, %v1476
      %v1588 = vsel %vm1568, %v1555, %v1478
      %v1589 = vsel %vm1568, %v1556, %v1480
      %v1590 = vsel %vm1568, %v1557, %v1482
      %v1591 = vsel %vm1568, %v1558, %v1484
      %v1592 = vsel %vm1568, %v1559, %v1486
      %v1593 = vsel %vm1568, %v1560, %v1488
      %v1594 = vsel %vm1568, %v1561, %v1490
      %v1595 = vsel %vm1568, %v1562, %v1492
      %v1596 = vsel %vm1568, %v1563, %v1494
      %v1597 = vsel %vm1568, %v1564, %v1496
      %v1598 = vsel %vm1568, %v1565, %v1498
      %v1599 = vsel %vm1568, %v1566, %v1500
      %v1600 = vsel %vm1568, %v1567, %v1502
      %v1601 = vpack.c.bf16 %v1570, %v1569
      %v1602 = vpack.c.bf16 %v1572, %v1571
      %v1603 = vpack.c.bf16 %v1574, %v1573
      %v1604 = vpack.c.bf16 %v1576, %v1575
      %v1605 = vpack.c.bf16 %v1578, %v1577
      %v1606 = vpack.c.bf16 %v1580, %v1579
      %v1607 = vpack.c.bf16 %v1582, %v1581
      %v1608 = vpack.c.bf16 %v1584, %v1583
      %v1609 = vpack.c.bf16 %v1586, %v1585
      %v1610 = vpack.c.bf16 %v1588, %v1587
      %v1611 = vpack.c.bf16 %v1590, %v1589
      %v1612 = vpack.c.bf16 %v1592, %v1591
      %v1613 = vpack.c.bf16 %v1594, %v1593
      %v1614 = vpack.c.bf16 %v1596, %v1595
      %v1615 = vpack.c.bf16 %v1598, %v1597
      %v1616 = vpack.c.bf16 %v1600, %v1599
      %1633 = vrot.lane.b32.xlu0 %v1601, 12
      %v1634 = vpop.permute.xlu0 %1633
      %1635 = vrot.lane.b32.xlu0 %v1602, 12
      %v1636 = vpop.permute.xlu0 %1635
      %1637 = vrot.lane.b32.xlu0 %v1603, 12
      %v1638 = vpop.permute.xlu0 %1637
      %1639 = vrot.lane.b32.xlu0 %v1604, 12
      %v1640 = vpop.permute.xlu0 %1639
      %1641 = vrot.lane.b32.xlu0 %v1605, 12
      %v1642 = vpop.permute.xlu0 %1641
      %1643 = vrot.lane.b32.xlu0 %v1606, 12
      %v1644 = vpop.permute.xlu0 %1643
      %1645 = vrot.lane.b32.xlu0 %v1607, 12
      %v1646 = vpop.permute.xlu0 %1645
      %1647 = vrot.lane.b32.xlu0 %v1608, 12
      %v1648 = vpop.permute.xlu0 %1647
      %1649 = vrot.lane.b32.xlu0 %v1609, 12
      %v1650 = vpop.permute.xlu0 %1649
      %1651 = vrot.lane.b32.xlu0 %v1610, 12
      %v1652 = vpop.permute.xlu0 %1651
      %1653 = vrot.lane.b32.xlu0 %v1611, 12
      %v1654 = vpop.permute.xlu0 %1653
      %1655 = vrot.lane.b32.xlu0 %v1612, 12
      %v1656 = vpop.permute.xlu0 %1655
      %1657 = vrot.lane.b32.xlu0 %v1613, 12
      %v1658 = vpop.permute.xlu0 %1657
      %1659 = vrot.lane.b32.xlu0 %v1614, 12
      %v1660 = vpop.permute.xlu0 %1659
      %1661 = vrot.lane.b32.xlu0 %v1615, 12
      %v1662 = vpop.permute.xlu0 %1661
      %1663 = vrot.lane.b32.xlu0 %v1616, 12
      %v1664 = vpop.permute.xlu0 %1663
      %1666 = vrot.lane.b32.xlu0 %v1602, 24
      %v1667 = vpop.permute.xlu0 %1666
      %1668 = vrot.lane.b32.xlu0 %v1603, 24
      %v1669 = vpop.permute.xlu0 %1668
      %1670 = vrot.lane.b32.xlu0 %v1604, 24
      %v1671 = vpop.permute.xlu0 %1670
      %1672 = vrot.lane.b32.xlu0 %v1605, 24
      %v1673 = vpop.permute.xlu0 %1672
      %1674 = vrot.lane.b32.xlu0 %v1606, 24
      %v1675 = vpop.permute.xlu0 %1674
      %1676 = vrot.lane.b32.xlu0 %v1607, 24
      %v1677 = vpop.permute.xlu0 %1676
      %1678 = vrot.lane.b32.xlu0 %v1608, 24
      %v1679 = vpop.permute.xlu0 %1678
      %1680 = vrot.lane.b32.xlu0 %v1609, 24
      %v1681 = vpop.permute.xlu0 %1680
      %1682 = vrot.lane.b32.xlu0 %v1610, 24
      %v1683 = vpop.permute.xlu0 %1682
      %1684 = vrot.lane.b32.xlu0 %v1611, 24
      %v1685 = vpop.permute.xlu0 %1684
      %1686 = vrot.lane.b32.xlu0 %v1612, 24
      %v1687 = vpop.permute.xlu0 %1686
      %1688 = vrot.lane.b32.xlu0 %v1613, 24
      %v1689 = vpop.permute.xlu0 %1688
      %1690 = vrot.lane.b32.xlu0 %v1614, 24
      %v1691 = vpop.permute.xlu0 %1690
      %1692 = vrot.lane.b32.xlu0 %v1615, 24
      %v1693 = vpop.permute.xlu0 %1692
      %1694 = vrot.lane.b32.xlu0 %v1616, 24
      %v1695 = vpop.permute.xlu0 %1694
      %1696 = vrot.lane.b32.xlu0 0, 24
      %v1697 = vpop.permute.xlu0 %1696
      %vm1698 = vcmask 97280
      %v1701 = vsel %vm1698, 0, %v1634
      %v1704 = vsel %vm1698, %v1601, %v1636
      %v1707 = vsel %vm1698, %v1602, %v1638
      %v1710 = vsel %vm1698, %v1603, %v1640
      %v1713 = vsel %vm1698, %v1604, %v1642
      %v1716 = vsel %vm1698, %v1605, %v1644
      %v1719 = vsel %vm1698, %v1606, %v1646
      %v1722 = vsel %vm1698, %v1607, %v1648
      %v1725 = vsel %vm1698, %v1608, %v1650
      %v1728 = vsel %vm1698, %v1609, %v1652
      %v1731 = vsel %vm1698, %v1610, %v1654
      %v1734 = vsel %vm1698, %v1611, %v1656
      %v1737 = vsel %vm1698, %v1612, %v1658
      %v1740 = vsel %vm1698, %v1613, %v1660
      %v1743 = vsel %vm1698, %v1614, %v1662
      %v1746 = vsel %vm1698, %v1615, %v1664
      %vm1747 = vcmask 195584
      %v1749 = vsel %vm1747, %v1701, %v1667
      %v1751 = vsel %vm1747, %v1704, %v1669
      %v1753 = vsel %vm1747, %v1707, %v1671
      %v1755 = vsel %vm1747, %v1710, %v1673
      %v1757 = vsel %vm1747, %v1713, %v1675
      %v1759 = vsel %vm1747, %v1716, %v1677
      %v1761 = vsel %vm1747, %v1719, %v1679
      %v1763 = vsel %vm1747, %v1722, %v1681
      %v1765 = vsel %vm1747, %v1725, %v1683
      %v1767 = vsel %vm1747, %v1728, %v1685
      %v1769 = vsel %vm1747, %v1731, %v1687
      %v1771 = vsel %vm1747, %v1734, %v1689
      %v1773 = vsel %vm1747, %v1737, %v1691
      %v1775 = vsel %vm1747, %v1740, %v1693
      %v1777 = vsel %vm1747, %v1743, %v1695
      %v1779 = vsel %vm1747, %v1746, %v1697
      %v1780 = vld [vmem:[%s3] sm:$0xf]
      %v1781 = vld [vmem:[%s3 + $0x4] sm:$0xf]
      %v1782 = vld [vmem:[%s3 + $0x8] sm:$0xf]
      %v1783 = vld [vmem:[%s3 + $0xc] sm:$0xf]
      %v1784 = vld [vmem:[%s3 + $0x10] sm:$0x3]
      %v1790 = vunpack.c.l.b16 %v1780
      %v1791 = vunpack.c.l.b16 %v1781
      %v1792 = vunpack.c.l.b16 %v1782
      %v1793 = vunpack.c.l.b16 %v1783
      %v1794 = vunpack.c.l.b16 %v1784
      %v1795 = vpack.c.b16 %v1791, %v1790
      %v1796 = vpack.c.b16 %v1793, %v1792
      %v1797 = vpack.c.b16 %v1794, %v1794
      %vm1800 = vcmask 293888
      %v1801 = vsel %vm1800, %v1749, 0
      %v1803 = vsel %vm1800, %v1751, 0
      %v1805 = vsel %vm1800, %v1753, 0
      %v1807 = vsel %vm1800, %v1755, 0
      %v1809 = vsel %vm1800, %v1757, 0
      %v1811 = vsel %vm1800, %v1759, 0
      %v1813 = vsel %vm1800, %v1761, 0
      %v1815 = vsel %vm1800, %v1763, 0
      %v1817 = vsel %vm1800, %v1765, 0
      %v1819 = vsel %vm1800, %v1767, 0
      %v1821 = vsel %vm1800, %v1769, 0
      %v1823 = vsel %vm1800, %v1771, 0
      %v1825 = vsel %vm1800, %v1773, 0
      %v1827 = vsel %vm1800, %v1775, 0
      %v1829 = vsel %vm1800, %v1777, 0
      %v1831 = vsel %vm1800, %v1779, 0
      %vm1833 = vcmask 1041408
      %v1835 = vsel %vm1833, %v1797, 0
      %1837 = vmatprep.subr.bf16.mxu0 0
      %1838 = vmatpush1.bf16.msra.mxu0 %v1795
      %1839 = vmatprep.subr.bf16.mxu0 0
      %1840 = vmatpush1.bf16.msra.mxu0 %v1796
      %1841 = vmatprep.subr.bf16.mxu0 0
      %1842 = vmatpush1.bf16.msra.mxu0 %v1835
      %1843 = vmatprep.subr.bf16.mxu0 0
      %1844 = vmatpush1.bf16.msra.mxu0 0
      %1845 = vmatprep.subr.bf16.mxu0 0
      %1846 = vmatpush1.bf16.msra.mxu0 0
      %1847 = vmatprep.subr.bf16.mxu0 0
      %1848 = vmatpush1.bf16.msra.mxu0 0
      %1849 = vmatprep.subr.bf16.mxu0 0
      %1850 = vmatpush1.bf16.msra.mxu0 0
      %1851 = vmatprep.subr.bf16.mxu0 0
      %1852 = vmatpush1.bf16.msra.mxu0 0
      %1853 = vmatprep.subr.bf16.mxu0 0
      %1854 = vmatpush1.bf16.msra.mxu0 0
      %1855 = vmatprep.subr.bf16.mxu0 0
      %1856 = vmatpush1.bf16.msra.mxu0 0
      %1857 = vmatprep.subr.bf16.mxu0 0
      %1858 = vmatpush1.bf16.msra.mxu0 0
      %1859 = vmatprep.subr.bf16.mxu0 0
      %1860 = vmatpush1.bf16.msra.mxu0 0
      %1861 = vmatprep.subr.bf16.mxu0 0
      %1862 = vmatpush1.bf16.msra.mxu0 0
      %1863 = vmatprep.subr.bf16.mxu0 0
      %1864 = vmatpush1.bf16.msra.mxu0 0
      %1865 = vmatprep.subr.bf16.mxu0 0
      %1866 = vmatpush1.bf16.msra.mxu0 0
      %1867 = vmatprep.subr.bf16.mxu0 0
      %1868 = vmatpush1.bf16.msra.mxu0 0
      %1869 = vmatprep.mubr.bf16.mxu0 0
      %1870 = vmatmul.mubr.bf16.gmra.mrb[0].mxu0 %v1801
      %v1871 = vpop.f32.mrb[0].mxu0
      %v1872 = vadd.f32 0.0, %v1871
      %v1873 = vpop.f32.mrb[0].mxu0
      %v1874 = vpop.f32.mrb[0].mxu0
      %v1875 = vadd.f32 0.0, %v1874
      %v1876 = vpop.f32.mrb[0].mxu0
      %1877 = vmatprep.mubr.bf16.mxu0 0
      %1878 = vmatmul.mubr.bf16.gmra.mrb[0].mxu0 %v1803
      %v1879 = vpop.f32.mrb[0].mxu0
      %v1880 = vadd.f32 0.0, %v1879
      %v1881 = vpop.f32.mrb[0].mxu0
      %v1882 = vpop.f32.mrb[0].mxu0
      %v1883 = vadd.f32 0.0, %v1882
      %v1884 = vpop.f32.mrb[0].mxu0
      %1885 = vmatprep.mubr.bf16.mxu0 0
      %1886 = vmatmul.mubr.bf16.gmra.mrb[0].mxu0 %v1805
      %v1887 = vpop.f32.mrb[0].mxu0
      %v1888 = vadd.f32 0.0, %v1887
      %v1889 = vpop.f32.mrb[0].mxu0
      %v1890 = vpop.f32.mrb[0].mxu0
      %v1891 = vadd.f32 0.0, %v1890
      %v1892 = vpop.f32.mrb[0].mxu0
      %1893 = vmatprep.mubr.bf16.mxu0 0
      %1894 = vmatmul.mubr.bf16.gmra.mrb[0].mxu0 %v1807
      %v1895 = vpop.f32.mrb[0].mxu0
      %v1896 = vadd.f32 0.0, %v1895
      %v1897 = vpop.f32.mrb[0].mxu0
      %v1898 = vpop.f32.mrb[0].mxu0
      %v1899 = vadd.f32 0.0, %v1898
      %v1900 = vpop.f32.mrb[0].mxu0
      %1901 = vmatprep.mubr.bf16.mxu0 0
      %1902 = vmatmul.mubr.bf16.gmra.mrb[0].mxu0 %v1809
      %v1903 = vpop.f32.mrb[0].mxu0
      %v1904 = vadd.f32 0.0, %v1903
      %v1905 = vpop.f32.mrb[0].mxu0
      %v1906 = vpop.f32.mrb[0].mxu0
      %v1907 = vadd.f32 0.0, %v1906
      %v1908 = vpop.f32.mrb[0].mxu0
      %1909 = vmatprep.mubr.bf16.mxu0 0
      %1910 = vmatmul.mubr.bf16.gmra.mrb[0].mxu0 %v1811
      %v1911 = vpop.f32.mrb[0].mxu0
      %v1912 = vadd.f32 0.0, %v1911
      %v1913 = vpop.f32.mrb[0].mxu0
      %v1914 = vpop.f32.mrb[0].mxu0
      %v1915 = vadd.f32 0.0, %v1914
      %v1916 = vpop.f32.mrb[0].mxu0
      %1917 = vmatprep.mubr.bf16.mxu0 0
      %1918 = vmatmul.mubr.bf16.gmra.mrb[0].mxu0 %v1813
      %v1919 = vpop.f32.mrb[0].mxu0
      %v1920 = vadd.f32 0.0, %v1919
      %v1921 = vpop.f32.mrb[0].mxu0
      %v1922 = vpop.f32.mrb[0].mxu0
      %v1923 = vadd.f32 0.0, %v1922
      %v1924 = vpop.f32.mrb[0].mxu0
      %1925 = vmatprep.mubr.bf16.mxu0 0
      %1926 = vmatmul.mubr.bf16.gmra.mrb[0].mxu0 %v1815
      %v1927 = vpop.f32.mrb[0].mxu0
      %v1928 = vadd.f32 0.0, %v1927
      %v1929 = vpop.f32.mrb[0].mxu0
      %v1930 = vpop.f32.mrb[0].mxu0
      %v1931 = vadd.f32 0.0, %v1930
      %v1932 = vpop.f32.mrb[0].mxu0
      %1933 = vmatprep.mubr.bf16.mxu0 0
      %1934 = vmatmul.mubr.bf16.gmra.mrb[0].mxu0 %v1817
      %v1935 = vpop.f32.mrb[0].mxu0
      %v1936 = vadd.f32 0.0, %v1935
      %v1937 = vpop.f32.mrb[0].mxu0
      %v1938 = vpop.f32.mrb[0].mxu0
      %v1939 = vadd.f32 0.0, %v1938
      %v1940 = vpop.f32.mrb[0].mxu0
      %1941 = vmatprep.mubr.bf16.mxu0 0
      %1942 = vmatmul.mubr.bf16.gmra.mrb[0].mxu0 %v1819
      %v1943 = vpop.f32.mrb[0].mxu0
      %v1944 = vadd.f32 0.0, %v1943
      %v1945 = vpop.f32.mrb[0].mxu0
      %v1946 = vpop.f32.mrb[0].mxu0
      %v1947 = vadd.f32 0.0, %v1946
      %v1948 = vpop.f32.mrb[0].mxu0
      %1949 = vmatprep.mubr.bf16.mxu0 0
      %1950 = vmatmul.mubr.bf16.gmra.mrb[0].mxu0 %v1821
      %v1951 = vpop.f32.mrb[0].mxu0
      %v1952 = vadd.f32 0.0, %v1951
      %v1953 = vpop.f32.mrb[0].mxu0
      %v1954 = vpop.f32.mrb[0].mxu0
      %v1955 = vadd.f32 0.0, %v1954
      %v1956 = vpop.f32.mrb[0].mxu0
      %1957 = vmatprep.mubr.bf16.mxu0 0
      %1958 = vmatmul.mubr.bf16.gmra.mrb[0].mxu0 %v1823
      %v1959 = vpop.f32.mrb[0].mxu0
      %v1960 = vadd.f32 0.0, %v1959
      %v1961 = vpop.f32.mrb[0].mxu0
      %v1962 = vpop.f32.mrb[0].mxu0
      %v1963 = vadd.f32 0.0, %v1962
      %v1964 = vpop.f32.mrb[0].mxu0
      %1965 = vmatprep.mubr.bf16.mxu0 0
      %1966 = vmatmul.mubr.bf16.gmra.mrb[0].mxu0 %v1825
      %v1967 = vpop.f32.mrb[0].mxu0
      %v1968 = vadd.f32 0.0, %v1967
      %v1969 = vpop.f32.mrb[0].mxu0
      %v1970 = vpop.f32.mrb[0].mxu0
      %v1971 = vadd.f32 0.0, %v1970
      %v1972 = vpop.f32.mrb[0].mxu0
      %1973 = vmatprep.mubr.bf16.mxu0 0
      %1974 = vmatmul.mubr.bf16.gmra.mrb[0].mxu0 %v1827
      %v1975 = vpop.f32.mrb[0].mxu0
      %v1976 = vadd.f32 0.0, %v1975
      %v1977 = vpop.f32.mrb[0].mxu0
      %v1978 = vpop.f32.mrb[0].mxu0
      %v1979 = vadd.f32 0.0, %v1978
      %v1980 = vpop.f32.mrb[0].mxu0
      %1981 = vmatprep.mubr.bf16.mxu0 0
      %1982 = vmatmul.mubr.bf16.gmra.mrb[0].mxu0 %v1829
      %v1983 = vpop.f32.mrb[0].mxu0
      %v1984 = vadd.f32 0.0, %v1983
      %v1985 = vpop.f32.mrb[0].mxu0
      %v1986 = vpop.f32.mrb[0].mxu0
      %v1987 = vadd.f32 0.0, %v1986
      %v1988 = vpop.f32.mrb[0].mxu0
      %1989 = vmatprep.mubr.bf16.mxu0 0
      %1990 = vmatmul.mubr.bf16.gmra.mrb[0].mxu0 %v1831
      %v1991 = vpop.f32.mrb[0].mxu0
      %v1992 = vadd.f32 0.0, %v1991
      %v1993 = vpop.f32.mrb[0].mxu0
      %v1994 = vpop.f32.mrb[0].mxu0
      %v1995 = vadd.f32 0.0, %v1994
      %v1996 = vpop.f32.mrb[0].mxu0
      %1997 = vdwg.mxu0
      %v1998 = vld [vmem:[%s4] sm:$0x1]
      %v2000 = vlaneseq
      %v2001 = vshrl.u32 %v2000, 7
      %v2002 = vsub.s32 0, %v2001
      %v2003 = vrot.slane %v1998, %v2002
      %v2005 = vmul.f32 %v1872, %v2003
      %v2006 = vmul.f32 %v1875, %v2003
      %v2007 = vmul.f32 %v1880, %v2003
      %v2008 = vmul.f32 %v1883, %v2003
      %v2009 = vmul.f32 %v1888, %v2003
      %v2010 = vmul.f32 %v1891, %v2003
      %v2011 = vmul.f32 %v1896, %v2003
      %v2012 = vmul.f32 %v1899, %v2003
      %v2013 = vmul.f32 %v1904, %v2003
      %v2014 = vmul.f32 %v1907, %v2003
      %v2015 = vmul.f32 %v1912, %v2003
      %v2016 = vmul.f32 %v1915, %v2003
      %v2017 = vmul.f32 %v1920, %v2003
      %v2018 = vmul.f32 %v1923, %v2003
      %v2019 = vmul.f32 %v1928, %v2003
      %v2020 = vmul.f32 %v1931, %v2003
      %v2021 = vmul.f32 %v1936, %v2003
      %v2022 = vmul.f32 %v1939, %v2003
      %v2023 = vmul.f32 %v1944, %v2003
      %v2024 = vmul.f32 %v1947, %v2003
      %v2025 = vmul.f32 %v1952, %v2003
      %v2026 = vmul.f32 %v1955, %v2003
      %v2027 = vmul.f32 %v1960, %v2003
      %v2028 = vmul.f32 %v1963, %v2003
      %v2029 = vmul.f32 %v1968, %v2003
      %v2030 = vmul.f32 %v1971, %v2003
      %v2031 = vmul.f32 %v1976, %v2003
      %v2032 = vmul.f32 %v1979, %v2003
      %v2033 = vmul.f32 %v1984, %v2003
      %v2034 = vmul.f32 %v1987, %v2003
      %v2035 = vmul.f32 %v1992, %v2003
      %v2036 = vmul.f32 %v1995, %v2003
      %v2037 = vld [vmem:[%s5] sm:$0x1]
      %v2039 = vlaneseq
      %v2040 = vshrl.u32 %v2039, 7
      %v2041 = vsub.s32 0, %v2040
      %v2042 = vrot.slane %v2037, %v2041
      %v2044 = vadd.f32 %v2005, %v2042
      %v2045 = vadd.f32 %v2006, %v2042
      %v2046 = vadd.f32 %v2007, %v2042
      %v2047 = vadd.f32 %v2008, %v2042
      %v2048 = vadd.f32 %v2009, %v2042
      %v2049 = vadd.f32 %v2010, %v2042
      %v2050 = vadd.f32 %v2011, %v2042
      %v2051 = vadd.f32 %v2012, %v2042
      %v2052 = vadd.f32 %v2013, %v2042
      %v2053 = vadd.f32 %v2014, %v2042
      %v2054 = vadd.f32 %v2015, %v2042
      %v2055 = vadd.f32 %v2016, %v2042
      %v2056 = vadd.f32 %v2017, %v2042
      %v2057 = vadd.f32 %v2018, %v2042
      %v2058 = vadd.f32 %v2019, %v2042
      %v2059 = vadd.f32 %v2020, %v2042
      %v2060 = vadd.f32 %v2021, %v2042
      %v2061 = vadd.f32 %v2022, %v2042
      %v2062 = vadd.f32 %v2023, %v2042
      %v2063 = vadd.f32 %v2024, %v2042
      %v2064 = vadd.f32 %v2025, %v2042
      %v2065 = vadd.f32 %v2026, %v2042
      %v2066 = vadd.f32 %v2027, %v2042
      %v2067 = vadd.f32 %v2028, %v2042
      %v2068 = vadd.f32 %v2029, %v2042
      %v2069 = vadd.f32 %v2030, %v2042
      %v2070 = vadd.f32 %v2031, %v2042
      %v2071 = vadd.f32 %v2032, %v2042
      %v2072 = vadd.f32 %v2033, %v2042
      %v2073 = vadd.f32 %v2034, %v2042
      %v2074 = vadd.f32 %v2035, %v2042
      %v2075 = vadd.f32 %v2036, %v2042
      %v2076 = vmax.f32 %v2044, 0.0
      %v2077 = vmax.f32 %v2045, 0.0
      %v2078 = vmax.f32 %v2046, 0.0
      %v2079 = vmax.f32 %v2047, 0.0
      %v2080 = vmax.f32 %v2048, 0.0
      %v2081 = vmax.f32 %v2049, 0.0
      %v2082 = vmax.f32 %v2050, 0.0
      %v2083 = vmax.f32 %v2051, 0.0
      %v2084 = vmax.f32 %v2052, 0.0
      %v2085 = vmax.f32 %v2053, 0.0
      %v2086 = vmax.f32 %v2054, 0.0
      %v2087 = vmax.f32 %v2055, 0.0
      %v2088 = vmax.f32 %v2056, 0.0
      %v2089 = vmax.f32 %v2057, 0.0
      %v2090 = vmax.f32 %v2058, 0.0
      %v2091 = vmax.f32 %v2059, 0.0
      %v2092 = vmax.f32 %v2060, 0.0
      %v2093 = vmax.f32 %v2061, 0.0
      %v2094 = vmax.f32 %v2062, 0.0
      %v2095 = vmax.f32 %v2063, 0.0
      %v2096 = vmax.f32 %v2064, 0.0
      %v2097 = vmax.f32 %v2065, 0.0
      %v2098 = vmax.f32 %v2066, 0.0
      %v2099 = vmax.f32 %v2067, 0.0
      %v2100 = vmax.f32 %v2068, 0.0
      %v2101 = vmax.f32 %v2069, 0.0
      %v2102 = vmax.f32 %v2070, 0.0
      %v2103 = vmax.f32 %v2071, 0.0
      %v2104 = vmax.f32 %v2072, 0.0
      %v2105 = vmax.f32 %v2073, 0.0
      %v2106 = vmax.f32 %v2074, 0.0
      %v2107 = vmax.f32 %v2075, 0.0
      %v2108 = vrot.slane %v2076, 7
      %v2109 = vrot.slane %v2077, 7
      %v2110 = vrot.slane %v2078, 7
      %v2111 = vrot.slane %v2079, 7
      %v2112 = vrot.slane %v2080, 7
      %v2113 = vrot.slane %v2081, 7
      %v2114 = vrot.slane %v2082, 7
      %v2115 = vrot.slane %v2083, 7
      %v2116 = vrot.slane %v2084, 7
      %v2117 = vrot.slane %v2085, 7
      %v2118 = vrot.slane %v2086, 7
      %v2119 = vrot.slane %v2087, 7
      %v2120 = vrot.slane %v2088, 7
      %v2121 = vrot.slane %v2089, 7
      %v2122 = vrot.slane %v2090, 7
      %v2123 = vrot.slane %v2091, 7
      %v2124 = vrot.slane %v2092, 7
      %v2125 = vrot.slane %v2093, 7
      %v2126 = vrot.slane %v2094, 7
      %v2127 = vrot.slane %v2095, 7
      %v2128 = vrot.slane %v2096, 7
      %v2129 = vrot.slane %v2097, 7
      %v2130 = vrot.slane %v2098, 7
      %v2131 = vrot.slane %v2099, 7
      %v2132 = vrot.slane %v2100, 7
      %v2133 = vrot.slane %v2101, 7
      %v2134 = vrot.slane %v2102, 7
      %v2135 = vrot.slane %v2103, 7
      %v2136 = vrot.slane %v2104, 7
      %v2137 = vrot.slane %v2105, 7
      %v2138 = vrot.slane %v2106, 7
      %v2139 = vrot.slane %v2107, 7
      %v2140 = vsel %vm989, %v2138, %v2139
      %v2141 = vsel %vm989, %v2137, %v2138
      %v2142 = vsel %vm989, %v2136, %v2137
      %v2143 = vsel %vm989, %v2135, %v2136
      %v2144 = vsel %vm989, %v2134, %v2135
      %v2145 = vsel %vm989, %v2133, %v2134
      %v2146 = vsel %vm989, %v2132, %v2133
      %v2147 = vsel %vm989, %v2131, %v2132
      %v2148 = vsel %vm989, %v2130, %v2131
      %v2149 = vsel %vm989, %v2129, %v2130
      %v2150 = vsel %vm989, %v2128, %v2129
      %v2151 = vsel %vm989, %v2127, %v2128
      %v2152 = vsel %vm989, %v2126, %v2127
      %v2153 = vsel %vm989, %v2125, %v2126
      %v2154 = vsel %vm989, %v2124, %v2125
      %v2155 = vsel %vm989, %v2123, %v2124
      %v2156 = vsel %vm989, %v2122, %v2123
      %v2157 = vsel %vm989, %v2121, %v2122
      %v2158 = vsel %vm989, %v2120, %v2121
      %v2159 = vsel %vm989, %v2119, %v2120
      %v2160 = vsel %vm989, %v2118, %v2119
      %v2161 = vsel %vm989, %v2117, %v2118
      %v2162 = vsel %vm989, %v2116, %v2117
      %v2163 = vsel %vm989, %v2115, %v2116
      %v2164 = vsel %vm989, %v2114, %v2115
      %v2165 = vsel %vm989, %v2113, %v2114
      %v2166 = vsel %vm989, %v2112, %v2113
      %v2167 = vsel %vm989, %v2111, %v2112
      %v2168 = vsel %vm989, %v2110, %v2111
      %v2169 = vsel %vm989, %v2109, %v2110
      %v2170 = vsel %vm989, %v2108, %v2109
      %v2171 = vsel %vm989, %v2139, %v2108
      %v2172 = vsel %vm1054, 0.0, %v2171
      %v2173 = vsel %vm1055, 0.0, %v2170
      %v2174 = vsel %vm1056, 0.0, %v2169
      %v2175 = vsel %vm1057, 0.0, %v2168
      %v2176 = vsel %vm1058, 0.0, %v2167
      %v2177 = vsel %vm1059, 0.0, %v2166
      %v2178 = vsel %vm1060, 0.0, %v2165
      %v2179 = vsel %vm1061, 0.0, %v2164
      %v2180 = vsel %vm1062, 0.0, %v2163
      %v2181 = vsel %vm1063, 0.0, %v2162
      %v2182 = vsel %vm1064, 0.0, %v2161
      %v2183 = vsel %vm1065, 0.0, %v2160
      %v2184 = vsel %vm1066, 0.0, %v2159
      %v2185 = vsel %vm1067, 0.0, %v2158
      %v2186 = vsel %vm1068, 0.0, %v2157
      %v2187 = vsel %vm1069, 0.0, %v2156
      %v2188 = vsel %vm1070, 0.0, %v2155
      %v2189 = vsel %vm1071, 0.0, %v2154
      %v2190 = vsel %vm1072, 0.0, %v2153
      %v2191 = vsel %vm1073, 0.0, %v2152
      %v2192 = vsel %vm1074, 0.0, %v2151
      %v2193 = vsel %vm1075, 0.0, %v2150
      %v2194 = vsel %vm1076, 0.0, %v2149
      %v2195 = vsel %vm1077, 0.0, %v2148
      %v2196 = vsel %vm1078, 0.0, %v2147
      %v2197 = vsel %vm1079, 0.0, %v2146
      %v2198 = vsel %vm1080, 0.0, %v2145
      %v2199 = vsel %vm1081, 0.0, %v2144
      %v2200 = vsel %vm1082, 0.0, %v2143
      %v2201 = vsel %vm1083, 0.0, %v2142
      %v2202 = vsel %vm1084, 0.0, %v2141
      %v2203 = vsel %vm1085, 0.0, %v2140
      %v2204 = vrot.slane %v2076, 1
      %v2205 = vrot.slane %v2077, 1
      %v2206 = vrot.slane %v2078, 1
      %v2207 = vrot.slane %v2079, 1
      %v2208 = vrot.slane %v2080, 1
      %v2209 = vrot.slane %v2081, 1
      %v2210 = vrot.slane %v2082, 1
      %v2211 = vrot.slane %v2083, 1
      %v2212 = vrot.slane %v2084, 1
      %v2213 = vrot.slane %v2085, 1
      %v2214 = vrot.slane %v2086, 1
      %v2215 = vrot.slane %v2087, 1
      %v2216 = vrot.slane %v2088, 1
      %v2217 = vrot.slane %v2089, 1
      %v2218 = vrot.slane %v2090, 1
      %v2219 = vrot.slane %v2091, 1
      %v2220 = vrot.slane %v2092, 1
      %v2221 = vrot.slane %v2093, 1
      %v2222 = vrot.slane %v2094, 1
      %v2223 = vrot.slane %v2095, 1
      %v2224 = vrot.slane %v2096, 1
      %v2225 = vrot.slane %v2097, 1
      %v2226 = vrot.slane %v2098, 1
      %v2227 = vrot.slane %v2099, 1
      %v2228 = vrot.slane %v2100, 1
      %v2229 = vrot.slane %v2101, 1
      %v2230 = vrot.slane %v2102, 1
      %v2231 = vrot.slane %v2103, 1
      %v2232 = vrot.slane %v2104, 1
      %v2233 = vrot.slane %v2105, 1
      %v2234 = vrot.slane %v2106, 1
      %v2235 = vrot.slane %v2107, 1
      %v2236 = vsel %vm1150, %v2234, %v2235
      %v2237 = vsel %vm1150, %v2233, %v2234
      %v2238 = vsel %vm1150, %v2232, %v2233
      %v2239 = vsel %vm1150, %v2231, %v2232
      %v2240 = vsel %vm1150, %v2230, %v2231
      %v2241 = vsel %vm1150, %v2229, %v2230
      %v2242 = vsel %vm1150, %v2228, %v2229
      %v2243 = vsel %vm1150, %v2227, %v2228
      %v2244 = vsel %vm1150, %v2226, %v2227
      %v2245 = vsel %vm1150, %v2225, %v2226
      %v2246 = vsel %vm1150, %v2224, %v2225
      %v2247 = vsel %vm1150, %v2223, %v2224
      %v2248 = vsel %vm1150, %v2222, %v2223
      %v2249 = vsel %vm1150, %v2221, %v2222
      %v2250 = vsel %vm1150, %v2220, %v2221
      %v2251 = vsel %vm1150, %v2219, %v2220
      %v2252 = vsel %vm1150, %v2218, %v2219
      %v2253 = vsel %vm1150, %v2217, %v2218
      %v2254 = vsel %vm1150, %v2216, %v2217
      %v2255 = vsel %vm1150, %v2215, %v2216
      %v2256 = vsel %vm1150, %v2214, %v2215
      %v2257 = vsel %vm1150, %v2213, %v2214
      %v2258 = vsel %vm1150, %v2212, %v2213
      %v2259 = vsel %vm1150, %v2211, %v2212
      %v2260 = vsel %vm1150, %v2210, %v2211
      %v2261 = vsel %vm1150, %v2209, %v2210
      %v2262 = vsel %vm1150, %v2208, %v2209
      %v2263 = vsel %vm1150, %v2207, %v2208
      %v2264 = vsel %vm1150, %v2206, %v2207
      %v2265 = vsel %vm1150, %v2205, %v2206
      %v2266 = vsel %vm1150, %v2204, %v2205
      %v2267 = vsel %vm1150, %v2235, %v2204
      %v2268 = vsel %vm1215, 0.0, %v2266
      %v2269 = vsel %vm1216, 0.0, %v2265
      %v2270 = vsel %vm1217, 0.0, %v2264
      %v2271 = vsel %vm1218, 0.0, %v2263
      %v2272 = vsel %vm1219, 0.0, %v2262
      %v2273 = vsel %vm1220, 0.0, %v2261
      %v2274 = vsel %vm1221, 0.0, %v2260
      %v2275 = vsel %vm1222, 0.0, %v2259
      %v2276 = vsel %vm1223, 0.0, %v2258
      %v2277 = vsel %vm1224, 0.0, %v2257
      %v2278 = vsel %vm1225, 0.0, %v2256
      %v2279 = vsel %vm1226, 0.0, %v2255
      %v2280 = vsel %vm1227, 0.0, %v2254
      %v2281 = vsel %vm1228, 0.0, %v2253
      %v2282 = vsel %vm1229, 0.0, %v2252
      %v2283 = vsel %vm1230, 0.0, %v2251
      %v2284 = vsel %vm1231, 0.0, %v2250
      %v2285 = vsel %vm1232, 0.0, %v2249
      %v2286 = vsel %vm1233, 0.0, %v2248
      %v2287 = vsel %vm1234, 0.0, %v2247
      %v2288 = vsel %vm1235, 0.0, %v2246
      %v2289 = vsel %vm1236, 0.0, %v2245
      %v2290 = vsel %vm1237, 0.0, %v2244
      %v2291 = vsel %vm1238, 0.0, %v2243
      %v2292 = vsel %vm1239, 0.0, %v2242
      %v2293 = vsel %vm1240, 0.0, %v2241
      %v2294 = vsel %vm1241, 0.0, %v2240
      %v2295 = vsel %vm1242, 0.0, %v2239
      %v2296 = vsel %vm1243, 0.0, %v2238
      %v2297 = vsel %vm1244, 0.0, %v2237
      %v2298 = vsel %vm1245, 0.0, %v2236
      %v2299 = vsel %vm1246, 0.0, %v2267
      %2332 = vrot.lane.b32.xlu0 %v2076, 8
      %v2333 = vpop.permute.xlu0 %2332
      %2334 = vrot.lane.b32.xlu0 %v2077, 8
      %v2335 = vpop.permute.xlu0 %2334
      %2336 = vrot.lane.b32.xlu0 %v2078, 8
      %v2337 = vpop.permute.xlu0 %2336
      %2338 = vrot.lane.b32.xlu0 %v2079, 8
      %v2339 = vpop.permute.xlu0 %2338
      %2340 = vrot.lane.b32.xlu0 %v2080, 8
      %v2341 = vpop.permute.xlu0 %2340
      %2342 = vrot.lane.b32.xlu0 %v2081, 8
      %v2343 = vpop.permute.xlu0 %2342
      %2344 = vrot.lane.b32.xlu0 %v2082, 8
      %v2345 = vpop.permute.xlu0 %2344
      %2346 = vrot.lane.b32.xlu0 %v2083, 8
      %v2347 = vpop.permute.xlu0 %2346
      %2348 = vrot.lane.b32.xlu0 %v2084, 8
      %v2349 = vpop.permute.xlu0 %2348
      %2350 = vrot.lane.b32.xlu0 %v2085, 8
      %v2351 = vpop.permute.xlu0 %2350
      %2352 = vrot.lane.b32.xlu0 %v2086, 8
      %v2353 = vpop.permute.xlu0 %2352
      %2354 = vrot.lane.b32.xlu0 %v2087, 8
      %v2355 = vpop.permute.xlu0 %2354
      %2356 = vrot.lane.b32.xlu0 %v2088, 8
      %v2357 = vpop.permute.xlu0 %2356
      %2358 = vrot.lane.b32.xlu0 %v2089, 8
      %v2359 = vpop.permute.xlu0 %2358
      %2360 = vrot.lane.b32.xlu0 %v2090, 8
      %v2361 = vpop.permute.xlu0 %2360
      %2362 = vrot.lane.b32.xlu0 %v2091, 8
      %v2363 = vpop.permute.xlu0 %2362
      %2364 = vrot.lane.b32.xlu0 %v2092, 8
      %v2365 = vpop.permute.xlu0 %2364
      %2366 = vrot.lane.b32.xlu0 %v2093, 8
      %v2367 = vpop.permute.xlu0 %2366
      %2368 = vrot.lane.b32.xlu0 %v2094, 8
      %v2369 = vpop.permute.xlu0 %2368
      %2370 = vrot.lane.b32.xlu0 %v2095, 8
      %v2371 = vpop.permute.xlu0 %2370
      %2372 = vrot.lane.b32.xlu0 %v2096, 8
      %v2373 = vpop.permute.xlu0 %2372
      %2374 = vrot.lane.b32.xlu0 %v2097, 8
      %v2375 = vpop.permute.xlu0 %2374
      %2376 = vrot.lane.b32.xlu0 %v2098, 8
      %v2377 = vpop.permute.xlu0 %2376
      %2378 = vrot.lane.b32.xlu0 %v2099, 8
      %v2379 = vpop.permute.xlu0 %2378
      %2380 = vrot.lane.b32.xlu0 %v2100, 8
      %v2381 = vpop.permute.xlu0 %2380
      %2382 = vrot.lane.b32.xlu0 %v2101, 8
      %v2383 = vpop.permute.xlu0 %2382
      %2384 = vrot.lane.b32.xlu0 %v2102, 8
      %v2385 = vpop.permute.xlu0 %2384
      %2386 = vrot.lane.b32.xlu0 %v2103, 8
      %v2387 = vpop.permute.xlu0 %2386
      %2388 = vrot.lane.b32.xlu0 %v2104, 8
      %v2389 = vpop.permute.xlu0 %2388
      %2390 = vrot.lane.b32.xlu0 %v2105, 8
      %v2391 = vpop.permute.xlu0 %2390
      %2392 = vrot.lane.b32.xlu0 %v2106, 8
      %v2393 = vpop.permute.xlu0 %2392
      %2394 = vrot.lane.b32.xlu0 %v2107, 8
      %v2395 = vpop.permute.xlu0 %2394
      %2460 = vrot.lane.b32.xlu0 %v2268, 16
      %v2461 = vpop.permute.xlu0 %2460
      %2462 = vrot.lane.b32.xlu0 %v2269, 16
      %v2463 = vpop.permute.xlu0 %2462
      %2464 = vrot.lane.b32.xlu0 %v2270, 16
      %v2465 = vpop.permute.xlu0 %2464
      %2466 = vrot.lane.b32.xlu0 %v2271, 16
      %v2467 = vpop.permute.xlu0 %2466
      %2468 = vrot.lane.b32.xlu0 %v2272, 16
      %v2469 = vpop.permute.xlu0 %2468
      %2470 = vrot.lane.b32.xlu0 %v2273, 16
      %v2471 = vpop.permute.xlu0 %2470
      %2472 = vrot.lane.b32.xlu0 %v2274, 16
      %v2473 = vpop.permute.xlu0 %2472
      %2474 = vrot.lane.b32.xlu0 %v2275, 16
      %v2475 = vpop.permute.xlu0 %2474
      %2476 = vrot.lane.b32.xlu0 %v2276, 16
      %v2477 = vpop.permute.xlu0 %2476
      %2478 = vrot.lane.b32.xlu0 %v2277, 16
      %v2479 = vpop.permute.xlu0 %2478
      %2480 = vrot.lane.b32.xlu0 %v2278, 16
      %v2481 = vpop.permute.xlu0 %2480
      %2482 = vrot.lane.b32.xlu0 %v2279, 16
      %v2483 = vpop.permute.xlu0 %2482
      %2484 = vrot.lane.b32.xlu0 %v2280, 16
      %v2485 = vpop.permute.xlu0 %2484
      %2486 = vrot.lane.b32.xlu0 %v2281, 16
      %v2487 = vpop.permute.xlu0 %2486
      %2488 = vrot.lane.b32.xlu0 %v2282, 16
      %v2489 = vpop.permute.xlu0 %2488
      %2490 = vrot.lane.b32.xlu0 %v2283, 16
      %v2491 = vpop.permute.xlu0 %2490
      %2492 = vrot.lane.b32.xlu0 %v2284, 16
      %v2493 = vpop.permute.xlu0 %2492
      %2494 = vrot.lane.b32.xlu0 %v2285, 16
      %v2495 = vpop.permute.xlu0 %2494
      %2496 = vrot.lane.b32.xlu0 %v2286, 16
      %v2497 = vpop.permute.xlu0 %2496
      %2498 = vrot.lane.b32.xlu0 %v2287, 16
      %v2499 = vpop.permute.xlu0 %2498
      %2500 = vrot.lane.b32.xlu0 %v2288, 16
      %v2501 = vpop.permute.xlu0 %2500
      %2502 = vrot.lane.b32.xlu0 %v2289, 16
      %v2503 = vpop.permute.xlu0 %2502
      %2504 = vrot.lane.b32.xlu0 %v2290, 16
      %v2505 = vpop.permute.xlu0 %2504
      %2506 = vrot.lane.b32.xlu0 %v2291, 16
      %v2507 = vpop.permute.xlu0 %2506
      %2508 = vrot.lane.b32.xlu0 %v2292, 16
      %v2509 = vpop.permute.xlu0 %2508
      %2510 = vrot.lane.b32.xlu0 %v2293, 16
      %v2511 = vpop.permute.xlu0 %2510
      %2512 = vrot.lane.b32.xlu0 %v2294, 16
      %v2513 = vpop.permute.xlu0 %2512
      %2514 = vrot.lane.b32.xlu0 %v2295, 16
      %v2515 = vpop.permute.xlu0 %2514
      %2516 = vrot.lane.b32.xlu0 %v2296, 16
      %v2517 = vpop.permute.xlu0 %2516
      %2518 = vrot.lane.b32.xlu0 %v2297, 16
      %v2519 = vpop.permute.xlu0 %2518
      %2520 = vrot.lane.b32.xlu0 %v2298, 16
      %v2521 = vpop.permute.xlu0 %2520
      %2522 = vrot.lane.b32.xlu0 %v2299, 16
      %v2523 = vpop.permute.xlu0 %2522
      %v2556 = vsel %vm1568, %v2172, %v2333
      %v2557 = vsel %vm1568, %v2173, %v2335
      %v2558 = vsel %vm1568, %v2174, %v2337
      %v2559 = vsel %vm1568, %v2175, %v2339
      %v2560 = vsel %vm1568, %v2176, %v2341
      %v2561 = vsel %vm1568, %v2177, %v2343
      %v2562 = vsel %vm1568, %v2178, %v2345
      %v2563 = vsel %vm1568, %v2179, %v2347
      %v2564 = vsel %vm1568, %v2180, %v2349
      %v2565 = vsel %vm1568, %v2181, %v2351
      %v2566 = vsel %vm1568, %v2182, %v2353
      %v2567 = vsel %vm1568, %v2183, %v2355
      %v2568 = vsel %vm1568, %v2184, %v2357
      %v2569 = vsel %vm1568, %v2185, %v2359
      %v2570 = vsel %vm1568, %v2186, %v2361
      %v2571 = vsel %vm1568, %v2187, %v2363
      %v2572 = vsel %vm1568, %v2188, %v2365
      %v2573 = vsel %vm1568, %v2189, %v2367
      %v2574 = vsel %vm1568, %v2190, %v2369
      %v2575 = vsel %vm1568, %v2191, %v2371
      %v2576 = vsel %vm1568, %v2192, %v2373
      %v2577 = vsel %vm1568, %v2193, %v2375
      %v2578 = vsel %vm1568, %v2194, %v2377
      %v2579 = vsel %vm1568, %v2195, %v2379
      %v2580 = vsel %vm1568, %v2196, %v2381
      %v2581 = vsel %vm1568, %v2197, %v2383
      %v2582 = vsel %vm1568, %v2198, %v2385
      %v2583 = vsel %vm1568, %v2199, %v2387
      %v2584 = vsel %vm1568, %v2200, %v2389
      %v2585 = vsel %vm1568, %v2201, %v2391
      %v2586 = vsel %vm1568, %v2202, %v2393
      %v2587 = vsel %vm1568, %v2203, %v2395
      %vm2588 = vcmask 130048
      %v2589 = vsel %vm2588, %v2556, %v2461
      %v2590 = vsel %vm2588, %v2557, %v2463
      %v2591 = vsel %vm2588, %v2558, %v2465
      %v2592 = vsel %vm2588, %v2559, %v2467
      %v2593 = vsel %vm2588, %v2560, %v2469
      %v2594 = vsel %vm2588, %v2561, %v2471
      %v2595 = vsel %vm2588, %v2562, %v2473
      %v2596 = vsel %vm2588, %v2563, %v2475
      %v2597 = vsel %vm2588, %v2564, %v2477
      %v2598 = vsel %vm2588, %v2565, %v2479
      %v2599 = vsel %vm2588, %v2566, %v2481
      %v2600 = vsel %vm2588, %v2567, %v2483
      %v2601 = vsel %vm2588, %v2568, %v2485
      %v2602 = vsel %vm2588, %v2569, %v2487
      %v2603 = vsel %vm2588, %v2570, %v2489
      %v2604 = vsel %vm2588, %v2571, %v2491
      %v2605 = vsel %vm2588, %v2572, %v2493
      %v2606 = vsel %vm2588, %v2573, %v2495
      %v2607 = vsel %vm2588, %v2574, %v2497
      %v2608 = vsel %vm2588, %v2575, %v2499
      %v2609 = vsel %vm2588, %v2576, %v2501
      %v2610 = vsel %vm2588, %v2577, %v2503
      %v2611 = vsel %vm2588, %v2578, %v2505
      %v2612 = vsel %vm2588, %v2579, %v2507
      %v2613 = vsel %vm2588, %v2580, %v2509
      %v2614 = vsel %vm2588, %v2581, %v2511
      %v2615 = vsel %vm2588, %v2582, %v2513
      %v2616 = vsel %vm2588, %v2583, %v2515
      %v2617 = vsel %vm2588, %v2584, %v2517
      %v2618 = vsel %vm2588, %v2585, %v2519
      %v2619 = vsel %vm2588, %v2586, %v2521
      %v2620 = vsel %vm2588, %v2587, %v2523
      %v2621 = vpack.c.bf16 %v2590, %v2589
      %v2622 = vpack.c.bf16 %v2592, %v2591
      %v2623 = vpack.c.bf16 %v2594, %v2593
      %v2624 = vpack.c.bf16 %v2596, %v2595
      %v2625 = vpack.c.bf16 %v2598, %v2597
      %v2626 = vpack.c.bf16 %v2600, %v2599
      %v2627 = vpack.c.bf16 %v2602, %v2601
      %v2628 = vpack.c.bf16 %v2604, %v2603
      %v2629 = vpack.c.bf16 %v2606, %v2605
      %v2630 = vpack.c.bf16 %v2608, %v2607
      %v2631 = vpack.c.bf16 %v2610, %v2609
      %v2632 = vpack.c.bf16 %v2612, %v2611
      %v2633 = vpack.c.bf16 %v2614, %v2613
      %v2634 = vpack.c.bf16 %v2616, %v2615
      %v2635 = vpack.c.bf16 %v2618, %v2617
      %v2636 = vpack.c.bf16 %v2620, %v2619
      %2653 = vrot.lane.b32.xlu0 %v2621, 24
      %v2654 = vpop.permute.xlu0 %2653
      %2655 = vrot.lane.b32.xlu0 %v2622, 24
      %v2656 = vpop.permute.xlu0 %2655
      %2657 = vrot.lane.b32.xlu0 %v2623, 24
      %v2658 = vpop.permute.xlu0 %2657
      %2659 = vrot.lane.b32.xlu0 %v2624, 24
      %v2660 = vpop.permute.xlu0 %2659
      %2661 = vrot.lane.b32.xlu0 %v2625, 24
      %v2662 = vpop.permute.xlu0 %2661
      %2663 = vrot.lane.b32.xlu0 %v2626, 24
      %v2664 = vpop.permute.xlu0 %2663
      %2665 = vrot.lane.b32.xlu0 %v2627, 24
      %v2666 = vpop.permute.xlu0 %2665
      %2667 = vrot.lane.b32.xlu0 %v2628, 24
      %v2668 = vpop.permute.xlu0 %2667
      %2669 = vrot.lane.b32.xlu0 %v2629, 24
      %v2670 = vpop.permute.xlu0 %2669
      %2671 = vrot.lane.b32.xlu0 %v2630, 24
      %v2672 = vpop.permute.xlu0 %2671
      %2673 = vrot.lane.b32.xlu0 %v2631, 24
      %v2674 = vpop.permute.xlu0 %2673
      %2675 = vrot.lane.b32.xlu0 %v2632, 24
      %v2676 = vpop.permute.xlu0 %2675
      %2677 = vrot.lane.b32.xlu0 %v2633, 24
      %v2678 = vpop.permute.xlu0 %2677
      %2679 = vrot.lane.b32.xlu0 %v2634, 24
      %v2680 = vpop.permute.xlu0 %2679
      %2681 = vrot.lane.b32.xlu0 %v2635, 24
      %v2682 = vpop.permute.xlu0 %2681
      %2683 = vrot.lane.b32.xlu0 %v2636, 24
      %v2684 = vpop.permute.xlu0 %2683
      %2685 = vrot.lane.b32.xlu0 %v2622, 48
      %v2686 = vpop.permute.xlu0 %2685
      %2687 = vrot.lane.b32.xlu0 %v2623, 48
      %v2688 = vpop.permute.xlu0 %2687
      %2689 = vrot.lane.b32.xlu0 %v2624, 48
      %v2690 = vpop.permute.xlu0 %2689
      %2691 = vrot.lane.b32.xlu0 %v2625, 48
      %v2692 = vpop.permute.xlu0 %2691
      %2693 = vrot.lane.b32.xlu0 %v2626, 48
      %v2694 = vpop.permute.xlu0 %2693
      %2695 = vrot.lane.b32.xlu0 %v2627, 48
      %v2696 = vpop.permute.xlu0 %2695
      %2697 = vrot.lane.b32.xlu0 %v2628, 48
      %v2698 = vpop.permute.xlu0 %2697
      %2699 = vrot.lane.b32.xlu0 %v2629, 48
      %v2700 = vpop.permute.xlu0 %2699
      %2701 = vrot.lane.b32.xlu0 %v2630, 48
      %v2702 = vpop.permute.xlu0 %2701
      %2703 = vrot.lane.b32.xlu0 %v2631, 48
      %v2704 = vpop.permute.xlu0 %2703
      %2705 = vrot.lane.b32.xlu0 %v2632, 48
      %v2706 = vpop.permute.xlu0 %2705
      %2707 = vrot.lane.b32.xlu0 %v2633, 48
      %v2708 = vpop.permute.xlu0 %2707
      %2709 = vrot.lane.b32.xlu0 %v2634, 48
      %v2710 = vpop.permute.xlu0 %2709
      %2711 = vrot.lane.b32.xlu0 %v2635, 48
      %v2712 = vpop.permute.xlu0 %2711
      %2713 = vrot.lane.b32.xlu0 %v2636, 48
      %v2714 = vpop.permute.xlu0 %2713
      %2715 = vrot.lane.b32.xlu0 0, 48
      %v2716 = vpop.permute.xlu0 %2715
      %v2718 = vsel %vm1747, 0, %v2654
      %v2721 = vsel %vm1747, %v2621, %v2656
      %v2724 = vsel %vm1747, %v2622, %v2658
      %v2727 = vsel %vm1747, %v2623, %v2660
      %v2730 = vsel %vm1747, %v2624, %v2662
      %v2733 = vsel %vm1747, %v2625, %v2664
      %v2736 = vsel %vm1747, %v2626, %v2666
      %v2739 = vsel %vm1747, %v2627, %v2668
      %v2742 = vsel %vm1747, %v2628, %v2670
      %v2745 = vsel %vm1747, %v2629, %v2672
      %v2748 = vsel %vm1747, %v2630, %v2674
      %v2751 = vsel %vm1747, %v2631, %v2676
      %v2754 = vsel %vm1747, %v2632, %v2678
      %v2757 = vsel %vm1747, %v2633, %v2680
      %v2760 = vsel %vm1747, %v2634, %v2682
      %v2763 = vsel %vm1747, %v2635, %v2684
      %vm2764 = vcmask 392192
      %v2766 = vsel %vm2764, %v2718, %v2686
      %v2768 = vsel %vm2764, %v2721, %v2688
      %v2770 = vsel %vm2764, %v2724, %v2690
      %v2772 = vsel %vm2764, %v2727, %v2692
      %v2774 = vsel %vm2764, %v2730, %v2694
      %v2776 = vsel %vm2764, %v2733, %v2696
      %v2778 = vsel %vm2764, %v2736, %v2698
      %v2780 = vsel %vm2764, %v2739, %v2700
      %v2782 = vsel %vm2764, %v2742, %v2702
      %v2784 = vsel %vm2764, %v2745, %v2704
      %v2786 = vsel %vm2764, %v2748, %v2706
      %v2788 = vsel %vm2764, %v2751, %v2708
      %v2790 = vsel %vm2764, %v2754, %v2710
      %v2792 = vsel %vm2764, %v2757, %v2712
      %v2794 = vsel %vm2764, %v2760, %v2714
      %v2796 = vsel %vm2764, %v2763, %v2716
      %v2797 = vld [vmem:[%s6] sm:$0xf]
      %v2798 = vld [vmem:[%s6 + $0x4] sm:$0xf]
      %v2799 = vld [vmem:[%s6 + $0x8] sm:$0xf]
      %v2800 = vld [vmem:[%s6 + $0xc] sm:$0xf]
      %v2801 = vld [vmem:[%s6 + $0x10] sm:$0xf]
      %v2802 = vld [vmem:[%s6 + $0x14] sm:$0xf]
      %v2803 = vld [vmem:[%s6 + $0x18] sm:$0xf]
      %v2804 = vld [vmem:[%s6 + $0x1c] sm:$0xf]
      %v2805 = vld [vmem:[%s6 + $0x20] sm:$0xf]
      %v2806 = vpack.c.bf16 %v335, %v334
      %v2807 = vpack.c.bf16 %v337, %v336
      %v2808 = vpack.c.bf16 %v339, %v338
      %v2809 = vpack.c.bf16 %v341, %v340
      %v2810 = vpack.c.bf16 %v343, %v342
      %v2811 = vpack.c.bf16 %v345, %v344
      %v2812 = vpack.c.bf16 %v347, %v346
      %v2813 = vpack.c.bf16 %v349, %v348
      %v2814 = vpack.c.bf16 %v351, %v350
      %v2815 = vpack.c.bf16 %v353, %v352
      %v2816 = vpack.c.bf16 %v355, %v354
      %v2817 = vpack.c.bf16 %v357, %v356
      %v2818 = vpack.c.bf16 %v359, %v358
      %v2819 = vpack.c.bf16 %v361, %v360
      %v2820 = vpack.c.bf16 %v363, %v362
      %v2821 = vpack.c.bf16 %v365, %v364
      %v2822 = vld [vmem:[%s8] sm:$0x3]
      %v2824 = vsel %vm1535, %v2806, 0
      %v2827 = vsel %vm1535, %v2807, 0
      %v2830 = vsel %vm1535, %v2808, 0
      %v2833 = vsel %vm1535, %v2809, 0
      %v2836 = vsel %vm1535, %v2810, 0
      %v2839 = vsel %vm1535, %v2811, 0
      %v2842 = vsel %vm1535, %v2812, 0
      %v2845 = vsel %vm1535, %v2813, 0
      %v2848 = vsel %vm1535, %v2814, 0
      %v2851 = vsel %vm1535, %v2815, 0
      %v2854 = vsel %vm1535, %v2816, 0
      %v2857 = vsel %vm1535, %v2817, 0
      %v2860 = vsel %vm1535, %v2818, 0
      %v2863 = vsel %vm1535, %v2819, 0
      %v2866 = vsel %vm1535, %v2820, 0
      %v2869 = vsel %vm1535, %v2821, 0
      %v2872 = vsel %vm1833, %v2822, 0
      %2874 = vmatprep.subr.bf16.mxu0 0
      %2875 = vmatpush1.bf16.msra.mxu0 %v2872
      %2876 = vmatprep.subr.bf16.mxu0 0
      %2877 = vmatpush1.bf16.msra.mxu0 0
      %2878 = vmatprep.subr.bf16.mxu0 0
      %2879 = vmatpush1.bf16.msra.mxu0 0
      %2880 = vmatprep.subr.bf16.mxu0 0
      %2881 = vmatpush1.bf16.msra.mxu0 0
      %2882 = vmatprep.subr.bf16.mxu0 0
      %2883 = vmatpush1.bf16.msra.mxu0 0
      %2884 = vmatprep.subr.bf16.mxu0 0
      %2885 = vmatpush1.bf16.msra.mxu0 0
      %2886 = vmatprep.subr.bf16.mxu0 0
      %2887 = vmatpush1.bf16.msra.mxu0 0
      %2888 = vmatprep.subr.bf16.mxu0 0
      %2889 = vmatpush1.bf16.msra.mxu0 0
      %2890 = vmatprep.subr.bf16.mxu0 0
      %2891 = vmatpush1.bf16.msra.mxu0 0
      %2892 = vmatprep.subr.bf16.mxu0 0
      %2893 = vmatpush1.bf16.msra.mxu0 0
      %2894 = vmatprep.subr.bf16.mxu0 0
      %2895 = vmatpush1.bf16.msra.mxu0 0
      %2896 = vmatprep.subr.bf16.mxu0 0
      %2897 = vmatpush1.bf16.msra.mxu0 0
      %2898 = vmatprep.subr.bf16.mxu0 0
      %2899 = vmatpush1.bf16.msra.mxu0 0
      %2900 = vmatprep.subr.bf16.mxu0 0
      %2901 = vmatpush1.bf16.msra.mxu0 0
      %2902 = vmatprep.subr.bf16.mxu0 0
      %2903 = vmatpush1.bf16.msra.mxu0 0
      %2904 = vmatprep.subr.bf16.mxu0 0
      %2905 = vmatpush1.bf16.msra.mxu0 0
      %2906 = vmatprep.mubr.bf16.mxu0 0
      %2907 = vmatmul.mubr.bf16.gmra.mrb[0].mxu0 %v2824
      %v2908 = vpop.f32.mrb[0].mxu0
      %v2909 = vadd.f32 0.0, %v2908
      %v2910 = vpop.f32.mrb[0].mxu0
      %v2911 = vpop.f32.mrb[0].mxu0
      %v2912 = vadd.f32 0.0, %v2911
      %v2913 = vpop.f32.mrb[0].mxu0
      %2914 = vmatprep.mubr.bf16.mxu0 0
      %2915 = vmatmul.mubr.bf16.gmra.mrb[0].mxu0 %v2827
      %v2916 = vpop.f32.mrb[0].mxu0
      %v2917 = vadd.f32 0.0, %v2916
      %v2918 = vpop.f32.mrb[0].mxu0
      %v2919 = vpop.f32.mrb[0].mxu0
      %v2920 = vadd.f32 0.0, %v2919
      %v2921 = vpop.f32.mrb[0].mxu0
      %2922 = vmatprep.mubr.bf16.mxu0 0
      %2923 = vmatmul.mubr.bf16.gmra.mrb[0].mxu0 %v2830
      %v2924 = vpop.f32.mrb[0].mxu0
      %v2925 = vadd.f32 0.0, %v2924
      %v2926 = vpop.f32.mrb[0].mxu0
      %v2927 = vpop.f32.mrb[0].mxu0
      %v2928 = vadd.f32 0.0, %v2927
      %v2929 = vpop.f32.mrb[0].mxu0
      %2930 = vmatprep.mubr.bf16.mxu0 0
      %2931 = vmatmul.mubr.bf16.gmra.mrb[0].mxu0 %v2833
      %v2932 = vpop.f32.mrb[0].mxu0
      %v2933 = vadd.f32 0.0, %v2932
      %v2934 = vpop.f32.mrb[0].mxu0
      %v2935 = vpop.f32.mrb[0].mxu0
      %v2936 = vadd.f32 0.0, %v2935
      %v2937 = vpop.f32.mrb[0].mxu0
      %2938 = vmatprep.mubr.bf16.mxu0 0
      %2939 = vmatmul.mubr.bf16.gmra.mrb[0].mxu0 %v2836
      %v2940 = vpop.f32.mrb[0].mxu0
      %v2941 = vadd.f32 0.0, %v2940
      %v2942 = vpop.f32.mrb[0].mxu0
      %v2943 = vpop.f32.mrb[0].mxu0
      %v2944 = vadd.f32 0.0, %v2943
      %v2945 = vpop.f32.mrb[0].mxu0
      %2946 = vmatprep.mubr.bf16.mxu0 0
      %2947 = vmatmul.mubr.bf16.gmra.mrb[0].mxu0 %v2839
      %v2948 = vpop.f32.mrb[0].mxu0
      %v2949 = vadd.f32 0.0, %v2948
      %v2950 = vpop.f32.mrb[0].mxu0
      %v2951 = vpop.f32.mrb[0].mxu0
      %v2952 = vadd.f32 0.0, %v2951
      %v2953 = vpop.f32.mrb[0].mxu0
      %2954 = vmatprep.mubr.bf16.mxu0 0
      %2955 = vmatmul.mubr.bf16.gmra.mrb[0].mxu0 %v2842
      %v2956 = vpop.f32.mrb[0].mxu0
      %v2957 = vadd.f32 0.0, %v2956
      %v2958 = vpop.f32.mrb[0].mxu0
      %v2959 = vpop.f32.mrb[0].mxu0
      %v2960 = vadd.f32 0.0, %v2959
      %v2961 = vpop.f32.mrb[0].mxu0
      %2962 = vmatprep.mubr.bf16.mxu0 0
      %2963 = vmatmul.mubr.bf16.gmra.mrb[0].mxu0 %v2845
      %v2964 = vpop.f32.mrb[0].mxu0
      %v2965 = vadd.f32 0.0, %v2964
      %v2966 = vpop.f32.mrb[0].mxu0
      %v2967 = vpop.f32.mrb[0].mxu0
      %v2968 = vadd.f32 0.0, %v2967
      %v2969 = vpop.f32.mrb[0].mxu0
      %2970 = vmatprep.mubr.bf16.mxu0 0
      %2971 = vmatmul.mubr.bf16.gmra.mrb[0].mxu0 %v2848
      %v2972 = vpop.f32.mrb[0].mxu0
      %v2973 = vadd.f32 0.0, %v2972
      %v2974 = vpop.f32.mrb[0].mxu0
      %v2975 = vpop.f32.mrb[0].mxu0
      %v2976 = vadd.f32 0.0, %v2975
      %v2977 = vpop.f32.mrb[0].mxu0
      %2978 = vmatprep.mubr.bf16.mxu0 0
      %2979 = vmatmul.mubr.bf16.gmra.mrb[0].mxu0 %v2851
      %v2980 = vpop.f32.mrb[0].mxu0
      %v2981 = vadd.f32 0.0, %v2980
      %v2982 = vpop.f32.mrb[0].mxu0
      %v2983 = vpop.f32.mrb[0].mxu0
      %v2984 = vadd.f32 0.0, %v2983
      %v2985 = vpop.f32.mrb[0].mxu0
      %2986 = vmatprep.mubr.bf16.mxu0 0
      %2987 = vmatmul.mubr.bf16.gmra.mrb[0].mxu0 %v2854
      %v2988 = vpop.f32.mrb[0].mxu0
      %v2989 = vadd.f32 0.0, %v2988
      %v2990 = vpop.f32.mrb[0].mxu0
      %v2991 = vpop.f32.mrb[0].mxu0
      %v2992 = vadd.f32 0.0, %v2991
      %v2993 = vpop.f32.mrb[0].mxu0
      %2994 = vmatprep.mubr.bf16.mxu0 0
      %2995 = vmatmul.mubr.bf16.gmra.mrb[0].mxu0 %v2857
      %v2996 = vpop.f32.mrb[0].mxu0
      %v2997 = vadd.f32 0.0, %v2996
      %v2998 = vpop.f32.mrb[0].mxu0
      %v2999 = vpop.f32.mrb[0].mxu0
      %v3000 = vadd.f32 0.0, %v2999
      %v3001 = vpop.f32.mrb[0].mxu0
      %3002 = vmatprep.mubr.bf16.mxu0 0
      %3003 = vmatmul.mubr.bf16.gmra.mrb[0].mxu0 %v2860
      %v3004 = vpop.f32.mrb[0].mxu0
      %v3005 = vadd.f32 0.0, %v3004
      %v3006 = vpop.f32.mrb[0].mxu0
      %v3007 = vpop.f32.mrb[0].mxu0
      %v3008 = vadd.f32 0.0, %v3007
      %v3009 = vpop.f32.mrb[0].mxu0
      %3010 = vmatprep.mubr.bf16.mxu0 0
      %3011 = vmatmul.mubr.bf16.gmra.mrb[0].mxu0 %v2863
      %v3012 = vpop.f32.mrb[0].mxu0
      %v3013 = vadd.f32 0.0, %v3012
      %v3014 = vpop.f32.mrb[0].mxu0
      %v3015 = vpop.f32.mrb[0].mxu0
      %v3016 = vadd.f32 0.0, %v3015
      %v3017 = vpop.f32.mrb[0].mxu0
      %3018 = vmatprep.mubr.bf16.mxu0 0
      %3019 = vmatmul.mubr.bf16.gmra.mrb[0].mxu0 %v2866
      %v3020 = vpop.f32.mrb[0].mxu0
      %v3021 = vadd.f32 0.0, %v3020
      %v3022 = vpop.f32.mrb[0].mxu0
      %v3023 = vpop.f32.mrb[0].mxu0
      %v3024 = vadd.f32 0.0, %v3023
      %v3025 = vpop.f32.mrb[0].mxu0
      %3026 = vmatprep.mubr.bf16.mxu0 0
      %3027 = vmatmul.mubr.bf16.gmra.mrb[0].mxu0 %v2869
      %v3028 = vpop.f32.mrb[0].mxu0
      %v3029 = vadd.f32 0.0, %v3028
      %v3030 = vpop.f32.mrb[0].mxu0
      %v3031 = vpop.f32.mrb[0].mxu0
      %v3032 = vadd.f32 0.0, %v3031
      %v3033 = vpop.f32.mrb[0].mxu0
      %3034 = vdwg.mxu0
      %v3044 = vunpack.c.l.b16 %v2797
      %v3045 = vunpack.c.l.b16 %v2798
      %v3046 = vunpack.c.l.b16 %v2799
      %v3047 = vunpack.c.l.b16 %v2800
      %v3048 = vunpack.c.l.b16 %v2801
      %v3049 = vunpack.c.l.b16 %v2802
      %v3050 = vunpack.c.l.b16 %v2803
      %v3051 = vunpack.c.l.b16 %v2804
      %v3052 = vunpack.c.l.b16 %v2805
      %v3053 = vpack.c.b16 %v3045, %v3044
      %v3054 = vpack.c.b16 %v3047, %v3046
      %v3055 = vpack.c.b16 %v3049, %v3048
      %v3056 = vpack.c.b16 %v3051, %v3050
      %v3057 = vpack.c.b16 %v3052, %v3052
      %vm3062 = vcmask 588800
      %v3063 = vsel %vm3062, %v2766, 0
      %v3065 = vsel %vm3062, %v2768, 0
      %v3067 = vsel %vm3062, %v2770, 0
      %v3069 = vsel %vm3062, %v2772, 0
      %v3071 = vsel %vm3062, %v2774, 0
      %v3073 = vsel %vm3062, %v2776, 0
      %v3075 = vsel %vm3062, %v2778, 0
      %v3077 = vsel %vm3062, %v2780, 0
      %v3079 = vsel %vm3062, %v2782, 0
      %v3081 = vsel %vm3062, %v2784, 0
      %v3083 = vsel %vm3062, %v2786, 0
      %v3085 = vsel %vm3062, %v2788, 0
      %v3087 = vsel %vm3062, %v2790, 0
      %v3089 = vsel %vm3062, %v2792, 0
      %v3091 = vsel %vm3062, %v2794, 0
      %v3093 = vsel %vm3062, %v2796, 0
      %vm3095 = vcmask 1043456
      %v3097 = vsel %vm3095, %v3057, 0
      %3099 = vmatprep.subr.bf16.mxu0 0
      %3100 = vmatpush1.bf16.msra.mxu0 %v3053
      %3101 = vmatprep.subr.bf16.mxu0 0
      %3102 = vmatpush1.bf16.msra.mxu0 %v3054
      %3103 = vmatprep.subr.bf16.mxu0 0
      %3104 = vmatpush1.bf16.msra.mxu0 %v3055
      %3105 = vmatprep.subr.bf16.mxu0 0
      %3106 = vmatpush1.bf16.msra.mxu0 %v3056
      %3107 = vmatprep.subr.bf16.mxu0 0
      %3108 = vmatpush1.bf16.msra.mxu0 %v3097
      %3109 = vmatprep.subr.bf16.mxu0 0
      %3110 = vmatpush1.bf16.msra.mxu0 0
      %3111 = vmatprep.subr.bf16.mxu0 0
      %3112 = vmatpush1.bf16.msra.mxu0 0
      %3113 = vmatprep.subr.bf16.mxu0 0
      %3114 = vmatpush1.bf16.msra.mxu0 0
      %3115 = vmatprep.subr.bf16.mxu0 0
      %3116 = vmatpush1.bf16.msra.mxu0 0
      %3117 = vmatprep.subr.bf16.mxu0 0
      %3118 = vmatpush1.bf16.msra.mxu0 0
      %3119 = vmatprep.subr.bf16.mxu0 0
      %3120 = vmatpush1.bf16.msra.mxu0 0
      %3121 = vmatprep.subr.bf16.mxu0 0
      %3122 = vmatpush1.bf16.msra.mxu0 0
      %3123 = vmatprep.subr.bf16.mxu0 0
      %3124 = vmatpush1.bf16.msra.mxu0 0
      %3125 = vmatprep.subr.bf16.mxu0 0
      %3126 = vmatpush1.bf16.msra.mxu0 0
      %3127 = vmatprep.subr.bf16.mxu0 0
      %3128 = vmatpush1.bf16.msra.mxu0 0
      %3129 = vmatprep.subr.bf16.mxu0 0
      %3130 = vmatpush1.bf16.msra.mxu0 0
      %3131 = vmatprep.mubr.bf16.mxu0 0
      %3132 = vmatmul.mubr.bf16.gmra.mrb[0].mxu0 %v3063
      %v3133 = vpop.f32.mrb[0].mxu0
      %v3134 = vadd.f32 %v2909, %v3133
      %v3135 = vpop.f32.mrb[0].mxu0
      %v3136 = vpop.f32.mrb[0].mxu0
      %v3137 = vadd.f32 %v2912, %v3136
      %v3138 = vpop.f32.mrb[0].mxu0
      %3139 = vmatprep.mubr.bf16.mxu0 0
      %3140 = vmatmul.mubr.bf16.gmra.mrb[0].mxu0 %v3065
      %v3141 = vpop.f32.mrb[0].mxu0
      %v3142 = vadd.f32 %v2917, %v3141
      %v3143 = vpop.f32.mrb[0].mxu0
      %v3144 = vpop.f32.mrb[0].mxu0
      %v3145 = vadd.f32 %v2920, %v3144
      %v3146 = vpop.f32.mrb[0].mxu0
      %3147 = vmatprep.mubr.bf16.mxu0 0
      %3148 = vmatmul.mubr.bf16.gmra.mrb[0].mxu0 %v3067
      %v3149 = vpop.f32.mrb[0].mxu0
      %v3150 = vadd.f32 %v2925, %v3149
      %v3151 = vpop.f32.mrb[0].mxu0
      %v3152 = vpop.f32.mrb[0].mxu0
      %v3153 = vadd.f32 %v2928, %v3152
      %v3154 = vpop.f32.mrb[0].mxu0
      %3155 = vmatprep.mubr.bf16.mxu0 0
      %3156 = vmatmul.mubr.bf16.gmra.mrb[0].mxu0 %v3069
      %v3157 = vpop.f32.mrb[0].mxu0
      %v3158 = vadd.f32 %v2933, %v3157
      %v3159 = vpop.f32.mrb[0].mxu0
      %v3160 = vpop.f32.mrb[0].mxu0
      %v3161 = vadd.f32 %v2936, %v3160
      %v3162 = vpop.f32.mrb[0].mxu0
      %3163 = vmatprep.mubr.bf16.mxu0 0
      %3164 = vmatmul.mubr.bf16.gmra.mrb[0].mxu0 %v3071
      %v3165 = vpop.f32.mrb[0].mxu0
      %v3166 = vadd.f32 %v2941, %v3165
      %v3167 = vpop.f32.mrb[0].mxu0
      %v3168 = vpop.f32.mrb[0].mxu0
      %v3169 = vadd.f32 %v2944, %v3168
      %v3170 = vpop.f32.mrb[0].mxu0
      %3171 = vmatprep.mubr.bf16.mxu0 0
      %3172 = vmatmul.mubr.bf16.gmra.mrb[0].mxu0 %v3073
      %v3173 = vpop.f32.mrb[0].mxu0
      %v3174 = vadd.f32 %v2949, %v3173
      %v3175 = vpop.f32.mrb[0].mxu0
      %v3176 = vpop.f32.mrb[0].mxu0
      %v3177 = vadd.f32 %v2952, %v3176
      %v3178 = vpop.f32.mrb[0].mxu0
      %3179 = vmatprep.mubr.bf16.mxu0 0
      %3180 = vmatmul.mubr.bf16.gmra.mrb[0].mxu0 %v3075
      %v3181 = vpop.f32.mrb[0].mxu0
      %v3182 = vadd.f32 %v2957, %v3181
      %v3183 = vpop.f32.mrb[0].mxu0
      %v3184 = vpop.f32.mrb[0].mxu0
      %v3185 = vadd.f32 %v2960, %v3184
      %v3186 = vpop.f32.mrb[0].mxu0
      %3187 = vmatprep.mubr.bf16.mxu0 0
      %3188 = vmatmul.mubr.bf16.gmra.mrb[0].mxu0 %v3077
      %v3189 = vpop.f32.mrb[0].mxu0
      %v3190 = vadd.f32 %v2965, %v3189
      %v3191 = vpop.f32.mrb[0].mxu0
      %v3192 = vpop.f32.mrb[0].mxu0
      %v3193 = vadd.f32 %v2968, %v3192
      %v3194 = vpop.f32.mrb[0].mxu0
      %3195 = vmatprep.mubr.bf16.mxu0 0
      %3196 = vmatmul.mubr.bf16.gmra.mrb[0].mxu0 %v3079
      %v3197 = vpop.f32.mrb[0].mxu0
      %v3198 = vadd.f32 %v2973, %v3197
      %v3199 = vpop.f32.mrb[0].mxu0
      %v3200 = vpop.f32.mrb[0].mxu0
      %v3201 = vadd.f32 %v2976, %v3200
      %v3202 = vpop.f32.mrb[0].mxu0
      %3203 = vmatprep.mubr.bf16.mxu0 0
      %3204 = vmatmul.mubr.bf16.gmra.mrb[0].mxu0 %v3081
      %v3205 = vpop.f32.mrb[0].mxu0
      %v3206 = vadd.f32 %v2981, %v3205
      %v3207 = vpop.f32.mrb[0].mxu0
      %v3208 = vpop.f32.mrb[0].mxu0
      %v3209 = vadd.f32 %v2984, %v3208
      %v3210 = vpop.f32.mrb[0].mxu0
      %3211 = vmatprep.mubr.bf16.mxu0 0
      %3212 = vmatmul.mubr.bf16.gmra.mrb[0].mxu0 %v3083
      %v3213 = vpop.f32.mrb[0].mxu0
      %v3214 = vadd.f32 %v2989, %v3213
      %v3215 = vpop.f32.mrb[0].mxu0
      %v3216 = vpop.f32.mrb[0].mxu0
      %v3217 = vadd.f32 %v2992, %v3216
      %v3218 = vpop.f32.mrb[0].mxu0
      %3219 = vmatprep.mubr.bf16.mxu0 0
      %3220 = vmatmul.mubr.bf16.gmra.mrb[0].mxu0 %v3085
      %v3221 = vpop.f32.mrb[0].mxu0
      %v3222 = vadd.f32 %v2997, %v3221
      %v3223 = vpop.f32.mrb[0].mxu0
      %v3224 = vpop.f32.mrb[0].mxu0
      %v3225 = vadd.f32 %v3000, %v3224
      %v3226 = vpop.f32.mrb[0].mxu0
      %3227 = vmatprep.mubr.bf16.mxu0 0
      %3228 = vmatmul.mubr.bf16.gmra.mrb[0].mxu0 %v3087
      %v3229 = vpop.f32.mrb[0].mxu0
      %v3230 = vadd.f32 %v3005, %v3229
      %v3231 = vpop.f32.mrb[0].mxu0
      %v3232 = vpop.f32.mrb[0].mxu0
      %v3233 = vadd.f32 %v3008, %v3232
      %v3234 = vpop.f32.mrb[0].mxu0
      %3235 = vmatprep.mubr.bf16.mxu0 0
      %3236 = vmatmul.mubr.bf16.gmra.mrb[0].mxu0 %v3089
      %v3237 = vpop.f32.mrb[0].mxu0
      %v3238 = vadd.f32 %v3013, %v3237
      %v3239 = vpop.f32.mrb[0].mxu0
      %v3240 = vpop.f32.mrb[0].mxu0
      %v3241 = vadd.f32 %v3016, %v3240
      %v3242 = vpop.f32.mrb[0].mxu0
      %3243 = vmatprep.mubr.bf16.mxu0 0
      %3244 = vmatmul.mubr.bf16.gmra.mrb[0].mxu0 %v3091
      %v3245 = vpop.f32.mrb[0].mxu0
      %v3246 = vadd.f32 %v3021, %v3245
      %v3247 = vpop.f32.mrb[0].mxu0
      %v3248 = vpop.f32.mrb[0].mxu0
      %v3249 = vadd.f32 %v3024, %v3248
      %v3250 = vpop.f32.mrb[0].mxu0
      %3251 = vmatprep.mubr.bf16.mxu0 0
      %3252 = vmatmul.mubr.bf16.gmra.mrb[0].mxu0 %v3093
      %v3253 = vpop.f32.mrb[0].mxu0
      %v3254 = vadd.f32 %v3029, %v3253
      %v3255 = vpop.f32.mrb[0].mxu0
      %v3256 = vpop.f32.mrb[0].mxu0
      %v3257 = vadd.f32 %v3032, %v3256
      %v3258 = vpop.f32.mrb[0].mxu0
      %3259 = vdwg.mxu0
      %v3260 = vld [vmem:[%s7] sm:$0x1]
      %v3262 = vlaneseq
      %v3263 = vshrl.u32 %v3262, 7
      %v3264 = vsub.s32 0, %v3263
      %v3265 = vrot.slane %v3260, %v3264
      %v3267 = vadd.f32 %v3134, %v3265
      %v3268 = vadd.f32 %v3137, %v3265
      %v3269 = vadd.f32 %v3142, %v3265
      %v3270 = vadd.f32 %v3145, %v3265
      %v3271 = vadd.f32 %v3150, %v3265
      %v3272 = vadd.f32 %v3153, %v3265
      %v3273 = vadd.f32 %v3158, %v3265
      %v3274 = vadd.f32 %v3161, %v3265
      %v3275 = vadd.f32 %v3166, %v3265
      %v3276 = vadd.f32 %v3169, %v3265
      %v3277 = vadd.f32 %v3174, %v3265
      %v3278 = vadd.f32 %v3177, %v3265
      %v3279 = vadd.f32 %v3182, %v3265
      %v3280 = vadd.f32 %v3185, %v3265
      %v3281 = vadd.f32 %v3190, %v3265
      %v3282 = vadd.f32 %v3193, %v3265
      %v3283 = vadd.f32 %v3198, %v3265
      %v3284 = vadd.f32 %v3201, %v3265
      %v3285 = vadd.f32 %v3206, %v3265
      %v3286 = vadd.f32 %v3209, %v3265
      %v3287 = vadd.f32 %v3214, %v3265
      %v3288 = vadd.f32 %v3217, %v3265
      %v3289 = vadd.f32 %v3222, %v3265
      %v3290 = vadd.f32 %v3225, %v3265
      %v3291 = vadd.f32 %v3230, %v3265
      %v3292 = vadd.f32 %v3233, %v3265
      %v3293 = vadd.f32 %v3238, %v3265
      %v3294 = vadd.f32 %v3241, %v3265
      %v3295 = vadd.f32 %v3246, %v3265
      %v3296 = vadd.f32 %v3249, %v3265
      %v3297 = vadd.f32 %v3254, %v3265
      %v3298 = vadd.f32 %v3257, %v3265
      %3299 = vst.msk [vmem:[%s332] sm:$0xff] %vm1568, %v3267
      %3300 = vst.msk [vmem:[%s332 + $0x8] sm:$0xff] %vm1568, %v3268
      %3301 = vst.msk [vmem:[%s332 + $0x10] sm:$0xff] %vm1568, %v3269
      %3302 = vst.msk [vmem:[%s332 + $0x18] sm:$0xff] %vm1568, %v3270
      %3303 = vst.msk [vmem:[%s332 + $0x20] sm:$0xff] %vm1568, %v3271
      %3304 = vst.msk [vmem:[%s332 + $0x28] sm:$0xff] %vm1568, %v3272
      %3305 = vst.msk [vmem:[%s332 + $0x30] sm:$0xff] %vm1568, %v3273
      %3306 = vst.msk [vmem:[%s332 + $0x38] sm:$0xff] %vm1568, %v3274
      %3307 = vst.msk [vmem:[%s332 + $0x40] sm:$0xff] %vm1568, %v3275
      %3308 = vst.msk [vmem:[%s332 + $0x48] sm:$0xff] %vm1568, %v3276
      %3309 = vst.msk [vmem:[%s332 + $0x50] sm:$0xff] %vm1568, %v3277
      %3310 = vst.msk [vmem:[%s332 + $0x58] sm:$0xff] %vm1568, %v3278
      %3311 = vst.msk [vmem:[%s332 + $0x60] sm:$0xff] %vm1568, %v3279
      %3312 = vst.msk [vmem:[%s332 + $0x68] sm:$0xff] %vm1568, %v3280
      %3313 = vst.msk [vmem:[%s332 + $0x70] sm:$0xff] %vm1568, %v3281
      %3314 = vst.msk [vmem:[%s332 + $0x78] sm:$0xff] %vm1568, %v3282
      %3315 = vst.msk [vmem:[%s332 + $0x80] sm:$0xff] %vm1568, %v3283
      %3316 = vst.msk [vmem:[%s332 + $0x88] sm:$0xff] %vm1568, %v3284
      %3317 = vst.msk [vmem:[%s332 + $0x90] sm:$0xff] %vm1568, %v3285
      %3318 = vst.msk [vmem:[%s332 + $0x98] sm:$0xff] %vm1568, %v3286
      %3319 = vst.msk [vmem:[%s332 + $0xa0] sm:$0xff] %vm1568, %v3287
      %3320 = vst.msk [vmem:[%s332 + $0xa8] sm:$0xff] %vm1568, %v3288
      %3321 = vst.msk [vmem:[%s332 + $0xb0] sm:$0xff] %vm1568, %v3289
      %3322 = vst.msk [vmem:[%s332 + $0xb8] sm:$0xff] %vm1568, %v3290
      %3323 = vst.msk [vmem:[%s332 + $0xc0] sm:$0xff] %vm1568, %v3291
      %3324 = vst.msk [vmem:[%s332 + $0xc8] sm:$0xff] %vm1568, %v3292
      %3325 = vst.msk [vmem:[%s332 + $0xd0] sm:$0xff] %vm1568, %v3293
      %3326 = vst.msk [vmem:[%s332 + $0xd8] sm:$0xff] %vm1568, %v3294
      %3327 = vst.msk [vmem:[%s332 + $0xe0] sm:$0xff] %vm1568, %v3295
      %3328 = vst.msk [vmem:[%s332 + $0xe8] sm:$0xff] %vm1568, %v3296
      %3329 = vst.msk [vmem:[%s332 + $0xf0] sm:$0xff] %vm1568, %v3297
      %3330 = vst.msk [vmem:[%s332 + $0xf8] sm:$0xff] %vm1568, %v3298
      %p3331 = scmp.lt.s32.totalorder %s20, 1
      %s3332 = scalar_select %p3331, %s20, 1
      %s3333 = smul.addr %s3332, 32
      %s3334 = smul.addr %s3333, 8
      %s3335 = scalar_lea.vmem %s9, %s3334
      // Predicated region
      $region57: #{tpu_custom_call.1} parent=55 // pred_check
        %p3336 = pneg %p232
      $region58: #{tpu_custom_call.1} parent=55 // pred_check_branch
        %3338 = sbr.rel (%p3336) target = $region60
      $region59: #{tpu_custom_call.1} parent=55 // pred_region
        _
      $region60: #{tpu_custom_call.1} parent=55 // pred_fallthru
        _
    $region56: #{tpu_custom_call.1} parent=5 // pred_fallthru
      _
    %p3339 = scmp.le.s32.totalorder 2, %s15
    // Predicated region
    $region61: #{tpu_custom_call.1} parent=5 // pred_check
      %p3340 = pneg %p3339
    $region62: #{tpu_custom_call.1} parent=5 // pred_check_branch
      %3342 = sbr.rel (%p3340) target = $region64
    $region63: #{tpu_custom_call.1} parent=5 // pred_region
      %s3343 = ssub.s32 %s15, 2
      // Predicated region
      $region65: #{tpu_custom_call.1} parent=63 // pred_check
        %p3344 = pneg %p238
      $region66: #{tpu_custom_call.1} parent=63 // pred_check_branch
        %3346 = sbr.rel (%p3344) target = $region68
      $region67: #{tpu_custom_call.1} parent=63 // pred_region
        %p3347 = scmp.lt.s32.totalorder %s21, 1
        %s3348 = scalar_select %p3347, %s21, 1
        %s3349 = smul.addr %s3348, 32
        %s3350 = smul.addr %s3349, 8
        %s3351 = scalar_lea.vmem %s9, %s3350
      $region68: #{tpu_custom_call.1} parent=63 // pred_fallthru
        _
    $region64: #{tpu_custom_call.1} parent=5 // pred_fallthru
      _
  $region6: #{tpu_custom_call.1} parent=0 // loop_footer
    %s19 = sadd.s32 1, %s15
  $region7: #{tpu_custom_call.1} parent=0 // loop_footer_branch
    %14 = sbr.rel target = $region3
  $region8: #{tpu_custom_call.1} parent=0 // loop_exit
    _

</llo_original>
